<compile_context>
chip_gen: v6e
topology: v6e:2x2x1
jax: 0.10.0
libtpu: 0.0.40
codegen_flags: <defaults>
</compile_context>

<pallas_src>
import math

import jax
import jax.numpy as jnp
from jax.experimental import pallas as pl
from jax.experimental.pallas import tpu as pltpu


def _vmem_budgets():
    """(footprint budget for blocks + temporaries, vmem_limit_bytes)."""
    try:
        phys = int(pltpu.get_tpu_info().vmem_capacity_bytes)
    except Exception:
        phys = 64 * 1024 * 1024          # conservative default: v7x per-core VMEM
    vmem_limit = max(32 * 1024 * 1024, min(phys * 3 // 4, 96 * 1024 * 1024))
    budget = max(8 * 1024 * 1024, min(vmem_limit - 12 * 1024 * 1024,
                                      40 * 1024 * 1024))
    return budget, vmem_limit


def _pick_packing(n_rows, w, max_lanes):
    """Largest g with (g*w) % 128 == 0, g*w <= max_lanes and g | n_rows (else 1)."""
    g_min = 128 // math.gcd(w, 128)
    if g_min * w > max_lanes or n_rows % g_min != 0:
        return 1                          # unpacked fallback (still correct)
    for mult in range(max_lanes // (g_min * w), 0, -1):
        g = g_min * mult
        if n_rows % g == 0:
            return g
    return g_min


def _pick_tile_rows(rp, lanes, itemsize, sub, budget_bytes, override):
    """Rows per block: divisor of rp when possible, else budget-derived (masked)."""
    if override is not None:
        t = int(override)
        if t >= rp:
            return rp
        return max(sub, (t // sub) * sub)
    # footprint ~= 2 inputs x 2 pipeline buffers x block  +  ~6 f32 tile temporaries
    per_row = lanes * (4 * itemsize + 6 * 4)
    t = min(budget_bytes // per_row, 8192, rp)
    if t >= rp:
        return rp                         # single full-extent block
    t = max(sub, (t // sub) * sub)
    cand = t                              # prefer a divisor of rp -> no mask needed
    while cand >= max(sub, t // 2):
        if rp % cand == 0:
            return cand
        cand -= sub
    return t                              # ragged last tile, masked in-kernel


def _make_kernel(g, tile_r, rows_valid, needs_mask, use_seg):
    def body(pred_ref, tgt_ref, seg_ref, loss_ref):
        o = pred_ref[...].astype(jnp.float32)        # (tile_r, L)
        t = tgt_ref[...].astype(jnp.float32)

        # Per-packed-row max (full-lane-density reduce).  Shifting all g
        # W-segments of a packed row by the same max is exactly equivalent to
        # the per-row-max softmax via the log-sum-exp shift identity; it cannot
        # overflow and only assumes values within g consecutive heatmap rows do
        # not span ~88 units (always true for heatmaps / logits).
        m_o = jnp.max(o, axis=-1, keepdims=True)     # (tile_r, 1)
        m_t = jnp.max(t, axis=-1, keepdims=True)
        e_o = jnp.exp(o - m_o)                       # (tile_r, L)
        e_t = jnp.exp(t - m_t)
        d = e_t * (t - o)

        if use_seg:
            # Per-W-segment sums on the (otherwise idle) MXU: (tile_r,L)@(L,g).
            seg = seg_ref[...]
            kw = dict(preferred_element_type=jnp.float32,
                      precision=jax.lax.Precision.HIGHEST)
            se_o = jnp.dot(e_o, seg, **kw)           # (tile_r, g)
            se_t = jnp.dot(e_t, seg, **kw)
            s = jnp.dot(d, seg, **kw)
        else:                                        # unpacked fallback (g == 1)
            se_o = jnp.sum(e_o, axis=-1, keepdims=True)
            se_t = jnp.sum(e_t, axis=-1, keepdims=True)
            s = jnp.sum(d, axis=-1, keepdims=True)

        # KL of original row (segment k of packed row p):
        #   s/se_t + log(se_o/se_t) + (m_o - m_t)
        r_t = 1.0 / se_t
        kl_seg = s * r_t + jnp.log(se_o * r_t)       # (tile_r, g): 1 log, 1 recip
        m_diff = m_o - m_t                           # (tile_r, 1)

        if needs_mask:                               # ragged last tile
            row = jax.lax.broadcasted_iota(jnp.int32, (tile_r, 1), 0)
            valid = pl.program_id(0) * tile_r + row < rows_valid
            kl_seg = jnp.where(valid, kl_seg, 0.0)
            m_diff = jnp.where(valid, m_diff, 0.0)

        total = jnp.sum(kl_seg) + float(g) * jnp.sum(m_diff)
        # Lane-dense (1, 8, 128) slab -> single unmasked store; wrapper reads [:,0,0].
        loss_ref[...] = jnp.broadcast_to(total, (1, 8, 128))

    if use_seg:
        def kernel(pred_ref, tgt_ref, seg_ref, loss_ref):
            body(pred_ref, tgt_ref, seg_ref, loss_ref)
    else:
        def kernel(pred_ref, tgt_ref, loss_ref):
            body(pred_ref, tgt_ref, None, loss_ref)
    return kernel


def joints_kl_loss2(output, target, target_weight=None, *, tile_rows=None,
                    max_pack_lanes=1024, cast_inputs_to_bf16=False):
    """Pallas TPU implementation of JointsKLLoss2.forward.

    Matches F.kl_div(output.softmax(-1).log(), target.softmax(-1),
    reduction='batchmean').  target_weight is accepted for signature parity but
    unused (the reference forward ignores it, as it ignores reduction/epsilon).
    """
    assert output.shape == target.shape and output.ndim == 4
    B, K, H, W = output.shape
    R = B * K * H

    if cast_inputs_to_bf16:   # opt-in: halves HBM traffic on mem-bound parts (v5e)
        output = output.astype(jnp.bfloat16)
        target = target.astype(jnp.bfloat16)

    budget, vmem_limit = _vmem_budgets()

    g = _pick_packing(R, W, int(max_pack_lanes))
    lanes = g * W
    rp = R // g                                      # packed rows
    pred2d = output.reshape(rp, lanes)               # free: rows are contiguous
    tgt2d = target.reshape(rp, lanes)

    itemsize = max(pred2d.dtype.itemsize, tgt2d.dtype.itemsize)
    sub = 8 if itemsize >= 4 else 16                 # bf16 packs 16 rows/sublane grp
    tile_r = _pick_tile_rows(rp, lanes, itemsize, sub, budget, tile_rows)
    num_tiles = int(pl.cdiv(rp, tile_r))
    needs_mask = (num_tiles * tile_r) != rp
    use_seg = g > 1

    kernel = _make_kernel(g, tile_r, rp, needs_mask, use_seg)

    in_specs = [
        pl.BlockSpec((tile_r, lanes), lambda i: (i, 0)),
        pl.BlockSpec((tile_r, lanes), lambda i: (i, 0)),
    ]
    operands = [pred2d, tgt2d]
    if use_seg:
        # 0/1 segment-indicator matrix: column k sums lanes [k*W, (k+1)*W).
        seg = (jnp.arange(lanes, dtype=jnp.int32)[:, None] // W
               == jnp.arange(g, dtype=jnp.int32)[None, :]).astype(jnp.float32)
        in_specs.append(pl.BlockSpec((lanes, g), lambda i: (0, 0)))
        operands.append(seg)

    partials = pl.pallas_call(
        kernel,
        out_shape=jax.ShapeDtypeStruct((num_tiles, 8, 128), jnp.float32),
        grid_spec=pltpu.PrefetchScalarGridSpec(
            num_scalar_prefetch=0,
            grid=(num_tiles,),
            in_specs=in_specs,
            out_specs=pl.BlockSpec((1, 8, 128), lambda i: (i, 0, 0)),
        ),
        compiler_params=pltpu.CompilerParams(
            dimension_semantics=("parallel",),
            vmem_limit_bytes=int(vmem_limit),
        ),
    )(*operands)

    # 'batchmean': sum over all elements divided by the batch size.
    return jnp.sum(partials[:, 0, 0]) / B


def _reference(output, target):
    # Pure-JAX mirror of the PyTorch forward, for a sanity check.
    p = jax.nn.softmax(target.astype(jnp.float32), axis=-1)
    log_q = jnp.log(jax.nn.softmax(output.astype(jnp.float32), axis=-1))
    return jnp.sum(p * (jnp.log(p) - log_q)) / output.shape[0]


if __name__ == "__main__":
    key = jax.random.PRNGKey(0)
    k1, k2, k3, k4, k5, k6 = jax.random.split(key, 6)

    def check(out, tgt, *, rtol, atol, **kw):
        got = jax.block_until_ready(joints_kl_loss2(out, tgt, **kw))
        ref = jax.block_until_ready(_reference(out, tgt))
        assert jnp.allclose(got, ref, rtol=rtol, atol=atol), (got, ref, kw)

    # 1) f32, lane-packed (W=16 -> g=64, L=1024), single full-extent tile.
    B, K, H, W = 2, 4, 16, 16
    out = jax.random.uniform(k1, (B, K, H, W), dtype=jnp.float32)
    tgt = jax.random.uniform(k2, (B, K, H, W), dtype=jnp.float32)
    check(out, tgt, rtol=1e-4, atol=1e-6)

    # 2) Multi-tile path where tile_r divides the packed rows exactly (no mask).
    out2 = jax.random.uniform(k3, (2, 8, 16, 16), dtype=jnp.float32)
    tgt2 = jax.random.uniform(k4, (2, 8, 16, 16), dtype=jnp.float32)
    check(out2, tgt2, rtol=1e-4, atol=1e-6, tile_rows=8, max_pack_lanes=128)

    # 3) Ragged last tile -> in-kernel row mask (rp=20, tile_r=8 -> 3 tiles).
    out3 = jax.random.uniform(k5, (2, 4, 20, 16), dtype=jnp.float32)
    tgt3 = jax.random.uniform(k6, (2, 4, 20, 16), dtype=jnp.float32)
    check(out3, tgt3, rtol=1e-4, atol=1e-6, tile_rows=8, max_pack_lanes=128)

    # 4) bf16 inputs (kernel upcasts per tile; reference sees same rounded values).
    check(out.astype(jnp.bfloat16), tgt.astype(jnp.bfloat16), rtol=1e-4, atol=1e-5)

    # 5) Unpacked fallback (R=15 not a multiple of 8 -> g=1; lane-sparse but correct).
    out5 = jax.random.uniform(k1, (1, 3, 5, 16), dtype=jnp.float32)
    tgt5 = jax.random.uniform(k2, (1, 3, 5, 16), dtype=jnp.float32)
    check(out5, tgt5, rtol=1e-4, atol=1e-6)

    print("KERNEL_OK")
</pallas_src>

<mosaic_0001>
module attributes {stable_mosaic.version = 11 : i64} {
  func.func @kernel(%arg0: i32, %arg1: memref<2x1024xf32, #tpu.memory_space<vmem>>, %arg2: memref<2x1024xf32, #tpu.memory_space<vmem>>, %arg3: memref<1024x64xf32, #tpu.memory_space<vmem>>, %arg4: memref<1x8x128xf32, #tpu.memory_space<vmem>>) attributes {dimension_semantics = [#tpu.dimension_semantics<parallel>], iteration_bounds = array<i64: 1>, scalar_prefetch = 0 : i64, scratch_operands = 0 : i64, tpu.core_type = #tpu.core_type<tc>, window_params = [{transform_indices = @transform_0, window_bounds = array<i64: 2, 1024>}, {transform_indices = @transform_1, window_bounds = array<i64: 2, 1024>}, {pipeline_mode = #tpu.pipeline_mode<synchronous>, transform_indices = @transform_2, window_bounds = array<i64: 1024, 64>}, {transform_indices = @transform_3, window_bounds = array<i64: 1, 8, 128>}]} {
    %c0 = arith.constant 0 : index
    %c0_0 = arith.constant 0 : index
    %0 = vector.load %arg1[%c0, %c0_0] : memref<2x1024xf32, #tpu.memory_space<vmem>>, vector<2x1024xf32>
    %c0_1 = arith.constant 0 : index
    %c0_2 = arith.constant 0 : index
    %1 = vector.load %arg2[%c0_1, %c0_2] : memref<2x1024xf32, #tpu.memory_space<vmem>>, vector<2x1024xf32>
    %cst = arith.constant dense<0xFF800000> : vector<2xf32>
    %2 = vector.multi_reduction <maximumf>, %0, %cst [1] : vector<2x1024xf32> to vector<2xf32>
    %3 = vector.shape_cast %2 : vector<2xf32> to vector<2x1xf32>
    %cst_3 = arith.constant dense<0xFF800000> : vector<2xf32>
    %4 = vector.multi_reduction <maximumf>, %1, %cst_3 [1] : vector<2x1024xf32> to vector<2xf32>
    %5 = vector.shape_cast %4 : vector<2xf32> to vector<2x1xf32>
    %6 = vector.broadcast %3 : vector<2x1xf32> to vector<2x1024xf32>
    %7 = arith.subf %0, %6 : vector<2x1024xf32>
    %8 = math.exp %7 : vector<2x1024xf32>
    %9 = vector.broadcast %5 : vector<2x1xf32> to vector<2x1024xf32>
    %10 = arith.subf %1, %9 : vector<2x1024xf32>
    %11 = math.exp %10 : vector<2x1024xf32>
    %12 = arith.subf %1, %0 : vector<2x1024xf32>
    %13 = arith.mulf %11, %12 : vector<2x1024xf32>
    %c0_4 = arith.constant 0 : index
    %c0_5 = arith.constant 0 : index
    %14 = vector.load %arg3[%c0_4, %c0_5] : memref<1024x64xf32, #tpu.memory_space<vmem>>, vector<1024x64xf32>
    %cst_6 = arith.constant dense<0.000000e+00> : vector<2x64xf32>
    %15 = tpu.matmul %8, %14, %cst_6 {dimension_numbers = #tpu.dot_dimension_numbers<[1], [0], [0], [1], [0, 0, 1, 1], [], []>, precision = #tpu.contract_precision<fp32>} : vector<2x1024xf32>, vector<1024x64xf32>, vector<2x64xf32> -> vector<2x64xf32>
    %cst_7 = arith.constant dense<0.000000e+00> : vector<2x64xf32>
    %16 = tpu.matmul %11, %14, %cst_7 {dimension_numbers = #tpu.dot_dimension_numbers<[1], [0], [0], [1], [0, 0, 1, 1], [], []>, precision = #tpu.contract_precision<fp32>} : vector<2x1024xf32>, vector<1024x64xf32>, vector<2x64xf32> -> vector<2x64xf32>
    %cst_8 = arith.constant dense<0.000000e+00> : vector<2x64xf32>
    %17 = tpu.matmul %13, %14, %cst_8 {dimension_numbers = #tpu.dot_dimension_numbers<[1], [0], [0], [1], [0, 0, 1, 1], [], []>, precision = #tpu.contract_precision<fp32>} : vector<2x1024xf32>, vector<1024x64xf32>, vector<2x64xf32> -> vector<2x64xf32>
    %cst_9 = arith.constant 1.000000e+00 : f32
    %18 = vector.broadcast %cst_9 : f32 to vector<2x64xf32>
    %19 = arith.divf %18, %16 : vector<2x64xf32>
    %20 = arith.mulf %17, %19 : vector<2x64xf32>
    %21 = arith.mulf %15, %19 : vector<2x64xf32>
    %22 = math.log %21 : vector<2x64xf32>
    %23 = arith.addf %20, %22 : vector<2x64xf32>
    %24 = arith.subf %3, %5 : vector<2x1xf32>
    %25 = vector.shape_cast %23 : vector<2x64xf32> to vector<1x2x64xf32>
    %cst_10 = arith.constant dense<0.000000e+00> : vector<1xf32>
    %26 = vector.multi_reduction <add>, %25, %cst_10 [1, 2] : vector<1x2x64xf32> to vector<1xf32>
    %27 = vector.shape_cast %26 : vector<1xf32> to vector<1x1x1xf32>
    %28 = vector.extract %27[0, 0, 0] : f32 from vector<1x1x1xf32>
    %29 = vector.shape_cast %24 : vector<2x1xf32> to vector<1x2x1xf32>
    %cst_11 = arith.constant dense<0.000000e+00> : vector<1xf32>
    %30 = vector.multi_reduction <add>, %29, %cst_11 [1, 2] : vector<1x2x1xf32> to vector<1xf32>
    %31 = vector.shape_cast %30 : vector<1xf32> to vector<1x1x1xf32>
    %32 = vector.extract %31[0, 0, 0] : f32 from vector<1x1x1xf32>
    %cst_12 = arith.constant 6.400000e+01 : f32
    %33 = arith.mulf %cst_12, %32 : f32
    %34 = arith.addf %28, %33 : f32
    %35 = vector.broadcast %34 : f32 to vector<1x8x128xf32>
    %c0_13 = arith.constant 0 : index
    %c0_14 = arith.constant 0 : index
    %c0_15 = arith.constant 0 : index
    %36 = vector.load %arg4[%c0_13, %c0_14, %c0_15] : memref<1x8x128xf32, #tpu.memory_space<vmem>>, vector<1x8x128xf32>
    tpu.vector_store %arg4[%c0_13, %c0_14, %c0_15], %35 {strides = array<i32>} : memref<1x8x128xf32, #tpu.memory_space<vmem>>, vector<1x8x128xf32>,
    return
  }
  func.func @transform_0(%arg0: i32) -> (i32, i32) {
    %c0_i32 = arith.constant 0 : i32
    %c0_i32_0 = arith.constant 0 : i32
    return %arg0, %c0_i32 : i32, i32
  }
  func.func @transform_1(%arg0: i32) -> (i32, i32) {
    %c0_i32 = arith.constant 0 : i32
    %c0_i32_0 = arith.constant 0 : i32
    return %arg0, %c0_i32 : i32, i32
  }
  func.func @transform_2(%arg0: i32) -> (i32, i32) {
    %c0_i32 = arith.constant 0 : i32
    %c0_i32_0 = arith.constant 0 : i32
    %c0_i32_1 = arith.constant 0 : i32
    return %c0_i32, %c0_i32_0 : i32, i32
  }
  func.func @transform_3(%arg0: i32) -> (i32, i32, i32) {
    %c0_i32 = arith.constant 0 : i32
    %c0_i32_0 = arith.constant 0 : i32
    %c0_i32_1 = arith.constant 0 : i32
    return %arg0, %c0_i32, %c0_i32_0 : i32, i32, i32
  }
}

</mosaic_0001>

<llo_original>
// kernel: tpu_custom_call.1
$region0: #{tpu_custom_call.1}
  #allocation0 [shape = 'u32[]', space=smem, size = 0x4, offset = 0x4, fixed_abs, tag = 'smem constant byte address 0x4 - core index']
  #allocation1 [shape = 'u32[144,128]{1,0:T(1,128)}', space=vmem, size = 0x12000, scoped, tag = 'internal scratch']
  %s0 = inlined_call_operand.vmem [shape: f32[2,1024], index: 0, kind: input, shape index: {}]
  %s1 = inlined_call_operand.vmem [shape: f32[2,1024], index: 1, kind: input, shape index: {}]
  %s2 = inlined_call_operand.vmem [shape: f32[1024,64], index: 2, kind: input, shape index: {}]
  %s3 = inlined_call_operand.hbm [shape: f32[1,8,128], index: 3, kind: output, shape index: {}]
  %s4 = sld [smem:[#allocation0]]
  $region22: #{tpu_custom_call.1} parent=0
    _
  %s6 = ssub.s32 1, %s4
  %s7 = scalar_select 0, %s6, %s4
  $region1: #{tpu_custom_call.1} parent=0
    #allocation2 [shape = 'u8[4096]{0}', space=vmem, size = 0x1000, scoped, tag = 'output window, operand 0, single buffered']
    #allocation3 [shape = 's32[1]{0}', space=sflag, size = 0x4, scoped, tag = 'scoped memory for tpu_custom_call.1']
    %8 = vsyncpa [#allocation3], 0
    // Predicated region
    $region2: #{tpu_custom_call.1} parent=1 // pred_check
      _
    $region3: #{tpu_custom_call.1} parent=1 // pred_check_branch
      %10 = sbr.rel (0) target = $region5
    $region4: #{tpu_custom_call.1} parent=1 // pred_region
      _
    $region5: #{tpu_custom_call.1} parent=1 // pred_fallthru
      _
    // Predicated region
    $region6: #{tpu_custom_call.1} parent=1 // pred_check
      _
    $region7: #{tpu_custom_call.1} parent=1 // pred_check_branch
      %12 = sbr.rel (0) target = $region9
    $region8: #{tpu_custom_call.1} parent=1 // pred_region
      _
    $region9: #{tpu_custom_call.1} parent=1 // pred_fallthru
      _
    // Predicated region
    $region10: #{tpu_custom_call.1} parent=1 // pred_check
      _
    $region11: #{tpu_custom_call.1} parent=1 // pred_check_branch
      %14 = sbr.rel (0) target = $region13
    $region12: #{tpu_custom_call.1} parent=1 // pred_region
      _
    $region13: #{tpu_custom_call.1} parent=1 // pred_fallthru
      _
    %v15 = vld [vmem:[%s0] sm:$0xff]
    %v16 = vld [vmem:[%s0 + $0x8] sm:$0xff]
    %v17 = vld [vmem:[%s1] sm:$0xff]
    %v18 = vld [vmem:[%s1 + $0x8] sm:$0xff]
    %v21 = vcombine.high %v15, %v15
    %v23 = vunpack.c.l.s4 1983009808
    %v24 = vunpack.c.0.s8 %v23
    %v25 = vlaneseq
    %v26 = vshrl.u32 %v25, 7
    %v27 = vsub.s32 %v24, %v26
    %v28 = vrot.slane %v15, %v27
    %v30 = vunpack.c.l.s4 1983009808
    %v31 = vunpack.c.0.s8 %v30
    %v32 = vlaneseq
    %v33 = vshrl.u32 %v32, 7
    %v34 = vsub.s32 %v31, %v33
    %v35 = vrot.slane %v21, %v34
    %v36 = vcombine.high %v28, %v28
    %v37 = vcombine.high %v35, %v35
    %v38 = vcombine.high %v16, %v16
    %v40 = vunpack.c.l.s4 1983009808
    %v41 = vunpack.c.0.s8 %v40
    %v42 = vlaneseq
    %v43 = vshrl.u32 %v42, 7
    %v44 = vsub.s32 %v41, %v43
    %v45 = vrot.slane %v16, %v44
    %v47 = vunpack.c.l.s4 1983009808
    %v48 = vunpack.c.0.s8 %v47
    %v49 = vlaneseq
    %v50 = vshrl.u32 %v49, 7
    %v51 = vsub.s32 %v48, %v50
    %v52 = vrot.slane %v38, %v51
    %v53 = vcombine.high %v45, %v45
    %v54 = vcombine.high %v52, %v52
    %vm63 = vcmask 1041408
    %v64 = vsel %vm63, %v28, -inf
    %v65 = vsel %vm63, %v36, -inf
    %v66 = vsel %vm63, %v35, -inf
    %v67 = vsel %vm63, %v37, -inf
    %v68 = vsel %vm63, %v45, -inf
    %v69 = vmax.f32 %v64, %v68
    %v70 = vsel %vm63, %v53, -inf
    %v71 = vmax.f32 %v65, %v70
    %v72 = vsel %vm63, %v52, -inf
    %v73 = vmax.f32 %v66, %v72
    %v74 = vsel %vm63, %v54, -inf
    %v75 = vmax.f32 %v67, %v74
    %v76 = vmax.f32 %v69, %v71
    %v77 = vmax.f32 %v73, %v75
    %v78 = vmax.f32 %v76, %v77
    %79 = vmax.xlane.f32.xlu0 %v78
    %v80 = vpop.xlane.xlu0 %79
    %v83 = vcombine.high %v17, %v17
    %v85 = vunpack.c.l.s4 1983009808
    %v86 = vunpack.c.0.s8 %v85
    %v87 = vlaneseq
    %v88 = vshrl.u32 %v87, 7
    %v89 = vsub.s32 %v86, %v88
    %v90 = vrot.slane %v17, %v89
    %v92 = vunpack.c.l.s4 1983009808
    %v93 = vunpack.c.0.s8 %v92
    %v94 = vlaneseq
    %v95 = vshrl.u32 %v94, 7
    %v96 = vsub.s32 %v93, %v95
    %v97 = vrot.slane %v83, %v96
    %v98 = vcombine.high %v90, %v90
    %v99 = vcombine.high %v97, %v97
    %v100 = vcombine.high %v18, %v18
    %v102 = vunpack.c.l.s4 1983009808
    %v103 = vunpack.c.0.s8 %v102
    %v104 = vlaneseq
    %v105 = vshrl.u32 %v104, 7
    %v106 = vsub.s32 %v103, %v105
    %v107 = vrot.slane %v18, %v106
    %v109 = vunpack.c.l.s4 1983009808
    %v110 = vunpack.c.0.s8 %v109
    %v111 = vlaneseq
    %v112 = vshrl.u32 %v111, 7
    %v113 = vsub.s32 %v110, %v112
    %v114 = vrot.slane %v100, %v113
    %v115 = vcombine.high %v107, %v107
    %v116 = vcombine.high %v114, %v114
    %v125 = vsel %vm63, %v90, -inf
    %v126 = vsel %vm63, %v98, -inf
    %v127 = vsel %vm63, %v97, -inf
    %v128 = vsel %vm63, %v99, -inf
    %v129 = vsel %vm63, %v107, -inf
    %v130 = vmax.f32 %v125, %v129
    %v131 = vsel %vm63, %v115, -inf
    %v132 = vmax.f32 %v126, %v131
    %v133 = vsel %vm63, %v114, -inf
    %v134 = vmax.f32 %v127, %v133
    %v135 = vsel %vm63, %v116, -inf
    %v136 = vmax.f32 %v128, %v135
    %v137 = vmax.f32 %v130, %v132
    %v138 = vmax.f32 %v134, %v136
    %v139 = vmax.f32 %v137, %v138
    %140 = vmax.xlane.f32.xlu0 %v139
    %v141 = vpop.xlane.xlu0 %140
    %v144 = vunpack.c.l.s4 269488144
    %v145 = vunpack.c.0.s8 %v144
    %v146 = vlaneseq
    %v147 = vshrl.u32 %v146, 7
    %v148 = vsub.s32 %v145, %v147
    %v149 = vrot.slane %v80, %v148
    %v151 = vsub.f32 %v15, %v149
    %v152 = vsub.f32 %v16, %v149
    %v153 = vmul.f32 %v151, 1.442695
    %v154 = vpow.pop %v153
    %v155 = vmul.f32 %v152, 1.442695
    %v156 = vpow.pop %v155
    %v159 = vunpack.c.l.s4 269488144
    %v160 = vunpack.c.0.s8 %v159
    %v161 = vlaneseq
    %v162 = vshrl.u32 %v161, 7
    %v163 = vsub.s32 %v160, %v162
    %v164 = vrot.slane %v141, %v163
    %v166 = vsub.f32 %v17, %v164
    %v167 = vsub.f32 %v18, %v164
    %v168 = vmul.f32 %v166, 1.442695
    %v169 = vpow.pop %v168
    %v170 = vmul.f32 %v167, 1.442695
    %v171 = vpow.pop %v170
    %v172 = vsub.f32 %v17, %v15
    %v173 = vsub.f32 %v18, %v16
    %v174 = vmul.f32 %v169, %v172
    %v175 = vmul.f32 %v171, %v173
    %v176 = vld [vmem:[%s2] sm:$0xff]
    %v177 = vld [vmem:[%s2 + $0x8] sm:$0xff]
    %v178 = vld [vmem:[%s2 + $0x10] sm:$0xff]
    %v179 = vld [vmem:[%s2 + $0x18] sm:$0xff]
    %v180 = vld [vmem:[%s2 + $0x20] sm:$0xff]
    %v181 = vld [vmem:[%s2 + $0x28] sm:$0xff]
    %v182 = vld [vmem:[%s2 + $0x30] sm:$0xff]
    %v183 = vld [vmem:[%s2 + $0x38] sm:$0xff]
    %v184 = vld [vmem:[%s2 + $0x40] sm:$0xff]
    %v185 = vld [vmem:[%s2 + $0x48] sm:$0xff]
    %v186 = vld [vmem:[%s2 + $0x50] sm:$0xff]
    %v187 = vld [vmem:[%s2 + $0x58] sm:$0xff]
    %v188 = vld [vmem:[%s2 + $0x60] sm:$0xff]
    %v189 = vld [vmem:[%s2 + $0x68] sm:$0xff]
    %v190 = vld [vmem:[%s2 + $0x70] sm:$0xff]
    %v191 = vld [vmem:[%s2 + $0x78] sm:$0xff]
    %v192 = vld [vmem:[%s2 + $0x80] sm:$0xff]
    %v193 = vld [vmem:[%s2 + $0x88] sm:$0xff]
    %v194 = vld [vmem:[%s2 + $0x90] sm:$0xff]
    %v195 = vld [vmem:[%s2 + $0x98] sm:$0xff]
    %v196 = vld [vmem:[%s2 + $0xa0] sm:$0xff]
    %v197 = vld [vmem:[%s2 + $0xa8] sm:$0xff]
    %v198 = vld [vmem:[%s2 + $0xb0] sm:$0xff]
    %v199 = vld [vmem:[%s2 + $0xb8] sm:$0xff]
    %v200 = vld [vmem:[%s2 + $0xc0] sm:$0xff]
    %v201 = vld [vmem:[%s2 + $0xc8] sm:$0xff]
    %v202 = vld [vmem:[%s2 + $0xd0] sm:$0xff]
    %v203 = vld [vmem:[%s2 + $0xd8] sm:$0xff]
    %v204 = vld [vmem:[%s2 + $0xe0] sm:$0xff]
    %v205 = vld [vmem:[%s2 + $0xe8] sm:$0xff]
    %v206 = vld [vmem:[%s2 + $0xf0] sm:$0xff]
    %v207 = vld [vmem:[%s2 + $0xf8] sm:$0xff]
    %v208 = vld [vmem:[%s2 + $0x100] sm:$0xff]
    %v209 = vld [vmem:[%s2 + $0x108] sm:$0xff]
    %v210 = vld [vmem:[%s2 + $0x110] sm:$0xff]
    %v211 = vld [vmem:[%s2 + $0x118] sm:$0xff]
    %v212 = vld [vmem:[%s2 + $0x120] sm:$0xff]
    %v213 = vld [vmem:[%s2 + $0x128] sm:$0xff]
    %v214 = vld [vmem:[%s2 + $0x130] sm:$0xff]
    %v215 = vld [vmem:[%s2 + $0x138] sm:$0xff]
    %v216 = vld [vmem:[%s2 + $0x140] sm:$0xff]
    %v217 = vld [vmem:[%s2 + $0x148] sm:$0xff]
    %v218 = vld [vmem:[%s2 + $0x150] sm:$0xff]
    %v219 = vld [vmem:[%s2 + $0x158] sm:$0xff]
    %v220 = vld [vmem:[%s2 + $0x160] sm:$0xff]
    %v221 = vld [vmem:[%s2 + $0x168] sm:$0xff]
    %v222 = vld [vmem:[%s2 + $0x170] sm:$0xff]
    %v223 = vld [vmem:[%s2 + $0x178] sm:$0xff]
    %v224 = vld [vmem:[%s2 + $0x180] sm:$0xff]
    %v225 = vld [vmem:[%s2 + $0x188] sm:$0xff]
    %v226 = vld [vmem:[%s2 + $0x190] sm:$0xff]
    %v227 = vld [vmem:[%s2 + $0x198] sm:$0xff]
    %v228 = vld [vmem:[%s2 + $0x1a0] sm:$0xff]
    %v229 = vld [vmem:[%s2 + $0x1a8] sm:$0xff]
    %v230 = vld [vmem:[%s2 + $0x1b0] sm:$0xff]
    %v231 = vld [vmem:[%s2 + $0x1b8] sm:$0xff]
    %v232 = vld [vmem:[%s2 + $0x1c0] sm:$0xff]
    %v233 = vld [vmem:[%s2 + $0x1c8] sm:$0xff]
    %v234 = vld [vmem:[%s2 + $0x1d0] sm:$0xff]
    %v235 = vld [vmem:[%s2 + $0x1d8] sm:$0xff]
    %v236 = vld [vmem:[%s2 + $0x1e0] sm:$0xff]
    %v237 = vld [vmem:[%s2 + $0x1e8] sm:$0xff]
    %v238 = vld [vmem:[%s2 + $0x1f0] sm:$0xff]
    %v239 = vld [vmem:[%s2 + $0x1f8] sm:$0xff]
    %v240 = vld [vmem:[%s2 + $0x200] sm:$0xff]
    %v241 = vld [vmem:[%s2 + $0x208] sm:$0xff]
    %v242 = vld [vmem:[%s2 + $0x210] sm:$0xff]
    %v243 = vld [vmem:[%s2 + $0x218] sm:$0xff]
    %v244 = vld [vmem:[%s2 + $0x220] sm:$0xff]
    %v245 = vld [vmem:[%s2 + $0x228] sm:$0xff]
    %v246 = vld [vmem:[%s2 + $0x230] sm:$0xff]
    %v247 = vld [vmem:[%s2 + $0x238] sm:$0xff]
    %v248 = vld [vmem:[%s2 + $0x240] sm:$0xff]
    %v249 = vld [vmem:[%s2 + $0x248] sm:$0xff]
    %v250 = vld [vmem:[%s2 + $0x250] sm:$0xff]
    %v251 = vld [vmem:[%s2 + $0x258] sm:$0xff]
    %v252 = vld [vmem:[%s2 + $0x260] sm:$0xff]
    %v253 = vld [vmem:[%s2 + $0x268] sm:$0xff]
    %v254 = vld [vmem:[%s2 + $0x270] sm:$0xff]
    %v255 = vld [vmem:[%s2 + $0x278] sm:$0xff]
    %v256 = vld [vmem:[%s2 + $0x280] sm:$0xff]
    %v257 = vld [vmem:[%s2 + $0x288] sm:$0xff]
    %v258 = vld [vmem:[%s2 + $0x290] sm:$0xff]
    %v259 = vld [vmem:[%s2 + $0x298] sm:$0xff]
    %v260 = vld [vmem:[%s2 + $0x2a0] sm:$0xff]
    %v261 = vld [vmem:[%s2 + $0x2a8] sm:$0xff]
    %v262 = vld [vmem:[%s2 + $0x2b0] sm:$0xff]
    %v263 = vld [vmem:[%s2 + $0x2b8] sm:$0xff]
    %v264 = vld [vmem:[%s2 + $0x2c0] sm:$0xff]
    %v265 = vld [vmem:[%s2 + $0x2c8] sm:$0xff]
    %v266 = vld [vmem:[%s2 + $0x2d0] sm:$0xff]
    %v267 = vld [vmem:[%s2 + $0x2d8] sm:$0xff]
    %v268 = vld [vmem:[%s2 + $0x2e0] sm:$0xff]
    %v269 = vld [vmem:[%s2 + $0x2e8] sm:$0xff]
    %v270 = vld [vmem:[%s2 + $0x2f0] sm:$0xff]
    %v271 = vld [vmem:[%s2 + $0x2f8] sm:$0xff]
    %v272 = vld [vmem:[%s2 + $0x300] sm:$0xff]
    %v273 = vld [vmem:[%s2 + $0x308] sm:$0xff]
    %v274 = vld [vmem:[%s2 + $0x310] sm:$0xff]
    %v275 = vld [vmem:[%s2 + $0x318] sm:$0xff]
    %v276 = vld [vmem:[%s2 + $0x320] sm:$0xff]
    %v277 = vld [vmem:[%s2 + $0x328] sm:$0xff]
    %v278 = vld [vmem:[%s2 + $0x330] sm:$0xff]
    %v279 = vld [vmem:[%s2 + $0x338] sm:$0xff]
    %v280 = vld [vmem:[%s2 + $0x340] sm:$0xff]
    %v281 = vld [vmem:[%s2 + $0x348] sm:$0xff]
    %v282 = vld [vmem:[%s2 + $0x350] sm:$0xff]
    %v283 = vld [vmem:[%s2 + $0x358] sm:$0xff]
    %v284 = vld [vmem:[%s2 + $0x360] sm:$0xff]
    %v285 = vld [vmem:[%s2 + $0x368] sm:$0xff]
    %v286 = vld [vmem:[%s2 + $0x370] sm:$0xff]
    %v287 = vld [vmem:[%s2 + $0x378] sm:$0xff]
    %v288 = vld [vmem:[%s2 + $0x380] sm:$0xff]
    %v289 = vld [vmem:[%s2 + $0x388] sm:$0xff]
    %v290 = vld [vmem:[%s2 + $0x390] sm:$0xff]
    %v291 = vld [vmem:[%s2 + $0x398] sm:$0xff]
    %v292 = vld [vmem:[%s2 + $0x3a0] sm:$0xff]
    %v293 = vld [vmem:[%s2 + $0x3a8] sm:$0xff]
    %v294 = vld [vmem:[%s2 + $0x3b0] sm:$0xff]
    %v295 = vld [vmem:[%s2 + $0x3b8] sm:$0xff]
    %v296 = vld [vmem:[%s2 + $0x3c0] sm:$0xff]
    %v297 = vld [vmem:[%s2 + $0x3c8] sm:$0xff]
    %v298 = vld [vmem:[%s2 + $0x3d0] sm:$0xff]
    %v299 = vld [vmem:[%s2 + $0x3d8] sm:$0xff]
    %v300 = vld [vmem:[%s2 + $0x3e0] sm:$0xff]
    %v301 = vld [vmem:[%s2 + $0x3e8] sm:$0xff]
    %v302 = vld [vmem:[%s2 + $0x3f0] sm:$0xff]
    %v303 = vld [vmem:[%s2 + $0x3f8] sm:$0xff]
    %v306 = vcombine.high %v154, %v154
    %v308 = vunpack.c.l.s4 1983009808
    %v309 = vunpack.c.0.s8 %v308
    %v310 = vlaneseq
    %v311 = vshrl.u32 %v310, 7
    %v312 = vsub.s32 %v309, %v311
    %v313 = vrot.slane %v154, %v312
    %v315 = vunpack.c.l.s4 1983009808
    %v316 = vunpack.c.0.s8 %v315
    %v317 = vlaneseq
    %v318 = vshrl.u32 %v317, 7
    %v319 = vsub.s32 %v316, %v318
    %v320 = vrot.slane %v306, %v319
    %v321 = vcombine.high %v313, %v313
    %v322 = vcombine.high %v320, %v320
    %v323 = vcombine.high %v156, %v156
    %v325 = vunpack.c.l.s4 1983009808
    %v326 = vunpack.c.0.s8 %v325
    %v327 = vlaneseq
    %v328 = vshrl.u32 %v327, 7
    %v329 = vsub.s32 %v326, %v328
    %v330 = vrot.slane %v156, %v329
    %v332 = vunpack.c.l.s4 1983009808
    %v333 = vunpack.c.0.s8 %v332
    %v334 = vlaneseq
    %v335 = vshrl.u32 %v334, 7
    %v336 = vsub.s32 %v333, %v335
    %v337 = vrot.slane %v323, %v336
    %v338 = vcombine.high %v330, %v330
    %v339 = vcombine.high %v337, %v337
    %348 = vmatprep.subr.mxu0 0.0
    %v349 = vand.u32 %v191, 4294901760
    %350 = vmatpush1.msra.mxu0 %v349
    %351 = vmatprep.subr.mxu0 0.0
    %v352 = vand.u32 %v190, 4294901760
    %353 = vmatpush1.msra.mxu0 %v352
    %354 = vmatprep.subr.mxu0 0.0
    %v355 = vand.u32 %v189, 4294901760
    %356 = vmatpush1.msra.mxu0 %v355
    %357 = vmatprep.subr.mxu0 0.0
    %v358 = vand.u32 %v188, 4294901760
    %359 = vmatpush1.msra.mxu0 %v358
    %360 = vmatprep.subr.mxu0 0.0
    %v361 = vand.u32 %v187, 4294901760
    %362 = vmatpush1.msra.mxu0 %v361
    %363 = vmatprep.subr.mxu0 0.0
    %v364 = vand.u32 %v186, 4294901760
    %365 = vmatpush1.msra.mxu0 %v364
    %366 = vmatprep.subr.mxu0 0.0
    %v367 = vand.u32 %v185, 4294901760
    %368 = vmatpush1.msra.mxu0 %v367
    %369 = vmatprep.subr.mxu0 0.0
    %v370 = vand.u32 %v184, 4294901760
    %371 = vmatpush1.msra.mxu0 %v370
    %372 = vmatprep.subr.mxu0 0.0
    %v373 = vand.u32 %v183, 4294901760
    %374 = vmatpush1.msra.mxu0 %v373
    %375 = vmatprep.subr.mxu0 0.0
    %v376 = vand.u32 %v182, 4294901760
    %377 = vmatpush1.msra.mxu0 %v376
    %378 = vmatprep.subr.mxu0 0.0
    %v379 = vand.u32 %v181, 4294901760
    %380 = vmatpush1.msra.mxu0 %v379
    %381 = vmatprep.subr.mxu0 0.0
    %v382 = vand.u32 %v180, 4294901760
    %383 = vmatpush1.msra.mxu0 %v382
    %384 = vmatprep.subr.mxu0 0.0
    %v385 = vand.u32 %v179, 4294901760
    %386 = vmatpush1.msra.mxu0 %v385
    %387 = vmatprep.subr.mxu0 0.0
    %v388 = vand.u32 %v178, 4294901760
    %389 = vmatpush1.msra.mxu0 %v388
    %390 = vmatprep.subr.mxu0 0.0
    %v391 = vand.u32 %v177, 4294901760
    %392 = vmatpush1.msra.mxu0 %v391
    %393 = vmatprep.subr.mxu0 0.0
    %v394 = vand.u32 %v176, 4294901760
    %395 = vmatpush1.msra.mxu0 %v394
    %396 = vmatprep.subr.mxu0 0.0
    %v397 = vand.u32 %v207, 4294901760
    %398 = vmatpush2.msra.mxu0 %v397
    %399 = vmatprep.subr.mxu0 0.0
    %v400 = vand.u32 %v206, 4294901760
    %401 = vmatpush2.msra.mxu0 %v400
    %402 = vmatprep.subr.mxu0 0.0
    %v403 = vand.u32 %v205, 4294901760
    %404 = vmatpush2.msra.mxu0 %v403
    %405 = vmatprep.subr.mxu0 0.0
    %v406 = vand.u32 %v204, 4294901760
    %407 = vmatpush2.msra.mxu0 %v406
    %408 = vmatprep.subr.mxu0 0.0
    %v409 = vand.u32 %v203, 4294901760
    %410 = vmatpush2.msra.mxu0 %v409
    %411 = vmatprep.subr.mxu0 0.0
    %v412 = vand.u32 %v202, 4294901760
    %413 = vmatpush2.msra.mxu0 %v412
    %414 = vmatprep.subr.mxu0 0.0
    %v415 = vand.u32 %v201, 4294901760
    %416 = vmatpush2.msra.mxu0 %v415
    %417 = vmatprep.subr.mxu0 0.0
    %v418 = vand.u32 %v200, 4294901760
    %419 = vmatpush2.msra.mxu0 %v418
    %420 = vmatprep.subr.mxu0 0.0
    %v421 = vand.u32 %v199, 4294901760
    %422 = vmatpush2.msra.mxu0 %v421
    %423 = vmatprep.subr.mxu0 0.0
    %v424 = vand.u32 %v198, 4294901760
    %425 = vmatpush2.msra.mxu0 %v424
    %426 = vmatprep.subr.mxu0 0.0
    %v427 = vand.u32 %v197, 4294901760
    %428 = vmatpush2.msra.mxu0 %v427
    %429 = vmatprep.subr.mxu0 0.0
    %v430 = vand.u32 %v196, 4294901760
    %431 = vmatpush2.msra.mxu0 %v430
    %432 = vmatprep.subr.mxu0 0.0
    %v433 = vand.u32 %v195, 4294901760
    %434 = vmatpush2.msra.mxu0 %v433
    %435 = vmatprep.subr.mxu0 0.0
    %v436 = vand.u32 %v194, 4294901760
    %437 = vmatpush2.msra.mxu0 %v436
    %438 = vmatprep.subr.mxu0 0.0
    %v439 = vand.u32 %v193, 4294901760
    %440 = vmatpush2.msra.mxu0 %v439
    %441 = vmatprep.subr.mxu0 0.0
    %v442 = vand.u32 %v192, 4294901760
    %443 = vmatpush2.msra.mxu0 %v442
    %v444 = vand.u32 %v321, 4294901760
    %v445 = vsub.f32 %v321, %v444
    %v446 = vand.u32 %v445, 4294901760
    %v447 = vsub.f32 %v445, %v446
    %v448 = vand.u32 %v447, 4294901760
    %449 = vmatprep.mubr.f32.mxu0 %v448
    %v450 = vand.u32 %v313, 4294901760
    %v451 = vsub.f32 %v313, %v450
    %v452 = vand.u32 %v451, 4294901760
    %v453 = vsub.f32 %v451, %v452
    %v454 = vand.u32 %v453, 4294901760
    %455 = vmatmul.mubr.f32.gmra.mxu0 %v454
    %v456 = vpop.f32.mrf.mxu0
    %v457 = vadd.f32 0.0, %v456
    %v458 = vpop.f32.mrf.mxu0
    %459 = vdwg.mxu0
    %460 = vmatprep.subr.mxu0 0.0
    %v461 = vand.u32 %v191, 4294901760
    %v462 = vsub.f32 %v191, %v461
    %v463 = vand.u32 %v462, 4294901760
    %v464 = vsub.f32 %v462, %v463
    %v465 = vand.u32 %v464, 4294901760
    %466 = vmatpush1.msra.mxu0 %v465
    %467 = vmatprep.subr.mxu0 0.0
    %v468 = vand.u32 %v190, 4294901760
    %v469 = vsub.f32 %v190, %v468
    %v470 = vand.u32 %v469, 4294901760
    %v471 = vsub.f32 %v469, %v470
    %v472 = vand.u32 %v471, 4294901760
    %473 = vmatpush1.msra.mxu0 %v472
    %474 = vmatprep.subr.mxu0 0.0
    %v475 = vand.u32 %v189, 4294901760
    %v476 = vsub.f32 %v189, %v475
    %v477 = vand.u32 %v476, 4294901760
    %v478 = vsub.f32 %v476, %v477
    %v479 = vand.u32 %v478, 4294901760
    %480 = vmatpush1.msra.mxu0 %v479
    %481 = vmatprep.subr.mxu0 0.0
    %v482 = vand.u32 %v188, 4294901760
    %v483 = vsub.f32 %v188, %v482
    %v484 = vand.u32 %v483, 4294901760
    %v485 = vsub.f32 %v483, %v484
    %v486 = vand.u32 %v485, 4294901760
    %487 = vmatpush1.msra.mxu0 %v486
    %488 = vmatprep.subr.mxu0 0.0
    %v489 = vand.u32 %v187, 4294901760
    %v490 = vsub.f32 %v187, %v489
    %v491 = vand.u32 %v490, 4294901760
    %v492 = vsub.f32 %v490, %v491
    %v493 = vand.u32 %v492, 4294901760
    %494 = vmatpush1.msra.mxu0 %v493
    %495 = vmatprep.subr.mxu0 0.0
    %v496 = vand.u32 %v186, 4294901760
    %v497 = vsub.f32 %v186, %v496
    %v498 = vand.u32 %v497, 4294901760
    %v499 = vsub.f32 %v497, %v498
    %v500 = vand.u32 %v499, 4294901760
    %501 = vmatpush1.msra.mxu0 %v500
    %502 = vmatprep.subr.mxu0 0.0
    %v503 = vand.u32 %v185, 4294901760
    %v504 = vsub.f32 %v185, %v503
    %v505 = vand.u32 %v504, 4294901760
    %v506 = vsub.f32 %v504, %v505
    %v507 = vand.u32 %v506, 4294901760
    %508 = vmatpush1.msra.mxu0 %v507
    %509 = vmatprep.subr.mxu0 0.0
    %v510 = vand.u32 %v184, 4294901760
    %v511 = vsub.f32 %v184, %v510
    %v512 = vand.u32 %v511, 4294901760
    %v513 = vsub.f32 %v511, %v512
    %v514 = vand.u32 %v513, 4294901760
    %515 = vmatpush1.msra.mxu0 %v514
    %516 = vmatprep.subr.mxu0 0.0
    %v517 = vand.u32 %v183, 4294901760
    %v518 = vsub.f32 %v183, %v517
    %v519 = vand.u32 %v518, 4294901760
    %v520 = vsub.f32 %v518, %v519
    %v521 = vand.u32 %v520, 4294901760
    %522 = vmatpush1.msra.mxu0 %v521
    %523 = vmatprep.subr.mxu0 0.0
    %v524 = vand.u32 %v182, 4294901760
    %v525 = vsub.f32 %v182, %v524
    %v526 = vand.u32 %v525, 4294901760
    %v527 = vsub.f32 %v525, %v526
    %v528 = vand.u32 %v527, 4294901760
    %529 = vmatpush1.msra.mxu0 %v528
    %530 = vmatprep.subr.mxu0 0.0
    %v531 = vand.u32 %v181, 4294901760
    %v532 = vsub.f32 %v181, %v531
    %v533 = vand.u32 %v532, 4294901760
    %v534 = vsub.f32 %v532, %v533
    %v535 = vand.u32 %v534, 4294901760
    %536 = vmatpush1.msra.mxu0 %v535
    %537 = vmatprep.subr.mxu0 0.0
    %v538 = vand.u32 %v180, 4294901760
    %v539 = vsub.f32 %v180, %v538
    %v540 = vand.u32 %v539, 4294901760
    %v541 = vsub.f32 %v539, %v540
    %v542 = vand.u32 %v541, 4294901760
    %543 = vmatpush1.msra.mxu0 %v542
    %544 = vmatprep.subr.mxu0 0.0
    %v545 = vand.u32 %v179, 4294901760
    %v546 = vsub.f32 %v179, %v545
    %v547 = vand.u32 %v546, 4294901760
    %v548 = vsub.f32 %v546, %v547
    %v549 = vand.u32 %v548, 4294901760
    %550 = vmatpush1.msra.mxu0 %v549
    %551 = vmatprep.subr.mxu0 0.0
    %v552 = vand.u32 %v178, 4294901760
    %v553 = vsub.f32 %v178, %v552
    %v554 = vand.u32 %v553, 4294901760
    %v555 = vsub.f32 %v553, %v554
    %v556 = vand.u32 %v555, 4294901760
    %557 = vmatpush1.msra.mxu0 %v556
    %558 = vmatprep.subr.mxu0 0.0
    %v559 = vand.u32 %v177, 4294901760
    %v560 = vsub.f32 %v177, %v559
    %v561 = vand.u32 %v560, 4294901760
    %v562 = vsub.f32 %v560, %v561
    %v563 = vand.u32 %v562, 4294901760
    %564 = vmatpush1.msra.mxu0 %v563
    %565 = vmatprep.subr.mxu0 0.0
    %v566 = vand.u32 %v176, 4294901760
    %v567 = vsub.f32 %v176, %v566
    %v568 = vand.u32 %v567, 4294901760
    %v569 = vsub.f32 %v567, %v568
    %v570 = vand.u32 %v569, 4294901760
    %571 = vmatpush1.msra.mxu0 %v570
    %572 = vmatprep.subr.mxu0 0.0
    %v573 = vand.u32 %v207, 4294901760
    %v574 = vsub.f32 %v207, %v573
    %v575 = vand.u32 %v574, 4294901760
    %v576 = vsub.f32 %v574, %v575
    %v577 = vand.u32 %v576, 4294901760
    %578 = vmatpush2.msra.mxu0 %v577
    %579 = vmatprep.subr.mxu0 0.0
    %v580 = vand.u32 %v206, 4294901760
    %v581 = vsub.f32 %v206, %v580
    %v582 = vand.u32 %v581, 4294901760
    %v583 = vsub.f32 %v581, %v582
    %v584 = vand.u32 %v583, 4294901760
    %585 = vmatpush2.msra.mxu0 %v584
    %586 = vmatprep.subr.mxu0 0.0
    %v587 = vand.u32 %v205, 4294901760
    %v588 = vsub.f32 %v205, %v587
    %v589 = vand.u32 %v588, 4294901760
    %v590 = vsub.f32 %v588, %v589
    %v591 = vand.u32 %v590, 4294901760
    %592 = vmatpush2.msra.mxu0 %v591
    %593 = vmatprep.subr.mxu0 0.0
    %v594 = vand.u32 %v204, 4294901760
    %v595 = vsub.f32 %v204, %v594
    %v596 = vand.u32 %v595, 4294901760
    %v597 = vsub.f32 %v595, %v596
    %v598 = vand.u32 %v597, 4294901760
    %599 = vmatpush2.msra.mxu0 %v598
    %600 = vmatprep.subr.mxu0 0.0
    %v601 = vand.u32 %v203, 4294901760
    %v602 = vsub.f32 %v203, %v601
    %v603 = vand.u32 %v602, 4294901760
    %v604 = vsub.f32 %v602, %v603
    %v605 = vand.u32 %v604, 4294901760
    %606 = vmatpush2.msra.mxu0 %v605
    %607 = vmatprep.subr.mxu0 0.0
    %v608 = vand.u32 %v202, 4294901760
    %v609 = vsub.f32 %v202, %v608
    %v610 = vand.u32 %v609, 4294901760
    %v611 = vsub.f32 %v609, %v610
    %v612 = vand.u32 %v611, 4294901760
    %613 = vmatpush2.msra.mxu0 %v612
    %614 = vmatprep.subr.mxu0 0.0
    %v615 = vand.u32 %v201, 4294901760
    %v616 = vsub.f32 %v201, %v615
    %v617 = vand.u32 %v616, 4294901760
    %v618 = vsub.f32 %v616, %v617
    %v619 = vand.u32 %v618, 4294901760
    %620 = vmatpush2.msra.mxu0 %v619
    %621 = vmatprep.subr.mxu0 0.0
    %v622 = vand.u32 %v200, 4294901760
    %v623 = vsub.f32 %v200, %v622
    %v624 = vand.u32 %v623, 4294901760
    %v625 = vsub.f32 %v623, %v624
    %v626 = vand.u32 %v625, 4294901760
    %627 = vmatpush2.msra.mxu0 %v626
    %628 = vmatprep.subr.mxu0 0.0
    %v629 = vand.u32 %v199, 4294901760
    %v630 = vsub.f32 %v199, %v629
    %v631 = vand.u32 %v630, 4294901760
    %v632 = vsub.f32 %v630, %v631
    %v633 = vand.u32 %v632, 4294901760
    %634 = vmatpush2.msra.mxu0 %v633
    %635 = vmatprep.subr.mxu0 0.0
    %v636 = vand.u32 %v198, 4294901760
    %v637 = vsub.f32 %v198, %v636
    %v638 = vand.u32 %v637, 4294901760
    %v639 = vsub.f32 %v637, %v638
    %v640 = vand.u32 %v639, 4294901760
    %641 = vmatpush2.msra.mxu0 %v640
    %642 = vmatprep.subr.mxu0 0.0
    %v643 = vand.u32 %v197, 4294901760
    %v644 = vsub.f32 %v197, %v643
    %v645 = vand.u32 %v644, 4294901760
    %v646 = vsub.f32 %v644, %v645
    %v647 = vand.u32 %v646, 4294901760
    %648 = vmatpush2.msra.mxu0 %v647
    %649 = vmatprep.subr.mxu0 0.0
    %v650 = vand.u32 %v196, 4294901760
    %v651 = vsub.f32 %v196, %v650
    %v652 = vand.u32 %v651, 4294901760
    %v653 = vsub.f32 %v651, %v652
    %v654 = vand.u32 %v653, 4294901760
    %655 = vmatpush2.msra.mxu0 %v654
    %656 = vmatprep.subr.mxu0 0.0
    %v657 = vand.u32 %v195, 4294901760
    %v658 = vsub.f32 %v195, %v657
    %v659 = vand.u32 %v658, 4294901760
    %v660 = vsub.f32 %v658, %v659
    %v661 = vand.u32 %v660, 4294901760
    %662 = vmatpush2.msra.mxu0 %v661
    %663 = vmatprep.subr.mxu0 0.0
    %v664 = vand.u32 %v194, 4294901760
    %v665 = vsub.f32 %v194, %v664
    %v666 = vand.u32 %v665, 4294901760
    %v667 = vsub.f32 %v665, %v666
    %v668 = vand.u32 %v667, 4294901760
    %669 = vmatpush2.msra.mxu0 %v668
    %670 = vmatprep.subr.mxu0 0.0
    %v671 = vand.u32 %v193, 4294901760
    %v672 = vsub.f32 %v193, %v671
    %v673 = vand.u32 %v672, 4294901760
    %v674 = vsub.f32 %v672, %v673
    %v675 = vand.u32 %v674, 4294901760
    %676 = vmatpush2.msra.mxu0 %v675
    %677 = vmatprep.subr.mxu0 0.0
    %v678 = vand.u32 %v192, 4294901760
    %v679 = vsub.f32 %v192, %v678
    %v680 = vand.u32 %v679, 4294901760
    %v681 = vsub.f32 %v679, %v680
    %v682 = vand.u32 %v681, 4294901760
    %683 = vmatpush2.msra.mxu0 %v682
    %v684 = vand.u32 %v321, 4294901760
    %685 = vmatprep.mubr.f32.mxu0 %v684
    %v686 = vand.u32 %v313, 4294901760
    %687 = vmatmul.mubr.f32.gmra.mxu0 %v686
    %v688 = vpop.f32.mrf.mxu0
    %v689 = vadd.f32 %v457, %v688
    %v690 = vpop.f32.mrf.mxu0
    %691 = vdwg.mxu0
    %692 = vmatprep.subr.mxu0 0.0
    %v693 = vand.u32 %v191, 4294901760
    %v694 = vsub.f32 %v191, %v693
    %695 = vmatpush1.msra.mxu0 %v694
    %696 = vmatprep.subr.mxu0 0.0
    %v697 = vand.u32 %v190, 4294901760
    %v698 = vsub.f32 %v190, %v697
    %699 = vmatpush1.msra.mxu0 %v698
    %700 = vmatprep.subr.mxu0 0.0
    %v701 = vand.u32 %v189, 4294901760
    %v702 = vsub.f32 %v189, %v701
    %703 = vmatpush1.msra.mxu0 %v702
    %704 = vmatprep.subr.mxu0 0.0
    %v705 = vand.u32 %v188, 4294901760
    %v706 = vsub.f32 %v188, %v705
    %707 = vmatpush1.msra.mxu0 %v706
    %708 = vmatprep.subr.mxu0 0.0
    %v709 = vand.u32 %v187, 4294901760
    %v710 = vsub.f32 %v187, %v709
    %711 = vmatpush1.msra.mxu0 %v710
    %712 = vmatprep.subr.mxu0 0.0
    %v713 = vand.u32 %v186, 4294901760
    %v714 = vsub.f32 %v186, %v713
    %715 = vmatpush1.msra.mxu0 %v714
    %716 = vmatprep.subr.mxu0 0.0
    %v717 = vand.u32 %v185, 4294901760
    %v718 = vsub.f32 %v185, %v717
    %719 = vmatpush1.msra.mxu0 %v718
    %720 = vmatprep.subr.mxu0 0.0
    %v721 = vand.u32 %v184, 4294901760
    %v722 = vsub.f32 %v184, %v721
    %723 = vmatpush1.msra.mxu0 %v722
    %724 = vmatprep.subr.mxu0 0.0
    %v725 = vand.u32 %v183, 4294901760
    %v726 = vsub.f32 %v183, %v725
    %727 = vmatpush1.msra.mxu0 %v726
    %728 = vmatprep.subr.mxu0 0.0
    %v729 = vand.u32 %v182, 4294901760
    %v730 = vsub.f32 %v182, %v729
    %731 = vmatpush1.msra.mxu0 %v730
    %732 = vmatprep.subr.mxu0 0.0
    %v733 = vand.u32 %v181, 4294901760
    %v734 = vsub.f32 %v181, %v733
    %735 = vmatpush1.msra.mxu0 %v734
    %736 = vmatprep.subr.mxu0 0.0
    %v737 = vand.u32 %v180, 4294901760
    %v738 = vsub.f32 %v180, %v737
    %739 = vmatpush1.msra.mxu0 %v738
    %740 = vmatprep.subr.mxu0 0.0
    %v741 = vand.u32 %v179, 4294901760
    %v742 = vsub.f32 %v179, %v741
    %743 = vmatpush1.msra.mxu0 %v742
    %744 = vmatprep.subr.mxu0 0.0
    %v745 = vand.u32 %v178, 4294901760
    %v746 = vsub.f32 %v178, %v745
    %747 = vmatpush1.msra.mxu0 %v746
    %748 = vmatprep.subr.mxu0 0.0
    %v749 = vand.u32 %v177, 4294901760
    %v750 = vsub.f32 %v177, %v749
    %751 = vmatpush1.msra.mxu0 %v750
    %752 = vmatprep.subr.mxu0 0.0
    %v753 = vand.u32 %v176, 4294901760
    %v754 = vsub.f32 %v176, %v753
    %755 = vmatpush1.msra.mxu0 %v754
    %756 = vmatprep.subr.mxu0 0.0
    %v757 = vand.u32 %v207, 4294901760
    %v758 = vsub.f32 %v207, %v757
    %759 = vmatpush2.msra.mxu0 %v758
    %760 = vmatprep.subr.mxu0 0.0
    %v761 = vand.u32 %v206, 4294901760
    %v762 = vsub.f32 %v206, %v761
    %763 = vmatpush2.msra.mxu0 %v762
    %764 = vmatprep.subr.mxu0 0.0
    %v765 = vand.u32 %v205, 4294901760
    %v766 = vsub.f32 %v205, %v765
    %767 = vmatpush2.msra.mxu0 %v766
    %768 = vmatprep.subr.mxu0 0.0
    %v769 = vand.u32 %v204, 4294901760
    %v770 = vsub.f32 %v204, %v769
    %771 = vmatpush2.msra.mxu0 %v770
    %772 = vmatprep.subr.mxu0 0.0
    %v773 = vand.u32 %v203, 4294901760
    %v774 = vsub.f32 %v203, %v773
    %775 = vmatpush2.msra.mxu0 %v774
    %776 = vmatprep.subr.mxu0 0.0
    %v777 = vand.u32 %v202, 4294901760
    %v778 = vsub.f32 %v202, %v777
    %779 = vmatpush2.msra.mxu0 %v778
    %780 = vmatprep.subr.mxu0 0.0
    %v781 = vand.u32 %v201, 4294901760
    %v782 = vsub.f32 %v201, %v781
    %783 = vmatpush2.msra.mxu0 %v782
    %784 = vmatprep.subr.mxu0 0.0
    %v785 = vand.u32 %v200, 4294901760
    %v786 = vsub.f32 %v200, %v785
    %787 = vmatpush2.msra.mxu0 %v786
    %788 = vmatprep.subr.mxu0 0.0
    %v789 = vand.u32 %v199, 4294901760
    %v790 = vsub.f32 %v199, %v789
    %791 = vmatpush2.msra.mxu0 %v790
    %792 = vmatprep.subr.mxu0 0.0
    %v793 = vand.u32 %v198, 4294901760
    %v794 = vsub.f32 %v198, %v793
    %795 = vmatpush2.msra.mxu0 %v794
    %796 = vmatprep.subr.mxu0 0.0
    %v797 = vand.u32 %v197, 4294901760
    %v798 = vsub.f32 %v197, %v797
    %799 = vmatpush2.msra.mxu0 %v798
    %800 = vmatprep.subr.mxu0 0.0
    %v801 = vand.u32 %v196, 4294901760
    %v802 = vsub.f32 %v196, %v801
    %803 = vmatpush2.msra.mxu0 %v802
    %804 = vmatprep.subr.mxu0 0.0
    %v805 = vand.u32 %v195, 4294901760
    %v806 = vsub.f32 %v195, %v805
    %807 = vmatpush2.msra.mxu0 %v806
    %808 = vmatprep.subr.mxu0 0.0
    %v809 = vand.u32 %v194, 4294901760
    %v810 = vsub.f32 %v194, %v809
    %811 = vmatpush2.msra.mxu0 %v810
    %812 = vmatprep.subr.mxu0 0.0
    %v813 = vand.u32 %v193, 4294901760
    %v814 = vsub.f32 %v193, %v813
    %815 = vmatpush2.msra.mxu0 %v814
    %816 = vmatprep.subr.mxu0 0.0
    %v817 = vand.u32 %v192, 4294901760
    %v818 = vsub.f32 %v192, %v817
    %819 = vmatpush2.msra.mxu0 %v818
    %v820 = vand.u32 %v321, 4294901760
    %v821 = vsub.f32 %v321, %v820
    %822 = vmatprep.mubr.f32.mxu0 %v821
    %v823 = vand.u32 %v313, 4294901760
    %v824 = vsub.f32 %v313, %v823
    %825 = vmatmul.mubr.f32.gmra.mxu0 %v824
    %v826 = vpop.f32.mrf.mxu0
    %v827 = vadd.f32 %v689, %v826
    %v828 = vpop.f32.mrf.mxu0
    %829 = vdwg.mxu0
    %830 = vmatprep.subr.mxu0 0.0
    %v831 = vand.u32 %v191, 4294901760
    %832 = vmatpush1.msra.mxu0 %v831
    %833 = vmatprep.subr.mxu0 0.0
    %v834 = vand.u32 %v190, 4294901760
    %835 = vmatpush1.msra.mxu0 %v834
    %836 = vmatprep.subr.mxu0 0.0
    %v837 = vand.u32 %v189, 4294901760
    %838 = vmatpush1.msra.mxu0 %v837
    %839 = vmatprep.subr.mxu0 0.0
    %v840 = vand.u32 %v188, 4294901760
    %841 = vmatpush1.msra.mxu0 %v840
    %842 = vmatprep.subr.mxu0 0.0
    %v843 = vand.u32 %v187, 4294901760
    %844 = vmatpush1.msra.mxu0 %v843
    %845 = vmatprep.subr.mxu0 0.0
    %v846 = vand.u32 %v186, 4294901760
    %847 = vmatpush1.msra.mxu0 %v846
    %848 = vmatprep.subr.mxu0 0.0
    %v849 = vand.u32 %v185, 4294901760
    %850 = vmatpush1.msra.mxu0 %v849
    %851 = vmatprep.subr.mxu0 0.0
    %v852 = vand.u32 %v184, 4294901760
    %853 = vmatpush1.msra.mxu0 %v852
    %854 = vmatprep.subr.mxu0 0.0
    %v855 = vand.u32 %v183, 4294901760
    %856 = vmatpush1.msra.mxu0 %v855
    %857 = vmatprep.subr.mxu0 0.0
    %v858 = vand.u32 %v182, 4294901760
    %859 = vmatpush1.msra.mxu0 %v858
    %860 = vmatprep.subr.mxu0 0.0
    %v861 = vand.u32 %v181, 4294901760
    %862 = vmatpush1.msra.mxu0 %v861
    %863 = vmatprep.subr.mxu0 0.0
    %v864 = vand.u32 %v180, 4294901760
    %865 = vmatpush1.msra.mxu0 %v864
    %866 = vmatprep.subr.mxu0 0.0
    %v867 = vand.u32 %v179, 4294901760
    %868 = vmatpush1.msra.mxu0 %v867
    %869 = vmatprep.subr.mxu0 0.0
    %v870 = vand.u32 %v178, 4294901760
    %871 = vmatpush1.msra.mxu0 %v870
    %872 = vmatprep.subr.mxu0 0.0
    %v873 = vand.u32 %v177, 4294901760
    %874 = vmatpush1.msra.mxu0 %v873
    %875 = vmatprep.subr.mxu0 0.0
    %v876 = vand.u32 %v176, 4294901760
    %877 = vmatpush1.msra.mxu0 %v876
    %878 = vmatprep.subr.mxu0 0.0
    %v879 = vand.u32 %v207, 4294901760
    %880 = vmatpush2.msra.mxu0 %v879
    %881 = vmatprep.subr.mxu0 0.0
    %v882 = vand.u32 %v206, 4294901760
    %883 = vmatpush2.msra.mxu0 %v882
    %884 = vmatprep.subr.mxu0 0.0
    %v885 = vand.u32 %v205, 4294901760
    %886 = vmatpush2.msra.mxu0 %v885
    %887 = vmatprep.subr.mxu0 0.0
    %v888 = vand.u32 %v204, 4294901760
    %889 = vmatpush2.msra.mxu0 %v888
    %890 = vmatprep.subr.mxu0 0.0
    %v891 = vand.u32 %v203, 4294901760
    %892 = vmatpush2.msra.mxu0 %v891
    %893 = vmatprep.subr.mxu0 0.0
    %v894 = vand.u32 %v202, 4294901760
    %895 = vmatpush2.msra.mxu0 %v894
    %896 = vmatprep.subr.mxu0 0.0
    %v897 = vand.u32 %v201, 4294901760
    %898 = vmatpush2.msra.mxu0 %v897
    %899 = vmatprep.subr.mxu0 0.0
    %v900 = vand.u32 %v200, 4294901760
    %901 = vmatpush2.msra.mxu0 %v900
    %902 = vmatprep.subr.mxu0 0.0
    %v903 = vand.u32 %v199, 4294901760
    %904 = vmatpush2.msra.mxu0 %v903
    %905 = vmatprep.subr.mxu0 0.0
    %v906 = vand.u32 %v198, 4294901760
    %907 = vmatpush2.msra.mxu0 %v906
    %908 = vmatprep.subr.mxu0 0.0
    %v909 = vand.u32 %v197, 4294901760
    %910 = vmatpush2.msra.mxu0 %v909
    %911 = vmatprep.subr.mxu0 0.0
    %v912 = vand.u32 %v196, 4294901760
    %913 = vmatpush2.msra.mxu0 %v912
    %914 = vmatprep.subr.mxu0 0.0
    %v915 = vand.u32 %v195, 4294901760
    %916 = vmatpush2.msra.mxu0 %v915
    %917 = vmatprep.subr.mxu0 0.0
    %v918 = vand.u32 %v194, 4294901760
    %919 = vmatpush2.msra.mxu0 %v918
    %920 = vmatprep.subr.mxu0 0.0
    %v921 = vand.u32 %v193, 4294901760
    %922 = vmatpush2.msra.mxu0 %v921
    %923 = vmatprep.subr.mxu0 0.0
    %v924 = vand.u32 %v192, 4294901760
    %925 = vmatpush2.msra.mxu0 %v924
    %v926 = vand.u32 %v321, 4294901760
    %v927 = vsub.f32 %v321, %v926
    %v928 = vand.u32 %v927, 4294901760
    %929 = vmatprep.mubr.f32.mxu0 %v928
    %v930 = vand.u32 %v313, 4294901760
    %v931 = vsub.f32 %v313, %v930
    %v932 = vand.u32 %v931, 4294901760
    %933 = vmatmul.mubr.f32.gmra.mxu0 %v932
    %v934 = vpop.f32.mrf.mxu0
    %v935 = vadd.f32 %v827, %v934
    %v936 = vpop.f32.mrf.mxu0
    %937 = vdwg.mxu0
    %938 = vmatprep.subr.mxu0 0.0
    %v939 = vand.u32 %v191, 4294901760
    %v940 = vsub.f32 %v191, %v939
    %v941 = vand.u32 %v940, 4294901760
    %942 = vmatpush1.msra.mxu0 %v941
    %943 = vmatprep.subr.mxu0 0.0
    %v944 = vand.u32 %v190, 4294901760
    %v945 = vsub.f32 %v190, %v944
    %v946 = vand.u32 %v945, 4294901760
    %947 = vmatpush1.msra.mxu0 %v946
    %948 = vmatprep.subr.mxu0 0.0
    %v949 = vand.u32 %v189, 4294901760
    %v950 = vsub.f32 %v189, %v949
    %v951 = vand.u32 %v950, 4294901760
    %952 = vmatpush1.msra.mxu0 %v951
    %953 = vmatprep.subr.mxu0 0.0
    %v954 = vand.u32 %v188, 4294901760
    %v955 = vsub.f32 %v188, %v954
    %v956 = vand.u32 %v955, 4294901760
    %957 = vmatpush1.msra.mxu0 %v956
    %958 = vmatprep.subr.mxu0 0.0
    %v959 = vand.u32 %v187, 4294901760
    %v960 = vsub.f32 %v187, %v959
    %v961 = vand.u32 %v960, 4294901760
    %962 = vmatpush1.msra.mxu0 %v961
    %963 = vmatprep.subr.mxu0 0.0
    %v964 = vand.u32 %v186, 4294901760
    %v965 = vsub.f32 %v186, %v964
    %v966 = vand.u32 %v965, 4294901760
    %967 = vmatpush1.msra.mxu0 %v966
    %968 = vmatprep.subr.mxu0 0.0
    %v969 = vand.u32 %v185, 4294901760
    %v970 = vsub.f32 %v185, %v969
    %v971 = vand.u32 %v970, 4294901760
    %972 = vmatpush1.msra.mxu0 %v971
    %973 = vmatprep.subr.mxu0 0.0
    %v974 = vand.u32 %v184, 4294901760
    %v975 = vsub.f32 %v184, %v974
    %v976 = vand.u32 %v975, 4294901760
    %977 = vmatpush1.msra.mxu0 %v976
    %978 = vmatprep.subr.mxu0 0.0
    %v979 = vand.u32 %v183, 4294901760
    %v980 = vsub.f32 %v183, %v979
    %v981 = vand.u32 %v980, 4294901760
    %982 = vmatpush1.msra.mxu0 %v981
    %983 = vmatprep.subr.mxu0 0.0
    %v984 = vand.u32 %v182, 4294901760
    %v985 = vsub.f32 %v182, %v984
    %v986 = vand.u32 %v985, 4294901760
    %987 = vmatpush1.msra.mxu0 %v986
    %988 = vmatprep.subr.mxu0 0.0
    %v989 = vand.u32 %v181, 4294901760
    %v990 = vsub.f32 %v181, %v989
    %v991 = vand.u32 %v990, 4294901760
    %992 = vmatpush1.msra.mxu0 %v991
    %993 = vmatprep.subr.mxu0 0.0
    %v994 = vand.u32 %v180, 4294901760
    %v995 = vsub.f32 %v180, %v994
    %v996 = vand.u32 %v995, 4294901760
    %997 = vmatpush1.msra.mxu0 %v996
    %998 = vmatprep.subr.mxu0 0.0
    %v999 = vand.u32 %v179, 4294901760
    %v1000 = vsub.f32 %v179, %v999
    %v1001 = vand.u32 %v1000, 4294901760
    %1002 = vmatpush1.msra.mxu0 %v1001
    %1003 = vmatprep.subr.mxu0 0.0
    %v1004 = vand.u32 %v178, 4294901760
    %v1005 = vsub.f32 %v178, %v1004
    %v1006 = vand.u32 %v1005, 4294901760
    %1007 = vmatpush1.msra.mxu0 %v1006
    %1008 = vmatprep.subr.mxu0 0.0
    %v1009 = vand.u32 %v177, 4294901760
    %v1010 = vsub.f32 %v177, %v1009
    %v1011 = vand.u32 %v1010, 4294901760
    %1012 = vmatpush1.msra.mxu0 %v1011
    %1013 = vmatprep.subr.mxu0 0.0
    %v1014 = vand.u32 %v176, 4294901760
    %v1015 = vsub.f32 %v176, %v1014
    %v1016 = vand.u32 %v1015, 4294901760
    %1017 = vmatpush1.msra.mxu0 %v1016
    %1018 = vmatprep.subr.mxu0 0.0
    %v1019 = vand.u32 %v207, 4294901760
    %v1020 = vsub.f32 %v207, %v1019
    %v1021 = vand.u32 %v1020, 4294901760
    %1022 = vmatpush2.msra.mxu0 %v1021
    %1023 = vmatprep.subr.mxu0 0.0
    %v1024 = vand.u32 %v206, 4294901760
    %v1025 = vsub.f32 %v206, %v1024
    %v1026 = vand.u32 %v1025, 4294901760
    %1027 = vmatpush2.msra.mxu0 %v1026
    %1028 = vmatprep.subr.mxu0 0.0
    %v1029 = vand.u32 %v205, 4294901760
    %v1030 = vsub.f32 %v205, %v1029
    %v1031 = vand.u32 %v1030, 4294901760
    %1032 = vmatpush2.msra.mxu0 %v1031
    %1033 = vmatprep.subr.mxu0 0.0
    %v1034 = vand.u32 %v204, 4294901760
    %v1035 = vsub.f32 %v204, %v1034
    %v1036 = vand.u32 %v1035, 4294901760
    %1037 = vmatpush2.msra.mxu0 %v1036
    %1038 = vmatprep.subr.mxu0 0.0
    %v1039 = vand.u32 %v203, 4294901760
    %v1040 = vsub.f32 %v203, %v1039
    %v1041 = vand.u32 %v1040, 4294901760
    %1042 = vmatpush2.msra.mxu0 %v1041
    %1043 = vmatprep.subr.mxu0 0.0
    %v1044 = vand.u32 %v202, 4294901760
    %v1045 = vsub.f32 %v202, %v1044
    %v1046 = vand.u32 %v1045, 4294901760
    %1047 = vmatpush2.msra.mxu0 %v1046
    %1048 = vmatprep.subr.mxu0 0.0
    %v1049 = vand.u32 %v201, 4294901760
    %v1050 = vsub.f32 %v201, %v1049
    %v1051 = vand.u32 %v1050, 4294901760
    %1052 = vmatpush2.msra.mxu0 %v1051
    %1053 = vmatprep.subr.mxu0 0.0
    %v1054 = vand.u32 %v200, 4294901760
    %v1055 = vsub.f32 %v200, %v1054
    %v1056 = vand.u32 %v1055, 4294901760
    %1057 = vmatpush2.msra.mxu0 %v1056
    %1058 = vmatprep.subr.mxu0 0.0
    %v1059 = vand.u32 %v199, 4294901760
    %v1060 = vsub.f32 %v199, %v1059
    %v1061 = vand.u32 %v1060, 4294901760
    %1062 = vmatpush2.msra.mxu0 %v1061
    %1063 = vmatprep.subr.mxu0 0.0
    %v1064 = vand.u32 %v198, 4294901760
    %v1065 = vsub.f32 %v198, %v1064
    %v1066 = vand.u32 %v1065, 4294901760
    %1067 = vmatpush2.msra.mxu0 %v1066
    %1068 = vmatprep.subr.mxu0 0.0
    %v1069 = vand.u32 %v197, 4294901760
    %v1070 = vsub.f32 %v197, %v1069
    %v1071 = vand.u32 %v1070, 4294901760
    %1072 = vmatpush2.msra.mxu0 %v1071
    %1073 = vmatprep.subr.mxu0 0.0
    %v1074 = vand.u32 %v196, 4294901760
    %v1075 = vsub.f32 %v196, %v1074
    %v1076 = vand.u32 %v1075, 4294901760
    %1077 = vmatpush2.msra.mxu0 %v1076
    %1078 = vmatprep.subr.mxu0 0.0
    %v1079 = vand.u32 %v195, 4294901760
    %v1080 = vsub.f32 %v195, %v1079
    %v1081 = vand.u32 %v1080, 4294901760
    %1082 = vmatpush2.msra.mxu0 %v1081
    %1083 = vmatprep.subr.mxu0 0.0
    %v1084 = vand.u32 %v194, 4294901760
    %v1085 = vsub.f32 %v194, %v1084
    %v1086 = vand.u32 %v1085, 4294901760
    %1087 = vmatpush2.msra.mxu0 %v1086
    %1088 = vmatprep.subr.mxu0 0.0
    %v1089 = vand.u32 %v193, 4294901760
    %v1090 = vsub.f32 %v193, %v1089
    %v1091 = vand.u32 %v1090, 4294901760
    %1092 = vmatpush2.msra.mxu0 %v1091
    %1093 = vmatprep.subr.mxu0 0.0
    %v1094 = vand.u32 %v192, 4294901760
    %v1095 = vsub.f32 %v192, %v1094
    %v1096 = vand.u32 %v1095, 4294901760
    %1097 = vmatpush2.msra.mxu0 %v1096
    %v1098 = vand.u32 %v321, 4294901760
    %1099 = vmatprep.mubr.f32.mxu0 %v1098
    %v1100 = vand.u32 %v313, 4294901760
    %1101 = vmatmul.mubr.f32.gmra.mxu0 %v1100
    %v1102 = vpop.f32.mrf.mxu0
    %v1103 = vadd.f32 %v935, %v1102
    %v1104 = vpop.f32.mrf.mxu0
    %1105 = vdwg.mxu0
    %1106 = vmatprep.subr.mxu0 0.0
    %v1107 = vand.u32 %v191, 4294901760
    %1108 = vmatpush1.msra.mxu0 %v1107
    %1109 = vmatprep.subr.mxu0 0.0
    %v1110 = vand.u32 %v190, 4294901760
    %1111 = vmatpush1.msra.mxu0 %v1110
    %1112 = vmatprep.subr.mxu0 0.0
    %v1113 = vand.u32 %v189, 4294901760
    %1114 = vmatpush1.msra.mxu0 %v1113
    %1115 = vmatprep.subr.mxu0 0.0
    %v1116 = vand.u32 %v188, 4294901760
    %1117 = vmatpush1.msra.mxu0 %v1116
    %1118 = vmatprep.subr.mxu0 0.0
    %v1119 = vand.u32 %v187, 4294901760
    %1120 = vmatpush1.msra.mxu0 %v1119
    %1121 = vmatprep.subr.mxu0 0.0
    %v1122 = vand.u32 %v186, 4294901760
    %1123 = vmatpush1.msra.mxu0 %v1122
    %1124 = vmatprep.subr.mxu0 0.0
    %v1125 = vand.u32 %v185, 4294901760
    %1126 = vmatpush1.msra.mxu0 %v1125
    %1127 = vmatprep.subr.mxu0 0.0
    %v1128 = vand.u32 %v184, 4294901760
    %1129 = vmatpush1.msra.mxu0 %v1128
    %1130 = vmatprep.subr.mxu0 0.0
    %v1131 = vand.u32 %v183, 4294901760
    %1132 = vmatpush1.msra.mxu0 %v1131
    %1133 = vmatprep.subr.mxu0 0.0
    %v1134 = vand.u32 %v182, 4294901760
    %1135 = vmatpush1.msra.mxu0 %v1134
    %1136 = vmatprep.subr.mxu0 0.0
    %v1137 = vand.u32 %v181, 4294901760
    %1138 = vmatpush1.msra.mxu0 %v1137
    %1139 = vmatprep.subr.mxu0 0.0
    %v1140 = vand.u32 %v180, 4294901760
    %1141 = vmatpush1.msra.mxu0 %v1140
    %1142 = vmatprep.subr.mxu0 0.0
    %v1143 = vand.u32 %v179, 4294901760
    %1144 = vmatpush1.msra.mxu0 %v1143
    %1145 = vmatprep.subr.mxu0 0.0
    %v1146 = vand.u32 %v178, 4294901760
    %1147 = vmatpush1.msra.mxu0 %v1146
    %1148 = vmatprep.subr.mxu0 0.0
    %v1149 = vand.u32 %v177, 4294901760
    %1150 = vmatpush1.msra.mxu0 %v1149
    %1151 = vmatprep.subr.mxu0 0.0
    %v1152 = vand.u32 %v176, 4294901760
    %1153 = vmatpush1.msra.mxu0 %v1152
    %1154 = vmatprep.subr.mxu0 0.0
    %v1155 = vand.u32 %v207, 4294901760
    %1156 = vmatpush2.msra.mxu0 %v1155
    %1157 = vmatprep.subr.mxu0 0.0
    %v1158 = vand.u32 %v206, 4294901760
    %1159 = vmatpush2.msra.mxu0 %v1158
    %1160 = vmatprep.subr.mxu0 0.0
    %v1161 = vand.u32 %v205, 4294901760
    %1162 = vmatpush2.msra.mxu0 %v1161
    %1163 = vmatprep.subr.mxu0 0.0
    %v1164 = vand.u32 %v204, 4294901760
    %1165 = vmatpush2.msra.mxu0 %v1164
    %1166 = vmatprep.subr.mxu0 0.0
    %v1167 = vand.u32 %v203, 4294901760
    %1168 = vmatpush2.msra.mxu0 %v1167
    %1169 = vmatprep.subr.mxu0 0.0
    %v1170 = vand.u32 %v202, 4294901760
    %1171 = vmatpush2.msra.mxu0 %v1170
    %1172 = vmatprep.subr.mxu0 0.0
    %v1173 = vand.u32 %v201, 4294901760
    %1174 = vmatpush2.msra.mxu0 %v1173
    %1175 = vmatprep.subr.mxu0 0.0
    %v1176 = vand.u32 %v200, 4294901760
    %1177 = vmatpush2.msra.mxu0 %v1176
    %1178 = vmatprep.subr.mxu0 0.0
    %v1179 = vand.u32 %v199, 4294901760
    %1180 = vmatpush2.msra.mxu0 %v1179
    %1181 = vmatprep.subr.mxu0 0.0
    %v1182 = vand.u32 %v198, 4294901760
    %1183 = vmatpush2.msra.mxu0 %v1182
    %1184 = vmatprep.subr.mxu0 0.0
    %v1185 = vand.u32 %v197, 4294901760
    %1186 = vmatpush2.msra.mxu0 %v1185
    %1187 = vmatprep.subr.mxu0 0.0
    %v1188 = vand.u32 %v196, 4294901760
    %1189 = vmatpush2.msra.mxu0 %v1188
    %1190 = vmatprep.subr.mxu0 0.0
    %v1191 = vand.u32 %v195, 4294901760
    %1192 = vmatpush2.msra.mxu0 %v1191
    %1193 = vmatprep.subr.mxu0 0.0
    %v1194 = vand.u32 %v194, 4294901760
    %1195 = vmatpush2.msra.mxu0 %v1194
    %1196 = vmatprep.subr.mxu0 0.0
    %v1197 = vand.u32 %v193, 4294901760
    %1198 = vmatpush2.msra.mxu0 %v1197
    %1199 = vmatprep.subr.mxu0 0.0
    %v1200 = vand.u32 %v192, 4294901760
    %1201 = vmatpush2.msra.mxu0 %v1200
    %v1202 = vand.u32 %v321, 4294901760
    %1203 = vmatprep.mubr.f32.mxu0 %v1202
    %v1204 = vand.u32 %v313, 4294901760
    %1205 = vmatmul.mubr.f32.gmra.mxu0 %v1204
    %v1206 = vpop.f32.mrf.mxu0
    %v1207 = vadd.f32 %v1103, %v1206
    %v1208 = vpop.f32.mrf.mxu0
    %1209 = vdwg.mxu0
    %1210 = vmatprep.subr.mxu0 0.0
    %v1211 = vand.u32 %v223, 4294901760
    %1212 = vmatpush1.msra.mxu0 %v1211
    %1213 = vmatprep.subr.mxu0 0.0
    %v1214 = vand.u32 %v222, 4294901760
    %1215 = vmatpush1.msra.mxu0 %v1214
    %1216 = vmatprep.subr.mxu0 0.0
    %v1217 = vand.u32 %v221, 4294901760
    %1218 = vmatpush1.msra.mxu0 %v1217
    %1219 = vmatprep.subr.mxu0 0.0
    %v1220 = vand.u32 %v220, 4294901760
    %1221 = vmatpush1.msra.mxu0 %v1220
    %1222 = vmatprep.subr.mxu0 0.0
    %v1223 = vand.u32 %v219, 4294901760
    %1224 = vmatpush1.msra.mxu0 %v1223
    %1225 = vmatprep.subr.mxu0 0.0
    %v1226 = vand.u32 %v218, 4294901760
    %1227 = vmatpush1.msra.mxu0 %v1226
    %1228 = vmatprep.subr.mxu0 0.0
    %v1229 = vand.u32 %v217, 4294901760
    %1230 = vmatpush1.msra.mxu0 %v1229
    %1231 = vmatprep.subr.mxu0 0.0
    %v1232 = vand.u32 %v216, 4294901760
    %1233 = vmatpush1.msra.mxu0 %v1232
    %1234 = vmatprep.subr.mxu0 0.0
    %v1235 = vand.u32 %v215, 4294901760
    %1236 = vmatpush1.msra.mxu0 %v1235
    %1237 = vmatprep.subr.mxu0 0.0
    %v1238 = vand.u32 %v214, 4294901760
    %1239 = vmatpush1.msra.mxu0 %v1238
    %1240 = vmatprep.subr.mxu0 0.0
    %v1241 = vand.u32 %v213, 4294901760
    %1242 = vmatpush1.msra.mxu0 %v1241
    %1243 = vmatprep.subr.mxu0 0.0
    %v1244 = vand.u32 %v212, 4294901760
    %1245 = vmatpush1.msra.mxu0 %v1244
    %1246 = vmatprep.subr.mxu0 0.0
    %v1247 = vand.u32 %v211, 4294901760
    %1248 = vmatpush1.msra.mxu0 %v1247
    %1249 = vmatprep.subr.mxu0 0.0
    %v1250 = vand.u32 %v210, 4294901760
    %1251 = vmatpush1.msra.mxu0 %v1250
    %1252 = vmatprep.subr.mxu0 0.0
    %v1253 = vand.u32 %v209, 4294901760
    %1254 = vmatpush1.msra.mxu0 %v1253
    %1255 = vmatprep.subr.mxu0 0.0
    %v1256 = vand.u32 %v208, 4294901760
    %1257 = vmatpush1.msra.mxu0 %v1256
    %1258 = vmatprep.subr.mxu0 0.0
    %v1259 = vand.u32 %v239, 4294901760
    %1260 = vmatpush2.msra.mxu0 %v1259
    %1261 = vmatprep.subr.mxu0 0.0
    %v1262 = vand.u32 %v238, 4294901760
    %1263 = vmatpush2.msra.mxu0 %v1262
    %1264 = vmatprep.subr.mxu0 0.0
    %v1265 = vand.u32 %v237, 4294901760
    %1266 = vmatpush2.msra.mxu0 %v1265
    %1267 = vmatprep.subr.mxu0 0.0
    %v1268 = vand.u32 %v236, 4294901760
    %1269 = vmatpush2.msra.mxu0 %v1268
    %1270 = vmatprep.subr.mxu0 0.0
    %v1271 = vand.u32 %v235, 4294901760
    %1272 = vmatpush2.msra.mxu0 %v1271
    %1273 = vmatprep.subr.mxu0 0.0
    %v1274 = vand.u32 %v234, 4294901760
    %1275 = vmatpush2.msra.mxu0 %v1274
    %1276 = vmatprep.subr.mxu0 0.0
    %v1277 = vand.u32 %v233, 4294901760
    %1278 = vmatpush2.msra.mxu0 %v1277
    %1279 = vmatprep.subr.mxu0 0.0
    %v1280 = vand.u32 %v232, 4294901760
    %1281 = vmatpush2.msra.mxu0 %v1280
    %1282 = vmatprep.subr.mxu0 0.0
    %v1283 = vand.u32 %v231, 4294901760
    %1284 = vmatpush2.msra.mxu0 %v1283
    %1285 = vmatprep.subr.mxu0 0.0
    %v1286 = vand.u32 %v230, 4294901760
    %1287 = vmatpush2.msra.mxu0 %v1286
    %1288 = vmatprep.subr.mxu0 0.0
    %v1289 = vand.u32 %v229, 4294901760
    %1290 = vmatpush2.msra.mxu0 %v1289
    %1291 = vmatprep.subr.mxu0 0.0
    %v1292 = vand.u32 %v228, 4294901760
    %1293 = vmatpush2.msra.mxu0 %v1292
    %1294 = vmatprep.subr.mxu0 0.0
    %v1295 = vand.u32 %v227, 4294901760
    %1296 = vmatpush2.msra.mxu0 %v1295
    %1297 = vmatprep.subr.mxu0 0.0
    %v1298 = vand.u32 %v226, 4294901760
    %1299 = vmatpush2.msra.mxu0 %v1298
    %1300 = vmatprep.subr.mxu0 0.0
    %v1301 = vand.u32 %v225, 4294901760
    %1302 = vmatpush2.msra.mxu0 %v1301
    %1303 = vmatprep.subr.mxu0 0.0
    %v1304 = vand.u32 %v224, 4294901760
    %1305 = vmatpush2.msra.mxu0 %v1304
    %v1306 = vand.u32 %v322, 4294901760
    %v1307 = vsub.f32 %v322, %v1306
    %v1308 = vand.u32 %v1307, 4294901760
    %v1309 = vsub.f32 %v1307, %v1308
    %v1310 = vand.u32 %v1309, 4294901760
    %1311 = vmatprep.mubr.f32.mxu0 %v1310
    %v1312 = vand.u32 %v320, 4294901760
    %v1313 = vsub.f32 %v320, %v1312
    %v1314 = vand.u32 %v1313, 4294901760
    %v1315 = vsub.f32 %v1313, %v1314
    %v1316 = vand.u32 %v1315, 4294901760
    %1317 = vmatmul.mubr.f32.gmra.mxu0 %v1316
    %v1318 = vpop.f32.mrf.mxu0
    %v1319 = vadd.f32 %v1207, %v1318
    %v1320 = vpop.f32.mrf.mxu0
    %1321 = vdwg.mxu0
    %1322 = vmatprep.subr.mxu0 0.0
    %v1323 = vand.u32 %v223, 4294901760
    %v1324 = vsub.f32 %v223, %v1323
    %v1325 = vand.u32 %v1324, 4294901760
    %v1326 = vsub.f32 %v1324, %v1325
    %v1327 = vand.u32 %v1326, 4294901760
    %1328 = vmatpush1.msra.mxu0 %v1327
    %1329 = vmatprep.subr.mxu0 0.0
    %v1330 = vand.u32 %v222, 4294901760
    %v1331 = vsub.f32 %v222, %v1330
    %v1332 = vand.u32 %v1331, 4294901760
    %v1333 = vsub.f32 %v1331, %v1332
    %v1334 = vand.u32 %v1333, 4294901760
    %1335 = vmatpush1.msra.mxu0 %v1334
    %1336 = vmatprep.subr.mxu0 0.0
    %v1337 = vand.u32 %v221, 4294901760
    %v1338 = vsub.f32 %v221, %v1337
    %v1339 = vand.u32 %v1338, 4294901760
    %v1340 = vsub.f32 %v1338, %v1339
    %v1341 = vand.u32 %v1340, 4294901760
    %1342 = vmatpush1.msra.mxu0 %v1341
    %1343 = vmatprep.subr.mxu0 0.0
    %v1344 = vand.u32 %v220, 4294901760
    %v1345 = vsub.f32 %v220, %v1344
    %v1346 = vand.u32 %v1345, 4294901760
    %v1347 = vsub.f32 %v1345, %v1346
    %v1348 = vand.u32 %v1347, 4294901760
    %1349 = vmatpush1.msra.mxu0 %v1348
    %1350 = vmatprep.subr.mxu0 0.0
    %v1351 = vand.u32 %v219, 4294901760
    %v1352 = vsub.f32 %v219, %v1351
    %v1353 = vand.u32 %v1352, 4294901760
    %v1354 = vsub.f32 %v1352, %v1353
    %v1355 = vand.u32 %v1354, 4294901760
    %1356 = vmatpush1.msra.mxu0 %v1355
    %1357 = vmatprep.subr.mxu0 0.0
    %v1358 = vand.u32 %v218, 4294901760
    %v1359 = vsub.f32 %v218, %v1358
    %v1360 = vand.u32 %v1359, 4294901760
    %v1361 = vsub.f32 %v1359, %v1360
    %v1362 = vand.u32 %v1361, 4294901760
    %1363 = vmatpush1.msra.mxu0 %v1362
    %1364 = vmatprep.subr.mxu0 0.0
    %v1365 = vand.u32 %v217, 4294901760
    %v1366 = vsub.f32 %v217, %v1365
    %v1367 = vand.u32 %v1366, 4294901760
    %v1368 = vsub.f32 %v1366, %v1367
    %v1369 = vand.u32 %v1368, 4294901760
    %1370 = vmatpush1.msra.mxu0 %v1369
    %1371 = vmatprep.subr.mxu0 0.0
    %v1372 = vand.u32 %v216, 4294901760
    %v1373 = vsub.f32 %v216, %v1372
    %v1374 = vand.u32 %v1373, 4294901760
    %v1375 = vsub.f32 %v1373, %v1374
    %v1376 = vand.u32 %v1375, 4294901760
    %1377 = vmatpush1.msra.mxu0 %v1376
    %1378 = vmatprep.subr.mxu0 0.0
    %v1379 = vand.u32 %v215, 4294901760
    %v1380 = vsub.f32 %v215, %v1379
    %v1381 = vand.u32 %v1380, 4294901760
    %v1382 = vsub.f32 %v1380, %v1381
    %v1383 = vand.u32 %v1382, 4294901760
    %1384 = vmatpush1.msra.mxu0 %v1383
    %1385 = vmatprep.subr.mxu0 0.0
    %v1386 = vand.u32 %v214, 4294901760
    %v1387 = vsub.f32 %v214, %v1386
    %v1388 = vand.u32 %v1387, 4294901760
    %v1389 = vsub.f32 %v1387, %v1388
    %v1390 = vand.u32 %v1389, 4294901760
    %1391 = vmatpush1.msra.mxu0 %v1390
    %1392 = vmatprep.subr.mxu0 0.0
    %v1393 = vand.u32 %v213, 4294901760
    %v1394 = vsub.f32 %v213, %v1393
    %v1395 = vand.u32 %v1394, 4294901760
    %v1396 = vsub.f32 %v1394, %v1395
    %v1397 = vand.u32 %v1396, 4294901760
    %1398 = vmatpush1.msra.mxu0 %v1397
    %1399 = vmatprep.subr.mxu0 0.0
    %v1400 = vand.u32 %v212, 4294901760
    %v1401 = vsub.f32 %v212, %v1400
    %v1402 = vand.u32 %v1401, 4294901760
    %v1403 = vsub.f32 %v1401, %v1402
    %v1404 = vand.u32 %v1403, 4294901760
    %1405 = vmatpush1.msra.mxu0 %v1404
    %1406 = vmatprep.subr.mxu0 0.0
    %v1407 = vand.u32 %v211, 4294901760
    %v1408 = vsub.f32 %v211, %v1407
    %v1409 = vand.u32 %v1408, 4294901760
    %v1410 = vsub.f32 %v1408, %v1409
    %v1411 = vand.u32 %v1410, 4294901760
    %1412 = vmatpush1.msra.mxu0 %v1411
    %1413 = vmatprep.subr.mxu0 0.0
    %v1414 = vand.u32 %v210, 4294901760
    %v1415 = vsub.f32 %v210, %v1414
    %v1416 = vand.u32 %v1415, 4294901760
    %v1417 = vsub.f32 %v1415, %v1416
    %v1418 = vand.u32 %v1417, 4294901760
    %1419 = vmatpush1.msra.mxu0 %v1418
    %1420 = vmatprep.subr.mxu0 0.0
    %v1421 = vand.u32 %v209, 4294901760
    %v1422 = vsub.f32 %v209, %v1421
    %v1423 = vand.u32 %v1422, 4294901760
    %v1424 = vsub.f32 %v1422, %v1423
    %v1425 = vand.u32 %v1424, 4294901760
    %1426 = vmatpush1.msra.mxu0 %v1425
    %1427 = vmatprep.subr.mxu0 0.0
    %v1428 = vand.u32 %v208, 4294901760
    %v1429 = vsub.f32 %v208, %v1428
    %v1430 = vand.u32 %v1429, 4294901760
    %v1431 = vsub.f32 %v1429, %v1430
    %v1432 = vand.u32 %v1431, 4294901760
    %1433 = vmatpush1.msra.mxu0 %v1432
    %1434 = vmatprep.subr.mxu0 0.0
    %v1435 = vand.u32 %v239, 4294901760
    %v1436 = vsub.f32 %v239, %v1435
    %v1437 = vand.u32 %v1436, 4294901760
    %v1438 = vsub.f32 %v1436, %v1437
    %v1439 = vand.u32 %v1438, 4294901760
    %1440 = vmatpush2.msra.mxu0 %v1439
    %1441 = vmatprep.subr.mxu0 0.0
    %v1442 = vand.u32 %v238, 4294901760
    %v1443 = vsub.f32 %v238, %v1442
    %v1444 = vand.u32 %v1443, 4294901760
    %v1445 = vsub.f32 %v1443, %v1444
    %v1446 = vand.u32 %v1445, 4294901760
    %1447 = vmatpush2.msra.mxu0 %v1446
    %1448 = vmatprep.subr.mxu0 0.0
    %v1449 = vand.u32 %v237, 4294901760
    %v1450 = vsub.f32 %v237, %v1449
    %v1451 = vand.u32 %v1450, 4294901760
    %v1452 = vsub.f32 %v1450, %v1451
    %v1453 = vand.u32 %v1452, 4294901760
    %1454 = vmatpush2.msra.mxu0 %v1453
    %1455 = vmatprep.subr.mxu0 0.0
    %v1456 = vand.u32 %v236, 4294901760
    %v1457 = vsub.f32 %v236, %v1456
    %v1458 = vand.u32 %v1457, 4294901760
    %v1459 = vsub.f32 %v1457, %v1458
    %v1460 = vand.u32 %v1459, 4294901760
    %1461 = vmatpush2.msra.mxu0 %v1460
    %1462 = vmatprep.subr.mxu0 0.0
    %v1463 = vand.u32 %v235, 4294901760
    %v1464 = vsub.f32 %v235, %v1463
    %v1465 = vand.u32 %v1464, 4294901760
    %v1466 = vsub.f32 %v1464, %v1465
    %v1467 = vand.u32 %v1466, 4294901760
    %1468 = vmatpush2.msra.mxu0 %v1467
    %1469 = vmatprep.subr.mxu0 0.0
    %v1470 = vand.u32 %v234, 4294901760
    %v1471 = vsub.f32 %v234, %v1470
    %v1472 = vand.u32 %v1471, 4294901760
    %v1473 = vsub.f32 %v1471, %v1472
    %v1474 = vand.u32 %v1473, 4294901760
    %1475 = vmatpush2.msra.mxu0 %v1474
    %1476 = vmatprep.subr.mxu0 0.0
    %v1477 = vand.u32 %v233, 4294901760
    %v1478 = vsub.f32 %v233, %v1477
    %v1479 = vand.u32 %v1478, 4294901760
    %v1480 = vsub.f32 %v1478, %v1479
    %v1481 = vand.u32 %v1480, 4294901760
    %1482 = vmatpush2.msra.mxu0 %v1481
    %1483 = vmatprep.subr.mxu0 0.0
    %v1484 = vand.u32 %v232, 4294901760
    %v1485 = vsub.f32 %v232, %v1484
    %v1486 = vand.u32 %v1485, 4294901760
    %v1487 = vsub.f32 %v1485, %v1486
    %v1488 = vand.u32 %v1487, 4294901760
    %1489 = vmatpush2.msra.mxu0 %v1488
    %1490 = vmatprep.subr.mxu0 0.0
    %v1491 = vand.u32 %v231, 4294901760
    %v1492 = vsub.f32 %v231, %v1491
    %v1493 = vand.u32 %v1492, 4294901760
    %v1494 = vsub.f32 %v1492, %v1493
    %v1495 = vand.u32 %v1494, 4294901760
    %1496 = vmatpush2.msra.mxu0 %v1495
    %1497 = vmatprep.subr.mxu0 0.0
    %v1498 = vand.u32 %v230, 4294901760
    %v1499 = vsub.f32 %v230, %v1498
    %v1500 = vand.u32 %v1499, 4294901760
    %v1501 = vsub.f32 %v1499, %v1500
    %v1502 = vand.u32 %v1501, 4294901760
    %1503 = vmatpush2.msra.mxu0 %v1502
    %1504 = vmatprep.subr.mxu0 0.0
    %v1505 = vand.u32 %v229, 4294901760
    %v1506 = vsub.f32 %v229, %v1505
    %v1507 = vand.u32 %v1506, 4294901760
    %v1508 = vsub.f32 %v1506, %v1507
    %v1509 = vand.u32 %v1508, 4294901760
    %1510 = vmatpush2.msra.mxu0 %v1509
    %1511 = vmatprep.subr.mxu0 0.0
    %v1512 = vand.u32 %v228, 4294901760
    %v1513 = vsub.f32 %v228, %v1512
    %v1514 = vand.u32 %v1513, 4294901760
    %v1515 = vsub.f32 %v1513, %v1514
    %v1516 = vand.u32 %v1515, 4294901760
    %1517 = vmatpush2.msra.mxu0 %v1516
    %1518 = vmatprep.subr.mxu0 0.0
    %v1519 = vand.u32 %v227, 4294901760
    %v1520 = vsub.f32 %v227, %v1519
    %v1521 = vand.u32 %v1520, 4294901760
    %v1522 = vsub.f32 %v1520, %v1521
    %v1523 = vand.u32 %v1522, 4294901760
    %1524 = vmatpush2.msra.mxu0 %v1523
    %1525 = vmatprep.subr.mxu0 0.0
    %v1526 = vand.u32 %v226, 4294901760
    %v1527 = vsub.f32 %v226, %v1526
    %v1528 = vand.u32 %v1527, 4294901760
    %v1529 = vsub.f32 %v1527, %v1528
    %v1530 = vand.u32 %v1529, 4294901760
    %1531 = vmatpush2.msra.mxu0 %v1530
    %1532 = vmatprep.subr.mxu0 0.0
    %v1533 = vand.u32 %v225, 4294901760
    %v1534 = vsub.f32 %v225, %v1533
    %v1535 = vand.u32 %v1534, 4294901760
    %v1536 = vsub.f32 %v1534, %v1535
    %v1537 = vand.u32 %v1536, 4294901760
    %1538 = vmatpush2.msra.mxu0 %v1537
    %1539 = vmatprep.subr.mxu0 0.0
    %v1540 = vand.u32 %v224, 4294901760
    %v1541 = vsub.f32 %v224, %v1540
    %v1542 = vand.u32 %v1541, 4294901760
    %v1543 = vsub.f32 %v1541, %v1542
    %v1544 = vand.u32 %v1543, 4294901760
    %1545 = vmatpush2.msra.mxu0 %v1544
    %v1546 = vand.u32 %v322, 4294901760
    %1547 = vmatprep.mubr.f32.mxu0 %v1546
    %v1548 = vand.u32 %v320, 4294901760
    %1549 = vmatmul.mubr.f32.gmra.mxu0 %v1548
    %v1550 = vpop.f32.mrf.mxu0
    %v1551 = vadd.f32 %v1319, %v1550
    %v1552 = vpop.f32.mrf.mxu0
    %1553 = vdwg.mxu0
    %1554 = vmatprep.subr.mxu0 0.0
    %v1555 = vand.u32 %v223, 4294901760
    %v1556 = vsub.f32 %v223, %v1555
    %1557 = vmatpush1.msra.mxu0 %v1556
    %1558 = vmatprep.subr.mxu0 0.0
    %v1559 = vand.u32 %v222, 4294901760
    %v1560 = vsub.f32 %v222, %v1559
    %1561 = vmatpush1.msra.mxu0 %v1560
    %1562 = vmatprep.subr.mxu0 0.0
    %v1563 = vand.u32 %v221, 4294901760
    %v1564 = vsub.f32 %v221, %v1563
    %1565 = vmatpush1.msra.mxu0 %v1564
    %1566 = vmatprep.subr.mxu0 0.0
    %v1567 = vand.u32 %v220, 4294901760
    %v1568 = vsub.f32 %v220, %v1567
    %1569 = vmatpush1.msra.mxu0 %v1568
    %1570 = vmatprep.subr.mxu0 0.0
    %v1571 = vand.u32 %v219, 4294901760
    %v1572 = vsub.f32 %v219, %v1571
    %1573 = vmatpush1.msra.mxu0 %v1572
    %1574 = vmatprep.subr.mxu0 0.0
    %v1575 = vand.u32 %v218, 4294901760
    %v1576 = vsub.f32 %v218, %v1575
    %1577 = vmatpush1.msra.mxu0 %v1576
    %1578 = vmatprep.subr.mxu0 0.0
    %v1579 = vand.u32 %v217, 4294901760
    %v1580 = vsub.f32 %v217, %v1579
    %1581 = vmatpush1.msra.mxu0 %v1580
    %1582 = vmatprep.subr.mxu0 0.0
    %v1583 = vand.u32 %v216, 4294901760
    %v1584 = vsub.f32 %v216, %v1583
    %1585 = vmatpush1.msra.mxu0 %v1584
    %1586 = vmatprep.subr.mxu0 0.0
    %v1587 = vand.u32 %v215, 4294901760
    %v1588 = vsub.f32 %v215, %v1587
    %1589 = vmatpush1.msra.mxu0 %v1588
    %1590 = vmatprep.subr.mxu0 0.0
    %v1591 = vand.u32 %v214, 4294901760
    %v1592 = vsub.f32 %v214, %v1591
    %1593 = vmatpush1.msra.mxu0 %v1592
    %1594 = vmatprep.subr.mxu0 0.0
    %v1595 = vand.u32 %v213, 4294901760
    %v1596 = vsub.f32 %v213, %v1595
    %1597 = vmatpush1.msra.mxu0 %v1596
    %1598 = vmatprep.subr.mxu0 0.0
    %v1599 = vand.u32 %v212, 4294901760
    %v1600 = vsub.f32 %v212, %v1599
    %1601 = vmatpush1.msra.mxu0 %v1600
    %1602 = vmatprep.subr.mxu0 0.0
    %v1603 = vand.u32 %v211, 4294901760
    %v1604 = vsub.f32 %v211, %v1603
    %1605 = vmatpush1.msra.mxu0 %v1604
    %1606 = vmatprep.subr.mxu0 0.0
    %v1607 = vand.u32 %v210, 4294901760
    %v1608 = vsub.f32 %v210, %v1607
    %1609 = vmatpush1.msra.mxu0 %v1608
    %1610 = vmatprep.subr.mxu0 0.0
    %v1611 = vand.u32 %v209, 4294901760
    %v1612 = vsub.f32 %v209, %v1611
    %1613 = vmatpush1.msra.mxu0 %v1612
    %1614 = vmatprep.subr.mxu0 0.0
    %v1615 = vand.u32 %v208, 4294901760
    %v1616 = vsub.f32 %v208, %v1615
    %1617 = vmatpush1.msra.mxu0 %v1616
    %1618 = vmatprep.subr.mxu0 0.0
    %v1619 = vand.u32 %v239, 4294901760
    %v1620 = vsub.f32 %v239, %v1619
    %1621 = vmatpush2.msra.mxu0 %v1620
    %1622 = vmatprep.subr.mxu0 0.0
    %v1623 = vand.u32 %v238, 4294901760
    %v1624 = vsub.f32 %v238, %v1623
    %1625 = vmatpush2.msra.mxu0 %v1624
    %1626 = vmatprep.subr.mxu0 0.0
    %v1627 = vand.u32 %v237, 4294901760
    %v1628 = vsub.f32 %v237, %v1627
    %1629 = vmatpush2.msra.mxu0 %v1628
    %1630 = vmatprep.subr.mxu0 0.0
    %v1631 = vand.u32 %v236, 4294901760
    %v1632 = vsub.f32 %v236, %v1631
    %1633 = vmatpush2.msra.mxu0 %v1632
    %1634 = vmatprep.subr.mxu0 0.0
    %v1635 = vand.u32 %v235, 4294901760
    %v1636 = vsub.f32 %v235, %v1635
    %1637 = vmatpush2.msra.mxu0 %v1636
    %1638 = vmatprep.subr.mxu0 0.0
    %v1639 = vand.u32 %v234, 4294901760
    %v1640 = vsub.f32 %v234, %v1639
    %1641 = vmatpush2.msra.mxu0 %v1640
    %1642 = vmatprep.subr.mxu0 0.0
    %v1643 = vand.u32 %v233, 4294901760
    %v1644 = vsub.f32 %v233, %v1643
    %1645 = vmatpush2.msra.mxu0 %v1644
    %1646 = vmatprep.subr.mxu0 0.0
    %v1647 = vand.u32 %v232, 4294901760
    %v1648 = vsub.f32 %v232, %v1647
    %1649 = vmatpush2.msra.mxu0 %v1648
    %1650 = vmatprep.subr.mxu0 0.0
    %v1651 = vand.u32 %v231, 4294901760
    %v1652 = vsub.f32 %v231, %v1651
    %1653 = vmatpush2.msra.mxu0 %v1652
    %1654 = vmatprep.subr.mxu0 0.0
    %v1655 = vand.u32 %v230, 4294901760
    %v1656 = vsub.f32 %v230, %v1655
    %1657 = vmatpush2.msra.mxu0 %v1656
    %1658 = vmatprep.subr.mxu0 0.0
    %v1659 = vand.u32 %v229, 4294901760
    %v1660 = vsub.f32 %v229, %v1659
    %1661 = vmatpush2.msra.mxu0 %v1660
    %1662 = vmatprep.subr.mxu0 0.0
    %v1663 = vand.u32 %v228, 4294901760
    %v1664 = vsub.f32 %v228, %v1663
    %1665 = vmatpush2.msra.mxu0 %v1664
    %1666 = vmatprep.subr.mxu0 0.0
    %v1667 = vand.u32 %v227, 4294901760
    %v1668 = vsub.f32 %v227, %v1667
    %1669 = vmatpush2.msra.mxu0 %v1668
    %1670 = vmatprep.subr.mxu0 0.0
    %v1671 = vand.u32 %v226, 4294901760
    %v1672 = vsub.f32 %v226, %v1671
    %1673 = vmatpush2.msra.mxu0 %v1672
    %1674 = vmatprep.subr.mxu0 0.0
    %v1675 = vand.u32 %v225, 4294901760
    %v1676 = vsub.f32 %v225, %v1675
    %1677 = vmatpush2.msra.mxu0 %v1676
    %1678 = vmatprep.subr.mxu0 0.0
    %v1679 = vand.u32 %v224, 4294901760
    %v1680 = vsub.f32 %v224, %v1679
    %1681 = vmatpush2.msra.mxu0 %v1680
    %v1682 = vand.u32 %v322, 4294901760
    %v1683 = vsub.f32 %v322, %v1682
    %1684 = vmatprep.mubr.f32.mxu0 %v1683
    %v1685 = vand.u32 %v320, 4294901760
    %v1686 = vsub.f32 %v320, %v1685
    %1687 = vmatmul.mubr.f32.gmra.mxu0 %v1686
    %v1688 = vpop.f32.mrf.mxu0
    %v1689 = vadd.f32 %v1551, %v1688
    %v1690 = vpop.f32.mrf.mxu0
    %1691 = vdwg.mxu0
    %1692 = vmatprep.subr.mxu0 0.0
    %v1693 = vand.u32 %v223, 4294901760
    %1694 = vmatpush1.msra.mxu0 %v1693
    %1695 = vmatprep.subr.mxu0 0.0
    %v1696 = vand.u32 %v222, 4294901760
    %1697 = vmatpush1.msra.mxu0 %v1696
    %1698 = vmatprep.subr.mxu0 0.0
    %v1699 = vand.u32 %v221, 4294901760
    %1700 = vmatpush1.msra.mxu0 %v1699
    %1701 = vmatprep.subr.mxu0 0.0
    %v1702 = vand.u32 %v220, 4294901760
    %1703 = vmatpush1.msra.mxu0 %v1702
    %1704 = vmatprep.subr.mxu0 0.0
    %v1705 = vand.u32 %v219, 4294901760
    %1706 = vmatpush1.msra.mxu0 %v1705
    %1707 = vmatprep.subr.mxu0 0.0
    %v1708 = vand.u32 %v218, 4294901760
    %1709 = vmatpush1.msra.mxu0 %v1708
    %1710 = vmatprep.subr.mxu0 0.0
    %v1711 = vand.u32 %v217, 4294901760
    %1712 = vmatpush1.msra.mxu0 %v1711
    %1713 = vmatprep.subr.mxu0 0.0
    %v1714 = vand.u32 %v216, 4294901760
    %1715 = vmatpush1.msra.mxu0 %v1714
    %1716 = vmatprep.subr.mxu0 0.0
    %v1717 = vand.u32 %v215, 4294901760
    %1718 = vmatpush1.msra.mxu0 %v1717
    %1719 = vmatprep.subr.mxu0 0.0
    %v1720 = vand.u32 %v214, 4294901760
    %1721 = vmatpush1.msra.mxu0 %v1720
    %1722 = vmatprep.subr.mxu0 0.0
    %v1723 = vand.u32 %v213, 4294901760
    %1724 = vmatpush1.msra.mxu0 %v1723
    %1725 = vmatprep.subr.mxu0 0.0
    %v1726 = vand.u32 %v212, 4294901760
    %1727 = vmatpush1.msra.mxu0 %v1726
    %1728 = vmatprep.subr.mxu0 0.0
    %v1729 = vand.u32 %v211, 4294901760
    %1730 = vmatpush1.msra.mxu0 %v1729
    %1731 = vmatprep.subr.mxu0 0.0
    %v1732 = vand.u32 %v210, 4294901760
    %1733 = vmatpush1.msra.mxu0 %v1732
    %1734 = vmatprep.subr.mxu0 0.0
    %v1735 = vand.u32 %v209, 4294901760
    %1736 = vmatpush1.msra.mxu0 %v1735
    %1737 = vmatprep.subr.mxu0 0.0
    %v1738 = vand.u32 %v208, 4294901760
    %1739 = vmatpush1.msra.mxu0 %v1738
    %1740 = vmatprep.subr.mxu0 0.0
    %v1741 = vand.u32 %v239, 4294901760
    %1742 = vmatpush2.msra.mxu0 %v1741
    %1743 = vmatprep.subr.mxu0 0.0
    %v1744 = vand.u32 %v238, 4294901760
    %1745 = vmatpush2.msra.mxu0 %v1744
    %1746 = vmatprep.subr.mxu0 0.0
    %v1747 = vand.u32 %v237, 4294901760
    %1748 = vmatpush2.msra.mxu0 %v1747
    %1749 = vmatprep.subr.mxu0 0.0
    %v1750 = vand.u32 %v236, 4294901760
    %1751 = vmatpush2.msra.mxu0 %v1750
    %1752 = vmatprep.subr.mxu0 0.0
    %v1753 = vand.u32 %v235, 4294901760
    %1754 = vmatpush2.msra.mxu0 %v1753
    %1755 = vmatprep.subr.mxu0 0.0
    %v1756 = vand.u32 %v234, 4294901760
    %1757 = vmatpush2.msra.mxu0 %v1756
    %1758 = vmatprep.subr.mxu0 0.0
    %v1759 = vand.u32 %v233, 4294901760
    %1760 = vmatpush2.msra.mxu0 %v1759
    %1761 = vmatprep.subr.mxu0 0.0
    %v1762 = vand.u32 %v232, 4294901760
    %1763 = vmatpush2.msra.mxu0 %v1762
    %1764 = vmatprep.subr.mxu0 0.0
    %v1765 = vand.u32 %v231, 4294901760
    %1766 = vmatpush2.msra.mxu0 %v1765
    %1767 = vmatprep.subr.mxu0 0.0
    %v1768 = vand.u32 %v230, 4294901760
    %1769 = vmatpush2.msra.mxu0 %v1768
    %1770 = vmatprep.subr.mxu0 0.0
    %v1771 = vand.u32 %v229, 4294901760
    %1772 = vmatpush2.msra.mxu0 %v1771
    %1773 = vmatprep.subr.mxu0 0.0
    %v1774 = vand.u32 %v228, 4294901760
    %1775 = vmatpush2.msra.mxu0 %v1774
    %1776 = vmatprep.subr.mxu0 0.0
    %v1777 = vand.u32 %v227, 4294901760
    %1778 = vmatpush2.msra.mxu0 %v1777
    %1779 = vmatprep.subr.mxu0 0.0
    %v1780 = vand.u32 %v226, 4294901760
    %1781 = vmatpush2.msra.mxu0 %v1780
    %1782 = vmatprep.subr.mxu0 0.0
    %v1783 = vand.u32 %v225, 4294901760
    %1784 = vmatpush2.msra.mxu0 %v1783
    %1785 = vmatprep.subr.mxu0 0.0
    %v1786 = vand.u32 %v224, 4294901760
    %1787 = vmatpush2.msra.mxu0 %v1786
    %v1788 = vand.u32 %v322, 4294901760
    %v1789 = vsub.f32 %v322, %v1788
    %v1790 = vand.u32 %v1789, 4294901760
    %1791 = vmatprep.mubr.f32.mxu0 %v1790
    %v1792 = vand.u32 %v320, 4294901760
    %v1793 = vsub.f32 %v320, %v1792
    %v1794 = vand.u32 %v1793, 4294901760
    %1795 = vmatmul.mubr.f32.gmra.mxu0 %v1794
    %v1796 = vpop.f32.mrf.mxu0
    %v1797 = vadd.f32 %v1689, %v1796
    %v1798 = vpop.f32.mrf.mxu0
    %1799 = vdwg.mxu0
    %1800 = vmatprep.subr.mxu0 0.0
    %v1801 = vand.u32 %v223, 4294901760
    %v1802 = vsub.f32 %v223, %v1801
    %v1803 = vand.u32 %v1802, 4294901760
    %1804 = vmatpush1.msra.mxu0 %v1803
    %1805 = vmatprep.subr.mxu0 0.0
    %v1806 = vand.u32 %v222, 4294901760
    %v1807 = vsub.f32 %v222, %v1806
    %v1808 = vand.u32 %v1807, 4294901760
    %1809 = vmatpush1.msra.mxu0 %v1808
    %1810 = vmatprep.subr.mxu0 0.0
    %v1811 = vand.u32 %v221, 4294901760
    %v1812 = vsub.f32 %v221, %v1811
    %v1813 = vand.u32 %v1812, 4294901760
    %1814 = vmatpush1.msra.mxu0 %v1813
    %1815 = vmatprep.subr.mxu0 0.0
    %v1816 = vand.u32 %v220, 4294901760
    %v1817 = vsub.f32 %v220, %v1816
    %v1818 = vand.u32 %v1817, 4294901760
    %1819 = vmatpush1.msra.mxu0 %v1818
    %1820 = vmatprep.subr.mxu0 0.0
    %v1821 = vand.u32 %v219, 4294901760
    %v1822 = vsub.f32 %v219, %v1821
    %v1823 = vand.u32 %v1822, 4294901760
    %1824 = vmatpush1.msra.mxu0 %v1823
    %1825 = vmatprep.subr.mxu0 0.0
    %v1826 = vand.u32 %v218, 4294901760
    %v1827 = vsub.f32 %v218, %v1826
    %v1828 = vand.u32 %v1827, 4294901760
    %1829 = vmatpush1.msra.mxu0 %v1828
    %1830 = vmatprep.subr.mxu0 0.0
    %v1831 = vand.u32 %v217, 4294901760
    %v1832 = vsub.f32 %v217, %v1831
    %v1833 = vand.u32 %v1832, 4294901760
    %1834 = vmatpush1.msra.mxu0 %v1833
    %1835 = vmatprep.subr.mxu0 0.0
    %v1836 = vand.u32 %v216, 4294901760
    %v1837 = vsub.f32 %v216, %v1836
    %v1838 = vand.u32 %v1837, 4294901760
    %1839 = vmatpush1.msra.mxu0 %v1838
    %1840 = vmatprep.subr.mxu0 0.0
    %v1841 = vand.u32 %v215, 4294901760
    %v1842 = vsub.f32 %v215, %v1841
    %v1843 = vand.u32 %v1842, 4294901760
    %1844 = vmatpush1.msra.mxu0 %v1843
    %1845 = vmatprep.subr.mxu0 0.0
    %v1846 = vand.u32 %v214, 4294901760
    %v1847 = vsub.f32 %v214, %v1846
    %v1848 = vand.u32 %v1847, 4294901760
    %1849 = vmatpush1.msra.mxu0 %v1848
    %1850 = vmatprep.subr.mxu0 0.0
    %v1851 = vand.u32 %v213, 4294901760
    %v1852 = vsub.f32 %v213, %v1851
    %v1853 = vand.u32 %v1852, 4294901760
    %1854 = vmatpush1.msra.mxu0 %v1853
    %1855 = vmatprep.subr.mxu0 0.0
    %v1856 = vand.u32 %v212, 4294901760
    %v1857 = vsub.f32 %v212, %v1856
    %v1858 = vand.u32 %v1857, 4294901760
    %1859 = vmatpush1.msra.mxu0 %v1858
    %1860 = vmatprep.subr.mxu0 0.0
    %v1861 = vand.u32 %v211, 4294901760
    %v1862 = vsub.f32 %v211, %v1861
    %v1863 = vand.u32 %v1862, 4294901760
    %1864 = vmatpush1.msra.mxu0 %v1863
    %1865 = vmatprep.subr.mxu0 0.0
    %v1866 = vand.u32 %v210, 4294901760
    %v1867 = vsub.f32 %v210, %v1866
    %v1868 = vand.u32 %v1867, 4294901760
    %1869 = vmatpush1.msra.mxu0 %v1868
    %1870 = vmatprep.subr.mxu0 0.0
    %v1871 = vand.u32 %v209, 4294901760
    %v1872 = vsub.f32 %v209, %v1871
    %v1873 = vand.u32 %v1872, 4294901760
    %1874 = vmatpush1.msra.mxu0 %v1873
    %1875 = vmatprep.subr.mxu0 0.0
    %v1876 = vand.u32 %v208, 4294901760
    %v1877 = vsub.f32 %v208, %v1876
    %v1878 = vand.u32 %v1877, 4294901760
    %1879 = vmatpush1.msra.mxu0 %v1878
    %1880 = vmatprep.subr.mxu0 0.0
    %v1881 = vand.u32 %v239, 4294901760
    %v1882 = vsub.f32 %v239, %v1881
    %v1883 = vand.u32 %v1882, 4294901760
    %1884 = vmatpush2.msra.mxu0 %v1883
    %1885 = vmatprep.subr.mxu0 0.0
    %v1886 = vand.u32 %v238, 4294901760
    %v1887 = vsub.f32 %v238, %v1886
    %v1888 = vand.u32 %v1887, 4294901760
    %1889 = vmatpush2.msra.mxu0 %v1888
    %1890 = vmatprep.subr.mxu0 0.0
    %v1891 = vand.u32 %v237, 4294901760
    %v1892 = vsub.f32 %v237, %v1891
    %v1893 = vand.u32 %v1892, 4294901760
    %1894 = vmatpush2.msra.mxu0 %v1893
    %1895 = vmatprep.subr.mxu0 0.0
    %v1896 = vand.u32 %v236, 4294901760
    %v1897 = vsub.f32 %v236, %v1896
    %v1898 = vand.u32 %v1897, 4294901760
    %1899 = vmatpush2.msra.mxu0 %v1898
    %1900 = vmatprep.subr.mxu0 0.0
    %v1901 = vand.u32 %v235, 4294901760
    %v1902 = vsub.f32 %v235, %v1901
    %v1903 = vand.u32 %v1902, 4294901760
    %1904 = vmatpush2.msra.mxu0 %v1903
    %1905 = vmatprep.subr.mxu0 0.0
    %v1906 = vand.u32 %v234, 4294901760
    %v1907 = vsub.f32 %v234, %v1906
    %v1908 = vand.u32 %v1907, 4294901760
    %1909 = vmatpush2.msra.mxu0 %v1908
    %1910 = vmatprep.subr.mxu0 0.0
    %v1911 = vand.u32 %v233, 4294901760
    %v1912 = vsub.f32 %v233, %v1911
    %v1913 = vand.u32 %v1912, 4294901760
    %1914 = vmatpush2.msra.mxu0 %v1913
    %1915 = vmatprep.subr.mxu0 0.0
    %v1916 = vand.u32 %v232, 4294901760
    %v1917 = vsub.f32 %v232, %v1916
    %v1918 = vand.u32 %v1917, 4294901760
    %1919 = vmatpush2.msra.mxu0 %v1918
    %1920 = vmatprep.subr.mxu0 0.0
    %v1921 = vand.u32 %v231, 4294901760
    %v1922 = vsub.f32 %v231, %v1921
    %v1923 = vand.u32 %v1922, 4294901760
    %1924 = vmatpush2.msra.mxu0 %v1923
    %1925 = vmatprep.subr.mxu0 0.0
    %v1926 = vand.u32 %v230, 4294901760
    %v1927 = vsub.f32 %v230, %v1926
    %v1928 = vand.u32 %v1927, 4294901760
    %1929 = vmatpush2.msra.mxu0 %v1928
    %1930 = vmatprep.subr.mxu0 0.0
    %v1931 = vand.u32 %v229, 4294901760
    %v1932 = vsub.f32 %v229, %v1931
    %v1933 = vand.u32 %v1932, 4294901760
    %1934 = vmatpush2.msra.mxu0 %v1933
    %1935 = vmatprep.subr.mxu0 0.0
    %v1936 = vand.u32 %v228, 4294901760
    %v1937 = vsub.f32 %v228, %v1936
    %v1938 = vand.u32 %v1937, 4294901760
    %1939 = vmatpush2.msra.mxu0 %v1938
    %1940 = vmatprep.subr.mxu0 0.0
    %v1941 = vand.u32 %v227, 4294901760
    %v1942 = vsub.f32 %v227, %v1941
    %v1943 = vand.u32 %v1942, 4294901760
    %1944 = vmatpush2.msra.mxu0 %v1943
    %1945 = vmatprep.subr.mxu0 0.0
    %v1946 = vand.u32 %v226, 4294901760
    %v1947 = vsub.f32 %v226, %v1946
    %v1948 = vand.u32 %v1947, 4294901760
    %1949 = vmatpush2.msra.mxu0 %v1948
    %1950 = vmatprep.subr.mxu0 0.0
    %v1951 = vand.u32 %v225, 4294901760
    %v1952 = vsub.f32 %v225, %v1951
    %v1953 = vand.u32 %v1952, 4294901760
    %1954 = vmatpush2.msra.mxu0 %v1953
    %1955 = vmatprep.subr.mxu0 0.0
    %v1956 = vand.u32 %v224, 4294901760
    %v1957 = vsub.f32 %v224, %v1956
    %v1958 = vand.u32 %v1957, 4294901760
    %1959 = vmatpush2.msra.mxu0 %v1958
    %v1960 = vand.u32 %v322, 4294901760
    %1961 = vmatprep.mubr.f32.mxu0 %v1960
    %v1962 = vand.u32 %v320, 4294901760
    %1963 = vmatmul.mubr.f32.gmra.mxu0 %v1962
    %v1964 = vpop.f32.mrf.mxu0
    %v1965 = vadd.f32 %v1797, %v1964
    %v1966 = vpop.f32.mrf.mxu0
    %1967 = vdwg.mxu0
    %1968 = vmatprep.subr.mxu0 0.0
    %v1969 = vand.u32 %v223, 4294901760
    %1970 = vmatpush1.msra.mxu0 %v1969
    %1971 = vmatprep.subr.mxu0 0.0
    %v1972 = vand.u32 %v222, 4294901760
    %1973 = vmatpush1.msra.mxu0 %v1972
    %1974 = vmatprep.subr.mxu0 0.0
    %v1975 = vand.u32 %v221, 4294901760
    %1976 = vmatpush1.msra.mxu0 %v1975
    %1977 = vmatprep.subr.mxu0 0.0
    %v1978 = vand.u32 %v220, 4294901760
    %1979 = vmatpush1.msra.mxu0 %v1978
    %1980 = vmatprep.subr.mxu0 0.0
    %v1981 = vand.u32 %v219, 4294901760
    %1982 = vmatpush1.msra.mxu0 %v1981
    %1983 = vmatprep.subr.mxu0 0.0
    %v1984 = vand.u32 %v218, 4294901760
    %1985 = vmatpush1.msra.mxu0 %v1984
    %1986 = vmatprep.subr.mxu0 0.0
    %v1987 = vand.u32 %v217, 4294901760
    %1988 = vmatpush1.msra.mxu0 %v1987
    %1989 = vmatprep.subr.mxu0 0.0
    %v1990 = vand.u32 %v216, 4294901760
    %1991 = vmatpush1.msra.mxu0 %v1990
    %1992 = vmatprep.subr.mxu0 0.0
    %v1993 = vand.u32 %v215, 4294901760
    %1994 = vmatpush1.msra.mxu0 %v1993
    %1995 = vmatprep.subr.mxu0 0.0
    %v1996 = vand.u32 %v214, 4294901760
    %1997 = vmatpush1.msra.mxu0 %v1996
    %1998 = vmatprep.subr.mxu0 0.0
    %v1999 = vand.u32 %v213, 4294901760
    %2000 = vmatpush1.msra.mxu0 %v1999
    %2001 = vmatprep.subr.mxu0 0.0
    %v2002 = vand.u32 %v212, 4294901760
    %2003 = vmatpush1.msra.mxu0 %v2002
    %2004 = vmatprep.subr.mxu0 0.0
    %v2005 = vand.u32 %v211, 4294901760
    %2006 = vmatpush1.msra.mxu0 %v2005
    %2007 = vmatprep.subr.mxu0 0.0
    %v2008 = vand.u32 %v210, 4294901760
    %2009 = vmatpush1.msra.mxu0 %v2008
    %2010 = vmatprep.subr.mxu0 0.0
    %v2011 = vand.u32 %v209, 4294901760
    %2012 = vmatpush1.msra.mxu0 %v2011
    %2013 = vmatprep.subr.mxu0 0.0
    %v2014 = vand.u32 %v208, 4294901760
    %2015 = vmatpush1.msra.mxu0 %v2014
    %2016 = vmatprep.subr.mxu0 0.0
    %v2017 = vand.u32 %v239, 4294901760
    %2018 = vmatpush2.msra.mxu0 %v2017
    %2019 = vmatprep.subr.mxu0 0.0
    %v2020 = vand.u32 %v238, 4294901760
    %2021 = vmatpush2.msra.mxu0 %v2020
    %2022 = vmatprep.subr.mxu0 0.0
    %v2023 = vand.u32 %v237, 4294901760
    %2024 = vmatpush2.msra.mxu0 %v2023
    %2025 = vmatprep.subr.mxu0 0.0
    %v2026 = vand.u32 %v236, 4294901760
    %2027 = vmatpush2.msra.mxu0 %v2026
    %2028 = vmatprep.subr.mxu0 0.0
    %v2029 = vand.u32 %v235, 4294901760
    %2030 = vmatpush2.msra.mxu0 %v2029
    %2031 = vmatprep.subr.mxu0 0.0
    %v2032 = vand.u32 %v234, 4294901760
    %2033 = vmatpush2.msra.mxu0 %v2032
    %2034 = vmatprep.subr.mxu0 0.0
    %v2035 = vand.u32 %v233, 4294901760
    %2036 = vmatpush2.msra.mxu0 %v2035
    %2037 = vmatprep.subr.mxu0 0.0
    %v2038 = vand.u32 %v232, 4294901760
    %2039 = vmatpush2.msra.mxu0 %v2038
    %2040 = vmatprep.subr.mxu0 0.0
    %v2041 = vand.u32 %v231, 4294901760
    %2042 = vmatpush2.msra.mxu0 %v2041
    %2043 = vmatprep.subr.mxu0 0.0
    %v2044 = vand.u32 %v230, 4294901760
    %2045 = vmatpush2.msra.mxu0 %v2044
    %2046 = vmatprep.subr.mxu0 0.0
    %v2047 = vand.u32 %v229, 4294901760
    %2048 = vmatpush2.msra.mxu0 %v2047
    %2049 = vmatprep.subr.mxu0 0.0
    %v2050 = vand.u32 %v228, 4294901760
    %2051 = vmatpush2.msra.mxu0 %v2050
    %2052 = vmatprep.subr.mxu0 0.0
    %v2053 = vand.u32 %v227, 4294901760
    %2054 = vmatpush2.msra.mxu0 %v2053
    %2055 = vmatprep.subr.mxu0 0.0
    %v2056 = vand.u32 %v226, 4294901760
    %2057 = vmatpush2.msra.mxu0 %v2056
    %2058 = vmatprep.subr.mxu0 0.0
    %v2059 = vand.u32 %v225, 4294901760
    %2060 = vmatpush2.msra.mxu0 %v2059
    %2061 = vmatprep.subr.mxu0 0.0
    %v2062 = vand.u32 %v224, 4294901760
    %2063 = vmatpush2.msra.mxu0 %v2062
    %v2064 = vand.u32 %v322, 4294901760
    %2065 = vmatprep.mubr.f32.mxu0 %v2064
    %v2066 = vand.u32 %v320, 4294901760
    %2067 = vmatmul.mubr.f32.gmra.mxu0 %v2066
    %v2068 = vpop.f32.mrf.mxu0
    %v2069 = vadd.f32 %v1965, %v2068
    %v2070 = vpop.f32.mrf.mxu0
    %2071 = vdwg.mxu0
    %2072 = vmatprep.subr.mxu0 0.0
    %v2073 = vand.u32 %v255, 4294901760
    %2074 = vmatpush1.msra.mxu0 %v2073
    %2075 = vmatprep.subr.mxu0 0.0
    %v2076 = vand.u32 %v254, 4294901760
    %2077 = vmatpush1.msra.mxu0 %v2076
    %2078 = vmatprep.subr.mxu0 0.0
    %v2079 = vand.u32 %v253, 4294901760
    %2080 = vmatpush1.msra.mxu0 %v2079
    %2081 = vmatprep.subr.mxu0 0.0
    %v2082 = vand.u32 %v252, 4294901760
    %2083 = vmatpush1.msra.mxu0 %v2082
    %2084 = vmatprep.subr.mxu0 0.0
    %v2085 = vand.u32 %v251, 4294901760
    %2086 = vmatpush1.msra.mxu0 %v2085
    %2087 = vmatprep.subr.mxu0 0.0
    %v2088 = vand.u32 %v250, 4294901760
    %2089 = vmatpush1.msra.mxu0 %v2088
    %2090 = vmatprep.subr.mxu0 0.0
    %v2091 = vand.u32 %v249, 4294901760
    %2092 = vmatpush1.msra.mxu0 %v2091
    %2093 = vmatprep.subr.mxu0 0.0
    %v2094 = vand.u32 %v248, 4294901760
    %2095 = vmatpush1.msra.mxu0 %v2094
    %2096 = vmatprep.subr.mxu0 0.0
    %v2097 = vand.u32 %v247, 4294901760
    %2098 = vmatpush1.msra.mxu0 %v2097
    %2099 = vmatprep.subr.mxu0 0.0
    %v2100 = vand.u32 %v246, 4294901760
    %2101 = vmatpush1.msra.mxu0 %v2100
    %2102 = vmatprep.subr.mxu0 0.0
    %v2103 = vand.u32 %v245, 4294901760
    %2104 = vmatpush1.msra.mxu0 %v2103
    %2105 = vmatprep.subr.mxu0 0.0
    %v2106 = vand.u32 %v244, 4294901760
    %2107 = vmatpush1.msra.mxu0 %v2106
    %2108 = vmatprep.subr.mxu0 0.0
    %v2109 = vand.u32 %v243, 4294901760
    %2110 = vmatpush1.msra.mxu0 %v2109
    %2111 = vmatprep.subr.mxu0 0.0
    %v2112 = vand.u32 %v242, 4294901760
    %2113 = vmatpush1.msra.mxu0 %v2112
    %2114 = vmatprep.subr.mxu0 0.0
    %v2115 = vand.u32 %v241, 4294901760
    %2116 = vmatpush1.msra.mxu0 %v2115
    %2117 = vmatprep.subr.mxu0 0.0
    %v2118 = vand.u32 %v240, 4294901760
    %2119 = vmatpush1.msra.mxu0 %v2118
    %2120 = vmatprep.subr.mxu0 0.0
    %v2121 = vand.u32 %v271, 4294901760
    %2122 = vmatpush2.msra.mxu0 %v2121
    %2123 = vmatprep.subr.mxu0 0.0
    %v2124 = vand.u32 %v270, 4294901760
    %2125 = vmatpush2.msra.mxu0 %v2124
    %2126 = vmatprep.subr.mxu0 0.0
    %v2127 = vand.u32 %v269, 4294901760
    %2128 = vmatpush2.msra.mxu0 %v2127
    %2129 = vmatprep.subr.mxu0 0.0
    %v2130 = vand.u32 %v268, 4294901760
    %2131 = vmatpush2.msra.mxu0 %v2130
    %2132 = vmatprep.subr.mxu0 0.0
    %v2133 = vand.u32 %v267, 4294901760
    %2134 = vmatpush2.msra.mxu0 %v2133
    %2135 = vmatprep.subr.mxu0 0.0
    %v2136 = vand.u32 %v266, 4294901760
    %2137 = vmatpush2.msra.mxu0 %v2136
    %2138 = vmatprep.subr.mxu0 0.0
    %v2139 = vand.u32 %v265, 4294901760
    %2140 = vmatpush2.msra.mxu0 %v2139
    %2141 = vmatprep.subr.mxu0 0.0
    %v2142 = vand.u32 %v264, 4294901760
    %2143 = vmatpush2.msra.mxu0 %v2142
    %2144 = vmatprep.subr.mxu0 0.0
    %v2145 = vand.u32 %v263, 4294901760
    %2146 = vmatpush2.msra.mxu0 %v2145
    %2147 = vmatprep.subr.mxu0 0.0
    %v2148 = vand.u32 %v262, 4294901760
    %2149 = vmatpush2.msra.mxu0 %v2148
    %2150 = vmatprep.subr.mxu0 0.0
    %v2151 = vand.u32 %v261, 4294901760
    %2152 = vmatpush2.msra.mxu0 %v2151
    %2153 = vmatprep.subr.mxu0 0.0
    %v2154 = vand.u32 %v260, 4294901760
    %2155 = vmatpush2.msra.mxu0 %v2154
    %2156 = vmatprep.subr.mxu0 0.0
    %v2157 = vand.u32 %v259, 4294901760
    %2158 = vmatpush2.msra.mxu0 %v2157
    %2159 = vmatprep.subr.mxu0 0.0
    %v2160 = vand.u32 %v258, 4294901760
    %2161 = vmatpush2.msra.mxu0 %v2160
    %2162 = vmatprep.subr.mxu0 0.0
    %v2163 = vand.u32 %v257, 4294901760
    %2164 = vmatpush2.msra.mxu0 %v2163
    %2165 = vmatprep.subr.mxu0 0.0
    %v2166 = vand.u32 %v256, 4294901760
    %2167 = vmatpush2.msra.mxu0 %v2166
    %v2168 = vand.u32 %v338, 4294901760
    %v2169 = vsub.f32 %v338, %v2168
    %v2170 = vand.u32 %v2169, 4294901760
    %v2171 = vsub.f32 %v2169, %v2170
    %v2172 = vand.u32 %v2171, 4294901760
    %2173 = vmatprep.mubr.f32.mxu0 %v2172
    %v2174 = vand.u32 %v330, 4294901760
    %v2175 = vsub.f32 %v330, %v2174
    %v2176 = vand.u32 %v2175, 4294901760
    %v2177 = vsub.f32 %v2175, %v2176
    %v2178 = vand.u32 %v2177, 4294901760
    %2179 = vmatmul.mubr.f32.gmra.mxu0 %v2178
    %v2180 = vpop.f32.mrf.mxu0
    %v2181 = vadd.f32 %v2069, %v2180
    %v2182 = vpop.f32.mrf.mxu0
    %2183 = vdwg.mxu0
    %2184 = vmatprep.subr.mxu0 0.0
    %v2185 = vand.u32 %v255, 4294901760
    %v2186 = vsub.f32 %v255, %v2185
    %v2187 = vand.u32 %v2186, 4294901760
    %v2188 = vsub.f32 %v2186, %v2187
    %v2189 = vand.u32 %v2188, 4294901760
    %2190 = vmatpush1.msra.mxu0 %v2189
    %2191 = vmatprep.subr.mxu0 0.0
    %v2192 = vand.u32 %v254, 4294901760
    %v2193 = vsub.f32 %v254, %v2192
    %v2194 = vand.u32 %v2193, 4294901760
    %v2195 = vsub.f32 %v2193, %v2194
    %v2196 = vand.u32 %v2195, 4294901760
    %2197 = vmatpush1.msra.mxu0 %v2196
    %2198 = vmatprep.subr.mxu0 0.0
    %v2199 = vand.u32 %v253, 4294901760
    %v2200 = vsub.f32 %v253, %v2199
    %v2201 = vand.u32 %v2200, 4294901760
    %v2202 = vsub.f32 %v2200, %v2201
    %v2203 = vand.u32 %v2202, 4294901760
    %2204 = vmatpush1.msra.mxu0 %v2203
    %2205 = vmatprep.subr.mxu0 0.0
    %v2206 = vand.u32 %v252, 4294901760
    %v2207 = vsub.f32 %v252, %v2206
    %v2208 = vand.u32 %v2207, 4294901760
    %v2209 = vsub.f32 %v2207, %v2208
    %v2210 = vand.u32 %v2209, 4294901760
    %2211 = vmatpush1.msra.mxu0 %v2210
    %2212 = vmatprep.subr.mxu0 0.0
    %v2213 = vand.u32 %v251, 4294901760
    %v2214 = vsub.f32 %v251, %v2213
    %v2215 = vand.u32 %v2214, 4294901760
    %v2216 = vsub.f32 %v2214, %v2215
    %v2217 = vand.u32 %v2216, 4294901760
    %2218 = vmatpush1.msra.mxu0 %v2217
    %2219 = vmatprep.subr.mxu0 0.0
    %v2220 = vand.u32 %v250, 4294901760
    %v2221 = vsub.f32 %v250, %v2220
    %v2222 = vand.u32 %v2221, 4294901760
    %v2223 = vsub.f32 %v2221, %v2222
    %v2224 = vand.u32 %v2223, 4294901760
    %2225 = vmatpush1.msra.mxu0 %v2224
    %2226 = vmatprep.subr.mxu0 0.0
    %v2227 = vand.u32 %v249, 4294901760
    %v2228 = vsub.f32 %v249, %v2227
    %v2229 = vand.u32 %v2228, 4294901760
    %v2230 = vsub.f32 %v2228, %v2229
    %v2231 = vand.u32 %v2230, 4294901760
    %2232 = vmatpush1.msra.mxu0 %v2231
    %2233 = vmatprep.subr.mxu0 0.0
    %v2234 = vand.u32 %v248, 4294901760
    %v2235 = vsub.f32 %v248, %v2234
    %v2236 = vand.u32 %v2235, 4294901760
    %v2237 = vsub.f32 %v2235, %v2236
    %v2238 = vand.u32 %v2237, 4294901760
    %2239 = vmatpush1.msra.mxu0 %v2238
    %2240 = vmatprep.subr.mxu0 0.0
    %v2241 = vand.u32 %v247, 4294901760
    %v2242 = vsub.f32 %v247, %v2241
    %v2243 = vand.u32 %v2242, 4294901760
    %v2244 = vsub.f32 %v2242, %v2243
    %v2245 = vand.u32 %v2244, 4294901760
    %2246 = vmatpush1.msra.mxu0 %v2245
    %2247 = vmatprep.subr.mxu0 0.0
    %v2248 = vand.u32 %v246, 4294901760
    %v2249 = vsub.f32 %v246, %v2248
    %v2250 = vand.u32 %v2249, 4294901760
    %v2251 = vsub.f32 %v2249, %v2250
    %v2252 = vand.u32 %v2251, 4294901760
    %2253 = vmatpush1.msra.mxu0 %v2252
    %2254 = vmatprep.subr.mxu0 0.0
    %v2255 = vand.u32 %v245, 4294901760
    %v2256 = vsub.f32 %v245, %v2255
    %v2257 = vand.u32 %v2256, 4294901760
    %v2258 = vsub.f32 %v2256, %v2257
    %v2259 = vand.u32 %v2258, 4294901760
    %2260 = vmatpush1.msra.mxu0 %v2259
    %2261 = vmatprep.subr.mxu0 0.0
    %v2262 = vand.u32 %v244, 4294901760
    %v2263 = vsub.f32 %v244, %v2262
    %v2264 = vand.u32 %v2263, 4294901760
    %v2265 = vsub.f32 %v2263, %v2264
    %v2266 = vand.u32 %v2265, 4294901760
    %2267 = vmatpush1.msra.mxu0 %v2266
    %2268 = vmatprep.subr.mxu0 0.0
    %v2269 = vand.u32 %v243, 4294901760
    %v2270 = vsub.f32 %v243, %v2269
    %v2271 = vand.u32 %v2270, 4294901760
    %v2272 = vsub.f32 %v2270, %v2271
    %v2273 = vand.u32 %v2272, 4294901760
    %2274 = vmatpush1.msra.mxu0 %v2273
    %2275 = vmatprep.subr.mxu0 0.0
    %v2276 = vand.u32 %v242, 4294901760
    %v2277 = vsub.f32 %v242, %v2276
    %v2278 = vand.u32 %v2277, 4294901760
    %v2279 = vsub.f32 %v2277, %v2278
    %v2280 = vand.u32 %v2279, 4294901760
    %2281 = vmatpush1.msra.mxu0 %v2280
    %2282 = vmatprep.subr.mxu0 0.0
    %v2283 = vand.u32 %v241, 4294901760
    %v2284 = vsub.f32 %v241, %v2283
    %v2285 = vand.u32 %v2284, 4294901760
    %v2286 = vsub.f32 %v2284, %v2285
    %v2287 = vand.u32 %v2286, 4294901760
    %2288 = vmatpush1.msra.mxu0 %v2287
    %2289 = vmatprep.subr.mxu0 0.0
    %v2290 = vand.u32 %v240, 4294901760
    %v2291 = vsub.f32 %v240, %v2290
    %v2292 = vand.u32 %v2291, 4294901760
    %v2293 = vsub.f32 %v2291, %v2292
    %v2294 = vand.u32 %v2293, 4294901760
    %2295 = vmatpush1.msra.mxu0 %v2294
    %2296 = vmatprep.subr.mxu0 0.0
    %v2297 = vand.u32 %v271, 4294901760
    %v2298 = vsub.f32 %v271, %v2297
    %v2299 = vand.u32 %v2298, 4294901760
    %v2300 = vsub.f32 %v2298, %v2299
    %v2301 = vand.u32 %v2300, 4294901760
    %2302 = vmatpush2.msra.mxu0 %v2301
    %2303 = vmatprep.subr.mxu0 0.0
    %v2304 = vand.u32 %v270, 4294901760
    %v2305 = vsub.f32 %v270, %v2304
    %v2306 = vand.u32 %v2305, 4294901760
    %v2307 = vsub.f32 %v2305, %v2306
    %v2308 = vand.u32 %v2307, 4294901760
    %2309 = vmatpush2.msra.mxu0 %v2308
    %2310 = vmatprep.subr.mxu0 0.0
    %v2311 = vand.u32 %v269, 4294901760
    %v2312 = vsub.f32 %v269, %v2311
    %v2313 = vand.u32 %v2312, 4294901760
    %v2314 = vsub.f32 %v2312, %v2313
    %v2315 = vand.u32 %v2314, 4294901760
    %2316 = vmatpush2.msra.mxu0 %v2315
    %2317 = vmatprep.subr.mxu0 0.0
    %v2318 = vand.u32 %v268, 4294901760
    %v2319 = vsub.f32 %v268, %v2318
    %v2320 = vand.u32 %v2319, 4294901760
    %v2321 = vsub.f32 %v2319, %v2320
    %v2322 = vand.u32 %v2321, 4294901760
    %2323 = vmatpush2.msra.mxu0 %v2322
    %2324 = vmatprep.subr.mxu0 0.0
    %v2325 = vand.u32 %v267, 4294901760
    %v2326 = vsub.f32 %v267, %v2325
    %v2327 = vand.u32 %v2326, 4294901760
    %v2328 = vsub.f32 %v2326, %v2327
    %v2329 = vand.u32 %v2328, 4294901760
    %2330 = vmatpush2.msra.mxu0 %v2329
    %2331 = vmatprep.subr.mxu0 0.0
    %v2332 = vand.u32 %v266, 4294901760
    %v2333 = vsub.f32 %v266, %v2332
    %v2334 = vand.u32 %v2333, 4294901760
    %v2335 = vsub.f32 %v2333, %v2334
    %v2336 = vand.u32 %v2335, 4294901760
    %2337 = vmatpush2.msra.mxu0 %v2336
    %2338 = vmatprep.subr.mxu0 0.0
    %v2339 = vand.u32 %v265, 4294901760
    %v2340 = vsub.f32 %v265, %v2339
    %v2341 = vand.u32 %v2340, 4294901760
    %v2342 = vsub.f32 %v2340, %v2341
    %v2343 = vand.u32 %v2342, 4294901760
    %2344 = vmatpush2.msra.mxu0 %v2343
    %2345 = vmatprep.subr.mxu0 0.0
    %v2346 = vand.u32 %v264, 4294901760
    %v2347 = vsub.f32 %v264, %v2346
    %v2348 = vand.u32 %v2347, 4294901760
    %v2349 = vsub.f32 %v2347, %v2348
    %v2350 = vand.u32 %v2349, 4294901760
    %2351 = vmatpush2.msra.mxu0 %v2350
    %2352 = vmatprep.subr.mxu0 0.0
    %v2353 = vand.u32 %v263, 4294901760
    %v2354 = vsub.f32 %v263, %v2353
    %v2355 = vand.u32 %v2354, 4294901760
    %v2356 = vsub.f32 %v2354, %v2355
    %v2357 = vand.u32 %v2356, 4294901760
    %2358 = vmatpush2.msra.mxu0 %v2357
    %2359 = vmatprep.subr.mxu0 0.0
    %v2360 = vand.u32 %v262, 4294901760
    %v2361 = vsub.f32 %v262, %v2360
    %v2362 = vand.u32 %v2361, 4294901760
    %v2363 = vsub.f32 %v2361, %v2362
    %v2364 = vand.u32 %v2363, 4294901760
    %2365 = vmatpush2.msra.mxu0 %v2364
    %2366 = vmatprep.subr.mxu0 0.0
    %v2367 = vand.u32 %v261, 4294901760
    %v2368 = vsub.f32 %v261, %v2367
    %v2369 = vand.u32 %v2368, 4294901760
    %v2370 = vsub.f32 %v2368, %v2369
    %v2371 = vand.u32 %v2370, 4294901760
    %2372 = vmatpush2.msra.mxu0 %v2371
    %2373 = vmatprep.subr.mxu0 0.0
    %v2374 = vand.u32 %v260, 4294901760
    %v2375 = vsub.f32 %v260, %v2374
    %v2376 = vand.u32 %v2375, 4294901760
    %v2377 = vsub.f32 %v2375, %v2376
    %v2378 = vand.u32 %v2377, 4294901760
    %2379 = vmatpush2.msra.mxu0 %v2378
    %2380 = vmatprep.subr.mxu0 0.0
    %v2381 = vand.u32 %v259, 4294901760
    %v2382 = vsub.f32 %v259, %v2381
    %v2383 = vand.u32 %v2382, 4294901760
    %v2384 = vsub.f32 %v2382, %v2383
    %v2385 = vand.u32 %v2384, 4294901760
    %2386 = vmatpush2.msra.mxu0 %v2385
    %2387 = vmatprep.subr.mxu0 0.0
    %v2388 = vand.u32 %v258, 4294901760
    %v2389 = vsub.f32 %v258, %v2388
    %v2390 = vand.u32 %v2389, 4294901760
    %v2391 = vsub.f32 %v2389, %v2390
    %v2392 = vand.u32 %v2391, 4294901760
    %2393 = vmatpush2.msra.mxu0 %v2392
    %2394 = vmatprep.subr.mxu0 0.0
    %v2395 = vand.u32 %v257, 4294901760
    %v2396 = vsub.f32 %v257, %v2395
    %v2397 = vand.u32 %v2396, 4294901760
    %v2398 = vsub.f32 %v2396, %v2397
    %v2399 = vand.u32 %v2398, 4294901760
    %2400 = vmatpush2.msra.mxu0 %v2399
    %2401 = vmatprep.subr.mxu0 0.0
    %v2402 = vand.u32 %v256, 4294901760
    %v2403 = vsub.f32 %v256, %v2402
    %v2404 = vand.u32 %v2403, 4294901760
    %v2405 = vsub.f32 %v2403, %v2404
    %v2406 = vand.u32 %v2405, 4294901760
    %2407 = vmatpush2.msra.mxu0 %v2406
    %v2408 = vand.u32 %v338, 4294901760
    %2409 = vmatprep.mubr.f32.mxu0 %v2408
    %v2410 = vand.u32 %v330, 4294901760
    %2411 = vmatmul.mubr.f32.gmra.mxu0 %v2410
    %v2412 = vpop.f32.mrf.mxu0
    %v2413 = vadd.f32 %v2181, %v2412
    %v2414 = vpop.f32.mrf.mxu0
    %2415 = vdwg.mxu0
    %2416 = vmatprep.subr.mxu0 0.0
    %v2417 = vand.u32 %v255, 4294901760
    %v2418 = vsub.f32 %v255, %v2417
    %2419 = vmatpush1.msra.mxu0 %v2418
    %2420 = vmatprep.subr.mxu0 0.0
    %v2421 = vand.u32 %v254, 4294901760
    %v2422 = vsub.f32 %v254, %v2421
    %2423 = vmatpush1.msra.mxu0 %v2422
    %2424 = vmatprep.subr.mxu0 0.0
    %v2425 = vand.u32 %v253, 4294901760
    %v2426 = vsub.f32 %v253, %v2425
    %2427 = vmatpush1.msra.mxu0 %v2426
    %2428 = vmatprep.subr.mxu0 0.0
    %v2429 = vand.u32 %v252, 4294901760
    %v2430 = vsub.f32 %v252, %v2429
    %2431 = vmatpush1.msra.mxu0 %v2430
    %2432 = vmatprep.subr.mxu0 0.0
    %v2433 = vand.u32 %v251, 4294901760
    %v2434 = vsub.f32 %v251, %v2433
    %2435 = vmatpush1.msra.mxu0 %v2434
    %2436 = vmatprep.subr.mxu0 0.0
    %v2437 = vand.u32 %v250, 4294901760
    %v2438 = vsub.f32 %v250, %v2437
    %2439 = vmatpush1.msra.mxu0 %v2438
    %2440 = vmatprep.subr.mxu0 0.0
    %v2441 = vand.u32 %v249, 4294901760
    %v2442 = vsub.f32 %v249, %v2441
    %2443 = vmatpush1.msra.mxu0 %v2442
    %2444 = vmatprep.subr.mxu0 0.0
    %v2445 = vand.u32 %v248, 4294901760
    %v2446 = vsub.f32 %v248, %v2445
    %2447 = vmatpush1.msra.mxu0 %v2446
    %2448 = vmatprep.subr.mxu0 0.0
    %v2449 = vand.u32 %v247, 4294901760
    %v2450 = vsub.f32 %v247, %v2449
    %2451 = vmatpush1.msra.mxu0 %v2450
    %2452 = vmatprep.subr.mxu0 0.0
    %v2453 = vand.u32 %v246, 4294901760
    %v2454 = vsub.f32 %v246, %v2453
    %2455 = vmatpush1.msra.mxu0 %v2454
    %2456 = vmatprep.subr.mxu0 0.0
    %v2457 = vand.u32 %v245, 4294901760
    %v2458 = vsub.f32 %v245, %v2457
    %2459 = vmatpush1.msra.mxu0 %v2458
    %2460 = vmatprep.subr.mxu0 0.0
    %v2461 = vand.u32 %v244, 4294901760
    %v2462 = vsub.f32 %v244, %v2461
    %2463 = vmatpush1.msra.mxu0 %v2462
    %2464 = vmatprep.subr.mxu0 0.0
    %v2465 = vand.u32 %v243, 4294901760
    %v2466 = vsub.f32 %v243, %v2465
    %2467 = vmatpush1.msra.mxu0 %v2466
    %2468 = vmatprep.subr.mxu0 0.0
    %v2469 = vand.u32 %v242, 4294901760
    %v2470 = vsub.f32 %v242, %v2469
    %2471 = vmatpush1.msra.mxu0 %v2470
    %2472 = vmatprep.subr.mxu0 0.0
    %v2473 = vand.u32 %v241, 4294901760
    %v2474 = vsub.f32 %v241, %v2473
    %2475 = vmatpush1.msra.mxu0 %v2474
    %2476 = vmatprep.subr.mxu0 0.0
    %v2477 = vand.u32 %v240, 4294901760
    %v2478 = vsub.f32 %v240, %v2477
    %2479 = vmatpush1.msra.mxu0 %v2478
    %2480 = vmatprep.subr.mxu0 0.0
    %v2481 = vand.u32 %v271, 4294901760
    %v2482 = vsub.f32 %v271, %v2481
    %2483 = vmatpush2.msra.mxu0 %v2482
    %2484 = vmatprep.subr.mxu0 0.0
    %v2485 = vand.u32 %v270, 4294901760
    %v2486 = vsub.f32 %v270, %v2485
    %2487 = vmatpush2.msra.mxu0 %v2486
    %2488 = vmatprep.subr.mxu0 0.0
    %v2489 = vand.u32 %v269, 4294901760
    %v2490 = vsub.f32 %v269, %v2489
    %2491 = vmatpush2.msra.mxu0 %v2490
    %2492 = vmatprep.subr.mxu0 0.0
    %v2493 = vand.u32 %v268, 4294901760
    %v2494 = vsub.f32 %v268, %v2493
    %2495 = vmatpush2.msra.mxu0 %v2494
    %2496 = vmatprep.subr.mxu0 0.0
    %v2497 = vand.u32 %v267, 4294901760
    %v2498 = vsub.f32 %v267, %v2497
    %2499 = vmatpush2.msra.mxu0 %v2498
    %2500 = vmatprep.subr.mxu0 0.0
    %v2501 = vand.u32 %v266, 4294901760
    %v2502 = vsub.f32 %v266, %v2501
    %2503 = vmatpush2.msra.mxu0 %v2502
    %2504 = vmatprep.subr.mxu0 0.0
    %v2505 = vand.u32 %v265, 4294901760
    %v2506 = vsub.f32 %v265, %v2505
    %2507 = vmatpush2.msra.mxu0 %v2506
    %2508 = vmatprep.subr.mxu0 0.0
    %v2509 = vand.u32 %v264, 4294901760
    %v2510 = vsub.f32 %v264, %v2509
    %2511 = vmatpush2.msra.mxu0 %v2510
    %2512 = vmatprep.subr.mxu0 0.0
    %v2513 = vand.u32 %v263, 4294901760
    %v2514 = vsub.f32 %v263, %v2513
    %2515 = vmatpush2.msra.mxu0 %v2514
    %2516 = vmatprep.subr.mxu0 0.0
    %v2517 = vand.u32 %v262, 4294901760
    %v2518 = vsub.f32 %v262, %v2517
    %2519 = vmatpush2.msra.mxu0 %v2518
    %2520 = vmatprep.subr.mxu0 0.0
    %v2521 = vand.u32 %v261, 4294901760
    %v2522 = vsub.f32 %v261, %v2521
    %2523 = vmatpush2.msra.mxu0 %v2522
    %2524 = vmatprep.subr.mxu0 0.0
    %v2525 = vand.u32 %v260, 4294901760
    %v2526 = vsub.f32 %v260, %v2525
    %2527 = vmatpush2.msra.mxu0 %v2526
    %2528 = vmatprep.subr.mxu0 0.0
    %v2529 = vand.u32 %v259, 4294901760
    %v2530 = vsub.f32 %v259, %v2529
    %2531 = vmatpush2.msra.mxu0 %v2530
    %2532 = vmatprep.subr.mxu0 0.0
    %v2533 = vand.u32 %v258, 4294901760
    %v2534 = vsub.f32 %v258, %v2533
    %2535 = vmatpush2.msra.mxu0 %v2534
    %2536 = vmatprep.subr.mxu0 0.0
    %v2537 = vand.u32 %v257, 4294901760
    %v2538 = vsub.f32 %v257, %v2537
    %2539 = vmatpush2.msra.mxu0 %v2538
    %2540 = vmatprep.subr.mxu0 0.0
    %v2541 = vand.u32 %v256, 4294901760
    %v2542 = vsub.f32 %v256, %v2541
    %2543 = vmatpush2.msra.mxu0 %v2542
    %v2544 = vand.u32 %v338, 4294901760
    %v2545 = vsub.f32 %v338, %v2544
    %2546 = vmatprep.mubr.f32.mxu0 %v2545
    %v2547 = vand.u32 %v330, 4294901760
    %v2548 = vsub.f32 %v330, %v2547
    %2549 = vmatmul.mubr.f32.gmra.mxu0 %v2548
    %v2550 = vpop.f32.mrf.mxu0
    %v2551 = vadd.f32 %v2413, %v2550
    %v2552 = vpop.f32.mrf.mxu0
    %2553 = vdwg.mxu0
    %2554 = vmatprep.subr.mxu0 0.0
    %v2555 = vand.u32 %v255, 4294901760
    %2556 = vmatpush1.msra.mxu0 %v2555
    %2557 = vmatprep.subr.mxu0 0.0
    %v2558 = vand.u32 %v254, 4294901760
    %2559 = vmatpush1.msra.mxu0 %v2558
    %2560 = vmatprep.subr.mxu0 0.0
    %v2561 = vand.u32 %v253, 4294901760
    %2562 = vmatpush1.msra.mxu0 %v2561
    %2563 = vmatprep.subr.mxu0 0.0
    %v2564 = vand.u32 %v252, 4294901760
    %2565 = vmatpush1.msra.mxu0 %v2564
    %2566 = vmatprep.subr.mxu0 0.0
    %v2567 = vand.u32 %v251, 4294901760
    %2568 = vmatpush1.msra.mxu0 %v2567
    %2569 = vmatprep.subr.mxu0 0.0
    %v2570 = vand.u32 %v250, 4294901760
    %2571 = vmatpush1.msra.mxu0 %v2570
    %2572 = vmatprep.subr.mxu0 0.0
    %v2573 = vand.u32 %v249, 4294901760
    %2574 = vmatpush1.msra.mxu0 %v2573
    %2575 = vmatprep.subr.mxu0 0.0
    %v2576 = vand.u32 %v248, 4294901760
    %2577 = vmatpush1.msra.mxu0 %v2576
    %2578 = vmatprep.subr.mxu0 0.0
    %v2579 = vand.u32 %v247, 4294901760
    %2580 = vmatpush1.msra.mxu0 %v2579
    %2581 = vmatprep.subr.mxu0 0.0
    %v2582 = vand.u32 %v246, 4294901760
    %2583 = vmatpush1.msra.mxu0 %v2582
    %2584 = vmatprep.subr.mxu0 0.0
    %v2585 = vand.u32 %v245, 4294901760
    %2586 = vmatpush1.msra.mxu0 %v2585
    %2587 = vmatprep.subr.mxu0 0.0
    %v2588 = vand.u32 %v244, 4294901760
    %2589 = vmatpush1.msra.mxu0 %v2588
    %2590 = vmatprep.subr.mxu0 0.0
    %v2591 = vand.u32 %v243, 4294901760
    %2592 = vmatpush1.msra.mxu0 %v2591
    %2593 = vmatprep.subr.mxu0 0.0
    %v2594 = vand.u32 %v242, 4294901760
    %2595 = vmatpush1.msra.mxu0 %v2594
    %2596 = vmatprep.subr.mxu0 0.0
    %v2597 = vand.u32 %v241, 4294901760
    %2598 = vmatpush1.msra.mxu0 %v2597
    %2599 = vmatprep.subr.mxu0 0.0
    %v2600 = vand.u32 %v240, 4294901760
    %2601 = vmatpush1.msra.mxu0 %v2600
    %2602 = vmatprep.subr.mxu0 0.0
    %v2603 = vand.u32 %v271, 4294901760
    %2604 = vmatpush2.msra.mxu0 %v2603
    %2605 = vmatprep.subr.mxu0 0.0
    %v2606 = vand.u32 %v270, 4294901760
    %2607 = vmatpush2.msra.mxu0 %v2606
    %2608 = vmatprep.subr.mxu0 0.0
    %v2609 = vand.u32 %v269, 4294901760
    %2610 = vmatpush2.msra.mxu0 %v2609
    %2611 = vmatprep.subr.mxu0 0.0
    %v2612 = vand.u32 %v268, 4294901760
    %2613 = vmatpush2.msra.mxu0 %v2612
    %2614 = vmatprep.subr.mxu0 0.0
    %v2615 = vand.u32 %v267, 4294901760
    %2616 = vmatpush2.msra.mxu0 %v2615
    %2617 = vmatprep.subr.mxu0 0.0
    %v2618 = vand.u32 %v266, 4294901760
    %2619 = vmatpush2.msra.mxu0 %v2618
    %2620 = vmatprep.subr.mxu0 0.0
    %v2621 = vand.u32 %v265, 4294901760
    %2622 = vmatpush2.msra.mxu0 %v2621
    %2623 = vmatprep.subr.mxu0 0.0
    %v2624 = vand.u32 %v264, 4294901760
    %2625 = vmatpush2.msra.mxu0 %v2624
    %2626 = vmatprep.subr.mxu0 0.0
    %v2627 = vand.u32 %v263, 4294901760
    %2628 = vmatpush2.msra.mxu0 %v2627
    %2629 = vmatprep.subr.mxu0 0.0
    %v2630 = vand.u32 %v262, 4294901760
    %2631 = vmatpush2.msra.mxu0 %v2630
    %2632 = vmatprep.subr.mxu0 0.0
    %v2633 = vand.u32 %v261, 4294901760
    %2634 = vmatpush2.msra.mxu0 %v2633
    %2635 = vmatprep.subr.mxu0 0.0
    %v2636 = vand.u32 %v260, 4294901760
    %2637 = vmatpush2.msra.mxu0 %v2636
    %2638 = vmatprep.subr.mxu0 0.0
    %v2639 = vand.u32 %v259, 4294901760
    %2640 = vmatpush2.msra.mxu0 %v2639
    %2641 = vmatprep.subr.mxu0 0.0
    %v2642 = vand.u32 %v258, 4294901760
    %2643 = vmatpush2.msra.mxu0 %v2642
    %2644 = vmatprep.subr.mxu0 0.0
    %v2645 = vand.u32 %v257, 4294901760
    %2646 = vmatpush2.msra.mxu0 %v2645
    %2647 = vmatprep.subr.mxu0 0.0
    %v2648 = vand.u32 %v256, 4294901760
    %2649 = vmatpush2.msra.mxu0 %v2648
    %v2650 = vand.u32 %v338, 4294901760
    %v2651 = vsub.f32 %v338, %v2650
    %v2652 = vand.u32 %v2651, 4294901760
    %2653 = vmatprep.mubr.f32.mxu0 %v2652
    %v2654 = vand.u32 %v330, 4294901760
    %v2655 = vsub.f32 %v330, %v2654
    %v2656 = vand.u32 %v2655, 4294901760
    %2657 = vmatmul.mubr.f32.gmra.mxu0 %v2656
    %v2658 = vpop.f32.mrf.mxu0
    %v2659 = vadd.f32 %v2551, %v2658
    %v2660 = vpop.f32.mrf.mxu0
    %2661 = vdwg.mxu0
    %2662 = vmatprep.subr.mxu0 0.0
    %v2663 = vand.u32 %v255, 4294901760
    %v2664 = vsub.f32 %v255, %v2663
    %v2665 = vand.u32 %v2664, 4294901760
    %2666 = vmatpush1.msra.mxu0 %v2665
    %2667 = vmatprep.subr.mxu0 0.0
    %v2668 = vand.u32 %v254, 4294901760
    %v2669 = vsub.f32 %v254, %v2668
    %v2670 = vand.u32 %v2669, 4294901760
    %2671 = vmatpush1.msra.mxu0 %v2670
    %2672 = vmatprep.subr.mxu0 0.0
    %v2673 = vand.u32 %v253, 4294901760
    %v2674 = vsub.f32 %v253, %v2673
    %v2675 = vand.u32 %v2674, 4294901760
    %2676 = vmatpush1.msra.mxu0 %v2675
    %2677 = vmatprep.subr.mxu0 0.0
    %v2678 = vand.u32 %v252, 4294901760
    %v2679 = vsub.f32 %v252, %v2678
    %v2680 = vand.u32 %v2679, 4294901760
    %2681 = vmatpush1.msra.mxu0 %v2680
    %2682 = vmatprep.subr.mxu0 0.0
    %v2683 = vand.u32 %v251, 4294901760
    %v2684 = vsub.f32 %v251, %v2683
    %v2685 = vand.u32 %v2684, 4294901760
    %2686 = vmatpush1.msra.mxu0 %v2685
    %2687 = vmatprep.subr.mxu0 0.0
    %v2688 = vand.u32 %v250, 4294901760
    %v2689 = vsub.f32 %v250, %v2688
    %v2690 = vand.u32 %v2689, 4294901760
    %2691 = vmatpush1.msra.mxu0 %v2690
    %2692 = vmatprep.subr.mxu0 0.0
    %v2693 = vand.u32 %v249, 4294901760
    %v2694 = vsub.f32 %v249, %v2693
    %v2695 = vand.u32 %v2694, 4294901760
    %2696 = vmatpush1.msra.mxu0 %v2695
    %2697 = vmatprep.subr.mxu0 0.0
    %v2698 = vand.u32 %v248, 4294901760
    %v2699 = vsub.f32 %v248, %v2698
    %v2700 = vand.u32 %v2699, 4294901760
    %2701 = vmatpush1.msra.mxu0 %v2700
    %2702 = vmatprep.subr.mxu0 0.0
    %v2703 = vand.u32 %v247, 4294901760
    %v2704 = vsub.f32 %v247, %v2703
    %v2705 = vand.u32 %v2704, 4294901760
    %2706 = vmatpush1.msra.mxu0 %v2705
    %2707 = vmatprep.subr.mxu0 0.0
    %v2708 = vand.u32 %v246, 4294901760
    %v2709 = vsub.f32 %v246, %v2708
    %v2710 = vand.u32 %v2709, 4294901760
    %2711 = vmatpush1.msra.mxu0 %v2710
    %2712 = vmatprep.subr.mxu0 0.0
    %v2713 = vand.u32 %v245, 4294901760
    %v2714 = vsub.f32 %v245, %v2713
    %v2715 = vand.u32 %v2714, 4294901760
    %2716 = vmatpush1.msra.mxu0 %v2715
    %2717 = vmatprep.subr.mxu0 0.0
    %v2718 = vand.u32 %v244, 4294901760
    %v2719 = vsub.f32 %v244, %v2718
    %v2720 = vand.u32 %v2719, 4294901760
    %2721 = vmatpush1.msra.mxu0 %v2720
    %2722 = vmatprep.subr.mxu0 0.0
    %v2723 = vand.u32 %v243, 4294901760
    %v2724 = vsub.f32 %v243, %v2723
    %v2725 = vand.u32 %v2724, 4294901760
    %2726 = vmatpush1.msra.mxu0 %v2725
    %2727 = vmatprep.subr.mxu0 0.0
    %v2728 = vand.u32 %v242, 4294901760
    %v2729 = vsub.f32 %v242, %v2728
    %v2730 = vand.u32 %v2729, 4294901760
    %2731 = vmatpush1.msra.mxu0 %v2730
    %2732 = vmatprep.subr.mxu0 0.0
    %v2733 = vand.u32 %v241, 4294901760
    %v2734 = vsub.f32 %v241, %v2733
    %v2735 = vand.u32 %v2734, 4294901760
    %2736 = vmatpush1.msra.mxu0 %v2735
    %2737 = vmatprep.subr.mxu0 0.0
    %v2738 = vand.u32 %v240, 4294901760
    %v2739 = vsub.f32 %v240, %v2738
    %v2740 = vand.u32 %v2739, 4294901760
    %2741 = vmatpush1.msra.mxu0 %v2740
    %2742 = vmatprep.subr.mxu0 0.0
    %v2743 = vand.u32 %v271, 4294901760
    %v2744 = vsub.f32 %v271, %v2743
    %v2745 = vand.u32 %v2744, 4294901760
    %2746 = vmatpush2.msra.mxu0 %v2745
    %2747 = vmatprep.subr.mxu0 0.0
    %v2748 = vand.u32 %v270, 4294901760
    %v2749 = vsub.f32 %v270, %v2748
    %v2750 = vand.u32 %v2749, 4294901760
    %2751 = vmatpush2.msra.mxu0 %v2750
    %2752 = vmatprep.subr.mxu0 0.0
    %v2753 = vand.u32 %v269, 4294901760
    %v2754 = vsub.f32 %v269, %v2753
    %v2755 = vand.u32 %v2754, 4294901760
    %2756 = vmatpush2.msra.mxu0 %v2755
    %2757 = vmatprep.subr.mxu0 0.0
    %v2758 = vand.u32 %v268, 4294901760
    %v2759 = vsub.f32 %v268, %v2758
    %v2760 = vand.u32 %v2759, 4294901760
    %2761 = vmatpush2.msra.mxu0 %v2760
    %2762 = vmatprep.subr.mxu0 0.0
    %v2763 = vand.u32 %v267, 4294901760
    %v2764 = vsub.f32 %v267, %v2763
    %v2765 = vand.u32 %v2764, 4294901760
    %2766 = vmatpush2.msra.mxu0 %v2765
    %2767 = vmatprep.subr.mxu0 0.0
    %v2768 = vand.u32 %v266, 4294901760
    %v2769 = vsub.f32 %v266, %v2768
    %v2770 = vand.u32 %v2769, 4294901760
    %2771 = vmatpush2.msra.mxu0 %v2770
    %2772 = vmatprep.subr.mxu0 0.0
    %v2773 = vand.u32 %v265, 4294901760
    %v2774 = vsub.f32 %v265, %v2773
    %v2775 = vand.u32 %v2774, 4294901760
    %2776 = vmatpush2.msra.mxu0 %v2775
    %2777 = vmatprep.subr.mxu0 0.0
    %v2778 = vand.u32 %v264, 4294901760
    %v2779 = vsub.f32 %v264, %v2778
    %v2780 = vand.u32 %v2779, 4294901760
    %2781 = vmatpush2.msra.mxu0 %v2780
    %2782 = vmatprep.subr.mxu0 0.0
    %v2783 = vand.u32 %v263, 4294901760
    %v2784 = vsub.f32 %v263, %v2783
    %v2785 = vand.u32 %v2784, 4294901760
    %2786 = vmatpush2.msra.mxu0 %v2785
    %2787 = vmatprep.subr.mxu0 0.0
    %v2788 = vand.u32 %v262, 4294901760
    %v2789 = vsub.f32 %v262, %v2788
    %v2790 = vand.u32 %v2789, 4294901760
    %2791 = vmatpush2.msra.mxu0 %v2790
    %2792 = vmatprep.subr.mxu0 0.0
    %v2793 = vand.u32 %v261, 4294901760
    %v2794 = vsub.f32 %v261, %v2793
    %v2795 = vand.u32 %v2794, 4294901760
    %2796 = vmatpush2.msra.mxu0 %v2795
    %2797 = vmatprep.subr.mxu0 0.0
    %v2798 = vand.u32 %v260, 4294901760
    %v2799 = vsub.f32 %v260, %v2798
    %v2800 = vand.u32 %v2799, 4294901760
    %2801 = vmatpush2.msra.mxu0 %v2800
    %2802 = vmatprep.subr.mxu0 0.0
    %v2803 = vand.u32 %v259, 4294901760
    %v2804 = vsub.f32 %v259, %v2803
    %v2805 = vand.u32 %v2804, 4294901760
    %2806 = vmatpush2.msra.mxu0 %v2805
    %2807 = vmatprep.subr.mxu0 0.0
    %v2808 = vand.u32 %v258, 4294901760
    %v2809 = vsub.f32 %v258, %v2808
    %v2810 = vand.u32 %v2809, 4294901760
    %2811 = vmatpush2.msra.mxu0 %v2810
    %2812 = vmatprep.subr.mxu0 0.0
    %v2813 = vand.u32 %v257, 4294901760
    %v2814 = vsub.f32 %v257, %v2813
    %v2815 = vand.u32 %v2814, 4294901760
    %2816 = vmatpush2.msra.mxu0 %v2815
    %2817 = vmatprep.subr.mxu0 0.0
    %v2818 = vand.u32 %v256, 4294901760
    %v2819 = vsub.f32 %v256, %v2818
    %v2820 = vand.u32 %v2819, 4294901760
    %2821 = vmatpush2.msra.mxu0 %v2820
    %v2822 = vand.u32 %v338, 4294901760
    %2823 = vmatprep.mubr.f32.mxu0 %v2822
    %v2824 = vand.u32 %v330, 4294901760
    %2825 = vmatmul.mubr.f32.gmra.mxu0 %v2824
    %v2826 = vpop.f32.mrf.mxu0
    %v2827 = vadd.f32 %v2659, %v2826
    %v2828 = vpop.f32.mrf.mxu0
    %2829 = vdwg.mxu0
    %2830 = vmatprep.subr.mxu0 0.0
    %v2831 = vand.u32 %v255, 4294901760
    %2832 = vmatpush1.msra.mxu0 %v2831
    %2833 = vmatprep.subr.mxu0 0.0
    %v2834 = vand.u32 %v254, 4294901760
    %2835 = vmatpush1.msra.mxu0 %v2834
    %2836 = vmatprep.subr.mxu0 0.0
    %v2837 = vand.u32 %v253, 4294901760
    %2838 = vmatpush1.msra.mxu0 %v2837
    %2839 = vmatprep.subr.mxu0 0.0
    %v2840 = vand.u32 %v252, 4294901760
    %2841 = vmatpush1.msra.mxu0 %v2840
    %2842 = vmatprep.subr.mxu0 0.0
    %v2843 = vand.u32 %v251, 4294901760
    %2844 = vmatpush1.msra.mxu0 %v2843
    %2845 = vmatprep.subr.mxu0 0.0
    %v2846 = vand.u32 %v250, 4294901760
    %2847 = vmatpush1.msra.mxu0 %v2846
    %2848 = vmatprep.subr.mxu0 0.0
    %v2849 = vand.u32 %v249, 4294901760
    %2850 = vmatpush1.msra.mxu0 %v2849
    %2851 = vmatprep.subr.mxu0 0.0
    %v2852 = vand.u32 %v248, 4294901760
    %2853 = vmatpush1.msra.mxu0 %v2852
    %2854 = vmatprep.subr.mxu0 0.0
    %v2855 = vand.u32 %v247, 4294901760
    %2856 = vmatpush1.msra.mxu0 %v2855
    %2857 = vmatprep.subr.mxu0 0.0
    %v2858 = vand.u32 %v246, 4294901760
    %2859 = vmatpush1.msra.mxu0 %v2858
    %2860 = vmatprep.subr.mxu0 0.0
    %v2861 = vand.u32 %v245, 4294901760
    %2862 = vmatpush1.msra.mxu0 %v2861
    %2863 = vmatprep.subr.mxu0 0.0
    %v2864 = vand.u32 %v244, 4294901760
    %2865 = vmatpush1.msra.mxu0 %v2864
    %2866 = vmatprep.subr.mxu0 0.0
    %v2867 = vand.u32 %v243, 4294901760
    %2868 = vmatpush1.msra.mxu0 %v2867
    %2869 = vmatprep.subr.mxu0 0.0
    %v2870 = vand.u32 %v242, 4294901760
    %2871 = vmatpush1.msra.mxu0 %v2870
    %2872 = vmatprep.subr.mxu0 0.0
    %v2873 = vand.u32 %v241, 4294901760
    %2874 = vmatpush1.msra.mxu0 %v2873
    %2875 = vmatprep.subr.mxu0 0.0
    %v2876 = vand.u32 %v240, 4294901760
    %2877 = vmatpush1.msra.mxu0 %v2876
    %2878 = vmatprep.subr.mxu0 0.0
    %v2879 = vand.u32 %v271, 4294901760
    %2880 = vmatpush2.msra.mxu0 %v2879
    %2881 = vmatprep.subr.mxu0 0.0
    %v2882 = vand.u32 %v270, 4294901760
    %2883 = vmatpush2.msra.mxu0 %v2882
    %2884 = vmatprep.subr.mxu0 0.0
    %v2885 = vand.u32 %v269, 4294901760
    %2886 = vmatpush2.msra.mxu0 %v2885
    %2887 = vmatprep.subr.mxu0 0.0
    %v2888 = vand.u32 %v268, 4294901760
    %2889 = vmatpush2.msra.mxu0 %v2888
    %2890 = vmatprep.subr.mxu0 0.0
    %v2891 = vand.u32 %v267, 4294901760
    %2892 = vmatpush2.msra.mxu0 %v2891
    %2893 = vmatprep.subr.mxu0 0.0
    %v2894 = vand.u32 %v266, 4294901760
    %2895 = vmatpush2.msra.mxu0 %v2894
    %2896 = vmatprep.subr.mxu0 0.0
    %v2897 = vand.u32 %v265, 4294901760
    %2898 = vmatpush2.msra.mxu0 %v2897
    %2899 = vmatprep.subr.mxu0 0.0
    %v2900 = vand.u32 %v264, 4294901760
    %2901 = vmatpush2.msra.mxu0 %v2900
    %2902 = vmatprep.subr.mxu0 0.0
    %v2903 = vand.u32 %v263, 4294901760
    %2904 = vmatpush2.msra.mxu0 %v2903
    %2905 = vmatprep.subr.mxu0 0.0
    %v2906 = vand.u32 %v262, 4294901760
    %2907 = vmatpush2.msra.mxu0 %v2906
    %2908 = vmatprep.subr.mxu0 0.0
    %v2909 = vand.u32 %v261, 4294901760
    %2910 = vmatpush2.msra.mxu0 %v2909
    %2911 = vmatprep.subr.mxu0 0.0
    %v2912 = vand.u32 %v260, 4294901760
    %2913 = vmatpush2.msra.mxu0 %v2912
    %2914 = vmatprep.subr.mxu0 0.0
    %v2915 = vand.u32 %v259, 4294901760
    %2916 = vmatpush2.msra.mxu0 %v2915
    %2917 = vmatprep.subr.mxu0 0.0
    %v2918 = vand.u32 %v258, 4294901760
    %2919 = vmatpush2.msra.mxu0 %v2918
    %2920 = vmatprep.subr.mxu0 0.0
    %v2921 = vand.u32 %v257, 4294901760
    %2922 = vmatpush2.msra.mxu0 %v2921
    %2923 = vmatprep.subr.mxu0 0.0
    %v2924 = vand.u32 %v256, 4294901760
    %2925 = vmatpush2.msra.mxu0 %v2924
    %v2926 = vand.u32 %v338, 4294901760
    %2927 = vmatprep.mubr.f32.mxu0 %v2926
    %v2928 = vand.u32 %v330, 4294901760
    %2929 = vmatmul.mubr.f32.gmra.mxu0 %v2928
    %v2930 = vpop.f32.mrf.mxu0
    %v2931 = vadd.f32 %v2827, %v2930
    %v2932 = vpop.f32.mrf.mxu0
    %2933 = vdwg.mxu0
    %2934 = vmatprep.subr.mxu0 0.0
    %v2935 = vand.u32 %v287, 4294901760
    %2936 = vmatpush1.msra.mxu0 %v2935
    %2937 = vmatprep.subr.mxu0 0.0
    %v2938 = vand.u32 %v286, 4294901760
    %2939 = vmatpush1.msra.mxu0 %v2938
    %2940 = vmatprep.subr.mxu0 0.0
    %v2941 = vand.u32 %v285, 4294901760
    %2942 = vmatpush1.msra.mxu0 %v2941
    %2943 = vmatprep.subr.mxu0 0.0
    %v2944 = vand.u32 %v284, 4294901760
    %2945 = vmatpush1.msra.mxu0 %v2944
    %2946 = vmatprep.subr.mxu0 0.0
    %v2947 = vand.u32 %v283, 4294901760
    %2948 = vmatpush1.msra.mxu0 %v2947
    %2949 = vmatprep.subr.mxu0 0.0
    %v2950 = vand.u32 %v282, 4294901760
    %2951 = vmatpush1.msra.mxu0 %v2950
    %2952 = vmatprep.subr.mxu0 0.0
    %v2953 = vand.u32 %v281, 4294901760
    %2954 = vmatpush1.msra.mxu0 %v2953
    %2955 = vmatprep.subr.mxu0 0.0
    %v2956 = vand.u32 %v280, 4294901760
    %2957 = vmatpush1.msra.mxu0 %v2956
    %2958 = vmatprep.subr.mxu0 0.0
    %v2959 = vand.u32 %v279, 4294901760
    %2960 = vmatpush1.msra.mxu0 %v2959
    %2961 = vmatprep.subr.mxu0 0.0
    %v2962 = vand.u32 %v278, 4294901760
    %2963 = vmatpush1.msra.mxu0 %v2962
    %2964 = vmatprep.subr.mxu0 0.0
    %v2965 = vand.u32 %v277, 4294901760
    %2966 = vmatpush1.msra.mxu0 %v2965
    %2967 = vmatprep.subr.mxu0 0.0
    %v2968 = vand.u32 %v276, 4294901760
    %2969 = vmatpush1.msra.mxu0 %v2968
    %2970 = vmatprep.subr.mxu0 0.0
    %v2971 = vand.u32 %v275, 4294901760
    %2972 = vmatpush1.msra.mxu0 %v2971
    %2973 = vmatprep.subr.mxu0 0.0
    %v2974 = vand.u32 %v274, 4294901760
    %2975 = vmatpush1.msra.mxu0 %v2974
    %2976 = vmatprep.subr.mxu0 0.0
    %v2977 = vand.u32 %v273, 4294901760
    %2978 = vmatpush1.msra.mxu0 %v2977
    %2979 = vmatprep.subr.mxu0 0.0
    %v2980 = vand.u32 %v272, 4294901760
    %2981 = vmatpush1.msra.mxu0 %v2980
    %2982 = vmatprep.subr.mxu0 0.0
    %v2983 = vand.u32 %v303, 4294901760
    %2984 = vmatpush2.msra.mxu0 %v2983
    %2985 = vmatprep.subr.mxu0 0.0
    %v2986 = vand.u32 %v302, 4294901760
    %2987 = vmatpush2.msra.mxu0 %v2986
    %2988 = vmatprep.subr.mxu0 0.0
    %v2989 = vand.u32 %v301, 4294901760
    %2990 = vmatpush2.msra.mxu0 %v2989
    %2991 = vmatprep.subr.mxu0 0.0
    %v2992 = vand.u32 %v300, 4294901760
    %2993 = vmatpush2.msra.mxu0 %v2992
    %2994 = vmatprep.subr.mxu0 0.0
    %v2995 = vand.u32 %v299, 4294901760
    %2996 = vmatpush2.msra.mxu0 %v2995
    %2997 = vmatprep.subr.mxu0 0.0
    %v2998 = vand.u32 %v298, 4294901760
    %2999 = vmatpush2.msra.mxu0 %v2998
    %3000 = vmatprep.subr.mxu0 0.0
    %v3001 = vand.u32 %v297, 4294901760
    %3002 = vmatpush2.msra.mxu0 %v3001
    %3003 = vmatprep.subr.mxu0 0.0
    %v3004 = vand.u32 %v296, 4294901760
    %3005 = vmatpush2.msra.mxu0 %v3004
    %3006 = vmatprep.subr.mxu0 0.0
    %v3007 = vand.u32 %v295, 4294901760
    %3008 = vmatpush2.msra.mxu0 %v3007
    %3009 = vmatprep.subr.mxu0 0.0
    %v3010 = vand.u32 %v294, 4294901760
    %3011 = vmatpush2.msra.mxu0 %v3010
    %3012 = vmatprep.subr.mxu0 0.0
    %v3013 = vand.u32 %v293, 4294901760
    %3014 = vmatpush2.msra.mxu0 %v3013
    %3015 = vmatprep.subr.mxu0 0.0
    %v3016 = vand.u32 %v292, 4294901760
    %3017 = vmatpush2.msra.mxu0 %v3016
    %3018 = vmatprep.subr.mxu0 0.0
    %v3019 = vand.u32 %v291, 4294901760
    %3020 = vmatpush2.msra.mxu0 %v3019
    %3021 = vmatprep.subr.mxu0 0.0
    %v3022 = vand.u32 %v290, 4294901760
    %3023 = vmatpush2.msra.mxu0 %v3022
    %3024 = vmatprep.subr.mxu0 0.0
    %v3025 = vand.u32 %v289, 4294901760
    %3026 = vmatpush2.msra.mxu0 %v3025
    %3027 = vmatprep.subr.mxu0 0.0
    %v3028 = vand.u32 %v288, 4294901760
    %3029 = vmatpush2.msra.mxu0 %v3028
    %v3030 = vand.u32 %v339, 4294901760
    %v3031 = vsub.f32 %v339, %v3030
    %v3032 = vand.u32 %v3031, 4294901760
    %v3033 = vsub.f32 %v3031, %v3032
    %v3034 = vand.u32 %v3033, 4294901760
    %3035 = vmatprep.mubr.f32.mxu0 %v3034
    %v3036 = vand.u32 %v337, 4294901760
    %v3037 = vsub.f32 %v337, %v3036
    %v3038 = vand.u32 %v3037, 4294901760
    %v3039 = vsub.f32 %v3037, %v3038
    %v3040 = vand.u32 %v3039, 4294901760
    %3041 = vmatmul.mubr.f32.gmra.mxu0 %v3040
    %v3042 = vpop.f32.mrf.mxu0
    %v3043 = vadd.f32 %v2931, %v3042
    %v3044 = vpop.f32.mrf.mxu0
    %3045 = vdwg.mxu0
    %3046 = vmatprep.subr.mxu0 0.0
    %v3047 = vand.u32 %v287, 4294901760
    %v3048 = vsub.f32 %v287, %v3047
    %v3049 = vand.u32 %v3048, 4294901760
    %v3050 = vsub.f32 %v3048, %v3049
    %v3051 = vand.u32 %v3050, 4294901760
    %3052 = vmatpush1.msra.mxu0 %v3051
    %3053 = vmatprep.subr.mxu0 0.0
    %v3054 = vand.u32 %v286, 4294901760
    %v3055 = vsub.f32 %v286, %v3054
    %v3056 = vand.u32 %v3055, 4294901760
    %v3057 = vsub.f32 %v3055, %v3056
    %v3058 = vand.u32 %v3057, 4294901760
    %3059 = vmatpush1.msra.mxu0 %v3058
    %3060 = vmatprep.subr.mxu0 0.0
    %v3061 = vand.u32 %v285, 4294901760
    %v3062 = vsub.f32 %v285, %v3061
    %v3063 = vand.u32 %v3062, 4294901760
    %v3064 = vsub.f32 %v3062, %v3063
    %v3065 = vand.u32 %v3064, 4294901760
    %3066 = vmatpush1.msra.mxu0 %v3065
    %3067 = vmatprep.subr.mxu0 0.0
    %v3068 = vand.u32 %v284, 4294901760
    %v3069 = vsub.f32 %v284, %v3068
    %v3070 = vand.u32 %v3069, 4294901760
    %v3071 = vsub.f32 %v3069, %v3070
    %v3072 = vand.u32 %v3071, 4294901760
    %3073 = vmatpush1.msra.mxu0 %v3072
    %3074 = vmatprep.subr.mxu0 0.0
    %v3075 = vand.u32 %v283, 4294901760
    %v3076 = vsub.f32 %v283, %v3075
    %v3077 = vand.u32 %v3076, 4294901760
    %v3078 = vsub.f32 %v3076, %v3077
    %v3079 = vand.u32 %v3078, 4294901760
    %3080 = vmatpush1.msra.mxu0 %v3079
    %3081 = vmatprep.subr.mxu0 0.0
    %v3082 = vand.u32 %v282, 4294901760
    %v3083 = vsub.f32 %v282, %v3082
    %v3084 = vand.u32 %v3083, 4294901760
    %v3085 = vsub.f32 %v3083, %v3084
    %v3086 = vand.u32 %v3085, 4294901760
    %3087 = vmatpush1.msra.mxu0 %v3086
    %3088 = vmatprep.subr.mxu0 0.0
    %v3089 = vand.u32 %v281, 4294901760
    %v3090 = vsub.f32 %v281, %v3089
    %v3091 = vand.u32 %v3090, 4294901760
    %v3092 = vsub.f32 %v3090, %v3091
    %v3093 = vand.u32 %v3092, 4294901760
    %3094 = vmatpush1.msra.mxu0 %v3093
    %3095 = vmatprep.subr.mxu0 0.0
    %v3096 = vand.u32 %v280, 4294901760
    %v3097 = vsub.f32 %v280, %v3096
    %v3098 = vand.u32 %v3097, 4294901760
    %v3099 = vsub.f32 %v3097, %v3098
    %v3100 = vand.u32 %v3099, 4294901760
    %3101 = vmatpush1.msra.mxu0 %v3100
    %3102 = vmatprep.subr.mxu0 0.0
    %v3103 = vand.u32 %v279, 4294901760
    %v3104 = vsub.f32 %v279, %v3103
    %v3105 = vand.u32 %v3104, 4294901760
    %v3106 = vsub.f32 %v3104, %v3105
    %v3107 = vand.u32 %v3106, 4294901760
    %3108 = vmatpush1.msra.mxu0 %v3107
    %3109 = vmatprep.subr.mxu0 0.0
    %v3110 = vand.u32 %v278, 4294901760
    %v3111 = vsub.f32 %v278, %v3110
    %v3112 = vand.u32 %v3111, 4294901760
    %v3113 = vsub.f32 %v3111, %v3112
    %v3114 = vand.u32 %v3113, 4294901760
    %3115 = vmatpush1.msra.mxu0 %v3114
    %3116 = vmatprep.subr.mxu0 0.0
    %v3117 = vand.u32 %v277, 4294901760
    %v3118 = vsub.f32 %v277, %v3117
    %v3119 = vand.u32 %v3118, 4294901760
    %v3120 = vsub.f32 %v3118, %v3119
    %v3121 = vand.u32 %v3120, 4294901760
    %3122 = vmatpush1.msra.mxu0 %v3121
    %3123 = vmatprep.subr.mxu0 0.0
    %v3124 = vand.u32 %v276, 4294901760
    %v3125 = vsub.f32 %v276, %v3124
    %v3126 = vand.u32 %v3125, 4294901760
    %v3127 = vsub.f32 %v3125, %v3126
    %v3128 = vand.u32 %v3127, 4294901760
    %3129 = vmatpush1.msra.mxu0 %v3128
    %3130 = vmatprep.subr.mxu0 0.0
    %v3131 = vand.u32 %v275, 4294901760
    %v3132 = vsub.f32 %v275, %v3131
    %v3133 = vand.u32 %v3132, 4294901760
    %v3134 = vsub.f32 %v3132, %v3133
    %v3135 = vand.u32 %v3134, 4294901760
    %3136 = vmatpush1.msra.mxu0 %v3135
    %3137 = vmatprep.subr.mxu0 0.0
    %v3138 = vand.u32 %v274, 4294901760
    %v3139 = vsub.f32 %v274, %v3138
    %v3140 = vand.u32 %v3139, 4294901760
    %v3141 = vsub.f32 %v3139, %v3140
    %v3142 = vand.u32 %v3141, 4294901760
    %3143 = vmatpush1.msra.mxu0 %v3142
    %3144 = vmatprep.subr.mxu0 0.0
    %v3145 = vand.u32 %v273, 4294901760
    %v3146 = vsub.f32 %v273, %v3145
    %v3147 = vand.u32 %v3146, 4294901760
    %v3148 = vsub.f32 %v3146, %v3147
    %v3149 = vand.u32 %v3148, 4294901760
    %3150 = vmatpush1.msra.mxu0 %v3149
    %3151 = vmatprep.subr.mxu0 0.0
    %v3152 = vand.u32 %v272, 4294901760
    %v3153 = vsub.f32 %v272, %v3152
    %v3154 = vand.u32 %v3153, 4294901760
    %v3155 = vsub.f32 %v3153, %v3154
    %v3156 = vand.u32 %v3155, 4294901760
    %3157 = vmatpush1.msra.mxu0 %v3156
    %3158 = vmatprep.subr.mxu0 0.0
    %v3159 = vand.u32 %v303, 4294901760
    %v3160 = vsub.f32 %v303, %v3159
    %v3161 = vand.u32 %v3160, 4294901760
    %v3162 = vsub.f32 %v3160, %v3161
    %v3163 = vand.u32 %v3162, 4294901760
    %3164 = vmatpush2.msra.mxu0 %v3163
    %3165 = vmatprep.subr.mxu0 0.0
    %v3166 = vand.u32 %v302, 4294901760
    %v3167 = vsub.f32 %v302, %v3166
    %v3168 = vand.u32 %v3167, 4294901760
    %v3169 = vsub.f32 %v3167, %v3168
    %v3170 = vand.u32 %v3169, 4294901760
    %3171 = vmatpush2.msra.mxu0 %v3170
    %3172 = vmatprep.subr.mxu0 0.0
    %v3173 = vand.u32 %v301, 4294901760
    %v3174 = vsub.f32 %v301, %v3173
    %v3175 = vand.u32 %v3174, 4294901760
    %v3176 = vsub.f32 %v3174, %v3175
    %v3177 = vand.u32 %v3176, 4294901760
    %3178 = vmatpush2.msra.mxu0 %v3177
    %3179 = vmatprep.subr.mxu0 0.0
    %v3180 = vand.u32 %v300, 4294901760
    %v3181 = vsub.f32 %v300, %v3180
    %v3182 = vand.u32 %v3181, 4294901760
    %v3183 = vsub.f32 %v3181, %v3182
    %v3184 = vand.u32 %v3183, 4294901760
    %3185 = vmatpush2.msra.mxu0 %v3184
    %3186 = vmatprep.subr.mxu0 0.0
    %v3187 = vand.u32 %v299, 4294901760
    %v3188 = vsub.f32 %v299, %v3187
    %v3189 = vand.u32 %v3188, 4294901760
    %v3190 = vsub.f32 %v3188, %v3189
    %v3191 = vand.u32 %v3190, 4294901760
    %3192 = vmatpush2.msra.mxu0 %v3191
    %3193 = vmatprep.subr.mxu0 0.0
    %v3194 = vand.u32 %v298, 4294901760
    %v3195 = vsub.f32 %v298, %v3194
    %v3196 = vand.u32 %v3195, 4294901760
    %v3197 = vsub.f32 %v3195, %v3196
    %v3198 = vand.u32 %v3197, 4294901760
    %3199 = vmatpush2.msra.mxu0 %v3198
    %3200 = vmatprep.subr.mxu0 0.0
    %v3201 = vand.u32 %v297, 4294901760
    %v3202 = vsub.f32 %v297, %v3201
    %v3203 = vand.u32 %v3202, 4294901760
    %v3204 = vsub.f32 %v3202, %v3203
    %v3205 = vand.u32 %v3204, 4294901760
    %3206 = vmatpush2.msra.mxu0 %v3205
    %3207 = vmatprep.subr.mxu0 0.0
    %v3208 = vand.u32 %v296, 4294901760
    %v3209 = vsub.f32 %v296, %v3208
    %v3210 = vand.u32 %v3209, 4294901760
    %v3211 = vsub.f32 %v3209, %v3210
    %v3212 = vand.u32 %v3211, 4294901760
    %3213 = vmatpush2.msra.mxu0 %v3212
    %3214 = vmatprep.subr.mxu0 0.0
    %v3215 = vand.u32 %v295, 4294901760
    %v3216 = vsub.f32 %v295, %v3215
    %v3217 = vand.u32 %v3216, 4294901760
    %v3218 = vsub.f32 %v3216, %v3217
    %v3219 = vand.u32 %v3218, 4294901760
    %3220 = vmatpush2.msra.mxu0 %v3219
    %3221 = vmatprep.subr.mxu0 0.0
    %v3222 = vand.u32 %v294, 4294901760
    %v3223 = vsub.f32 %v294, %v3222
    %v3224 = vand.u32 %v3223, 4294901760
    %v3225 = vsub.f32 %v3223, %v3224
    %v3226 = vand.u32 %v3225, 4294901760
    %3227 = vmatpush2.msra.mxu0 %v3226
    %3228 = vmatprep.subr.mxu0 0.0
    %v3229 = vand.u32 %v293, 4294901760
    %v3230 = vsub.f32 %v293, %v3229
    %v3231 = vand.u32 %v3230, 4294901760
    %v3232 = vsub.f32 %v3230, %v3231
    %v3233 = vand.u32 %v3232, 4294901760
    %3234 = vmatpush2.msra.mxu0 %v3233
    %3235 = vmatprep.subr.mxu0 0.0
    %v3236 = vand.u32 %v292, 4294901760
    %v3237 = vsub.f32 %v292, %v3236
    %v3238 = vand.u32 %v3237, 4294901760
    %v3239 = vsub.f32 %v3237, %v3238
    %v3240 = vand.u32 %v3239, 4294901760
    %3241 = vmatpush2.msra.mxu0 %v3240
    %3242 = vmatprep.subr.mxu0 0.0
    %v3243 = vand.u32 %v291, 4294901760
    %v3244 = vsub.f32 %v291, %v3243
    %v3245 = vand.u32 %v3244, 4294901760
    %v3246 = vsub.f32 %v3244, %v3245
    %v3247 = vand.u32 %v3246, 4294901760
    %3248 = vmatpush2.msra.mxu0 %v3247
    %3249 = vmatprep.subr.mxu0 0.0
    %v3250 = vand.u32 %v290, 4294901760
    %v3251 = vsub.f32 %v290, %v3250
    %v3252 = vand.u32 %v3251, 4294901760
    %v3253 = vsub.f32 %v3251, %v3252
    %v3254 = vand.u32 %v3253, 4294901760
    %3255 = vmatpush2.msra.mxu0 %v3254
    %3256 = vmatprep.subr.mxu0 0.0
    %v3257 = vand.u32 %v289, 4294901760
    %v3258 = vsub.f32 %v289, %v3257
    %v3259 = vand.u32 %v3258, 4294901760
    %v3260 = vsub.f32 %v3258, %v3259
    %v3261 = vand.u32 %v3260, 4294901760
    %3262 = vmatpush2.msra.mxu0 %v3261
    %3263 = vmatprep.subr.mxu0 0.0
    %v3264 = vand.u32 %v288, 4294901760
    %v3265 = vsub.f32 %v288, %v3264
    %v3266 = vand.u32 %v3265, 4294901760
    %v3267 = vsub.f32 %v3265, %v3266
    %v3268 = vand.u32 %v3267, 4294901760
    %3269 = vmatpush2.msra.mxu0 %v3268
    %v3270 = vand.u32 %v339, 4294901760
    %3271 = vmatprep.mubr.f32.mxu0 %v3270
    %v3272 = vand.u32 %v337, 4294901760
    %3273 = vmatmul.mubr.f32.gmra.mxu0 %v3272
    %v3274 = vpop.f32.mrf.mxu0
    %v3275 = vadd.f32 %v3043, %v3274
    %v3276 = vpop.f32.mrf.mxu0
    %3277 = vdwg.mxu0
    %3278 = vmatprep.subr.mxu0 0.0
    %v3279 = vand.u32 %v287, 4294901760
    %v3280 = vsub.f32 %v287, %v3279
    %3281 = vmatpush1.msra.mxu0 %v3280
    %3282 = vmatprep.subr.mxu0 0.0
    %v3283 = vand.u32 %v286, 4294901760
    %v3284 = vsub.f32 %v286, %v3283
    %3285 = vmatpush1.msra.mxu0 %v3284
    %3286 = vmatprep.subr.mxu0 0.0
    %v3287 = vand.u32 %v285, 4294901760
    %v3288 = vsub.f32 %v285, %v3287
    %3289 = vmatpush1.msra.mxu0 %v3288
    %3290 = vmatprep.subr.mxu0 0.0
    %v3291 = vand.u32 %v284, 4294901760
    %v3292 = vsub.f32 %v284, %v3291
    %3293 = vmatpush1.msra.mxu0 %v3292
    %3294 = vmatprep.subr.mxu0 0.0
    %v3295 = vand.u32 %v283, 4294901760
    %v3296 = vsub.f32 %v283, %v3295
    %3297 = vmatpush1.msra.mxu0 %v3296
    %3298 = vmatprep.subr.mxu0 0.0
    %v3299 = vand.u32 %v282, 4294901760
    %v3300 = vsub.f32 %v282, %v3299
    %3301 = vmatpush1.msra.mxu0 %v3300
    %3302 = vmatprep.subr.mxu0 0.0
    %v3303 = vand.u32 %v281, 4294901760
    %v3304 = vsub.f32 %v281, %v3303
    %3305 = vmatpush1.msra.mxu0 %v3304
    %3306 = vmatprep.subr.mxu0 0.0
    %v3307 = vand.u32 %v280, 4294901760
    %v3308 = vsub.f32 %v280, %v3307
    %3309 = vmatpush1.msra.mxu0 %v3308
    %3310 = vmatprep.subr.mxu0 0.0
    %v3311 = vand.u32 %v279, 4294901760
    %v3312 = vsub.f32 %v279, %v3311
    %3313 = vmatpush1.msra.mxu0 %v3312
    %3314 = vmatprep.subr.mxu0 0.0
    %v3315 = vand.u32 %v278, 4294901760
    %v3316 = vsub.f32 %v278, %v3315
    %3317 = vmatpush1.msra.mxu0 %v3316
    %3318 = vmatprep.subr.mxu0 0.0
    %v3319 = vand.u32 %v277, 4294901760
    %v3320 = vsub.f32 %v277, %v3319
    %3321 = vmatpush1.msra.mxu0 %v3320
    %3322 = vmatprep.subr.mxu0 0.0
    %v3323 = vand.u32 %v276, 4294901760
    %v3324 = vsub.f32 %v276, %v3323
    %3325 = vmatpush1.msra.mxu0 %v3324
    %3326 = vmatprep.subr.mxu0 0.0
    %v3327 = vand.u32 %v275, 4294901760
    %v3328 = vsub.f32 %v275, %v3327
    %3329 = vmatpush1.msra.mxu0 %v3328
    %3330 = vmatprep.subr.mxu0 0.0
    %v3331 = vand.u32 %v274, 4294901760
    %v3332 = vsub.f32 %v274, %v3331
    %3333 = vmatpush1.msra.mxu0 %v3332
    %3334 = vmatprep.subr.mxu0 0.0
    %v3335 = vand.u32 %v273, 4294901760
    %v3336 = vsub.f32 %v273, %v3335
    %3337 = vmatpush1.msra.mxu0 %v3336
    %3338 = vmatprep.subr.mxu0 0.0
    %v3339 = vand.u32 %v272, 4294901760
    %v3340 = vsub.f32 %v272, %v3339
    %3341 = vmatpush1.msra.mxu0 %v3340
    %3342 = vmatprep.subr.mxu0 0.0
    %v3343 = vand.u32 %v303, 4294901760
    %v3344 = vsub.f32 %v303, %v3343
    %3345 = vmatpush2.msra.mxu0 %v3344
    %3346 = vmatprep.subr.mxu0 0.0
    %v3347 = vand.u32 %v302, 4294901760
    %v3348 = vsub.f32 %v302, %v3347
    %3349 = vmatpush2.msra.mxu0 %v3348
    %3350 = vmatprep.subr.mxu0 0.0
    %v3351 = vand.u32 %v301, 4294901760
    %v3352 = vsub.f32 %v301, %v3351
    %3353 = vmatpush2.msra.mxu0 %v3352
    %3354 = vmatprep.subr.mxu0 0.0
    %v3355 = vand.u32 %v300, 4294901760
    %v3356 = vsub.f32 %v300, %v3355
    %3357 = vmatpush2.msra.mxu0 %v3356
    %3358 = vmatprep.subr.mxu0 0.0
    %v3359 = vand.u32 %v299, 4294901760
    %v3360 = vsub.f32 %v299, %v3359
    %3361 = vmatpush2.msra.mxu0 %v3360
    %3362 = vmatprep.subr.mxu0 0.0
    %v3363 = vand.u32 %v298, 4294901760
    %v3364 = vsub.f32 %v298, %v3363
    %3365 = vmatpush2.msra.mxu0 %v3364
    %3366 = vmatprep.subr.mxu0 0.0
    %v3367 = vand.u32 %v297, 4294901760
    %v3368 = vsub.f32 %v297, %v3367
    %3369 = vmatpush2.msra.mxu0 %v3368
    %3370 = vmatprep.subr.mxu0 0.0
    %v3371 = vand.u32 %v296, 4294901760
    %v3372 = vsub.f32 %v296, %v3371
    %3373 = vmatpush2.msra.mxu0 %v3372
    %3374 = vmatprep.subr.mxu0 0.0
    %v3375 = vand.u32 %v295, 4294901760
    %v3376 = vsub.f32 %v295, %v3375
    %3377 = vmatpush2.msra.mxu0 %v3376
    %3378 = vmatprep.subr.mxu0 0.0
    %v3379 = vand.u32 %v294, 4294901760
    %v3380 = vsub.f32 %v294, %v3379
    %3381 = vmatpush2.msra.mxu0 %v3380
    %3382 = vmatprep.subr.mxu0 0.0
    %v3383 = vand.u32 %v293, 4294901760
    %v3384 = vsub.f32 %v293, %v3383
    %3385 = vmatpush2.msra.mxu0 %v3384
    %3386 = vmatprep.subr.mxu0 0.0
    %v3387 = vand.u32 %v292, 4294901760
    %v3388 = vsub.f32 %v292, %v3387
    %3389 = vmatpush2.msra.mxu0 %v3388
    %3390 = vmatprep.subr.mxu0 0.0
    %v3391 = vand.u32 %v291, 4294901760
    %v3392 = vsub.f32 %v291, %v3391
    %3393 = vmatpush2.msra.mxu0 %v3392
    %3394 = vmatprep.subr.mxu0 0.0
    %v3395 = vand.u32 %v290, 4294901760
    %v3396 = vsub.f32 %v290, %v3395
    %3397 = vmatpush2.msra.mxu0 %v3396
    %3398 = vmatprep.subr.mxu0 0.0
    %v3399 = vand.u32 %v289, 4294901760
    %v3400 = vsub.f32 %v289, %v3399
    %3401 = vmatpush2.msra.mxu0 %v3400
    %3402 = vmatprep.subr.mxu0 0.0
    %v3403 = vand.u32 %v288, 4294901760
    %v3404 = vsub.f32 %v288, %v3403
    %3405 = vmatpush2.msra.mxu0 %v3404
    %v3406 = vand.u32 %v339, 4294901760
    %v3407 = vsub.f32 %v339, %v3406
    %3408 = vmatprep.mubr.f32.mxu0 %v3407
    %v3409 = vand.u32 %v337, 4294901760
    %v3410 = vsub.f32 %v337, %v3409
    %3411 = vmatmul.mubr.f32.gmra.mxu0 %v3410
    %v3412 = vpop.f32.mrf.mxu0
    %v3413 = vadd.f32 %v3275, %v3412
    %v3414 = vpop.f32.mrf.mxu0
    %3415 = vdwg.mxu0
    %3416 = vmatprep.subr.mxu0 0.0
    %v3417 = vand.u32 %v287, 4294901760
    %3418 = vmatpush1.msra.mxu0 %v3417
    %3419 = vmatprep.subr.mxu0 0.0
    %v3420 = vand.u32 %v286, 4294901760
    %3421 = vmatpush1.msra.mxu0 %v3420
    %3422 = vmatprep.subr.mxu0 0.0
    %v3423 = vand.u32 %v285, 4294901760
    %3424 = vmatpush1.msra.mxu0 %v3423
    %3425 = vmatprep.subr.mxu0 0.0
    %v3426 = vand.u32 %v284, 4294901760
    %3427 = vmatpush1.msra.mxu0 %v3426
    %3428 = vmatprep.subr.mxu0 0.0
    %v3429 = vand.u32 %v283, 4294901760
    %3430 = vmatpush1.msra.mxu0 %v3429
    %3431 = vmatprep.subr.mxu0 0.0
    %v3432 = vand.u32 %v282, 4294901760
    %3433 = vmatpush1.msra.mxu0 %v3432
    %3434 = vmatprep.subr.mxu0 0.0
    %v3435 = vand.u32 %v281, 4294901760
    %3436 = vmatpush1.msra.mxu0 %v3435
    %3437 = vmatprep.subr.mxu0 0.0
    %v3438 = vand.u32 %v280, 4294901760
    %3439 = vmatpush1.msra.mxu0 %v3438
    %3440 = vmatprep.subr.mxu0 0.0
    %v3441 = vand.u32 %v279, 4294901760
    %3442 = vmatpush1.msra.mxu0 %v3441
    %3443 = vmatprep.subr.mxu0 0.0
    %v3444 = vand.u32 %v278, 4294901760
    %3445 = vmatpush1.msra.mxu0 %v3444
    %3446 = vmatprep.subr.mxu0 0.0
    %v3447 = vand.u32 %v277, 4294901760
    %3448 = vmatpush1.msra.mxu0 %v3447
    %3449 = vmatprep.subr.mxu0 0.0
    %v3450 = vand.u32 %v276, 4294901760
    %3451 = vmatpush1.msra.mxu0 %v3450
    %3452 = vmatprep.subr.mxu0 0.0
    %v3453 = vand.u32 %v275, 4294901760
    %3454 = vmatpush1.msra.mxu0 %v3453
    %3455 = vmatprep.subr.mxu0 0.0
    %v3456 = vand.u32 %v274, 4294901760
    %3457 = vmatpush1.msra.mxu0 %v3456
    %3458 = vmatprep.subr.mxu0 0.0
    %v3459 = vand.u32 %v273, 4294901760
    %3460 = vmatpush1.msra.mxu0 %v3459
    %3461 = vmatprep.subr.mxu0 0.0
    %v3462 = vand.u32 %v272, 4294901760
    %3463 = vmatpush1.msra.mxu0 %v3462
    %3464 = vmatprep.subr.mxu0 0.0
    %v3465 = vand.u32 %v303, 4294901760
    %3466 = vmatpush2.msra.mxu0 %v3465
    %3467 = vmatprep.subr.mxu0 0.0
    %v3468 = vand.u32 %v302, 4294901760
    %3469 = vmatpush2.msra.mxu0 %v3468
    %3470 = vmatprep.subr.mxu0 0.0
    %v3471 = vand.u32 %v301, 4294901760
    %3472 = vmatpush2.msra.mxu0 %v3471
    %3473 = vmatprep.subr.mxu0 0.0
    %v3474 = vand.u32 %v300, 4294901760
    %3475 = vmatpush2.msra.mxu0 %v3474
    %3476 = vmatprep.subr.mxu0 0.0
    %v3477 = vand.u32 %v299, 4294901760
    %3478 = vmatpush2.msra.mxu0 %v3477
    %3479 = vmatprep.subr.mxu0 0.0
    %v3480 = vand.u32 %v298, 4294901760
    %3481 = vmatpush2.msra.mxu0 %v3480
    %3482 = vmatprep.subr.mxu0 0.0
    %v3483 = vand.u32 %v297, 4294901760
    %3484 = vmatpush2.msra.mxu0 %v3483
    %3485 = vmatprep.subr.mxu0 0.0
    %v3486 = vand.u32 %v296, 4294901760
    %3487 = vmatpush2.msra.mxu0 %v3486
    %3488 = vmatprep.subr.mxu0 0.0
    %v3489 = vand.u32 %v295, 4294901760
    %3490 = vmatpush2.msra.mxu0 %v3489
    %3491 = vmatprep.subr.mxu0 0.0
    %v3492 = vand.u32 %v294, 4294901760
    %3493 = vmatpush2.msra.mxu0 %v3492
    %3494 = vmatprep.subr.mxu0 0.0
    %v3495 = vand.u32 %v293, 4294901760
    %3496 = vmatpush2.msra.mxu0 %v3495
    %3497 = vmatprep.subr.mxu0 0.0
    %v3498 = vand.u32 %v292, 4294901760
    %3499 = vmatpush2.msra.mxu0 %v3498
    %3500 = vmatprep.subr.mxu0 0.0
    %v3501 = vand.u32 %v291, 4294901760
    %3502 = vmatpush2.msra.mxu0 %v3501
    %3503 = vmatprep.subr.mxu0 0.0
    %v3504 = vand.u32 %v290, 4294901760
    %3505 = vmatpush2.msra.mxu0 %v3504
    %3506 = vmatprep.subr.mxu0 0.0
    %v3507 = vand.u32 %v289, 4294901760
    %3508 = vmatpush2.msra.mxu0 %v3507
    %3509 = vmatprep.subr.mxu0 0.0
    %v3510 = vand.u32 %v288, 4294901760
    %3511 = vmatpush2.msra.mxu0 %v3510
    %v3512 = vand.u32 %v339, 4294901760
    %v3513 = vsub.f32 %v339, %v3512
    %v3514 = vand.u32 %v3513, 4294901760
    %3515 = vmatprep.mubr.f32.mxu0 %v3514
    %v3516 = vand.u32 %v337, 4294901760
    %v3517 = vsub.f32 %v337, %v3516
    %v3518 = vand.u32 %v3517, 4294901760
    %3519 = vmatmul.mubr.f32.gmra.mxu0 %v3518
    %v3520 = vpop.f32.mrf.mxu0
    %v3521 = vadd.f32 %v3413, %v3520
    %v3522 = vpop.f32.mrf.mxu0
    %3523 = vdwg.mxu0
    %3524 = vmatprep.subr.mxu0 0.0
    %v3525 = vand.u32 %v287, 4294901760
    %v3526 = vsub.f32 %v287, %v3525
    %v3527 = vand.u32 %v3526, 4294901760
    %3528 = vmatpush1.msra.mxu0 %v3527
    %3529 = vmatprep.subr.mxu0 0.0
    %v3530 = vand.u32 %v286, 4294901760
    %v3531 = vsub.f32 %v286, %v3530
    %v3532 = vand.u32 %v3531, 4294901760
    %3533 = vmatpush1.msra.mxu0 %v3532
    %3534 = vmatprep.subr.mxu0 0.0
    %v3535 = vand.u32 %v285, 4294901760
    %v3536 = vsub.f32 %v285, %v3535
    %v3537 = vand.u32 %v3536, 4294901760
    %3538 = vmatpush1.msra.mxu0 %v3537
    %3539 = vmatprep.subr.mxu0 0.0
    %v3540 = vand.u32 %v284, 4294901760
    %v3541 = vsub.f32 %v284, %v3540
    %v3542 = vand.u32 %v3541, 4294901760
    %3543 = vmatpush1.msra.mxu0 %v3542
    %3544 = vmatprep.subr.mxu0 0.0
    %v3545 = vand.u32 %v283, 4294901760
    %v3546 = vsub.f32 %v283, %v3545
    %v3547 = vand.u32 %v3546, 4294901760
    %3548 = vmatpush1.msra.mxu0 %v3547
    %3549 = vmatprep.subr.mxu0 0.0
    %v3550 = vand.u32 %v282, 4294901760
    %v3551 = vsub.f32 %v282, %v3550
    %v3552 = vand.u32 %v3551, 4294901760
    %3553 = vmatpush1.msra.mxu0 %v3552
    %3554 = vmatprep.subr.mxu0 0.0
    %v3555 = vand.u32 %v281, 4294901760
    %v3556 = vsub.f32 %v281, %v3555
    %v3557 = vand.u32 %v3556, 4294901760
    %3558 = vmatpush1.msra.mxu0 %v3557
    %3559 = vmatprep.subr.mxu0 0.0
    %v3560 = vand.u32 %v280, 4294901760
    %v3561 = vsub.f32 %v280, %v3560
    %v3562 = vand.u32 %v3561, 4294901760
    %3563 = vmatpush1.msra.mxu0 %v3562
    %3564 = vmatprep.subr.mxu0 0.0
    %v3565 = vand.u32 %v279, 4294901760
    %v3566 = vsub.f32 %v279, %v3565
    %v3567 = vand.u32 %v3566, 4294901760
    %3568 = vmatpush1.msra.mxu0 %v3567
    %3569 = vmatprep.subr.mxu0 0.0
    %v3570 = vand.u32 %v278, 4294901760
    %v3571 = vsub.f32 %v278, %v3570
    %v3572 = vand.u32 %v3571, 4294901760
    %3573 = vmatpush1.msra.mxu0 %v3572
    %3574 = vmatprep.subr.mxu0 0.0
    %v3575 = vand.u32 %v277, 4294901760
    %v3576 = vsub.f32 %v277, %v3575
    %v3577 = vand.u32 %v3576, 4294901760
    %3578 = vmatpush1.msra.mxu0 %v3577
    %3579 = vmatprep.subr.mxu0 0.0
    %v3580 = vand.u32 %v276, 4294901760
    %v3581 = vsub.f32 %v276, %v3580
    %v3582 = vand.u32 %v3581, 4294901760
    %3583 = vmatpush1.msra.mxu0 %v3582
    %3584 = vmatprep.subr.mxu0 0.0
    %v3585 = vand.u32 %v275, 4294901760
    %v3586 = vsub.f32 %v275, %v3585
    %v3587 = vand.u32 %v3586, 4294901760
    %3588 = vmatpush1.msra.mxu0 %v3587
    %3589 = vmatprep.subr.mxu0 0.0
    %v3590 = vand.u32 %v274, 4294901760
    %v3591 = vsub.f32 %v274, %v3590
    %v3592 = vand.u32 %v3591, 4294901760
    %3593 = vmatpush1.msra.mxu0 %v3592
    %3594 = vmatprep.subr.mxu0 0.0
    %v3595 = vand.u32 %v273, 4294901760
    %v3596 = vsub.f32 %v273, %v3595
    %v3597 = vand.u32 %v3596, 4294901760
    %3598 = vmatpush1.msra.mxu0 %v3597
    %3599 = vmatprep.subr.mxu0 0.0
    %v3600 = vand.u32 %v272, 4294901760
    %v3601 = vsub.f32 %v272, %v3600
    %v3602 = vand.u32 %v3601, 4294901760
    %3603 = vmatpush1.msra.mxu0 %v3602
    %3604 = vmatprep.subr.mxu0 0.0
    %v3605 = vand.u32 %v303, 4294901760
    %v3606 = vsub.f32 %v303, %v3605
    %v3607 = vand.u32 %v3606, 4294901760
    %3608 = vmatpush2.msra.mxu0 %v3607
    %3609 = vmatprep.subr.mxu0 0.0
    %v3610 = vand.u32 %v302, 4294901760
    %v3611 = vsub.f32 %v302, %v3610
    %v3612 = vand.u32 %v3611, 4294901760
    %3613 = vmatpush2.msra.mxu0 %v3612
    %3614 = vmatprep.subr.mxu0 0.0
    %v3615 = vand.u32 %v301, 4294901760
    %v3616 = vsub.f32 %v301, %v3615
    %v3617 = vand.u32 %v3616, 4294901760
    %3618 = vmatpush2.msra.mxu0 %v3617
    %3619 = vmatprep.subr.mxu0 0.0
    %v3620 = vand.u32 %v300, 4294901760
    %v3621 = vsub.f32 %v300, %v3620
    %v3622 = vand.u32 %v3621, 4294901760
    %3623 = vmatpush2.msra.mxu0 %v3622
    %3624 = vmatprep.subr.mxu0 0.0
    %v3625 = vand.u32 %v299, 4294901760
    %v3626 = vsub.f32 %v299, %v3625
    %v3627 = vand.u32 %v3626, 4294901760
    %3628 = vmatpush2.msra.mxu0 %v3627
    %3629 = vmatprep.subr.mxu0 0.0
    %v3630 = vand.u32 %v298, 4294901760
    %v3631 = vsub.f32 %v298, %v3630
    %v3632 = vand.u32 %v3631, 4294901760
    %3633 = vmatpush2.msra.mxu0 %v3632
    %3634 = vmatprep.subr.mxu0 0.0
    %v3635 = vand.u32 %v297, 4294901760
    %v3636 = vsub.f32 %v297, %v3635
    %v3637 = vand.u32 %v3636, 4294901760
    %3638 = vmatpush2.msra.mxu0 %v3637
    %3639 = vmatprep.subr.mxu0 0.0
    %v3640 = vand.u32 %v296, 4294901760
    %v3641 = vsub.f32 %v296, %v3640
    %v3642 = vand.u32 %v3641, 4294901760
    %3643 = vmatpush2.msra.mxu0 %v3642
    %3644 = vmatprep.subr.mxu0 0.0
    %v3645 = vand.u32 %v295, 4294901760
    %v3646 = vsub.f32 %v295, %v3645
    %v3647 = vand.u32 %v3646, 4294901760
    %3648 = vmatpush2.msra.mxu0 %v3647
    %3649 = vmatprep.subr.mxu0 0.0
    %v3650 = vand.u32 %v294, 4294901760
    %v3651 = vsub.f32 %v294, %v3650
    %v3652 = vand.u32 %v3651, 4294901760
    %3653 = vmatpush2.msra.mxu0 %v3652
    %3654 = vmatprep.subr.mxu0 0.0
    %v3655 = vand.u32 %v293, 4294901760
    %v3656 = vsub.f32 %v293, %v3655
    %v3657 = vand.u32 %v3656, 4294901760
    %3658 = vmatpush2.msra.mxu0 %v3657
    %3659 = vmatprep.subr.mxu0 0.0
    %v3660 = vand.u32 %v292, 4294901760
    %v3661 = vsub.f32 %v292, %v3660
    %v3662 = vand.u32 %v3661, 4294901760
    %3663 = vmatpush2.msra.mxu0 %v3662
    %3664 = vmatprep.subr.mxu0 0.0
    %v3665 = vand.u32 %v291, 4294901760
    %v3666 = vsub.f32 %v291, %v3665
    %v3667 = vand.u32 %v3666, 4294901760
    %3668 = vmatpush2.msra.mxu0 %v3667
    %3669 = vmatprep.subr.mxu0 0.0
    %v3670 = vand.u32 %v290, 4294901760
    %v3671 = vsub.f32 %v290, %v3670
    %v3672 = vand.u32 %v3671, 4294901760
    %3673 = vmatpush2.msra.mxu0 %v3672
    %3674 = vmatprep.subr.mxu0 0.0
    %v3675 = vand.u32 %v289, 4294901760
    %v3676 = vsub.f32 %v289, %v3675
    %v3677 = vand.u32 %v3676, 4294901760
    %3678 = vmatpush2.msra.mxu0 %v3677
    %3679 = vmatprep.subr.mxu0 0.0
    %v3680 = vand.u32 %v288, 4294901760
    %v3681 = vsub.f32 %v288, %v3680
    %v3682 = vand.u32 %v3681, 4294901760
    %3683 = vmatpush2.msra.mxu0 %v3682
    %v3684 = vand.u32 %v339, 4294901760
    %3685 = vmatprep.mubr.f32.mxu0 %v3684
    %v3686 = vand.u32 %v337, 4294901760
    %3687 = vmatmul.mubr.f32.gmra.mxu0 %v3686
    %v3688 = vpop.f32.mrf.mxu0
    %v3689 = vadd.f32 %v3521, %v3688
    %v3690 = vpop.f32.mrf.mxu0
    %3691 = vdwg.mxu0
    %3692 = vmatprep.subr.mxu0 0.0
    %v3693 = vand.u32 %v287, 4294901760
    %3694 = vmatpush1.msra.mxu0 %v3693
    %3695 = vmatprep.subr.mxu0 0.0
    %v3696 = vand.u32 %v286, 4294901760
    %3697 = vmatpush1.msra.mxu0 %v3696
    %3698 = vmatprep.subr.mxu0 0.0
    %v3699 = vand.u32 %v285, 4294901760
    %3700 = vmatpush1.msra.mxu0 %v3699
    %3701 = vmatprep.subr.mxu0 0.0
    %v3702 = vand.u32 %v284, 4294901760
    %3703 = vmatpush1.msra.mxu0 %v3702
    %3704 = vmatprep.subr.mxu0 0.0
    %v3705 = vand.u32 %v283, 4294901760
    %3706 = vmatpush1.msra.mxu0 %v3705
    %3707 = vmatprep.subr.mxu0 0.0
    %v3708 = vand.u32 %v282, 4294901760
    %3709 = vmatpush1.msra.mxu0 %v3708
    %3710 = vmatprep.subr.mxu0 0.0
    %v3711 = vand.u32 %v281, 4294901760
    %3712 = vmatpush1.msra.mxu0 %v3711
    %3713 = vmatprep.subr.mxu0 0.0
    %v3714 = vand.u32 %v280, 4294901760
    %3715 = vmatpush1.msra.mxu0 %v3714
    %3716 = vmatprep.subr.mxu0 0.0
    %v3717 = vand.u32 %v279, 4294901760
    %3718 = vmatpush1.msra.mxu0 %v3717
    %3719 = vmatprep.subr.mxu0 0.0
    %v3720 = vand.u32 %v278, 4294901760
    %3721 = vmatpush1.msra.mxu0 %v3720
    %3722 = vmatprep.subr.mxu0 0.0
    %v3723 = vand.u32 %v277, 4294901760
    %3724 = vmatpush1.msra.mxu0 %v3723
    %3725 = vmatprep.subr.mxu0 0.0
    %v3726 = vand.u32 %v276, 4294901760
    %3727 = vmatpush1.msra.mxu0 %v3726
    %3728 = vmatprep.subr.mxu0 0.0
    %v3729 = vand.u32 %v275, 4294901760
    %3730 = vmatpush1.msra.mxu0 %v3729
    %3731 = vmatprep.subr.mxu0 0.0
    %v3732 = vand.u32 %v274, 4294901760
    %3733 = vmatpush1.msra.mxu0 %v3732
    %3734 = vmatprep.subr.mxu0 0.0
    %v3735 = vand.u32 %v273, 4294901760
    %3736 = vmatpush1.msra.mxu0 %v3735
    %3737 = vmatprep.subr.mxu0 0.0
    %v3738 = vand.u32 %v272, 4294901760
    %3739 = vmatpush1.msra.mxu0 %v3738
    %3740 = vmatprep.subr.mxu0 0.0
    %v3741 = vand.u32 %v303, 4294901760
    %3742 = vmatpush2.msra.mxu0 %v3741
    %3743 = vmatprep.subr.mxu0 0.0
    %v3744 = vand.u32 %v302, 4294901760
    %3745 = vmatpush2.msra.mxu0 %v3744
    %3746 = vmatprep.subr.mxu0 0.0
    %v3747 = vand.u32 %v301, 4294901760
    %3748 = vmatpush2.msra.mxu0 %v3747
    %3749 = vmatprep.subr.mxu0 0.0
    %v3750 = vand.u32 %v300, 4294901760
    %3751 = vmatpush2.msra.mxu0 %v3750
    %3752 = vmatprep.subr.mxu0 0.0
    %v3753 = vand.u32 %v299, 4294901760
    %3754 = vmatpush2.msra.mxu0 %v3753
    %3755 = vmatprep.subr.mxu0 0.0
    %v3756 = vand.u32 %v298, 4294901760
    %3757 = vmatpush2.msra.mxu0 %v3756
    %3758 = vmatprep.subr.mxu0 0.0
    %v3759 = vand.u32 %v297, 4294901760
    %3760 = vmatpush2.msra.mxu0 %v3759
    %3761 = vmatprep.subr.mxu0 0.0
    %v3762 = vand.u32 %v296, 4294901760
    %3763 = vmatpush2.msra.mxu0 %v3762
    %3764 = vmatprep.subr.mxu0 0.0
    %v3765 = vand.u32 %v295, 4294901760
    %3766 = vmatpush2.msra.mxu0 %v3765
    %3767 = vmatprep.subr.mxu0 0.0
    %v3768 = vand.u32 %v294, 4294901760
    %3769 = vmatpush2.msra.mxu0 %v3768
    %3770 = vmatprep.subr.mxu0 0.0
    %v3771 = vand.u32 %v293, 4294901760
    %3772 = vmatpush2.msra.mxu0 %v3771
    %3773 = vmatprep.subr.mxu0 0.0
    %v3774 = vand.u32 %v292, 4294901760
    %3775 = vmatpush2.msra.mxu0 %v3774
    %3776 = vmatprep.subr.mxu0 0.0
    %v3777 = vand.u32 %v291, 4294901760
    %3778 = vmatpush2.msra.mxu0 %v3777
    %3779 = vmatprep.subr.mxu0 0.0
    %v3780 = vand.u32 %v290, 4294901760
    %3781 = vmatpush2.msra.mxu0 %v3780
    %3782 = vmatprep.subr.mxu0 0.0
    %v3783 = vand.u32 %v289, 4294901760
    %3784 = vmatpush2.msra.mxu0 %v3783
    %3785 = vmatprep.subr.mxu0 0.0
    %v3786 = vand.u32 %v288, 4294901760
    %3787 = vmatpush2.msra.mxu0 %v3786
    %v3788 = vand.u32 %v339, 4294901760
    %3789 = vmatprep.mubr.f32.mxu0 %v3788
    %v3790 = vand.u32 %v337, 4294901760
    %3791 = vmatmul.mubr.f32.gmra.mxu0 %v3790
    %v3792 = vpop.f32.mrf.mxu0
    %v3793 = vadd.f32 %v3689, %v3792
    %v3794 = vpop.f32.mrf.mxu0
    %3795 = vdwg.mxu0
    %v3798 = vcombine.high %v169, %v169
    %v3800 = vunpack.c.l.s4 1983009808
    %v3801 = vunpack.c.0.s8 %v3800
    %v3802 = vlaneseq
    %v3803 = vshrl.u32 %v3802, 7
    %v3804 = vsub.s32 %v3801, %v3803
    %v3805 = vrot.slane %v169, %v3804
    %v3807 = vunpack.c.l.s4 1983009808
    %v3808 = vunpack.c.0.s8 %v3807
    %v3809 = vlaneseq
    %v3810 = vshrl.u32 %v3809, 7
    %v3811 = vsub.s32 %v3808, %v3810
    %v3812 = vrot.slane %v3798, %v3811
    %v3813 = vcombine.high %v3805, %v3805
    %v3814 = vcombine.high %v3812, %v3812
    %v3815 = vcombine.high %v171, %v171
    %v3817 = vunpack.c.l.s4 1983009808
    %v3818 = vunpack.c.0.s8 %v3817
    %v3819 = vlaneseq
    %v3820 = vshrl.u32 %v3819, 7
    %v3821 = vsub.s32 %v3818, %v3820
    %v3822 = vrot.slane %v171, %v3821
    %v3824 = vunpack.c.l.s4 1983009808
    %v3825 = vunpack.c.0.s8 %v3824
    %v3826 = vlaneseq
    %v3827 = vshrl.u32 %v3826, 7
    %v3828 = vsub.s32 %v3825, %v3827
    %v3829 = vrot.slane %v3815, %v3828
    %v3830 = vcombine.high %v3822, %v3822
    %v3831 = vcombine.high %v3829, %v3829
    %3840 = vmatprep.subr.mxu0 0.0
    %v3841 = vand.u32 %v191, 4294901760
    %3842 = vmatpush1.msra.mxu0 %v3841
    %3843 = vmatprep.subr.mxu0 0.0
    %v3844 = vand.u32 %v190, 4294901760
    %3845 = vmatpush1.msra.mxu0 %v3844
    %3846 = vmatprep.subr.mxu0 0.0
    %v3847 = vand.u32 %v189, 4294901760
    %3848 = vmatpush1.msra.mxu0 %v3847
    %3849 = vmatprep.subr.mxu0 0.0
    %v3850 = vand.u32 %v188, 4294901760
    %3851 = vmatpush1.msra.mxu0 %v3850
    %3852 = vmatprep.subr.mxu0 0.0
    %v3853 = vand.u32 %v187, 4294901760
    %3854 = vmatpush1.msra.mxu0 %v3853
    %3855 = vmatprep.subr.mxu0 0.0
    %v3856 = vand.u32 %v186, 4294901760
    %3857 = vmatpush1.msra.mxu0 %v3856
    %3858 = vmatprep.subr.mxu0 0.0
    %v3859 = vand.u32 %v185, 4294901760
    %3860 = vmatpush1.msra.mxu0 %v3859
    %3861 = vmatprep.subr.mxu0 0.0
    %v3862 = vand.u32 %v184, 4294901760
    %3863 = vmatpush1.msra.mxu0 %v3862
    %3864 = vmatprep.subr.mxu0 0.0
    %v3865 = vand.u32 %v183, 4294901760
    %3866 = vmatpush1.msra.mxu0 %v3865
    %3867 = vmatprep.subr.mxu0 0.0
    %v3868 = vand.u32 %v182, 4294901760
    %3869 = vmatpush1.msra.mxu0 %v3868
    %3870 = vmatprep.subr.mxu0 0.0
    %v3871 = vand.u32 %v181, 4294901760
    %3872 = vmatpush1.msra.mxu0 %v3871
    %3873 = vmatprep.subr.mxu0 0.0
    %v3874 = vand.u32 %v180, 4294901760
    %3875 = vmatpush1.msra.mxu0 %v3874
    %3876 = vmatprep.subr.mxu0 0.0
    %v3877 = vand.u32 %v179, 4294901760
    %3878 = vmatpush1.msra.mxu0 %v3877
    %3879 = vmatprep.subr.mxu0 0.0
    %v3880 = vand.u32 %v178, 4294901760
    %3881 = vmatpush1.msra.mxu0 %v3880
    %3882 = vmatprep.subr.mxu0 0.0
    %v3883 = vand.u32 %v177, 4294901760
    %3884 = vmatpush1.msra.mxu0 %v3883
    %3885 = vmatprep.subr.mxu0 0.0
    %v3886 = vand.u32 %v176, 4294901760
    %3887 = vmatpush1.msra.mxu0 %v3886
    %3888 = vmatprep.subr.mxu0 0.0
    %v3889 = vand.u32 %v207, 4294901760
    %3890 = vmatpush2.msra.mxu0 %v3889
    %3891 = vmatprep.subr.mxu0 0.0
    %v3892 = vand.u32 %v206, 4294901760
    %3893 = vmatpush2.msra.mxu0 %v3892
    %3894 = vmatprep.subr.mxu0 0.0
    %v3895 = vand.u32 %v205, 4294901760
    %3896 = vmatpush2.msra.mxu0 %v3895
    %3897 = vmatprep.subr.mxu0 0.0
    %v3898 = vand.u32 %v204, 4294901760
    %3899 = vmatpush2.msra.mxu0 %v3898
    %3900 = vmatprep.subr.mxu0 0.0
    %v3901 = vand.u32 %v203, 4294901760
    %3902 = vmatpush2.msra.mxu0 %v3901
    %3903 = vmatprep.subr.mxu0 0.0
    %v3904 = vand.u32 %v202, 4294901760
    %3905 = vmatpush2.msra.mxu0 %v3904
    %3906 = vmatprep.subr.mxu0 0.0
    %v3907 = vand.u32 %v201, 4294901760
    %3908 = vmatpush2.msra.mxu0 %v3907
    %3909 = vmatprep.subr.mxu0 0.0
    %v3910 = vand.u32 %v200, 4294901760
    %3911 = vmatpush2.msra.mxu0 %v3910
    %3912 = vmatprep.subr.mxu0 0.0
    %v3913 = vand.u32 %v199, 4294901760
    %3914 = vmatpush2.msra.mxu0 %v3913
    %3915 = vmatprep.subr.mxu0 0.0
    %v3916 = vand.u32 %v198, 4294901760
    %3917 = vmatpush2.msra.mxu0 %v3916
    %3918 = vmatprep.subr.mxu0 0.0
    %v3919 = vand.u32 %v197, 4294901760
    %3920 = vmatpush2.msra.mxu0 %v3919
    %3921 = vmatprep.subr.mxu0 0.0
    %v3922 = vand.u32 %v196, 4294901760
    %3923 = vmatpush2.msra.mxu0 %v3922
    %3924 = vmatprep.subr.mxu0 0.0
    %v3925 = vand.u32 %v195, 4294901760
    %3926 = vmatpush2.msra.mxu0 %v3925
    %3927 = vmatprep.subr.mxu0 0.0
    %v3928 = vand.u32 %v194, 4294901760
    %3929 = vmatpush2.msra.mxu0 %v3928
    %3930 = vmatprep.subr.mxu0 0.0
    %v3931 = vand.u32 %v193, 4294901760
    %3932 = vmatpush2.msra.mxu0 %v3931
    %3933 = vmatprep.subr.mxu0 0.0
    %v3934 = vand.u32 %v192, 4294901760
    %3935 = vmatpush2.msra.mxu0 %v3934
    %v3936 = vand.u32 %v3813, 4294901760
    %v3937 = vsub.f32 %v3813, %v3936
    %v3938 = vand.u32 %v3937, 4294901760
    %v3939 = vsub.f32 %v3937, %v3938
    %v3940 = vand.u32 %v3939, 4294901760
    %3941 = vmatprep.mubr.f32.mxu0 %v3940
    %v3942 = vand.u32 %v3805, 4294901760
    %v3943 = vsub.f32 %v3805, %v3942
    %v3944 = vand.u32 %v3943, 4294901760
    %v3945 = vsub.f32 %v3943, %v3944
    %v3946 = vand.u32 %v3945, 4294901760
    %3947 = vmatmul.mubr.f32.gmra.mxu0 %v3946
    %v3948 = vpop.f32.mrf.mxu0
    %v3949 = vadd.f32 0.0, %v3948
    %v3950 = vpop.f32.mrf.mxu0
    %3951 = vdwg.mxu0
    %3952 = vmatprep.subr.mxu0 0.0
    %v3953 = vand.u32 %v191, 4294901760
    %v3954 = vsub.f32 %v191, %v3953
    %v3955 = vand.u32 %v3954, 4294901760
    %v3956 = vsub.f32 %v3954, %v3955
    %v3957 = vand.u32 %v3956, 4294901760
    %3958 = vmatpush1.msra.mxu0 %v3957
    %3959 = vmatprep.subr.mxu0 0.0
    %v3960 = vand.u32 %v190, 4294901760
    %v3961 = vsub.f32 %v190, %v3960
    %v3962 = vand.u32 %v3961, 4294901760
    %v3963 = vsub.f32 %v3961, %v3962
    %v3964 = vand.u32 %v3963, 4294901760
    %3965 = vmatpush1.msra.mxu0 %v3964
    %3966 = vmatprep.subr.mxu0 0.0
    %v3967 = vand.u32 %v189, 4294901760
    %v3968 = vsub.f32 %v189, %v3967
    %v3969 = vand.u32 %v3968, 4294901760
    %v3970 = vsub.f32 %v3968, %v3969
    %v3971 = vand.u32 %v3970, 4294901760
    %3972 = vmatpush1.msra.mxu0 %v3971
    %3973 = vmatprep.subr.mxu0 0.0
    %v3974 = vand.u32 %v188, 4294901760
    %v3975 = vsub.f32 %v188, %v3974
    %v3976 = vand.u32 %v3975, 4294901760
    %v3977 = vsub.f32 %v3975, %v3976
    %v3978 = vand.u32 %v3977, 4294901760
    %3979 = vmatpush1.msra.mxu0 %v3978
    %3980 = vmatprep.subr.mxu0 0.0
    %v3981 = vand.u32 %v187, 4294901760
    %v3982 = vsub.f32 %v187, %v3981
    %v3983 = vand.u32 %v3982, 4294901760
    %v3984 = vsub.f32 %v3982, %v3983
    %v3985 = vand.u32 %v3984, 4294901760
    %3986 = vmatpush1.msra.mxu0 %v3985
    %3987 = vmatprep.subr.mxu0 0.0
    %v3988 = vand.u32 %v186, 4294901760
    %v3989 = vsub.f32 %v186, %v3988
    %v3990 = vand.u32 %v3989, 4294901760
    %v3991 = vsub.f32 %v3989, %v3990
    %v3992 = vand.u32 %v3991, 4294901760
    %3993 = vmatpush1.msra.mxu0 %v3992
    %3994 = vmatprep.subr.mxu0 0.0
    %v3995 = vand.u32 %v185, 4294901760
    %v3996 = vsub.f32 %v185, %v3995
    %v3997 = vand.u32 %v3996, 4294901760
    %v3998 = vsub.f32 %v3996, %v3997
    %v3999 = vand.u32 %v3998, 4294901760
    %4000 = vmatpush1.msra.mxu0 %v3999
    %4001 = vmatprep.subr.mxu0 0.0
    %v4002 = vand.u32 %v184, 4294901760
    %v4003 = vsub.f32 %v184, %v4002
    %v4004 = vand.u32 %v4003, 4294901760
    %v4005 = vsub.f32 %v4003, %v4004
    %v4006 = vand.u32 %v4005, 4294901760
    %4007 = vmatpush1.msra.mxu0 %v4006
    %4008 = vmatprep.subr.mxu0 0.0
    %v4009 = vand.u32 %v183, 4294901760
    %v4010 = vsub.f32 %v183, %v4009
    %v4011 = vand.u32 %v4010, 4294901760
    %v4012 = vsub.f32 %v4010, %v4011
    %v4013 = vand.u32 %v4012, 4294901760
    %4014 = vmatpush1.msra.mxu0 %v4013
    %4015 = vmatprep.subr.mxu0 0.0
    %v4016 = vand.u32 %v182, 4294901760
    %v4017 = vsub.f32 %v182, %v4016
    %v4018 = vand.u32 %v4017, 4294901760
    %v4019 = vsub.f32 %v4017, %v4018
    %v4020 = vand.u32 %v4019, 4294901760
    %4021 = vmatpush1.msra.mxu0 %v4020
    %4022 = vmatprep.subr.mxu0 0.0
    %v4023 = vand.u32 %v181, 4294901760
    %v4024 = vsub.f32 %v181, %v4023
    %v4025 = vand.u32 %v4024, 4294901760
    %v4026 = vsub.f32 %v4024, %v4025
    %v4027 = vand.u32 %v4026, 4294901760
    %4028 = vmatpush1.msra.mxu0 %v4027
    %4029 = vmatprep.subr.mxu0 0.0
    %v4030 = vand.u32 %v180, 4294901760
    %v4031 = vsub.f32 %v180, %v4030
    %v4032 = vand.u32 %v4031, 4294901760
    %v4033 = vsub.f32 %v4031, %v4032
    %v4034 = vand.u32 %v4033, 4294901760
    %4035 = vmatpush1.msra.mxu0 %v4034
    %4036 = vmatprep.subr.mxu0 0.0
    %v4037 = vand.u32 %v179, 4294901760
    %v4038 = vsub.f32 %v179, %v4037
    %v4039 = vand.u32 %v4038, 4294901760
    %v4040 = vsub.f32 %v4038, %v4039
    %v4041 = vand.u32 %v4040, 4294901760
    %4042 = vmatpush1.msra.mxu0 %v4041
    %4043 = vmatprep.subr.mxu0 0.0
    %v4044 = vand.u32 %v178, 4294901760
    %v4045 = vsub.f32 %v178, %v4044
    %v4046 = vand.u32 %v4045, 4294901760
    %v4047 = vsub.f32 %v4045, %v4046
    %v4048 = vand.u32 %v4047, 4294901760
    %4049 = vmatpush1.msra.mxu0 %v4048
    %4050 = vmatprep.subr.mxu0 0.0
    %v4051 = vand.u32 %v177, 4294901760
    %v4052 = vsub.f32 %v177, %v4051
    %v4053 = vand.u32 %v4052, 4294901760
    %v4054 = vsub.f32 %v4052, %v4053
    %v4055 = vand.u32 %v4054, 4294901760
    %4056 = vmatpush1.msra.mxu0 %v4055
    %4057 = vmatprep.subr.mxu0 0.0
    %v4058 = vand.u32 %v176, 4294901760
    %v4059 = vsub.f32 %v176, %v4058
    %v4060 = vand.u32 %v4059, 4294901760
    %v4061 = vsub.f32 %v4059, %v4060
    %v4062 = vand.u32 %v4061, 4294901760
    %4063 = vmatpush1.msra.mxu0 %v4062
    %4064 = vmatprep.subr.mxu0 0.0
    %v4065 = vand.u32 %v207, 4294901760
    %v4066 = vsub.f32 %v207, %v4065
    %v4067 = vand.u32 %v4066, 4294901760
    %v4068 = vsub.f32 %v4066, %v4067
    %v4069 = vand.u32 %v4068, 4294901760
    %4070 = vmatpush2.msra.mxu0 %v4069
    %4071 = vmatprep.subr.mxu0 0.0
    %v4072 = vand.u32 %v206, 4294901760
    %v4073 = vsub.f32 %v206, %v4072
    %v4074 = vand.u32 %v4073, 4294901760
    %v4075 = vsub.f32 %v4073, %v4074
    %v4076 = vand.u32 %v4075, 4294901760
    %4077 = vmatpush2.msra.mxu0 %v4076
    %4078 = vmatprep.subr.mxu0 0.0
    %v4079 = vand.u32 %v205, 4294901760
    %v4080 = vsub.f32 %v205, %v4079
    %v4081 = vand.u32 %v4080, 4294901760
    %v4082 = vsub.f32 %v4080, %v4081
    %v4083 = vand.u32 %v4082, 4294901760
    %4084 = vmatpush2.msra.mxu0 %v4083
    %4085 = vmatprep.subr.mxu0 0.0
    %v4086 = vand.u32 %v204, 4294901760
    %v4087 = vsub.f32 %v204, %v4086
    %v4088 = vand.u32 %v4087, 4294901760
    %v4089 = vsub.f32 %v4087, %v4088
    %v4090 = vand.u32 %v4089, 4294901760
    %4091 = vmatpush2.msra.mxu0 %v4090
    %4092 = vmatprep.subr.mxu0 0.0
    %v4093 = vand.u32 %v203, 4294901760
    %v4094 = vsub.f32 %v203, %v4093
    %v4095 = vand.u32 %v4094, 4294901760
    %v4096 = vsub.f32 %v4094, %v4095
    %v4097 = vand.u32 %v4096, 4294901760
    %4098 = vmatpush2.msra.mxu0 %v4097
    %4099 = vmatprep.subr.mxu0 0.0
    %v4100 = vand.u32 %v202, 4294901760
    %v4101 = vsub.f32 %v202, %v4100
    %v4102 = vand.u32 %v4101, 4294901760
    %v4103 = vsub.f32 %v4101, %v4102
    %v4104 = vand.u32 %v4103, 4294901760
    %4105 = vmatpush2.msra.mxu0 %v4104
    %4106 = vmatprep.subr.mxu0 0.0
    %v4107 = vand.u32 %v201, 4294901760
    %v4108 = vsub.f32 %v201, %v4107
    %v4109 = vand.u32 %v4108, 4294901760
    %v4110 = vsub.f32 %v4108, %v4109
    %v4111 = vand.u32 %v4110, 4294901760
    %4112 = vmatpush2.msra.mxu0 %v4111
    %4113 = vmatprep.subr.mxu0 0.0
    %v4114 = vand.u32 %v200, 4294901760
    %v4115 = vsub.f32 %v200, %v4114
    %v4116 = vand.u32 %v4115, 4294901760
    %v4117 = vsub.f32 %v4115, %v4116
    %v4118 = vand.u32 %v4117, 4294901760
    %4119 = vmatpush2.msra.mxu0 %v4118
    %4120 = vmatprep.subr.mxu0 0.0
    %v4121 = vand.u32 %v199, 4294901760
    %v4122 = vsub.f32 %v199, %v4121
    %v4123 = vand.u32 %v4122, 4294901760
    %v4124 = vsub.f32 %v4122, %v4123
    %v4125 = vand.u32 %v4124, 4294901760
    %4126 = vmatpush2.msra.mxu0 %v4125
    %4127 = vmatprep.subr.mxu0 0.0
    %v4128 = vand.u32 %v198, 4294901760
    %v4129 = vsub.f32 %v198, %v4128
    %v4130 = vand.u32 %v4129, 4294901760
    %v4131 = vsub.f32 %v4129, %v4130
    %v4132 = vand.u32 %v4131, 4294901760
    %4133 = vmatpush2.msra.mxu0 %v4132
    %4134 = vmatprep.subr.mxu0 0.0
    %v4135 = vand.u32 %v197, 4294901760
    %v4136 = vsub.f32 %v197, %v4135
    %v4137 = vand.u32 %v4136, 4294901760
    %v4138 = vsub.f32 %v4136, %v4137
    %v4139 = vand.u32 %v4138, 4294901760
    %4140 = vmatpush2.msra.mxu0 %v4139
    %4141 = vmatprep.subr.mxu0 0.0
    %v4142 = vand.u32 %v196, 4294901760
    %v4143 = vsub.f32 %v196, %v4142
    %v4144 = vand.u32 %v4143, 4294901760
    %v4145 = vsub.f32 %v4143, %v4144
    %v4146 = vand.u32 %v4145, 4294901760
    %4147 = vmatpush2.msra.mxu0 %v4146
    %4148 = vmatprep.subr.mxu0 0.0
    %v4149 = vand.u32 %v195, 4294901760
    %v4150 = vsub.f32 %v195, %v4149
    %v4151 = vand.u32 %v4150, 4294901760
    %v4152 = vsub.f32 %v4150, %v4151
    %v4153 = vand.u32 %v4152, 4294901760
    %4154 = vmatpush2.msra.mxu0 %v4153
    %4155 = vmatprep.subr.mxu0 0.0
    %v4156 = vand.u32 %v194, 4294901760
    %v4157 = vsub.f32 %v194, %v4156
    %v4158 = vand.u32 %v4157, 4294901760
    %v4159 = vsub.f32 %v4157, %v4158
    %v4160 = vand.u32 %v4159, 4294901760
    %4161 = vmatpush2.msra.mxu0 %v4160
    %4162 = vmatprep.subr.mxu0 0.0
    %v4163 = vand.u32 %v193, 4294901760
    %v4164 = vsub.f32 %v193, %v4163
    %v4165 = vand.u32 %v4164, 4294901760
    %v4166 = vsub.f32 %v4164, %v4165
    %v4167 = vand.u32 %v4166, 4294901760
    %4168 = vmatpush2.msra.mxu0 %v4167
    %4169 = vmatprep.subr.mxu0 0.0
    %v4170 = vand.u32 %v192, 4294901760
    %v4171 = vsub.f32 %v192, %v4170
    %v4172 = vand.u32 %v4171, 4294901760
    %v4173 = vsub.f32 %v4171, %v4172
    %v4174 = vand.u32 %v4173, 4294901760
    %4175 = vmatpush2.msra.mxu0 %v4174
    %v4176 = vand.u32 %v3813, 4294901760
    %4177 = vmatprep.mubr.f32.mxu0 %v4176
    %v4178 = vand.u32 %v3805, 4294901760
    %4179 = vmatmul.mubr.f32.gmra.mxu0 %v4178
    %v4180 = vpop.f32.mrf.mxu0
    %v4181 = vadd.f32 %v3949, %v4180
    %v4182 = vpop.f32.mrf.mxu0
    %4183 = vdwg.mxu0
    %4184 = vmatprep.subr.mxu0 0.0
    %v4185 = vand.u32 %v191, 4294901760
    %v4186 = vsub.f32 %v191, %v4185
    %4187 = vmatpush1.msra.mxu0 %v4186
    %4188 = vmatprep.subr.mxu0 0.0
    %v4189 = vand.u32 %v190, 4294901760
    %v4190 = vsub.f32 %v190, %v4189
    %4191 = vmatpush1.msra.mxu0 %v4190
    %4192 = vmatprep.subr.mxu0 0.0
    %v4193 = vand.u32 %v189, 4294901760
    %v4194 = vsub.f32 %v189, %v4193
    %4195 = vmatpush1.msra.mxu0 %v4194
    %4196 = vmatprep.subr.mxu0 0.0
    %v4197 = vand.u32 %v188, 4294901760
    %v4198 = vsub.f32 %v188, %v4197
    %4199 = vmatpush1.msra.mxu0 %v4198
    %4200 = vmatprep.subr.mxu0 0.0
    %v4201 = vand.u32 %v187, 4294901760
    %v4202 = vsub.f32 %v187, %v4201
    %4203 = vmatpush1.msra.mxu0 %v4202
    %4204 = vmatprep.subr.mxu0 0.0
    %v4205 = vand.u32 %v186, 4294901760
    %v4206 = vsub.f32 %v186, %v4205
    %4207 = vmatpush1.msra.mxu0 %v4206
    %4208 = vmatprep.subr.mxu0 0.0
    %v4209 = vand.u32 %v185, 4294901760
    %v4210 = vsub.f32 %v185, %v4209
    %4211 = vmatpush1.msra.mxu0 %v4210
    %4212 = vmatprep.subr.mxu0 0.0
    %v4213 = vand.u32 %v184, 4294901760
    %v4214 = vsub.f32 %v184, %v4213
    %4215 = vmatpush1.msra.mxu0 %v4214
    %4216 = vmatprep.subr.mxu0 0.0
    %v4217 = vand.u32 %v183, 4294901760
    %v4218 = vsub.f32 %v183, %v4217
    %4219 = vmatpush1.msra.mxu0 %v4218
    %4220 = vmatprep.subr.mxu0 0.0
    %v4221 = vand.u32 %v182, 4294901760
    %v4222 = vsub.f32 %v182, %v4221
    %4223 = vmatpush1.msra.mxu0 %v4222
    %4224 = vmatprep.subr.mxu0 0.0
    %v4225 = vand.u32 %v181, 4294901760
    %v4226 = vsub.f32 %v181, %v4225
    %4227 = vmatpush1.msra.mxu0 %v4226
    %4228 = vmatprep.subr.mxu0 0.0
    %v4229 = vand.u32 %v180, 4294901760
    %v4230 = vsub.f32 %v180, %v4229
    %4231 = vmatpush1.msra.mxu0 %v4230
    %4232 = vmatprep.subr.mxu0 0.0
    %v4233 = vand.u32 %v179, 4294901760
    %v4234 = vsub.f32 %v179, %v4233
    %4235 = vmatpush1.msra.mxu0 %v4234
    %4236 = vmatprep.subr.mxu0 0.0
    %v4237 = vand.u32 %v178, 4294901760
    %v4238 = vsub.f32 %v178, %v4237
    %4239 = vmatpush1.msra.mxu0 %v4238
    %4240 = vmatprep.subr.mxu0 0.0
    %v4241 = vand.u32 %v177, 4294901760
    %v4242 = vsub.f32 %v177, %v4241
    %4243 = vmatpush1.msra.mxu0 %v4242
    %4244 = vmatprep.subr.mxu0 0.0
    %v4245 = vand.u32 %v176, 4294901760
    %v4246 = vsub.f32 %v176, %v4245
    %4247 = vmatpush1.msra.mxu0 %v4246
    %4248 = vmatprep.subr.mxu0 0.0
    %v4249 = vand.u32 %v207, 4294901760
    %v4250 = vsub.f32 %v207, %v4249
    %4251 = vmatpush2.msra.mxu0 %v4250
    %4252 = vmatprep.subr.mxu0 0.0
    %v4253 = vand.u32 %v206, 4294901760
    %v4254 = vsub.f32 %v206, %v4253
    %4255 = vmatpush2.msra.mxu0 %v4254
    %4256 = vmatprep.subr.mxu0 0.0
    %v4257 = vand.u32 %v205, 4294901760
    %v4258 = vsub.f32 %v205, %v4257
    %4259 = vmatpush2.msra.mxu0 %v4258
    %4260 = vmatprep.subr.mxu0 0.0
    %v4261 = vand.u32 %v204, 4294901760
    %v4262 = vsub.f32 %v204, %v4261
    %4263 = vmatpush2.msra.mxu0 %v4262
    %4264 = vmatprep.subr.mxu0 0.0
    %v4265 = vand.u32 %v203, 4294901760
    %v4266 = vsub.f32 %v203, %v4265
    %4267 = vmatpush2.msra.mxu0 %v4266
    %4268 = vmatprep.subr.mxu0 0.0
    %v4269 = vand.u32 %v202, 4294901760
    %v4270 = vsub.f32 %v202, %v4269
    %4271 = vmatpush2.msra.mxu0 %v4270
    %4272 = vmatprep.subr.mxu0 0.0
    %v4273 = vand.u32 %v201, 4294901760
    %v4274 = vsub.f32 %v201, %v4273
    %4275 = vmatpush2.msra.mxu0 %v4274
    %4276 = vmatprep.subr.mxu0 0.0
    %v4277 = vand.u32 %v200, 4294901760
    %v4278 = vsub.f32 %v200, %v4277
    %4279 = vmatpush2.msra.mxu0 %v4278
    %4280 = vmatprep.subr.mxu0 0.0
    %v4281 = vand.u32 %v199, 4294901760
    %v4282 = vsub.f32 %v199, %v4281
    %4283 = vmatpush2.msra.mxu0 %v4282
    %4284 = vmatprep.subr.mxu0 0.0
    %v4285 = vand.u32 %v198, 4294901760
    %v4286 = vsub.f32 %v198, %v4285
    %4287 = vmatpush2.msra.mxu0 %v4286
    %4288 = vmatprep.subr.mxu0 0.0
    %v4289 = vand.u32 %v197, 4294901760
    %v4290 = vsub.f32 %v197, %v4289
    %4291 = vmatpush2.msra.mxu0 %v4290
    %4292 = vmatprep.subr.mxu0 0.0
    %v4293 = vand.u32 %v196, 4294901760
    %v4294 = vsub.f32 %v196, %v4293
    %4295 = vmatpush2.msra.mxu0 %v4294
    %4296 = vmatprep.subr.mxu0 0.0
    %v4297 = vand.u32 %v195, 4294901760
    %v4298 = vsub.f32 %v195, %v4297
    %4299 = vmatpush2.msra.mxu0 %v4298
    %4300 = vmatprep.subr.mxu0 0.0
    %v4301 = vand.u32 %v194, 4294901760
    %v4302 = vsub.f32 %v194, %v4301
    %4303 = vmatpush2.msra.mxu0 %v4302
    %4304 = vmatprep.subr.mxu0 0.0
    %v4305 = vand.u32 %v193, 4294901760
    %v4306 = vsub.f32 %v193, %v4305
    %4307 = vmatpush2.msra.mxu0 %v4306
    %4308 = vmatprep.subr.mxu0 0.0
    %v4309 = vand.u32 %v192, 4294901760
    %v4310 = vsub.f32 %v192, %v4309
    %4311 = vmatpush2.msra.mxu0 %v4310
    %v4312 = vand.u32 %v3813, 4294901760
    %v4313 = vsub.f32 %v3813, %v4312
    %4314 = vmatprep.mubr.f32.mxu0 %v4313
    %v4315 = vand.u32 %v3805, 4294901760
    %v4316 = vsub.f32 %v3805, %v4315
    %4317 = vmatmul.mubr.f32.gmra.mxu0 %v4316
    %v4318 = vpop.f32.mrf.mxu0
    %v4319 = vadd.f32 %v4181, %v4318
    %v4320 = vpop.f32.mrf.mxu0
    %4321 = vdwg.mxu0
    %4322 = vmatprep.subr.mxu0 0.0
    %v4323 = vand.u32 %v191, 4294901760
    %4324 = vmatpush1.msra.mxu0 %v4323
    %4325 = vmatprep.subr.mxu0 0.0
    %v4326 = vand.u32 %v190, 4294901760
    %4327 = vmatpush1.msra.mxu0 %v4326
    %4328 = vmatprep.subr.mxu0 0.0
    %v4329 = vand.u32 %v189, 4294901760
    %4330 = vmatpush1.msra.mxu0 %v4329
    %4331 = vmatprep.subr.mxu0 0.0
    %v4332 = vand.u32 %v188, 4294901760
    %4333 = vmatpush1.msra.mxu0 %v4332
    %4334 = vmatprep.subr.mxu0 0.0
    %v4335 = vand.u32 %v187, 4294901760
    %4336 = vmatpush1.msra.mxu0 %v4335
    %4337 = vmatprep.subr.mxu0 0.0
    %v4338 = vand.u32 %v186, 4294901760
    %4339 = vmatpush1.msra.mxu0 %v4338
    %4340 = vmatprep.subr.mxu0 0.0
    %v4341 = vand.u32 %v185, 4294901760
    %4342 = vmatpush1.msra.mxu0 %v4341
    %4343 = vmatprep.subr.mxu0 0.0
    %v4344 = vand.u32 %v184, 4294901760
    %4345 = vmatpush1.msra.mxu0 %v4344
    %4346 = vmatprep.subr.mxu0 0.0
    %v4347 = vand.u32 %v183, 4294901760
    %4348 = vmatpush1.msra.mxu0 %v4347
    %4349 = vmatprep.subr.mxu0 0.0
    %v4350 = vand.u32 %v182, 4294901760
    %4351 = vmatpush1.msra.mxu0 %v4350
    %4352 = vmatprep.subr.mxu0 0.0
    %v4353 = vand.u32 %v181, 4294901760
    %4354 = vmatpush1.msra.mxu0 %v4353
    %4355 = vmatprep.subr.mxu0 0.0
    %v4356 = vand.u32 %v180, 4294901760
    %4357 = vmatpush1.msra.mxu0 %v4356
    %4358 = vmatprep.subr.mxu0 0.0
    %v4359 = vand.u32 %v179, 4294901760
    %4360 = vmatpush1.msra.mxu0 %v4359
    %4361 = vmatprep.subr.mxu0 0.0
    %v4362 = vand.u32 %v178, 4294901760
    %4363 = vmatpush1.msra.mxu0 %v4362
    %4364 = vmatprep.subr.mxu0 0.0
    %v4365 = vand.u32 %v177, 4294901760
    %4366 = vmatpush1.msra.mxu0 %v4365
    %4367 = vmatprep.subr.mxu0 0.0
    %v4368 = vand.u32 %v176, 4294901760
    %4369 = vmatpush1.msra.mxu0 %v4368
    %4370 = vmatprep.subr.mxu0 0.0
    %v4371 = vand.u32 %v207, 4294901760
    %4372 = vmatpush2.msra.mxu0 %v4371
    %4373 = vmatprep.subr.mxu0 0.0
    %v4374 = vand.u32 %v206, 4294901760
    %4375 = vmatpush2.msra.mxu0 %v4374
    %4376 = vmatprep.subr.mxu0 0.0
    %v4377 = vand.u32 %v205, 4294901760
    %4378 = vmatpush2.msra.mxu0 %v4377
    %4379 = vmatprep.subr.mxu0 0.0
    %v4380 = vand.u32 %v204, 4294901760
    %4381 = vmatpush2.msra.mxu0 %v4380
    %4382 = vmatprep.subr.mxu0 0.0
    %v4383 = vand.u32 %v203, 4294901760
    %4384 = vmatpush2.msra.mxu0 %v4383
    %4385 = vmatprep.subr.mxu0 0.0
    %v4386 = vand.u32 %v202, 4294901760
    %4387 = vmatpush2.msra.mxu0 %v4386
    %4388 = vmatprep.subr.mxu0 0.0
    %v4389 = vand.u32 %v201, 4294901760
    %4390 = vmatpush2.msra.mxu0 %v4389
    %4391 = vmatprep.subr.mxu0 0.0
    %v4392 = vand.u32 %v200, 4294901760
    %4393 = vmatpush2.msra.mxu0 %v4392
    %4394 = vmatprep.subr.mxu0 0.0
    %v4395 = vand.u32 %v199, 4294901760
    %4396 = vmatpush2.msra.mxu0 %v4395
    %4397 = vmatprep.subr.mxu0 0.0
    %v4398 = vand.u32 %v198, 4294901760
    %4399 = vmatpush2.msra.mxu0 %v4398
    %4400 = vmatprep.subr.mxu0 0.0
    %v4401 = vand.u32 %v197, 4294901760
    %4402 = vmatpush2.msra.mxu0 %v4401
    %4403 = vmatprep.subr.mxu0 0.0
    %v4404 = vand.u32 %v196, 4294901760
    %4405 = vmatpush2.msra.mxu0 %v4404
    %4406 = vmatprep.subr.mxu0 0.0
    %v4407 = vand.u32 %v195, 4294901760
    %4408 = vmatpush2.msra.mxu0 %v4407
    %4409 = vmatprep.subr.mxu0 0.0
    %v4410 = vand.u32 %v194, 4294901760
    %4411 = vmatpush2.msra.mxu0 %v4410
    %4412 = vmatprep.subr.mxu0 0.0
    %v4413 = vand.u32 %v193, 4294901760
    %4414 = vmatpush2.msra.mxu0 %v4413
    %4415 = vmatprep.subr.mxu0 0.0
    %v4416 = vand.u32 %v192, 4294901760
    %4417 = vmatpush2.msra.mxu0 %v4416
    %v4418 = vand.u32 %v3813, 4294901760
    %v4419 = vsub.f32 %v3813, %v4418
    %v4420 = vand.u32 %v4419, 4294901760
    %4421 = vmatprep.mubr.f32.mxu0 %v4420
    %v4422 = vand.u32 %v3805, 4294901760
    %v4423 = vsub.f32 %v3805, %v4422
    %v4424 = vand.u32 %v4423, 4294901760
    %4425 = vmatmul.mubr.f32.gmra.mxu0 %v4424
    %v4426 = vpop.f32.mrf.mxu0
    %v4427 = vadd.f32 %v4319, %v4426
    %v4428 = vpop.f32.mrf.mxu0
    %4429 = vdwg.mxu0
    %4430 = vmatprep.subr.mxu0 0.0
    %v4431 = vand.u32 %v191, 4294901760
    %v4432 = vsub.f32 %v191, %v4431
    %v4433 = vand.u32 %v4432, 4294901760
    %4434 = vmatpush1.msra.mxu0 %v4433
    %4435 = vmatprep.subr.mxu0 0.0
    %v4436 = vand.u32 %v190, 4294901760
    %v4437 = vsub.f32 %v190, %v4436
    %v4438 = vand.u32 %v4437, 4294901760
    %4439 = vmatpush1.msra.mxu0 %v4438
    %4440 = vmatprep.subr.mxu0 0.0
    %v4441 = vand.u32 %v189, 4294901760
    %v4442 = vsub.f32 %v189, %v4441
    %v4443 = vand.u32 %v4442, 4294901760
    %4444 = vmatpush1.msra.mxu0 %v4443
    %4445 = vmatprep.subr.mxu0 0.0
    %v4446 = vand.u32 %v188, 4294901760
    %v4447 = vsub.f32 %v188, %v4446
    %v4448 = vand.u32 %v4447, 4294901760
    %4449 = vmatpush1.msra.mxu0 %v4448
    %4450 = vmatprep.subr.mxu0 0.0
    %v4451 = vand.u32 %v187, 4294901760
    %v4452 = vsub.f32 %v187, %v4451
    %v4453 = vand.u32 %v4452, 4294901760
    %4454 = vmatpush1.msra.mxu0 %v4453
    %4455 = vmatprep.subr.mxu0 0.0
    %v4456 = vand.u32 %v186, 4294901760
    %v4457 = vsub.f32 %v186, %v4456
    %v4458 = vand.u32 %v4457, 4294901760
    %4459 = vmatpush1.msra.mxu0 %v4458
    %4460 = vmatprep.subr.mxu0 0.0
    %v4461 = vand.u32 %v185, 4294901760
    %v4462 = vsub.f32 %v185, %v4461
    %v4463 = vand.u32 %v4462, 4294901760
    %4464 = vmatpush1.msra.mxu0 %v4463
    %4465 = vmatprep.subr.mxu0 0.0
    %v4466 = vand.u32 %v184, 4294901760
    %v4467 = vsub.f32 %v184, %v4466
    %v4468 = vand.u32 %v4467, 4294901760
    %4469 = vmatpush1.msra.mxu0 %v4468
    %4470 = vmatprep.subr.mxu0 0.0
    %v4471 = vand.u32 %v183, 4294901760
    %v4472 = vsub.f32 %v183, %v4471
    %v4473 = vand.u32 %v4472, 4294901760
    %4474 = vmatpush1.msra.mxu0 %v4473
    %4475 = vmatprep.subr.mxu0 0.0
    %v4476 = vand.u32 %v182, 4294901760
    %v4477 = vsub.f32 %v182, %v4476
    %v4478 = vand.u32 %v4477, 4294901760
    %4479 = vmatpush1.msra.mxu0 %v4478
    %4480 = vmatprep.subr.mxu0 0.0
    %v4481 = vand.u32 %v181, 4294901760
    %v4482 = vsub.f32 %v181, %v4481
    %v4483 = vand.u32 %v4482, 4294901760
    %4484 = vmatpush1.msra.mxu0 %v4483
    %4485 = vmatprep.subr.mxu0 0.0
    %v4486 = vand.u32 %v180, 4294901760
    %v4487 = vsub.f32 %v180, %v4486
    %v4488 = vand.u32 %v4487, 4294901760
    %4489 = vmatpush1.msra.mxu0 %v4488
    %4490 = vmatprep.subr.mxu0 0.0
    %v4491 = vand.u32 %v179, 4294901760
    %v4492 = vsub.f32 %v179, %v4491
    %v4493 = vand.u32 %v4492, 4294901760
    %4494 = vmatpush1.msra.mxu0 %v4493
    %4495 = vmatprep.subr.mxu0 0.0
    %v4496 = vand.u32 %v178, 4294901760
    %v4497 = vsub.f32 %v178, %v4496
    %v4498 = vand.u32 %v4497, 4294901760
    %4499 = vmatpush1.msra.mxu0 %v4498
    %4500 = vmatprep.subr.mxu0 0.0
    %v4501 = vand.u32 %v177, 4294901760
    %v4502 = vsub.f32 %v177, %v4501
    %v4503 = vand.u32 %v4502, 4294901760
    %4504 = vmatpush1.msra.mxu0 %v4503
    %4505 = vmatprep.subr.mxu0 0.0
    %v4506 = vand.u32 %v176, 4294901760
    %v4507 = vsub.f32 %v176, %v4506
    %v4508 = vand.u32 %v4507, 4294901760
    %4509 = vmatpush1.msra.mxu0 %v4508
    %4510 = vmatprep.subr.mxu0 0.0
    %v4511 = vand.u32 %v207, 4294901760
    %v4512 = vsub.f32 %v207, %v4511
    %v4513 = vand.u32 %v4512, 4294901760
    %4514 = vmatpush2.msra.mxu0 %v4513
    %4515 = vmatprep.subr.mxu0 0.0
    %v4516 = vand.u32 %v206, 4294901760
    %v4517 = vsub.f32 %v206, %v4516
    %v4518 = vand.u32 %v4517, 4294901760
    %4519 = vmatpush2.msra.mxu0 %v4518
    %4520 = vmatprep.subr.mxu0 0.0
    %v4521 = vand.u32 %v205, 4294901760
    %v4522 = vsub.f32 %v205, %v4521
    %v4523 = vand.u32 %v4522, 4294901760
    %4524 = vmatpush2.msra.mxu0 %v4523
    %4525 = vmatprep.subr.mxu0 0.0
    %v4526 = vand.u32 %v204, 4294901760
    %v4527 = vsub.f32 %v204, %v4526
    %v4528 = vand.u32 %v4527, 4294901760
    %4529 = vmatpush2.msra.mxu0 %v4528
    %4530 = vmatprep.subr.mxu0 0.0
    %v4531 = vand.u32 %v203, 4294901760
    %v4532 = vsub.f32 %v203, %v4531
    %v4533 = vand.u32 %v4532, 4294901760
    %4534 = vmatpush2.msra.mxu0 %v4533
    %4535 = vmatprep.subr.mxu0 0.0
    %v4536 = vand.u32 %v202, 4294901760
    %v4537 = vsub.f32 %v202, %v4536
    %v4538 = vand.u32 %v4537, 4294901760
    %4539 = vmatpush2.msra.mxu0 %v4538
    %4540 = vmatprep.subr.mxu0 0.0
    %v4541 = vand.u32 %v201, 4294901760
    %v4542 = vsub.f32 %v201, %v4541
    %v4543 = vand.u32 %v4542, 4294901760
    %4544 = vmatpush2.msra.mxu0 %v4543
    %4545 = vmatprep.subr.mxu0 0.0
    %v4546 = vand.u32 %v200, 4294901760
    %v4547 = vsub.f32 %v200, %v4546
    %v4548 = vand.u32 %v4547, 4294901760
    %4549 = vmatpush2.msra.mxu0 %v4548
    %4550 = vmatprep.subr.mxu0 0.0
    %v4551 = vand.u32 %v199, 4294901760
    %v4552 = vsub.f32 %v199, %v4551
    %v4553 = vand.u32 %v4552, 4294901760
    %4554 = vmatpush2.msra.mxu0 %v4553
    %4555 = vmatprep.subr.mxu0 0.0
    %v4556 = vand.u32 %v198, 4294901760
    %v4557 = vsub.f32 %v198, %v4556
    %v4558 = vand.u32 %v4557, 4294901760
    %4559 = vmatpush2.msra.mxu0 %v4558
    %4560 = vmatprep.subr.mxu0 0.0
    %v4561 = vand.u32 %v197, 4294901760
    %v4562 = vsub.f32 %v197, %v4561
    %v4563 = vand.u32 %v4562, 4294901760
    %4564 = vmatpush2.msra.mxu0 %v4563
    %4565 = vmatprep.subr.mxu0 0.0
    %v4566 = vand.u32 %v196, 4294901760
    %v4567 = vsub.f32 %v196, %v4566
    %v4568 = vand.u32 %v4567, 4294901760
    %4569 = vmatpush2.msra.mxu0 %v4568
    %4570 = vmatprep.subr.mxu0 0.0
    %v4571 = vand.u32 %v195, 4294901760
    %v4572 = vsub.f32 %v195, %v4571
    %v4573 = vand.u32 %v4572, 4294901760
    %4574 = vmatpush2.msra.mxu0 %v4573
    %4575 = vmatprep.subr.mxu0 0.0
    %v4576 = vand.u32 %v194, 4294901760
    %v4577 = vsub.f32 %v194, %v4576
    %v4578 = vand.u32 %v4577, 4294901760
    %4579 = vmatpush2.msra.mxu0 %v4578
    %4580 = vmatprep.subr.mxu0 0.0
    %v4581 = vand.u32 %v193, 4294901760
    %v4582 = vsub.f32 %v193, %v4581
    %v4583 = vand.u32 %v4582, 4294901760
    %4584 = vmatpush2.msra.mxu0 %v4583
    %4585 = vmatprep.subr.mxu0 0.0
    %v4586 = vand.u32 %v192, 4294901760
    %v4587 = vsub.f32 %v192, %v4586
    %v4588 = vand.u32 %v4587, 4294901760
    %4589 = vmatpush2.msra.mxu0 %v4588
    %v4590 = vand.u32 %v3813, 4294901760
    %4591 = vmatprep.mubr.f32.mxu0 %v4590
    %v4592 = vand.u32 %v3805, 4294901760
    %4593 = vmatmul.mubr.f32.gmra.mxu0 %v4592
    %v4594 = vpop.f32.mrf.mxu0
    %v4595 = vadd.f32 %v4427, %v4594
    %v4596 = vpop.f32.mrf.mxu0
    %4597 = vdwg.mxu0
    %4598 = vmatprep.subr.mxu0 0.0
    %v4599 = vand.u32 %v191, 4294901760
    %4600 = vmatpush1.msra.mxu0 %v4599
    %4601 = vmatprep.subr.mxu0 0.0
    %v4602 = vand.u32 %v190, 4294901760
    %4603 = vmatpush1.msra.mxu0 %v4602
    %4604 = vmatprep.subr.mxu0 0.0
    %v4605 = vand.u32 %v189, 4294901760
    %4606 = vmatpush1.msra.mxu0 %v4605
    %4607 = vmatprep.subr.mxu0 0.0
    %v4608 = vand.u32 %v188, 4294901760
    %4609 = vmatpush1.msra.mxu0 %v4608
    %4610 = vmatprep.subr.mxu0 0.0
    %v4611 = vand.u32 %v187, 4294901760
    %4612 = vmatpush1.msra.mxu0 %v4611
    %4613 = vmatprep.subr.mxu0 0.0
    %v4614 = vand.u32 %v186, 4294901760
    %4615 = vmatpush1.msra.mxu0 %v4614
    %4616 = vmatprep.subr.mxu0 0.0
    %v4617 = vand.u32 %v185, 4294901760
    %4618 = vmatpush1.msra.mxu0 %v4617
    %4619 = vmatprep.subr.mxu0 0.0
    %v4620 = vand.u32 %v184, 4294901760
    %4621 = vmatpush1.msra.mxu0 %v4620
    %4622 = vmatprep.subr.mxu0 0.0
    %v4623 = vand.u32 %v183, 4294901760
    %4624 = vmatpush1.msra.mxu0 %v4623
    %4625 = vmatprep.subr.mxu0 0.0
    %v4626 = vand.u32 %v182, 4294901760
    %4627 = vmatpush1.msra.mxu0 %v4626
    %4628 = vmatprep.subr.mxu0 0.0
    %v4629 = vand.u32 %v181, 4294901760
    %4630 = vmatpush1.msra.mxu0 %v4629
    %4631 = vmatprep.subr.mxu0 0.0
    %v4632 = vand.u32 %v180, 4294901760
    %4633 = vmatpush1.msra.mxu0 %v4632
    %4634 = vmatprep.subr.mxu0 0.0
    %v4635 = vand.u32 %v179, 4294901760
    %4636 = vmatpush1.msra.mxu0 %v4635
    %4637 = vmatprep.subr.mxu0 0.0
    %v4638 = vand.u32 %v178, 4294901760
    %4639 = vmatpush1.msra.mxu0 %v4638
    %4640 = vmatprep.subr.mxu0 0.0
    %v4641 = vand.u32 %v177, 4294901760
    %4642 = vmatpush1.msra.mxu0 %v4641
    %4643 = vmatprep.subr.mxu0 0.0
    %v4644 = vand.u32 %v176, 4294901760
    %4645 = vmatpush1.msra.mxu0 %v4644
    %4646 = vmatprep.subr.mxu0 0.0
    %v4647 = vand.u32 %v207, 4294901760
    %4648 = vmatpush2.msra.mxu0 %v4647
    %4649 = vmatprep.subr.mxu0 0.0
    %v4650 = vand.u32 %v206, 4294901760
    %4651 = vmatpush2.msra.mxu0 %v4650
    %4652 = vmatprep.subr.mxu0 0.0
    %v4653 = vand.u32 %v205, 4294901760
    %4654 = vmatpush2.msra.mxu0 %v4653
    %4655 = vmatprep.subr.mxu0 0.0
    %v4656 = vand.u32 %v204, 4294901760
    %4657 = vmatpush2.msra.mxu0 %v4656
    %4658 = vmatprep.subr.mxu0 0.0
    %v4659 = vand.u32 %v203, 4294901760
    %4660 = vmatpush2.msra.mxu0 %v4659
    %4661 = vmatprep.subr.mxu0 0.0
    %v4662 = vand.u32 %v202, 4294901760
    %4663 = vmatpush2.msra.mxu0 %v4662
    %4664 = vmatprep.subr.mxu0 0.0
    %v4665 = vand.u32 %v201, 4294901760
    %4666 = vmatpush2.msra.mxu0 %v4665
    %4667 = vmatprep.subr.mxu0 0.0
    %v4668 = vand.u32 %v200, 4294901760
    %4669 = vmatpush2.msra.mxu0 %v4668
    %4670 = vmatprep.subr.mxu0 0.0
    %v4671 = vand.u32 %v199, 4294901760
    %4672 = vmatpush2.msra.mxu0 %v4671
    %4673 = vmatprep.subr.mxu0 0.0
    %v4674 = vand.u32 %v198, 4294901760
    %4675 = vmatpush2.msra.mxu0 %v4674
    %4676 = vmatprep.subr.mxu0 0.0
    %v4677 = vand.u32 %v197, 4294901760
    %4678 = vmatpush2.msra.mxu0 %v4677
    %4679 = vmatprep.subr.mxu0 0.0
    %v4680 = vand.u32 %v196, 4294901760
    %4681 = vmatpush2.msra.mxu0 %v4680
    %4682 = vmatprep.subr.mxu0 0.0
    %v4683 = vand.u32 %v195, 4294901760
    %4684 = vmatpush2.msra.mxu0 %v4683
    %4685 = vmatprep.subr.mxu0 0.0
    %v4686 = vand.u32 %v194, 4294901760
    %4687 = vmatpush2.msra.mxu0 %v4686
    %4688 = vmatprep.subr.mxu0 0.0
    %v4689 = vand.u32 %v193, 4294901760
    %4690 = vmatpush2.msra.mxu0 %v4689
    %4691 = vmatprep.subr.mxu0 0.0
    %v4692 = vand.u32 %v192, 4294901760
    %4693 = vmatpush2.msra.mxu0 %v4692
    %v4694 = vand.u32 %v3813, 4294901760
    %4695 = vmatprep.mubr.f32.mxu0 %v4694
    %v4696 = vand.u32 %v3805, 4294901760
    %4697 = vmatmul.mubr.f32.gmra.mxu0 %v4696
    %v4698 = vpop.f32.mrf.mxu0
    %v4699 = vadd.f32 %v4595, %v4698
    %v4700 = vpop.f32.mrf.mxu0
    %4701 = vdwg.mxu0
    %4702 = vmatprep.subr.mxu0 0.0
    %v4703 = vand.u32 %v223, 4294901760
    %4704 = vmatpush1.msra.mxu0 %v4703
    %4705 = vmatprep.subr.mxu0 0.0
    %v4706 = vand.u32 %v222, 4294901760
    %4707 = vmatpush1.msra.mxu0 %v4706
    %4708 = vmatprep.subr.mxu0 0.0
    %v4709 = vand.u32 %v221, 4294901760
    %4710 = vmatpush1.msra.mxu0 %v4709
    %4711 = vmatprep.subr.mxu0 0.0
    %v4712 = vand.u32 %v220, 4294901760
    %4713 = vmatpush1.msra.mxu0 %v4712
    %4714 = vmatprep.subr.mxu0 0.0
    %v4715 = vand.u32 %v219, 4294901760
    %4716 = vmatpush1.msra.mxu0 %v4715
    %4717 = vmatprep.subr.mxu0 0.0
    %v4718 = vand.u32 %v218, 4294901760
    %4719 = vmatpush1.msra.mxu0 %v4718
    %4720 = vmatprep.subr.mxu0 0.0
    %v4721 = vand.u32 %v217, 4294901760
    %4722 = vmatpush1.msra.mxu0 %v4721
    %4723 = vmatprep.subr.mxu0 0.0
    %v4724 = vand.u32 %v216, 4294901760
    %4725 = vmatpush1.msra.mxu0 %v4724
    %4726 = vmatprep.subr.mxu0 0.0
    %v4727 = vand.u32 %v215, 4294901760
    %4728 = vmatpush1.msra.mxu0 %v4727
    %4729 = vmatprep.subr.mxu0 0.0
    %v4730 = vand.u32 %v214, 4294901760
    %4731 = vmatpush1.msra.mxu0 %v4730
    %4732 = vmatprep.subr.mxu0 0.0
    %v4733 = vand.u32 %v213, 4294901760
    %4734 = vmatpush1.msra.mxu0 %v4733
    %4735 = vmatprep.subr.mxu0 0.0
    %v4736 = vand.u32 %v212, 4294901760
    %4737 = vmatpush1.msra.mxu0 %v4736
    %4738 = vmatprep.subr.mxu0 0.0
    %v4739 = vand.u32 %v211, 4294901760
    %4740 = vmatpush1.msra.mxu0 %v4739
    %4741 = vmatprep.subr.mxu0 0.0
    %v4742 = vand.u32 %v210, 4294901760
    %4743 = vmatpush1.msra.mxu0 %v4742
    %4744 = vmatprep.subr.mxu0 0.0
    %v4745 = vand.u32 %v209, 4294901760
    %4746 = vmatpush1.msra.mxu0 %v4745
    %4747 = vmatprep.subr.mxu0 0.0
    %v4748 = vand.u32 %v208, 4294901760
    %4749 = vmatpush1.msra.mxu0 %v4748
    %4750 = vmatprep.subr.mxu0 0.0
    %v4751 = vand.u32 %v239, 4294901760
    %4752 = vmatpush2.msra.mxu0 %v4751
    %4753 = vmatprep.subr.mxu0 0.0
    %v4754 = vand.u32 %v238, 4294901760
    %4755 = vmatpush2.msra.mxu0 %v4754
    %4756 = vmatprep.subr.mxu0 0.0
    %v4757 = vand.u32 %v237, 4294901760
    %4758 = vmatpush2.msra.mxu0 %v4757
    %4759 = vmatprep.subr.mxu0 0.0
    %v4760 = vand.u32 %v236, 4294901760
    %4761 = vmatpush2.msra.mxu0 %v4760
    %4762 = vmatprep.subr.mxu0 0.0
    %v4763 = vand.u32 %v235, 4294901760
    %4764 = vmatpush2.msra.mxu0 %v4763
    %4765 = vmatprep.subr.mxu0 0.0
    %v4766 = vand.u32 %v234, 4294901760
    %4767 = vmatpush2.msra.mxu0 %v4766
    %4768 = vmatprep.subr.mxu0 0.0
    %v4769 = vand.u32 %v233, 4294901760
    %4770 = vmatpush2.msra.mxu0 %v4769
    %4771 = vmatprep.subr.mxu0 0.0
    %v4772 = vand.u32 %v232, 4294901760
    %4773 = vmatpush2.msra.mxu0 %v4772
    %4774 = vmatprep.subr.mxu0 0.0
    %v4775 = vand.u32 %v231, 4294901760
    %4776 = vmatpush2.msra.mxu0 %v4775
    %4777 = vmatprep.subr.mxu0 0.0
    %v4778 = vand.u32 %v230, 4294901760
    %4779 = vmatpush2.msra.mxu0 %v4778
    %4780 = vmatprep.subr.mxu0 0.0
    %v4781 = vand.u32 %v229, 4294901760
    %4782 = vmatpush2.msra.mxu0 %v4781
    %4783 = vmatprep.subr.mxu0 0.0
    %v4784 = vand.u32 %v228, 4294901760
    %4785 = vmatpush2.msra.mxu0 %v4784
    %4786 = vmatprep.subr.mxu0 0.0
    %v4787 = vand.u32 %v227, 4294901760
    %4788 = vmatpush2.msra.mxu0 %v4787
    %4789 = vmatprep.subr.mxu0 0.0
    %v4790 = vand.u32 %v226, 4294901760
    %4791 = vmatpush2.msra.mxu0 %v4790
    %4792 = vmatprep.subr.mxu0 0.0
    %v4793 = vand.u32 %v225, 4294901760
    %4794 = vmatpush2.msra.mxu0 %v4793
    %4795 = vmatprep.subr.mxu0 0.0
    %v4796 = vand.u32 %v224, 4294901760
    %4797 = vmatpush2.msra.mxu0 %v4796
    %v4798 = vand.u32 %v3814, 4294901760
    %v4799 = vsub.f32 %v3814, %v4798
    %v4800 = vand.u32 %v4799, 4294901760
    %v4801 = vsub.f32 %v4799, %v4800
    %v4802 = vand.u32 %v4801, 4294901760
    %4803 = vmatprep.mubr.f32.mxu0 %v4802
    %v4804 = vand.u32 %v3812, 4294901760
    %v4805 = vsub.f32 %v3812, %v4804
    %v4806 = vand.u32 %v4805, 4294901760
    %v4807 = vsub.f32 %v4805, %v4806
    %v4808 = vand.u32 %v4807, 4294901760
    %4809 = vmatmul.mubr.f32.gmra.mxu0 %v4808
    %v4810 = vpop.f32.mrf.mxu0
    %v4811 = vadd.f32 %v4699, %v4810
    %v4812 = vpop.f32.mrf.mxu0
    %4813 = vdwg.mxu0
    %4814 = vmatprep.subr.mxu0 0.0
    %v4815 = vand.u32 %v223, 4294901760
    %v4816 = vsub.f32 %v223, %v4815
    %v4817 = vand.u32 %v4816, 4294901760
    %v4818 = vsub.f32 %v4816, %v4817
    %v4819 = vand.u32 %v4818, 4294901760
    %4820 = vmatpush1.msra.mxu0 %v4819
    %4821 = vmatprep.subr.mxu0 0.0
    %v4822 = vand.u32 %v222, 4294901760
    %v4823 = vsub.f32 %v222, %v4822
    %v4824 = vand.u32 %v4823, 4294901760
    %v4825 = vsub.f32 %v4823, %v4824
    %v4826 = vand.u32 %v4825, 4294901760
    %4827 = vmatpush1.msra.mxu0 %v4826
    %4828 = vmatprep.subr.mxu0 0.0
    %v4829 = vand.u32 %v221, 4294901760
    %v4830 = vsub.f32 %v221, %v4829
    %v4831 = vand.u32 %v4830, 4294901760
    %v4832 = vsub.f32 %v4830, %v4831
    %v4833 = vand.u32 %v4832, 4294901760
    %4834 = vmatpush1.msra.mxu0 %v4833
    %4835 = vmatprep.subr.mxu0 0.0
    %v4836 = vand.u32 %v220, 4294901760
    %v4837 = vsub.f32 %v220, %v4836
    %v4838 = vand.u32 %v4837, 4294901760
    %v4839 = vsub.f32 %v4837, %v4838
    %v4840 = vand.u32 %v4839, 4294901760
    %4841 = vmatpush1.msra.mxu0 %v4840
    %4842 = vmatprep.subr.mxu0 0.0
    %v4843 = vand.u32 %v219, 4294901760
    %v4844 = vsub.f32 %v219, %v4843
    %v4845 = vand.u32 %v4844, 4294901760
    %v4846 = vsub.f32 %v4844, %v4845
    %v4847 = vand.u32 %v4846, 4294901760
    %4848 = vmatpush1.msra.mxu0 %v4847
    %4849 = vmatprep.subr.mxu0 0.0
    %v4850 = vand.u32 %v218, 4294901760
    %v4851 = vsub.f32 %v218, %v4850
    %v4852 = vand.u32 %v4851, 4294901760
    %v4853 = vsub.f32 %v4851, %v4852
    %v4854 = vand.u32 %v4853, 4294901760
    %4855 = vmatpush1.msra.mxu0 %v4854
    %4856 = vmatprep.subr.mxu0 0.0
    %v4857 = vand.u32 %v217, 4294901760
    %v4858 = vsub.f32 %v217, %v4857
    %v4859 = vand.u32 %v4858, 4294901760
    %v4860 = vsub.f32 %v4858, %v4859
    %v4861 = vand.u32 %v4860, 4294901760
    %4862 = vmatpush1.msra.mxu0 %v4861
    %4863 = vmatprep.subr.mxu0 0.0
    %v4864 = vand.u32 %v216, 4294901760
    %v4865 = vsub.f32 %v216, %v4864
    %v4866 = vand.u32 %v4865, 4294901760
    %v4867 = vsub.f32 %v4865, %v4866
    %v4868 = vand.u32 %v4867, 4294901760
    %4869 = vmatpush1.msra.mxu0 %v4868
    %4870 = vmatprep.subr.mxu0 0.0
    %v4871 = vand.u32 %v215, 4294901760
    %v4872 = vsub.f32 %v215, %v4871
    %v4873 = vand.u32 %v4872, 4294901760
    %v4874 = vsub.f32 %v4872, %v4873
    %v4875 = vand.u32 %v4874, 4294901760
    %4876 = vmatpush1.msra.mxu0 %v4875
    %4877 = vmatprep.subr.mxu0 0.0
    %v4878 = vand.u32 %v214, 4294901760
    %v4879 = vsub.f32 %v214, %v4878
    %v4880 = vand.u32 %v4879, 4294901760
    %v4881 = vsub.f32 %v4879, %v4880
    %v4882 = vand.u32 %v4881, 4294901760
    %4883 = vmatpush1.msra.mxu0 %v4882
    %4884 = vmatprep.subr.mxu0 0.0
    %v4885 = vand.u32 %v213, 4294901760
    %v4886 = vsub.f32 %v213, %v4885
    %v4887 = vand.u32 %v4886, 4294901760
    %v4888 = vsub.f32 %v4886, %v4887
    %v4889 = vand.u32 %v4888, 4294901760
    %4890 = vmatpush1.msra.mxu0 %v4889
    %4891 = vmatprep.subr.mxu0 0.0
    %v4892 = vand.u32 %v212, 4294901760
    %v4893 = vsub.f32 %v212, %v4892
    %v4894 = vand.u32 %v4893, 4294901760
    %v4895 = vsub.f32 %v4893, %v4894
    %v4896 = vand.u32 %v4895, 4294901760
    %4897 = vmatpush1.msra.mxu0 %v4896
    %4898 = vmatprep.subr.mxu0 0.0
    %v4899 = vand.u32 %v211, 4294901760
    %v4900 = vsub.f32 %v211, %v4899
    %v4901 = vand.u32 %v4900, 4294901760
    %v4902 = vsub.f32 %v4900, %v4901
    %v4903 = vand.u32 %v4902, 4294901760
    %4904 = vmatpush1.msra.mxu0 %v4903
    %4905 = vmatprep.subr.mxu0 0.0
    %v4906 = vand.u32 %v210, 4294901760
    %v4907 = vsub.f32 %v210, %v4906
    %v4908 = vand.u32 %v4907, 4294901760
    %v4909 = vsub.f32 %v4907, %v4908
    %v4910 = vand.u32 %v4909, 4294901760
    %4911 = vmatpush1.msra.mxu0 %v4910
    %4912 = vmatprep.subr.mxu0 0.0
    %v4913 = vand.u32 %v209, 4294901760
    %v4914 = vsub.f32 %v209, %v4913
    %v4915 = vand.u32 %v4914, 4294901760
    %v4916 = vsub.f32 %v4914, %v4915
    %v4917 = vand.u32 %v4916, 4294901760
    %4918 = vmatpush1.msra.mxu0 %v4917
    %4919 = vmatprep.subr.mxu0 0.0
    %v4920 = vand.u32 %v208, 4294901760
    %v4921 = vsub.f32 %v208, %v4920
    %v4922 = vand.u32 %v4921, 4294901760
    %v4923 = vsub.f32 %v4921, %v4922
    %v4924 = vand.u32 %v4923, 4294901760
    %4925 = vmatpush1.msra.mxu0 %v4924
    %4926 = vmatprep.subr.mxu0 0.0
    %v4927 = vand.u32 %v239, 4294901760
    %v4928 = vsub.f32 %v239, %v4927
    %v4929 = vand.u32 %v4928, 4294901760
    %v4930 = vsub.f32 %v4928, %v4929
    %v4931 = vand.u32 %v4930, 4294901760
    %4932 = vmatpush2.msra.mxu0 %v4931
    %4933 = vmatprep.subr.mxu0 0.0
    %v4934 = vand.u32 %v238, 4294901760
    %v4935 = vsub.f32 %v238, %v4934
    %v4936 = vand.u32 %v4935, 4294901760
    %v4937 = vsub.f32 %v4935, %v4936
    %v4938 = vand.u32 %v4937, 4294901760
    %4939 = vmatpush2.msra.mxu0 %v4938
    %4940 = vmatprep.subr.mxu0 0.0
    %v4941 = vand.u32 %v237, 4294901760
    %v4942 = vsub.f32 %v237, %v4941
    %v4943 = vand.u32 %v4942, 4294901760
    %v4944 = vsub.f32 %v4942, %v4943
    %v4945 = vand.u32 %v4944, 4294901760
    %4946 = vmatpush2.msra.mxu0 %v4945
    %4947 = vmatprep.subr.mxu0 0.0
    %v4948 = vand.u32 %v236, 4294901760
    %v4949 = vsub.f32 %v236, %v4948
    %v4950 = vand.u32 %v4949, 4294901760
    %v4951 = vsub.f32 %v4949, %v4950
    %v4952 = vand.u32 %v4951, 4294901760
    %4953 = vmatpush2.msra.mxu0 %v4952
    %4954 = vmatprep.subr.mxu0 0.0
    %v4955 = vand.u32 %v235, 4294901760
    %v4956 = vsub.f32 %v235, %v4955
    %v4957 = vand.u32 %v4956, 4294901760
    %v4958 = vsub.f32 %v4956, %v4957
    %v4959 = vand.u32 %v4958, 4294901760
    %4960 = vmatpush2.msra.mxu0 %v4959
    %4961 = vmatprep.subr.mxu0 0.0
    %v4962 = vand.u32 %v234, 4294901760
    %v4963 = vsub.f32 %v234, %v4962
    %v4964 = vand.u32 %v4963, 4294901760
    %v4965 = vsub.f32 %v4963, %v4964
    %v4966 = vand.u32 %v4965, 4294901760
    %4967 = vmatpush2.msra.mxu0 %v4966
    %4968 = vmatprep.subr.mxu0 0.0
    %v4969 = vand.u32 %v233, 4294901760
    %v4970 = vsub.f32 %v233, %v4969
    %v4971 = vand.u32 %v4970, 4294901760
    %v4972 = vsub.f32 %v4970, %v4971
    %v4973 = vand.u32 %v4972, 4294901760
    %4974 = vmatpush2.msra.mxu0 %v4973
    %4975 = vmatprep.subr.mxu0 0.0
    %v4976 = vand.u32 %v232, 4294901760
    %v4977 = vsub.f32 %v232, %v4976
    %v4978 = vand.u32 %v4977, 4294901760
    %v4979 = vsub.f32 %v4977, %v4978
    %v4980 = vand.u32 %v4979, 4294901760
    %4981 = vmatpush2.msra.mxu0 %v4980
    %4982 = vmatprep.subr.mxu0 0.0
    %v4983 = vand.u32 %v231, 4294901760
    %v4984 = vsub.f32 %v231, %v4983
    %v4985 = vand.u32 %v4984, 4294901760
    %v4986 = vsub.f32 %v4984, %v4985
    %v4987 = vand.u32 %v4986, 4294901760
    %4988 = vmatpush2.msra.mxu0 %v4987
    %4989 = vmatprep.subr.mxu0 0.0
    %v4990 = vand.u32 %v230, 4294901760
    %v4991 = vsub.f32 %v230, %v4990
    %v4992 = vand.u32 %v4991, 4294901760
    %v4993 = vsub.f32 %v4991, %v4992
    %v4994 = vand.u32 %v4993, 4294901760
    %4995 = vmatpush2.msra.mxu0 %v4994
    %4996 = vmatprep.subr.mxu0 0.0
    %v4997 = vand.u32 %v229, 4294901760
    %v4998 = vsub.f32 %v229, %v4997
    %v4999 = vand.u32 %v4998, 4294901760
    %v5000 = vsub.f32 %v4998, %v4999
    %v5001 = vand.u32 %v5000, 4294901760
    %5002 = vmatpush2.msra.mxu0 %v5001
    %5003 = vmatprep.subr.mxu0 0.0
    %v5004 = vand.u32 %v228, 4294901760
    %v5005 = vsub.f32 %v228, %v5004
    %v5006 = vand.u32 %v5005, 4294901760
    %v5007 = vsub.f32 %v5005, %v5006
    %v5008 = vand.u32 %v5007, 4294901760
    %5009 = vmatpush2.msra.mxu0 %v5008
    %5010 = vmatprep.subr.mxu0 0.0
    %v5011 = vand.u32 %v227, 4294901760
    %v5012 = vsub.f32 %v227, %v5011
    %v5013 = vand.u32 %v5012, 4294901760
    %v5014 = vsub.f32 %v5012, %v5013
    %v5015 = vand.u32 %v5014, 4294901760
    %5016 = vmatpush2.msra.mxu0 %v5015
    %5017 = vmatprep.subr.mxu0 0.0
    %v5018 = vand.u32 %v226, 4294901760
    %v5019 = vsub.f32 %v226, %v5018
    %v5020 = vand.u32 %v5019, 4294901760
    %v5021 = vsub.f32 %v5019, %v5020
    %v5022 = vand.u32 %v5021, 4294901760
    %5023 = vmatpush2.msra.mxu0 %v5022
    %5024 = vmatprep.subr.mxu0 0.0
    %v5025 = vand.u32 %v225, 4294901760
    %v5026 = vsub.f32 %v225, %v5025
    %v5027 = vand.u32 %v5026, 4294901760
    %v5028 = vsub.f32 %v5026, %v5027
    %v5029 = vand.u32 %v5028, 4294901760
    %5030 = vmatpush2.msra.mxu0 %v5029
    %5031 = vmatprep.subr.mxu0 0.0
    %v5032 = vand.u32 %v224, 4294901760
    %v5033 = vsub.f32 %v224, %v5032
    %v5034 = vand.u32 %v5033, 4294901760
    %v5035 = vsub.f32 %v5033, %v5034
    %v5036 = vand.u32 %v5035, 4294901760
    %5037 = vmatpush2.msra.mxu0 %v5036
    %v5038 = vand.u32 %v3814, 4294901760
    %5039 = vmatprep.mubr.f32.mxu0 %v5038
    %v5040 = vand.u32 %v3812, 4294901760
    %5041 = vmatmul.mubr.f32.gmra.mxu0 %v5040
    %v5042 = vpop.f32.mrf.mxu0
    %v5043 = vadd.f32 %v4811, %v5042
    %v5044 = vpop.f32.mrf.mxu0
    %5045 = vdwg.mxu0
    %5046 = vmatprep.subr.mxu0 0.0
    %v5047 = vand.u32 %v223, 4294901760
    %v5048 = vsub.f32 %v223, %v5047
    %5049 = vmatpush1.msra.mxu0 %v5048
    %5050 = vmatprep.subr.mxu0 0.0
    %v5051 = vand.u32 %v222, 4294901760
    %v5052 = vsub.f32 %v222, %v5051
    %5053 = vmatpush1.msra.mxu0 %v5052
    %5054 = vmatprep.subr.mxu0 0.0
    %v5055 = vand.u32 %v221, 4294901760
    %v5056 = vsub.f32 %v221, %v5055
    %5057 = vmatpush1.msra.mxu0 %v5056
    %5058 = vmatprep.subr.mxu0 0.0
    %v5059 = vand.u32 %v220, 4294901760
    %v5060 = vsub.f32 %v220, %v5059
    %5061 = vmatpush1.msra.mxu0 %v5060
    %5062 = vmatprep.subr.mxu0 0.0
    %v5063 = vand.u32 %v219, 4294901760
    %v5064 = vsub.f32 %v219, %v5063
    %5065 = vmatpush1.msra.mxu0 %v5064
    %5066 = vmatprep.subr.mxu0 0.0
    %v5067 = vand.u32 %v218, 4294901760
    %v5068 = vsub.f32 %v218, %v5067
    %5069 = vmatpush1.msra.mxu0 %v5068
    %5070 = vmatprep.subr.mxu0 0.0
    %v5071 = vand.u32 %v217, 4294901760
    %v5072 = vsub.f32 %v217, %v5071
    %5073 = vmatpush1.msra.mxu0 %v5072
    %5074 = vmatprep.subr.mxu0 0.0
    %v5075 = vand.u32 %v216, 4294901760
    %v5076 = vsub.f32 %v216, %v5075
    %5077 = vmatpush1.msra.mxu0 %v5076
    %5078 = vmatprep.subr.mxu0 0.0
    %v5079 = vand.u32 %v215, 4294901760
    %v5080 = vsub.f32 %v215, %v5079
    %5081 = vmatpush1.msra.mxu0 %v5080
    %5082 = vmatprep.subr.mxu0 0.0
    %v5083 = vand.u32 %v214, 4294901760
    %v5084 = vsub.f32 %v214, %v5083
    %5085 = vmatpush1.msra.mxu0 %v5084
    %5086 = vmatprep.subr.mxu0 0.0
    %v5087 = vand.u32 %v213, 4294901760
    %v5088 = vsub.f32 %v213, %v5087
    %5089 = vmatpush1.msra.mxu0 %v5088
    %5090 = vmatprep.subr.mxu0 0.0
    %v5091 = vand.u32 %v212, 4294901760
    %v5092 = vsub.f32 %v212, %v5091
    %5093 = vmatpush1.msra.mxu0 %v5092
    %5094 = vmatprep.subr.mxu0 0.0
    %v5095 = vand.u32 %v211, 4294901760
    %v5096 = vsub.f32 %v211, %v5095
    %5097 = vmatpush1.msra.mxu0 %v5096
    %5098 = vmatprep.subr.mxu0 0.0
    %v5099 = vand.u32 %v210, 4294901760
    %v5100 = vsub.f32 %v210, %v5099
    %5101 = vmatpush1.msra.mxu0 %v5100
    %5102 = vmatprep.subr.mxu0 0.0
    %v5103 = vand.u32 %v209, 4294901760
    %v5104 = vsub.f32 %v209, %v5103
    %5105 = vmatpush1.msra.mxu0 %v5104
    %5106 = vmatprep.subr.mxu0 0.0
    %v5107 = vand.u32 %v208, 4294901760
    %v5108 = vsub.f32 %v208, %v5107
    %5109 = vmatpush1.msra.mxu0 %v5108
    %5110 = vmatprep.subr.mxu0 0.0
    %v5111 = vand.u32 %v239, 4294901760
    %v5112 = vsub.f32 %v239, %v5111
    %5113 = vmatpush2.msra.mxu0 %v5112
    %5114 = vmatprep.subr.mxu0 0.0
    %v5115 = vand.u32 %v238, 4294901760
    %v5116 = vsub.f32 %v238, %v5115
    %5117 = vmatpush2.msra.mxu0 %v5116
    %5118 = vmatprep.subr.mxu0 0.0
    %v5119 = vand.u32 %v237, 4294901760
    %v5120 = vsub.f32 %v237, %v5119
    %5121 = vmatpush2.msra.mxu0 %v5120
    %5122 = vmatprep.subr.mxu0 0.0
    %v5123 = vand.u32 %v236, 4294901760
    %v5124 = vsub.f32 %v236, %v5123
    %5125 = vmatpush2.msra.mxu0 %v5124
    %5126 = vmatprep.subr.mxu0 0.0
    %v5127 = vand.u32 %v235, 4294901760
    %v5128 = vsub.f32 %v235, %v5127
    %5129 = vmatpush2.msra.mxu0 %v5128
    %5130 = vmatprep.subr.mxu0 0.0
    %v5131 = vand.u32 %v234, 4294901760
    %v5132 = vsub.f32 %v234, %v5131
    %5133 = vmatpush2.msra.mxu0 %v5132
    %5134 = vmatprep.subr.mxu0 0.0
    %v5135 = vand.u32 %v233, 4294901760
    %v5136 = vsub.f32 %v233, %v5135
    %5137 = vmatpush2.msra.mxu0 %v5136
    %5138 = vmatprep.subr.mxu0 0.0
    %v5139 = vand.u32 %v232, 4294901760
    %v5140 = vsub.f32 %v232, %v5139
    %5141 = vmatpush2.msra.mxu0 %v5140
    %5142 = vmatprep.subr.mxu0 0.0
    %v5143 = vand.u32 %v231, 4294901760
    %v5144 = vsub.f32 %v231, %v5143
    %5145 = vmatpush2.msra.mxu0 %v5144
    %5146 = vmatprep.subr.mxu0 0.0
    %v5147 = vand.u32 %v230, 4294901760
    %v5148 = vsub.f32 %v230, %v5147
    %5149 = vmatpush2.msra.mxu0 %v5148
    %5150 = vmatprep.subr.mxu0 0.0
    %v5151 = vand.u32 %v229, 4294901760
    %v5152 = vsub.f32 %v229, %v5151
    %5153 = vmatpush2.msra.mxu0 %v5152
    %5154 = vmatprep.subr.mxu0 0.0
    %v5155 = vand.u32 %v228, 4294901760
    %v5156 = vsub.f32 %v228, %v5155
    %5157 = vmatpush2.msra.mxu0 %v5156
    %5158 = vmatprep.subr.mxu0 0.0
    %v5159 = vand.u32 %v227, 4294901760
    %v5160 = vsub.f32 %v227, %v5159
    %5161 = vmatpush2.msra.mxu0 %v5160
    %5162 = vmatprep.subr.mxu0 0.0
    %v5163 = vand.u32 %v226, 4294901760
    %v5164 = vsub.f32 %v226, %v5163
    %5165 = vmatpush2.msra.mxu0 %v5164
    %5166 = vmatprep.subr.mxu0 0.0
    %v5167 = vand.u32 %v225, 4294901760
    %v5168 = vsub.f32 %v225, %v5167
    %5169 = vmatpush2.msra.mxu0 %v5168
    %5170 = vmatprep.subr.mxu0 0.0
    %v5171 = vand.u32 %v224, 4294901760
    %v5172 = vsub.f32 %v224, %v5171
    %5173 = vmatpush2.msra.mxu0 %v5172
    %v5174 = vand.u32 %v3814, 4294901760
    %v5175 = vsub.f32 %v3814, %v5174
    %5176 = vmatprep.mubr.f32.mxu0 %v5175
    %v5177 = vand.u32 %v3812, 4294901760
    %v5178 = vsub.f32 %v3812, %v5177
    %5179 = vmatmul.mubr.f32.gmra.mxu0 %v5178
    %v5180 = vpop.f32.mrf.mxu0
    %v5181 = vadd.f32 %v5043, %v5180
    %v5182 = vpop.f32.mrf.mxu0
    %5183 = vdwg.mxu0
    %5184 = vmatprep.subr.mxu0 0.0
    %v5185 = vand.u32 %v223, 4294901760
    %5186 = vmatpush1.msra.mxu0 %v5185
    %5187 = vmatprep.subr.mxu0 0.0
    %v5188 = vand.u32 %v222, 4294901760
    %5189 = vmatpush1.msra.mxu0 %v5188
    %5190 = vmatprep.subr.mxu0 0.0
    %v5191 = vand.u32 %v221, 4294901760
    %5192 = vmatpush1.msra.mxu0 %v5191
    %5193 = vmatprep.subr.mxu0 0.0
    %v5194 = vand.u32 %v220, 4294901760
    %5195 = vmatpush1.msra.mxu0 %v5194
    %5196 = vmatprep.subr.mxu0 0.0
    %v5197 = vand.u32 %v219, 4294901760
    %5198 = vmatpush1.msra.mxu0 %v5197
    %5199 = vmatprep.subr.mxu0 0.0
    %v5200 = vand.u32 %v218, 4294901760
    %5201 = vmatpush1.msra.mxu0 %v5200
    %5202 = vmatprep.subr.mxu0 0.0
    %v5203 = vand.u32 %v217, 4294901760
    %5204 = vmatpush1.msra.mxu0 %v5203
    %5205 = vmatprep.subr.mxu0 0.0
    %v5206 = vand.u32 %v216, 4294901760
    %5207 = vmatpush1.msra.mxu0 %v5206
    %5208 = vmatprep.subr.mxu0 0.0
    %v5209 = vand.u32 %v215, 4294901760
    %5210 = vmatpush1.msra.mxu0 %v5209
    %5211 = vmatprep.subr.mxu0 0.0
    %v5212 = vand.u32 %v214, 4294901760
    %5213 = vmatpush1.msra.mxu0 %v5212
    %5214 = vmatprep.subr.mxu0 0.0
    %v5215 = vand.u32 %v213, 4294901760
    %5216 = vmatpush1.msra.mxu0 %v5215
    %5217 = vmatprep.subr.mxu0 0.0
    %v5218 = vand.u32 %v212, 4294901760
    %5219 = vmatpush1.msra.mxu0 %v5218
    %5220 = vmatprep.subr.mxu0 0.0
    %v5221 = vand.u32 %v211, 4294901760
    %5222 = vmatpush1.msra.mxu0 %v5221
    %5223 = vmatprep.subr.mxu0 0.0
    %v5224 = vand.u32 %v210, 4294901760
    %5225 = vmatpush1.msra.mxu0 %v5224
    %5226 = vmatprep.subr.mxu0 0.0
    %v5227 = vand.u32 %v209, 4294901760
    %5228 = vmatpush1.msra.mxu0 %v5227
    %5229 = vmatprep.subr.mxu0 0.0
    %v5230 = vand.u32 %v208, 4294901760
    %5231 = vmatpush1.msra.mxu0 %v5230
    %5232 = vmatprep.subr.mxu0 0.0
    %v5233 = vand.u32 %v239, 4294901760
    %5234 = vmatpush2.msra.mxu0 %v5233
    %5235 = vmatprep.subr.mxu0 0.0
    %v5236 = vand.u32 %v238, 4294901760
    %5237 = vmatpush2.msra.mxu0 %v5236
    %5238 = vmatprep.subr.mxu0 0.0
    %v5239 = vand.u32 %v237, 4294901760
    %5240 = vmatpush2.msra.mxu0 %v5239
    %5241 = vmatprep.subr.mxu0 0.0
    %v5242 = vand.u32 %v236, 4294901760
    %5243 = vmatpush2.msra.mxu0 %v5242
    %5244 = vmatprep.subr.mxu0 0.0
    %v5245 = vand.u32 %v235, 4294901760
    %5246 = vmatpush2.msra.mxu0 %v5245
    %5247 = vmatprep.subr.mxu0 0.0
    %v5248 = vand.u32 %v234, 4294901760
    %5249 = vmatpush2.msra.mxu0 %v5248
    %5250 = vmatprep.subr.mxu0 0.0
    %v5251 = vand.u32 %v233, 4294901760
    %5252 = vmatpush2.msra.mxu0 %v5251
    %5253 = vmatprep.subr.mxu0 0.0
    %v5254 = vand.u32 %v232, 4294901760
    %5255 = vmatpush2.msra.mxu0 %v5254
    %5256 = vmatprep.subr.mxu0 0.0
    %v5257 = vand.u32 %v231, 4294901760
    %5258 = vmatpush2.msra.mxu0 %v5257
    %5259 = vmatprep.subr.mxu0 0.0
    %v5260 = vand.u32 %v230, 4294901760
    %5261 = vmatpush2.msra.mxu0 %v5260
    %5262 = vmatprep.subr.mxu0 0.0
    %v5263 = vand.u32 %v229, 4294901760
    %5264 = vmatpush2.msra.mxu0 %v5263
    %5265 = vmatprep.subr.mxu0 0.0
    %v5266 = vand.u32 %v228, 4294901760
    %5267 = vmatpush2.msra.mxu0 %v5266
    %5268 = vmatprep.subr.mxu0 0.0
    %v5269 = vand.u32 %v227, 4294901760
    %5270 = vmatpush2.msra.mxu0 %v5269
    %5271 = vmatprep.subr.mxu0 0.0
    %v5272 = vand.u32 %v226, 4294901760
    %5273 = vmatpush2.msra.mxu0 %v5272
    %5274 = vmatprep.subr.mxu0 0.0
    %v5275 = vand.u32 %v225, 4294901760
    %5276 = vmatpush2.msra.mxu0 %v5275
    %5277 = vmatprep.subr.mxu0 0.0
    %v5278 = vand.u32 %v224, 4294901760
    %5279 = vmatpush2.msra.mxu0 %v5278
    %v5280 = vand.u32 %v3814, 4294901760
    %v5281 = vsub.f32 %v3814, %v5280
    %v5282 = vand.u32 %v5281, 4294901760
    %5283 = vmatprep.mubr.f32.mxu0 %v5282
    %v5284 = vand.u32 %v3812, 4294901760
    %v5285 = vsub.f32 %v3812, %v5284
    %v5286 = vand.u32 %v5285, 4294901760
    %5287 = vmatmul.mubr.f32.gmra.mxu0 %v5286
    %v5288 = vpop.f32.mrf.mxu0
    %v5289 = vadd.f32 %v5181, %v5288
    %v5290 = vpop.f32.mrf.mxu0
    %5291 = vdwg.mxu0
    %5292 = vmatprep.subr.mxu0 0.0
    %v5293 = vand.u32 %v223, 4294901760
    %v5294 = vsub.f32 %v223, %v5293
    %v5295 = vand.u32 %v5294, 4294901760
    %5296 = vmatpush1.msra.mxu0 %v5295
    %5297 = vmatprep.subr.mxu0 0.0
    %v5298 = vand.u32 %v222, 4294901760
    %v5299 = vsub.f32 %v222, %v5298
    %v5300 = vand.u32 %v5299, 4294901760
    %5301 = vmatpush1.msra.mxu0 %v5300
    %5302 = vmatprep.subr.mxu0 0.0
    %v5303 = vand.u32 %v221, 4294901760
    %v5304 = vsub.f32 %v221, %v5303
    %v5305 = vand.u32 %v5304, 4294901760
    %5306 = vmatpush1.msra.mxu0 %v5305
    %5307 = vmatprep.subr.mxu0 0.0
    %v5308 = vand.u32 %v220, 4294901760
    %v5309 = vsub.f32 %v220, %v5308
    %v5310 = vand.u32 %v5309, 4294901760
    %5311 = vmatpush1.msra.mxu0 %v5310
    %5312 = vmatprep.subr.mxu0 0.0
    %v5313 = vand.u32 %v219, 4294901760
    %v5314 = vsub.f32 %v219, %v5313
    %v5315 = vand.u32 %v5314, 4294901760
    %5316 = vmatpush1.msra.mxu0 %v5315
    %5317 = vmatprep.subr.mxu0 0.0
    %v5318 = vand.u32 %v218, 4294901760
    %v5319 = vsub.f32 %v218, %v5318
    %v5320 = vand.u32 %v5319, 4294901760
    %5321 = vmatpush1.msra.mxu0 %v5320
    %5322 = vmatprep.subr.mxu0 0.0
    %v5323 = vand.u32 %v217, 4294901760
    %v5324 = vsub.f32 %v217, %v5323
    %v5325 = vand.u32 %v5324, 4294901760
    %5326 = vmatpush1.msra.mxu0 %v5325
    %5327 = vmatprep.subr.mxu0 0.0
    %v5328 = vand.u32 %v216, 4294901760
    %v5329 = vsub.f32 %v216, %v5328
    %v5330 = vand.u32 %v5329, 4294901760
    %5331 = vmatpush1.msra.mxu0 %v5330
    %5332 = vmatprep.subr.mxu0 0.0
    %v5333 = vand.u32 %v215, 4294901760
    %v5334 = vsub.f32 %v215, %v5333
    %v5335 = vand.u32 %v5334, 4294901760
    %5336 = vmatpush1.msra.mxu0 %v5335
    %5337 = vmatprep.subr.mxu0 0.0
    %v5338 = vand.u32 %v214, 4294901760
    %v5339 = vsub.f32 %v214, %v5338
    %v5340 = vand.u32 %v5339, 4294901760
    %5341 = vmatpush1.msra.mxu0 %v5340
    %5342 = vmatprep.subr.mxu0 0.0
    %v5343 = vand.u32 %v213, 4294901760
    %v5344 = vsub.f32 %v213, %v5343
    %v5345 = vand.u32 %v5344, 4294901760
    %5346 = vmatpush1.msra.mxu0 %v5345
    %5347 = vmatprep.subr.mxu0 0.0
    %v5348 = vand.u32 %v212, 4294901760
    %v5349 = vsub.f32 %v212, %v5348
    %v5350 = vand.u32 %v5349, 4294901760
    %5351 = vmatpush1.msra.mxu0 %v5350
    %5352 = vmatprep.subr.mxu0 0.0
    %v5353 = vand.u32 %v211, 4294901760
    %v5354 = vsub.f32 %v211, %v5353
    %v5355 = vand.u32 %v5354, 4294901760
    %5356 = vmatpush1.msra.mxu0 %v5355
    %5357 = vmatprep.subr.mxu0 0.0
    %v5358 = vand.u32 %v210, 4294901760
    %v5359 = vsub.f32 %v210, %v5358
    %v5360 = vand.u32 %v5359, 4294901760
    %5361 = vmatpush1.msra.mxu0 %v5360
    %5362 = vmatprep.subr.mxu0 0.0
    %v5363 = vand.u32 %v209, 4294901760
    %v5364 = vsub.f32 %v209, %v5363
    %v5365 = vand.u32 %v5364, 4294901760
    %5366 = vmatpush1.msra.mxu0 %v5365
    %5367 = vmatprep.subr.mxu0 0.0
    %v5368 = vand.u32 %v208, 4294901760
    %v5369 = vsub.f32 %v208, %v5368
    %v5370 = vand.u32 %v5369, 4294901760
    %5371 = vmatpush1.msra.mxu0 %v5370
    %5372 = vmatprep.subr.mxu0 0.0
    %v5373 = vand.u32 %v239, 4294901760
    %v5374 = vsub.f32 %v239, %v5373
    %v5375 = vand.u32 %v5374, 4294901760
    %5376 = vmatpush2.msra.mxu0 %v5375
    %5377 = vmatprep.subr.mxu0 0.0
    %v5378 = vand.u32 %v238, 4294901760
    %v5379 = vsub.f32 %v238, %v5378
    %v5380 = vand.u32 %v5379, 4294901760
    %5381 = vmatpush2.msra.mxu0 %v5380
    %5382 = vmatprep.subr.mxu0 0.0
    %v5383 = vand.u32 %v237, 4294901760
    %v5384 = vsub.f32 %v237, %v5383
    %v5385 = vand.u32 %v5384, 4294901760
    %5386 = vmatpush2.msra.mxu0 %v5385
    %5387 = vmatprep.subr.mxu0 0.0
    %v5388 = vand.u32 %v236, 4294901760
    %v5389 = vsub.f32 %v236, %v5388
    %v5390 = vand.u32 %v5389, 4294901760
    %5391 = vmatpush2.msra.mxu0 %v5390
    %5392 = vmatprep.subr.mxu0 0.0
    %v5393 = vand.u32 %v235, 4294901760
    %v5394 = vsub.f32 %v235, %v5393
    %v5395 = vand.u32 %v5394, 4294901760
    %5396 = vmatpush2.msra.mxu0 %v5395
    %5397 = vmatprep.subr.mxu0 0.0
    %v5398 = vand.u32 %v234, 4294901760
    %v5399 = vsub.f32 %v234, %v5398
    %v5400 = vand.u32 %v5399, 4294901760
    %5401 = vmatpush2.msra.mxu0 %v5400
    %5402 = vmatprep.subr.mxu0 0.0
    %v5403 = vand.u32 %v233, 4294901760
    %v5404 = vsub.f32 %v233, %v5403
    %v5405 = vand.u32 %v5404, 4294901760
    %5406 = vmatpush2.msra.mxu0 %v5405
    %5407 = vmatprep.subr.mxu0 0.0
    %v5408 = vand.u32 %v232, 4294901760
    %v5409 = vsub.f32 %v232, %v5408
    %v5410 = vand.u32 %v5409, 4294901760
    %5411 = vmatpush2.msra.mxu0 %v5410
    %5412 = vmatprep.subr.mxu0 0.0
    %v5413 = vand.u32 %v231, 4294901760
    %v5414 = vsub.f32 %v231, %v5413
    %v5415 = vand.u32 %v5414, 4294901760
    %5416 = vmatpush2.msra.mxu0 %v5415
    %5417 = vmatprep.subr.mxu0 0.0
    %v5418 = vand.u32 %v230, 4294901760
    %v5419 = vsub.f32 %v230, %v5418
    %v5420 = vand.u32 %v5419, 4294901760
    %5421 = vmatpush2.msra.mxu0 %v5420
    %5422 = vmatprep.subr.mxu0 0.0
    %v5423 = vand.u32 %v229, 4294901760
    %v5424 = vsub.f32 %v229, %v5423
    %v5425 = vand.u32 %v5424, 4294901760
    %5426 = vmatpush2.msra.mxu0 %v5425
    %5427 = vmatprep.subr.mxu0 0.0
    %v5428 = vand.u32 %v228, 4294901760
    %v5429 = vsub.f32 %v228, %v5428
    %v5430 = vand.u32 %v5429, 4294901760
    %5431 = vmatpush2.msra.mxu0 %v5430
    %5432 = vmatprep.subr.mxu0 0.0
    %v5433 = vand.u32 %v227, 4294901760
    %v5434 = vsub.f32 %v227, %v5433
    %v5435 = vand.u32 %v5434, 4294901760
    %5436 = vmatpush2.msra.mxu0 %v5435
    %5437 = vmatprep.subr.mxu0 0.0
    %v5438 = vand.u32 %v226, 4294901760
    %v5439 = vsub.f32 %v226, %v5438
    %v5440 = vand.u32 %v5439, 4294901760
    %5441 = vmatpush2.msra.mxu0 %v5440
    %5442 = vmatprep.subr.mxu0 0.0
    %v5443 = vand.u32 %v225, 4294901760
    %v5444 = vsub.f32 %v225, %v5443
    %v5445 = vand.u32 %v5444, 4294901760
    %5446 = vmatpush2.msra.mxu0 %v5445
    %5447 = vmatprep.subr.mxu0 0.0
    %v5448 = vand.u32 %v224, 4294901760
    %v5449 = vsub.f32 %v224, %v5448
    %v5450 = vand.u32 %v5449, 4294901760
    %5451 = vmatpush2.msra.mxu0 %v5450
    %v5452 = vand.u32 %v3814, 4294901760
    %5453 = vmatprep.mubr.f32.mxu0 %v5452
    %v5454 = vand.u32 %v3812, 4294901760
    %5455 = vmatmul.mubr.f32.gmra.mxu0 %v5454
    %v5456 = vpop.f32.mrf.mxu0
    %v5457 = vadd.f32 %v5289, %v5456
    %v5458 = vpop.f32.mrf.mxu0
    %5459 = vdwg.mxu0
    %5460 = vmatprep.subr.mxu0 0.0
    %v5461 = vand.u32 %v223, 4294901760
    %5462 = vmatpush1.msra.mxu0 %v5461
    %5463 = vmatprep.subr.mxu0 0.0
    %v5464 = vand.u32 %v222, 4294901760
    %5465 = vmatpush1.msra.mxu0 %v5464
    %5466 = vmatprep.subr.mxu0 0.0
    %v5467 = vand.u32 %v221, 4294901760
    %5468 = vmatpush1.msra.mxu0 %v5467
    %5469 = vmatprep.subr.mxu0 0.0
    %v5470 = vand.u32 %v220, 4294901760
    %5471 = vmatpush1.msra.mxu0 %v5470
    %5472 = vmatprep.subr.mxu0 0.0
    %v5473 = vand.u32 %v219, 4294901760
    %5474 = vmatpush1.msra.mxu0 %v5473
    %5475 = vmatprep.subr.mxu0 0.0
    %v5476 = vand.u32 %v218, 4294901760
    %5477 = vmatpush1.msra.mxu0 %v5476
    %5478 = vmatprep.subr.mxu0 0.0
    %v5479 = vand.u32 %v217, 4294901760
    %5480 = vmatpush1.msra.mxu0 %v5479
    %5481 = vmatprep.subr.mxu0 0.0
    %v5482 = vand.u32 %v216, 4294901760
    %5483 = vmatpush1.msra.mxu0 %v5482
    %5484 = vmatprep.subr.mxu0 0.0
    %v5485 = vand.u32 %v215, 4294901760
    %5486 = vmatpush1.msra.mxu0 %v5485
    %5487 = vmatprep.subr.mxu0 0.0
    %v5488 = vand.u32 %v214, 4294901760
    %5489 = vmatpush1.msra.mxu0 %v5488
    %5490 = vmatprep.subr.mxu0 0.0
    %v5491 = vand.u32 %v213, 4294901760
    %5492 = vmatpush1.msra.mxu0 %v5491
    %5493 = vmatprep.subr.mxu0 0.0
    %v5494 = vand.u32 %v212, 4294901760
    %5495 = vmatpush1.msra.mxu0 %v5494
    %5496 = vmatprep.subr.mxu0 0.0
    %v5497 = vand.u32 %v211, 4294901760
    %5498 = vmatpush1.msra.mxu0 %v5497
    %5499 = vmatprep.subr.mxu0 0.0
    %v5500 = vand.u32 %v210, 4294901760
    %5501 = vmatpush1.msra.mxu0 %v5500
    %5502 = vmatprep.subr.mxu0 0.0
    %v5503 = vand.u32 %v209, 4294901760
    %5504 = vmatpush1.msra.mxu0 %v5503
    %5505 = vmatprep.subr.mxu0 0.0
    %v5506 = vand.u32 %v208, 4294901760
    %5507 = vmatpush1.msra.mxu0 %v5506
    %5508 = vmatprep.subr.mxu0 0.0
    %v5509 = vand.u32 %v239, 4294901760
    %5510 = vmatpush2.msra.mxu0 %v5509
    %5511 = vmatprep.subr.mxu0 0.0
    %v5512 = vand.u32 %v238, 4294901760
    %5513 = vmatpush2.msra.mxu0 %v5512
    %5514 = vmatprep.subr.mxu0 0.0
    %v5515 = vand.u32 %v237, 4294901760
    %5516 = vmatpush2.msra.mxu0 %v5515
    %5517 = vmatprep.subr.mxu0 0.0
    %v5518 = vand.u32 %v236, 4294901760
    %5519 = vmatpush2.msra.mxu0 %v5518
    %5520 = vmatprep.subr.mxu0 0.0
    %v5521 = vand.u32 %v235, 4294901760
    %5522 = vmatpush2.msra.mxu0 %v5521
    %5523 = vmatprep.subr.mxu0 0.0
    %v5524 = vand.u32 %v234, 4294901760
    %5525 = vmatpush2.msra.mxu0 %v5524
    %5526 = vmatprep.subr.mxu0 0.0
    %v5527 = vand.u32 %v233, 4294901760
    %5528 = vmatpush2.msra.mxu0 %v5527
    %5529 = vmatprep.subr.mxu0 0.0
    %v5530 = vand.u32 %v232, 4294901760
    %5531 = vmatpush2.msra.mxu0 %v5530
    %5532 = vmatprep.subr.mxu0 0.0
    %v5533 = vand.u32 %v231, 4294901760
    %5534 = vmatpush2.msra.mxu0 %v5533
    %5535 = vmatprep.subr.mxu0 0.0
    %v5536 = vand.u32 %v230, 4294901760
    %5537 = vmatpush2.msra.mxu0 %v5536
    %5538 = vmatprep.subr.mxu0 0.0
    %v5539 = vand.u32 %v229, 4294901760
    %5540 = vmatpush2.msra.mxu0 %v5539
    %5541 = vmatprep.subr.mxu0 0.0
    %v5542 = vand.u32 %v228, 4294901760
    %5543 = vmatpush2.msra.mxu0 %v5542
    %5544 = vmatprep.subr.mxu0 0.0
    %v5545 = vand.u32 %v227, 4294901760
    %5546 = vmatpush2.msra.mxu0 %v5545
    %5547 = vmatprep.subr.mxu0 0.0
    %v5548 = vand.u32 %v226, 4294901760
    %5549 = vmatpush2.msra.mxu0 %v5548
    %5550 = vmatprep.subr.mxu0 0.0
    %v5551 = vand.u32 %v225, 4294901760
    %5552 = vmatpush2.msra.mxu0 %v5551
    %5553 = vmatprep.subr.mxu0 0.0
    %v5554 = vand.u32 %v224, 4294901760
    %5555 = vmatpush2.msra.mxu0 %v5554
    %v5556 = vand.u32 %v3814, 4294901760
    %5557 = vmatprep.mubr.f32.mxu0 %v5556
    %v5558 = vand.u32 %v3812, 4294901760
    %5559 = vmatmul.mubr.f32.gmra.mxu0 %v5558
    %v5560 = vpop.f32.mrf.mxu0
    %v5561 = vadd.f32 %v5457, %v5560
    %v5562 = vpop.f32.mrf.mxu0
    %5563 = vdwg.mxu0
    %5564 = vmatprep.subr.mxu0 0.0
    %v5565 = vand.u32 %v255, 4294901760
    %5566 = vmatpush1.msra.mxu0 %v5565
    %5567 = vmatprep.subr.mxu0 0.0
    %v5568 = vand.u32 %v254, 4294901760
    %5569 = vmatpush1.msra.mxu0 %v5568
    %5570 = vmatprep.subr.mxu0 0.0
    %v5571 = vand.u32 %v253, 4294901760
    %5572 = vmatpush1.msra.mxu0 %v5571
    %5573 = vmatprep.subr.mxu0 0.0
    %v5574 = vand.u32 %v252, 4294901760
    %5575 = vmatpush1.msra.mxu0 %v5574
    %5576 = vmatprep.subr.mxu0 0.0
    %v5577 = vand.u32 %v251, 4294901760
    %5578 = vmatpush1.msra.mxu0 %v5577
    %5579 = vmatprep.subr.mxu0 0.0
    %v5580 = vand.u32 %v250, 4294901760
    %5581 = vmatpush1.msra.mxu0 %v5580
    %5582 = vmatprep.subr.mxu0 0.0
    %v5583 = vand.u32 %v249, 4294901760
    %5584 = vmatpush1.msra.mxu0 %v5583
    %5585 = vmatprep.subr.mxu0 0.0
    %v5586 = vand.u32 %v248, 4294901760
    %5587 = vmatpush1.msra.mxu0 %v5586
    %5588 = vmatprep.subr.mxu0 0.0
    %v5589 = vand.u32 %v247, 4294901760
    %5590 = vmatpush1.msra.mxu0 %v5589
    %5591 = vmatprep.subr.mxu0 0.0
    %v5592 = vand.u32 %v246, 4294901760
    %5593 = vmatpush1.msra.mxu0 %v5592
    %5594 = vmatprep.subr.mxu0 0.0
    %v5595 = vand.u32 %v245, 4294901760
    %5596 = vmatpush1.msra.mxu0 %v5595
    %5597 = vmatprep.subr.mxu0 0.0
    %v5598 = vand.u32 %v244, 4294901760
    %5599 = vmatpush1.msra.mxu0 %v5598
    %5600 = vmatprep.subr.mxu0 0.0
    %v5601 = vand.u32 %v243, 4294901760
    %5602 = vmatpush1.msra.mxu0 %v5601
    %5603 = vmatprep.subr.mxu0 0.0
    %v5604 = vand.u32 %v242, 4294901760
    %5605 = vmatpush1.msra.mxu0 %v5604
    %5606 = vmatprep.subr.mxu0 0.0
    %v5607 = vand.u32 %v241, 4294901760
    %5608 = vmatpush1.msra.mxu0 %v5607
    %5609 = vmatprep.subr.mxu0 0.0
    %v5610 = vand.u32 %v240, 4294901760
    %5611 = vmatpush1.msra.mxu0 %v5610
    %5612 = vmatprep.subr.mxu0 0.0
    %v5613 = vand.u32 %v271, 4294901760
    %5614 = vmatpush2.msra.mxu0 %v5613
    %5615 = vmatprep.subr.mxu0 0.0
    %v5616 = vand.u32 %v270, 4294901760
    %5617 = vmatpush2.msra.mxu0 %v5616
    %5618 = vmatprep.subr.mxu0 0.0
    %v5619 = vand.u32 %v269, 4294901760
    %5620 = vmatpush2.msra.mxu0 %v5619
    %5621 = vmatprep.subr.mxu0 0.0
    %v5622 = vand.u32 %v268, 4294901760
    %5623 = vmatpush2.msra.mxu0 %v5622
    %5624 = vmatprep.subr.mxu0 0.0
    %v5625 = vand.u32 %v267, 4294901760
    %5626 = vmatpush2.msra.mxu0 %v5625
    %5627 = vmatprep.subr.mxu0 0.0
    %v5628 = vand.u32 %v266, 4294901760
    %5629 = vmatpush2.msra.mxu0 %v5628
    %5630 = vmatprep.subr.mxu0 0.0
    %v5631 = vand.u32 %v265, 4294901760
    %5632 = vmatpush2.msra.mxu0 %v5631
    %5633 = vmatprep.subr.mxu0 0.0
    %v5634 = vand.u32 %v264, 4294901760
    %5635 = vmatpush2.msra.mxu0 %v5634
    %5636 = vmatprep.subr.mxu0 0.0
    %v5637 = vand.u32 %v263, 4294901760
    %5638 = vmatpush2.msra.mxu0 %v5637
    %5639 = vmatprep.subr.mxu0 0.0
    %v5640 = vand.u32 %v262, 4294901760
    %5641 = vmatpush2.msra.mxu0 %v5640
    %5642 = vmatprep.subr.mxu0 0.0
    %v5643 = vand.u32 %v261, 4294901760
    %5644 = vmatpush2.msra.mxu0 %v5643
    %5645 = vmatprep.subr.mxu0 0.0
    %v5646 = vand.u32 %v260, 4294901760
    %5647 = vmatpush2.msra.mxu0 %v5646
    %5648 = vmatprep.subr.mxu0 0.0
    %v5649 = vand.u32 %v259, 4294901760
    %5650 = vmatpush2.msra.mxu0 %v5649
    %5651 = vmatprep.subr.mxu0 0.0
    %v5652 = vand.u32 %v258, 4294901760
    %5653 = vmatpush2.msra.mxu0 %v5652
    %5654 = vmatprep.subr.mxu0 0.0
    %v5655 = vand.u32 %v257, 4294901760
    %5656 = vmatpush2.msra.mxu0 %v5655
    %5657 = vmatprep.subr.mxu0 0.0
    %v5658 = vand.u32 %v256, 4294901760
    %5659 = vmatpush2.msra.mxu0 %v5658
    %v5660 = vand.u32 %v3830, 4294901760
    %v5661 = vsub.f32 %v3830, %v5660
    %v5662 = vand.u32 %v5661, 4294901760
    %v5663 = vsub.f32 %v5661, %v5662
    %v5664 = vand.u32 %v5663, 4294901760
    %5665 = vmatprep.mubr.f32.mxu0 %v5664
    %v5666 = vand.u32 %v3822, 4294901760
    %v5667 = vsub.f32 %v3822, %v5666
    %v5668 = vand.u32 %v5667, 4294901760
    %v5669 = vsub.f32 %v5667, %v5668
    %v5670 = vand.u32 %v5669, 4294901760
    %5671 = vmatmul.mubr.f32.gmra.mxu0 %v5670
    %v5672 = vpop.f32.mrf.mxu0
    %v5673 = vadd.f32 %v5561, %v5672
    %v5674 = vpop.f32.mrf.mxu0
    %5675 = vdwg.mxu0
    %5676 = vmatprep.subr.mxu0 0.0
    %v5677 = vand.u32 %v255, 4294901760
    %v5678 = vsub.f32 %v255, %v5677
    %v5679 = vand.u32 %v5678, 4294901760
    %v5680 = vsub.f32 %v5678, %v5679
    %v5681 = vand.u32 %v5680, 4294901760
    %5682 = vmatpush1.msra.mxu0 %v5681
    %5683 = vmatprep.subr.mxu0 0.0
    %v5684 = vand.u32 %v254, 4294901760
    %v5685 = vsub.f32 %v254, %v5684
    %v5686 = vand.u32 %v5685, 4294901760
    %v5687 = vsub.f32 %v5685, %v5686
    %v5688 = vand.u32 %v5687, 4294901760
    %5689 = vmatpush1.msra.mxu0 %v5688
    %5690 = vmatprep.subr.mxu0 0.0
    %v5691 = vand.u32 %v253, 4294901760
    %v5692 = vsub.f32 %v253, %v5691
    %v5693 = vand.u32 %v5692, 4294901760
    %v5694 = vsub.f32 %v5692, %v5693
    %v5695 = vand.u32 %v5694, 4294901760
    %5696 = vmatpush1.msra.mxu0 %v5695
    %5697 = vmatprep.subr.mxu0 0.0
    %v5698 = vand.u32 %v252, 4294901760
    %v5699 = vsub.f32 %v252, %v5698
    %v5700 = vand.u32 %v5699, 4294901760
    %v5701 = vsub.f32 %v5699, %v5700
    %v5702 = vand.u32 %v5701, 4294901760
    %5703 = vmatpush1.msra.mxu0 %v5702
    %5704 = vmatprep.subr.mxu0 0.0
    %v5705 = vand.u32 %v251, 4294901760
    %v5706 = vsub.f32 %v251, %v5705
    %v5707 = vand.u32 %v5706, 4294901760
    %v5708 = vsub.f32 %v5706, %v5707
    %v5709 = vand.u32 %v5708, 4294901760
    %5710 = vmatpush1.msra.mxu0 %v5709
    %5711 = vmatprep.subr.mxu0 0.0
    %v5712 = vand.u32 %v250, 4294901760
    %v5713 = vsub.f32 %v250, %v5712
    %v5714 = vand.u32 %v5713, 4294901760
    %v5715 = vsub.f32 %v5713, %v5714
    %v5716 = vand.u32 %v5715, 4294901760
    %5717 = vmatpush1.msra.mxu0 %v5716
    %5718 = vmatprep.subr.mxu0 0.0
    %v5719 = vand.u32 %v249, 4294901760
    %v5720 = vsub.f32 %v249, %v5719
    %v5721 = vand.u32 %v5720, 4294901760
    %v5722 = vsub.f32 %v5720, %v5721
    %v5723 = vand.u32 %v5722, 4294901760
    %5724 = vmatpush1.msra.mxu0 %v5723
    %5725 = vmatprep.subr.mxu0 0.0
    %v5726 = vand.u32 %v248, 4294901760
    %v5727 = vsub.f32 %v248, %v5726
    %v5728 = vand.u32 %v5727, 4294901760
    %v5729 = vsub.f32 %v5727, %v5728
    %v5730 = vand.u32 %v5729, 4294901760
    %5731 = vmatpush1.msra.mxu0 %v5730
    %5732 = vmatprep.subr.mxu0 0.0
    %v5733 = vand.u32 %v247, 4294901760
    %v5734 = vsub.f32 %v247, %v5733
    %v5735 = vand.u32 %v5734, 4294901760
    %v5736 = vsub.f32 %v5734, %v5735
    %v5737 = vand.u32 %v5736, 4294901760
    %5738 = vmatpush1.msra.mxu0 %v5737
    %5739 = vmatprep.subr.mxu0 0.0
    %v5740 = vand.u32 %v246, 4294901760
    %v5741 = vsub.f32 %v246, %v5740
    %v5742 = vand.u32 %v5741, 4294901760
    %v5743 = vsub.f32 %v5741, %v5742
    %v5744 = vand.u32 %v5743, 4294901760
    %5745 = vmatpush1.msra.mxu0 %v5744
    %5746 = vmatprep.subr.mxu0 0.0
    %v5747 = vand.u32 %v245, 4294901760
    %v5748 = vsub.f32 %v245, %v5747
    %v5749 = vand.u32 %v5748, 4294901760
    %v5750 = vsub.f32 %v5748, %v5749
    %v5751 = vand.u32 %v5750, 4294901760
    %5752 = vmatpush1.msra.mxu0 %v5751
    %5753 = vmatprep.subr.mxu0 0.0
    %v5754 = vand.u32 %v244, 4294901760
    %v5755 = vsub.f32 %v244, %v5754
    %v5756 = vand.u32 %v5755, 4294901760
    %v5757 = vsub.f32 %v5755, %v5756
    %v5758 = vand.u32 %v5757, 4294901760
    %5759 = vmatpush1.msra.mxu0 %v5758
    %5760 = vmatprep.subr.mxu0 0.0
    %v5761 = vand.u32 %v243, 4294901760
    %v5762 = vsub.f32 %v243, %v5761
    %v5763 = vand.u32 %v5762, 4294901760
    %v5764 = vsub.f32 %v5762, %v5763
    %v5765 = vand.u32 %v5764, 4294901760
    %5766 = vmatpush1.msra.mxu0 %v5765
    %5767 = vmatprep.subr.mxu0 0.0
    %v5768 = vand.u32 %v242, 4294901760
    %v5769 = vsub.f32 %v242, %v5768
    %v5770 = vand.u32 %v5769, 4294901760
    %v5771 = vsub.f32 %v5769, %v5770
    %v5772 = vand.u32 %v5771, 4294901760
    %5773 = vmatpush1.msra.mxu0 %v5772
    %5774 = vmatprep.subr.mxu0 0.0
    %v5775 = vand.u32 %v241, 4294901760
    %v5776 = vsub.f32 %v241, %v5775
    %v5777 = vand.u32 %v5776, 4294901760
    %v5778 = vsub.f32 %v5776, %v5777
    %v5779 = vand.u32 %v5778, 4294901760
    %5780 = vmatpush1.msra.mxu0 %v5779
    %5781 = vmatprep.subr.mxu0 0.0
    %v5782 = vand.u32 %v240, 4294901760
    %v5783 = vsub.f32 %v240, %v5782
    %v5784 = vand.u32 %v5783, 4294901760
    %v5785 = vsub.f32 %v5783, %v5784
    %v5786 = vand.u32 %v5785, 4294901760
    %5787 = vmatpush1.msra.mxu0 %v5786
    %5788 = vmatprep.subr.mxu0 0.0
    %v5789 = vand.u32 %v271, 4294901760
    %v5790 = vsub.f32 %v271, %v5789
    %v5791 = vand.u32 %v5790, 4294901760
    %v5792 = vsub.f32 %v5790, %v5791
    %v5793 = vand.u32 %v5792, 4294901760
    %5794 = vmatpush2.msra.mxu0 %v5793
    %5795 = vmatprep.subr.mxu0 0.0
    %v5796 = vand.u32 %v270, 4294901760
    %v5797 = vsub.f32 %v270, %v5796
    %v5798 = vand.u32 %v5797, 4294901760
    %v5799 = vsub.f32 %v5797, %v5798
    %v5800 = vand.u32 %v5799, 4294901760
    %5801 = vmatpush2.msra.mxu0 %v5800
    %5802 = vmatprep.subr.mxu0 0.0
    %v5803 = vand.u32 %v269, 4294901760
    %v5804 = vsub.f32 %v269, %v5803
    %v5805 = vand.u32 %v5804, 4294901760
    %v5806 = vsub.f32 %v5804, %v5805
    %v5807 = vand.u32 %v5806, 4294901760
    %5808 = vmatpush2.msra.mxu0 %v5807
    %5809 = vmatprep.subr.mxu0 0.0
    %v5810 = vand.u32 %v268, 4294901760
    %v5811 = vsub.f32 %v268, %v5810
    %v5812 = vand.u32 %v5811, 4294901760
    %v5813 = vsub.f32 %v5811, %v5812
    %v5814 = vand.u32 %v5813, 4294901760
    %5815 = vmatpush2.msra.mxu0 %v5814
    %5816 = vmatprep.subr.mxu0 0.0
    %v5817 = vand.u32 %v267, 4294901760
    %v5818 = vsub.f32 %v267, %v5817
    %v5819 = vand.u32 %v5818, 4294901760
    %v5820 = vsub.f32 %v5818, %v5819
    %v5821 = vand.u32 %v5820, 4294901760
    %5822 = vmatpush2.msra.mxu0 %v5821
    %5823 = vmatprep.subr.mxu0 0.0
    %v5824 = vand.u32 %v266, 4294901760
    %v5825 = vsub.f32 %v266, %v5824
    %v5826 = vand.u32 %v5825, 4294901760
    %v5827 = vsub.f32 %v5825, %v5826
    %v5828 = vand.u32 %v5827, 4294901760
    %5829 = vmatpush2.msra.mxu0 %v5828
    %5830 = vmatprep.subr.mxu0 0.0
    %v5831 = vand.u32 %v265, 4294901760
    %v5832 = vsub.f32 %v265, %v5831
    %v5833 = vand.u32 %v5832, 4294901760
    %v5834 = vsub.f32 %v5832, %v5833
    %v5835 = vand.u32 %v5834, 4294901760
    %5836 = vmatpush2.msra.mxu0 %v5835
    %5837 = vmatprep.subr.mxu0 0.0
    %v5838 = vand.u32 %v264, 4294901760
    %v5839 = vsub.f32 %v264, %v5838
    %v5840 = vand.u32 %v5839, 4294901760
    %v5841 = vsub.f32 %v5839, %v5840
    %v5842 = vand.u32 %v5841, 4294901760
    %5843 = vmatpush2.msra.mxu0 %v5842
    %5844 = vmatprep.subr.mxu0 0.0
    %v5845 = vand.u32 %v263, 4294901760
    %v5846 = vsub.f32 %v263, %v5845
    %v5847 = vand.u32 %v5846, 4294901760
    %v5848 = vsub.f32 %v5846, %v5847
    %v5849 = vand.u32 %v5848, 4294901760
    %5850 = vmatpush2.msra.mxu0 %v5849
    %5851 = vmatprep.subr.mxu0 0.0
    %v5852 = vand.u32 %v262, 4294901760
    %v5853 = vsub.f32 %v262, %v5852
    %v5854 = vand.u32 %v5853, 4294901760
    %v5855 = vsub.f32 %v5853, %v5854
    %v5856 = vand.u32 %v5855, 4294901760
    %5857 = vmatpush2.msra.mxu0 %v5856
    %5858 = vmatprep.subr.mxu0 0.0
    %v5859 = vand.u32 %v261, 4294901760
    %v5860 = vsub.f32 %v261, %v5859
    %v5861 = vand.u32 %v5860, 4294901760
    %v5862 = vsub.f32 %v5860, %v5861
    %v5863 = vand.u32 %v5862, 4294901760
    %5864 = vmatpush2.msra.mxu0 %v5863
    %5865 = vmatprep.subr.mxu0 0.0
    %v5866 = vand.u32 %v260, 4294901760
    %v5867 = vsub.f32 %v260, %v5866
    %v5868 = vand.u32 %v5867, 4294901760
    %v5869 = vsub.f32 %v5867, %v5868
    %v5870 = vand.u32 %v5869, 4294901760
    %5871 = vmatpush2.msra.mxu0 %v5870
    %5872 = vmatprep.subr.mxu0 0.0
    %v5873 = vand.u32 %v259, 4294901760
    %v5874 = vsub.f32 %v259, %v5873
    %v5875 = vand.u32 %v5874, 4294901760
    %v5876 = vsub.f32 %v5874, %v5875
    %v5877 = vand.u32 %v5876, 4294901760
    %5878 = vmatpush2.msra.mxu0 %v5877
    %5879 = vmatprep.subr.mxu0 0.0
    %v5880 = vand.u32 %v258, 4294901760
    %v5881 = vsub.f32 %v258, %v5880
    %v5882 = vand.u32 %v5881, 4294901760
    %v5883 = vsub.f32 %v5881, %v5882
    %v5884 = vand.u32 %v5883, 4294901760
    %5885 = vmatpush2.msra.mxu0 %v5884
    %5886 = vmatprep.subr.mxu0 0.0
    %v5887 = vand.u32 %v257, 4294901760
    %v5888 = vsub.f32 %v257, %v5887
    %v5889 = vand.u32 %v5888, 4294901760
    %v5890 = vsub.f32 %v5888, %v5889
    %v5891 = vand.u32 %v5890, 4294901760
    %5892 = vmatpush2.msra.mxu0 %v5891
    %5893 = vmatprep.subr.mxu0 0.0
    %v5894 = vand.u32 %v256, 4294901760
    %v5895 = vsub.f32 %v256, %v5894
    %v5896 = vand.u32 %v5895, 4294901760
    %v5897 = vsub.f32 %v5895, %v5896
    %v5898 = vand.u32 %v5897, 4294901760
    %5899 = vmatpush2.msra.mxu0 %v5898
    %v5900 = vand.u32 %v3830, 4294901760
    %5901 = vmatprep.mubr.f32.mxu0 %v5900
    %v5902 = vand.u32 %v3822, 4294901760
    %5903 = vmatmul.mubr.f32.gmra.mxu0 %v5902
    %v5904 = vpop.f32.mrf.mxu0
    %v5905 = vadd.f32 %v5673, %v5904
    %v5906 = vpop.f32.mrf.mxu0
    %5907 = vdwg.mxu0
    %5908 = vmatprep.subr.mxu0 0.0
    %v5909 = vand.u32 %v255, 4294901760
    %v5910 = vsub.f32 %v255, %v5909
    %5911 = vmatpush1.msra.mxu0 %v5910
    %5912 = vmatprep.subr.mxu0 0.0
    %v5913 = vand.u32 %v254, 4294901760
    %v5914 = vsub.f32 %v254, %v5913
    %5915 = vmatpush1.msra.mxu0 %v5914
    %5916 = vmatprep.subr.mxu0 0.0
    %v5917 = vand.u32 %v253, 4294901760
    %v5918 = vsub.f32 %v253, %v5917
    %5919 = vmatpush1.msra.mxu0 %v5918
    %5920 = vmatprep.subr.mxu0 0.0
    %v5921 = vand.u32 %v252, 4294901760
    %v5922 = vsub.f32 %v252, %v5921
    %5923 = vmatpush1.msra.mxu0 %v5922
    %5924 = vmatprep.subr.mxu0 0.0
    %v5925 = vand.u32 %v251, 4294901760
    %v5926 = vsub.f32 %v251, %v5925
    %5927 = vmatpush1.msra.mxu0 %v5926
    %5928 = vmatprep.subr.mxu0 0.0
    %v5929 = vand.u32 %v250, 4294901760
    %v5930 = vsub.f32 %v250, %v5929
    %5931 = vmatpush1.msra.mxu0 %v5930
    %5932 = vmatprep.subr.mxu0 0.0
    %v5933 = vand.u32 %v249, 4294901760
    %v5934 = vsub.f32 %v249, %v5933
    %5935 = vmatpush1.msra.mxu0 %v5934
    %5936 = vmatprep.subr.mxu0 0.0
    %v5937 = vand.u32 %v248, 4294901760
    %v5938 = vsub.f32 %v248, %v5937
    %5939 = vmatpush1.msra.mxu0 %v5938
    %5940 = vmatprep.subr.mxu0 0.0
    %v5941 = vand.u32 %v247, 4294901760
    %v5942 = vsub.f32 %v247, %v5941
    %5943 = vmatpush1.msra.mxu0 %v5942
    %5944 = vmatprep.subr.mxu0 0.0
    %v5945 = vand.u32 %v246, 4294901760
    %v5946 = vsub.f32 %v246, %v5945
    %5947 = vmatpush1.msra.mxu0 %v5946
    %5948 = vmatprep.subr.mxu0 0.0
    %v5949 = vand.u32 %v245, 4294901760
    %v5950 = vsub.f32 %v245, %v5949
    %5951 = vmatpush1.msra.mxu0 %v5950
    %5952 = vmatprep.subr.mxu0 0.0
    %v5953 = vand.u32 %v244, 4294901760
    %v5954 = vsub.f32 %v244, %v5953
    %5955 = vmatpush1.msra.mxu0 %v5954
    %5956 = vmatprep.subr.mxu0 0.0
    %v5957 = vand.u32 %v243, 4294901760
    %v5958 = vsub.f32 %v243, %v5957
    %5959 = vmatpush1.msra.mxu0 %v5958
    %5960 = vmatprep.subr.mxu0 0.0
    %v5961 = vand.u32 %v242, 4294901760
    %v5962 = vsub.f32 %v242, %v5961
    %5963 = vmatpush1.msra.mxu0 %v5962
    %5964 = vmatprep.subr.mxu0 0.0
    %v5965 = vand.u32 %v241, 4294901760
    %v5966 = vsub.f32 %v241, %v5965
    %5967 = vmatpush1.msra.mxu0 %v5966
    %5968 = vmatprep.subr.mxu0 0.0
    %v5969 = vand.u32 %v240, 4294901760
    %v5970 = vsub.f32 %v240, %v5969
    %5971 = vmatpush1.msra.mxu0 %v5970
    %5972 = vmatprep.subr.mxu0 0.0
    %v5973 = vand.u32 %v271, 4294901760
    %v5974 = vsub.f32 %v271, %v5973
    %5975 = vmatpush2.msra.mxu0 %v5974
    %5976 = vmatprep.subr.mxu0 0.0
    %v5977 = vand.u32 %v270, 4294901760
    %v5978 = vsub.f32 %v270, %v5977
    %5979 = vmatpush2.msra.mxu0 %v5978
    %5980 = vmatprep.subr.mxu0 0.0
    %v5981 = vand.u32 %v269, 4294901760
    %v5982 = vsub.f32 %v269, %v5981
    %5983 = vmatpush2.msra.mxu0 %v5982
    %5984 = vmatprep.subr.mxu0 0.0
    %v5985 = vand.u32 %v268, 4294901760
    %v5986 = vsub.f32 %v268, %v5985
    %5987 = vmatpush2.msra.mxu0 %v5986
    %5988 = vmatprep.subr.mxu0 0.0
    %v5989 = vand.u32 %v267, 4294901760
    %v5990 = vsub.f32 %v267, %v5989
    %5991 = vmatpush2.msra.mxu0 %v5990
    %5992 = vmatprep.subr.mxu0 0.0
    %v5993 = vand.u32 %v266, 4294901760
    %v5994 = vsub.f32 %v266, %v5993
    %5995 = vmatpush2.msra.mxu0 %v5994
    %5996 = vmatprep.subr.mxu0 0.0
    %v5997 = vand.u32 %v265, 4294901760
    %v5998 = vsub.f32 %v265, %v5997
    %5999 = vmatpush2.msra.mxu0 %v5998
    %6000 = vmatprep.subr.mxu0 0.0
    %v6001 = vand.u32 %v264, 4294901760
    %v6002 = vsub.f32 %v264, %v6001
    %6003 = vmatpush2.msra.mxu0 %v6002
    %6004 = vmatprep.subr.mxu0 0.0
    %v6005 = vand.u32 %v263, 4294901760
    %v6006 = vsub.f32 %v263, %v6005
    %6007 = vmatpush2.msra.mxu0 %v6006
    %6008 = vmatprep.subr.mxu0 0.0
    %v6009 = vand.u32 %v262, 4294901760
    %v6010 = vsub.f32 %v262, %v6009
    %6011 = vmatpush2.msra.mxu0 %v6010
    %6012 = vmatprep.subr.mxu0 0.0
    %v6013 = vand.u32 %v261, 4294901760
    %v6014 = vsub.f32 %v261, %v6013
    %6015 = vmatpush2.msra.mxu0 %v6014
    %6016 = vmatprep.subr.mxu0 0.0
    %v6017 = vand.u32 %v260, 4294901760
    %v6018 = vsub.f32 %v260, %v6017
    %6019 = vmatpush2.msra.mxu0 %v6018
    %6020 = vmatprep.subr.mxu0 0.0
    %v6021 = vand.u32 %v259, 4294901760
    %v6022 = vsub.f32 %v259, %v6021
    %6023 = vmatpush2.msra.mxu0 %v6022
    %6024 = vmatprep.subr.mxu0 0.0
    %v6025 = vand.u32 %v258, 4294901760
    %v6026 = vsub.f32 %v258, %v6025
    %6027 = vmatpush2.msra.mxu0 %v6026
    %6028 = vmatprep.subr.mxu0 0.0
    %v6029 = vand.u32 %v257, 4294901760
    %v6030 = vsub.f32 %v257, %v6029
    %6031 = vmatpush2.msra.mxu0 %v6030
    %6032 = vmatprep.subr.mxu0 0.0
    %v6033 = vand.u32 %v256, 4294901760
    %v6034 = vsub.f32 %v256, %v6033
    %6035 = vmatpush2.msra.mxu0 %v6034
    %v6036 = vand.u32 %v3830, 4294901760
    %v6037 = vsub.f32 %v3830, %v6036
    %6038 = vmatprep.mubr.f32.mxu0 %v6037
    %v6039 = vand.u32 %v3822, 4294901760
    %v6040 = vsub.f32 %v3822, %v6039
    %6041 = vmatmul.mubr.f32.gmra.mxu0 %v6040
    %v6042 = vpop.f32.mrf.mxu0
    %v6043 = vadd.f32 %v5905, %v6042
    %v6044 = vpop.f32.mrf.mxu0
    %6045 = vdwg.mxu0
    %6046 = vmatprep.subr.mxu0 0.0
    %v6047 = vand.u32 %v255, 4294901760
    %6048 = vmatpush1.msra.mxu0 %v6047
    %6049 = vmatprep.subr.mxu0 0.0
    %v6050 = vand.u32 %v254, 4294901760
    %6051 = vmatpush1.msra.mxu0 %v6050
    %6052 = vmatprep.subr.mxu0 0.0
    %v6053 = vand.u32 %v253, 4294901760
    %6054 = vmatpush1.msra.mxu0 %v6053
    %6055 = vmatprep.subr.mxu0 0.0
    %v6056 = vand.u32 %v252, 4294901760
    %6057 = vmatpush1.msra.mxu0 %v6056
    %6058 = vmatprep.subr.mxu0 0.0
    %v6059 = vand.u32 %v251, 4294901760
    %6060 = vmatpush1.msra.mxu0 %v6059
    %6061 = vmatprep.subr.mxu0 0.0
    %v6062 = vand.u32 %v250, 4294901760
    %6063 = vmatpush1.msra.mxu0 %v6062
    %6064 = vmatprep.subr.mxu0 0.0
    %v6065 = vand.u32 %v249, 4294901760
    %6066 = vmatpush1.msra.mxu0 %v6065
    %6067 = vmatprep.subr.mxu0 0.0
    %v6068 = vand.u32 %v248, 4294901760
    %6069 = vmatpush1.msra.mxu0 %v6068
    %6070 = vmatprep.subr.mxu0 0.0
    %v6071 = vand.u32 %v247, 4294901760
    %6072 = vmatpush1.msra.mxu0 %v6071
    %6073 = vmatprep.subr.mxu0 0.0
    %v6074 = vand.u32 %v246, 4294901760
    %6075 = vmatpush1.msra.mxu0 %v6074
    %6076 = vmatprep.subr.mxu0 0.0
    %v6077 = vand.u32 %v245, 4294901760
    %6078 = vmatpush1.msra.mxu0 %v6077
    %6079 = vmatprep.subr.mxu0 0.0
    %v6080 = vand.u32 %v244, 4294901760
    %6081 = vmatpush1.msra.mxu0 %v6080
    %6082 = vmatprep.subr.mxu0 0.0
    %v6083 = vand.u32 %v243, 4294901760
    %6084 = vmatpush1.msra.mxu0 %v6083
    %6085 = vmatprep.subr.mxu0 0.0
    %v6086 = vand.u32 %v242, 4294901760
    %6087 = vmatpush1.msra.mxu0 %v6086
    %6088 = vmatprep.subr.mxu0 0.0
    %v6089 = vand.u32 %v241, 4294901760
    %6090 = vmatpush1.msra.mxu0 %v6089
    %6091 = vmatprep.subr.mxu0 0.0
    %v6092 = vand.u32 %v240, 4294901760
    %6093 = vmatpush1.msra.mxu0 %v6092
    %6094 = vmatprep.subr.mxu0 0.0
    %v6095 = vand.u32 %v271, 4294901760
    %6096 = vmatpush2.msra.mxu0 %v6095
    %6097 = vmatprep.subr.mxu0 0.0
    %v6098 = vand.u32 %v270, 4294901760
    %6099 = vmatpush2.msra.mxu0 %v6098
    %6100 = vmatprep.subr.mxu0 0.0
    %v6101 = vand.u32 %v269, 4294901760
    %6102 = vmatpush2.msra.mxu0 %v6101
    %6103 = vmatprep.subr.mxu0 0.0
    %v6104 = vand.u32 %v268, 4294901760
    %6105 = vmatpush2.msra.mxu0 %v6104
    %6106 = vmatprep.subr.mxu0 0.0
    %v6107 = vand.u32 %v267, 4294901760
    %6108 = vmatpush2.msra.mxu0 %v6107
    %6109 = vmatprep.subr.mxu0 0.0
    %v6110 = vand.u32 %v266, 4294901760
    %6111 = vmatpush2.msra.mxu0 %v6110
    %6112 = vmatprep.subr.mxu0 0.0
    %v6113 = vand.u32 %v265, 4294901760
    %6114 = vmatpush2.msra.mxu0 %v6113
    %6115 = vmatprep.subr.mxu0 0.0
    %v6116 = vand.u32 %v264, 4294901760
    %6117 = vmatpush2.msra.mxu0 %v6116
    %6118 = vmatprep.subr.mxu0 0.0
    %v6119 = vand.u32 %v263, 4294901760
    %6120 = vmatpush2.msra.mxu0 %v6119
    %6121 = vmatprep.subr.mxu0 0.0
    %v6122 = vand.u32 %v262, 4294901760
    %6123 = vmatpush2.msra.mxu0 %v6122
    %6124 = vmatprep.subr.mxu0 0.0
    %v6125 = vand.u32 %v261, 4294901760
    %6126 = vmatpush2.msra.mxu0 %v6125
    %6127 = vmatprep.subr.mxu0 0.0
    %v6128 = vand.u32 %v260, 4294901760
    %6129 = vmatpush2.msra.mxu0 %v6128
    %6130 = vmatprep.subr.mxu0 0.0
    %v6131 = vand.u32 %v259, 4294901760
    %6132 = vmatpush2.msra.mxu0 %v6131
    %6133 = vmatprep.subr.mxu0 0.0
    %v6134 = vand.u32 %v258, 4294901760
    %6135 = vmatpush2.msra.mxu0 %v6134
    %6136 = vmatprep.subr.mxu0 0.0
    %v6137 = vand.u32 %v257, 4294901760
    %6138 = vmatpush2.msra.mxu0 %v6137
    %6139 = vmatprep.subr.mxu0 0.0
    %v6140 = vand.u32 %v256, 4294901760
    %6141 = vmatpush2.msra.mxu0 %v6140
    %v6142 = vand.u32 %v3830, 4294901760
    %v6143 = vsub.f32 %v3830, %v6142
    %v6144 = vand.u32 %v6143, 4294901760
    %6145 = vmatprep.mubr.f32.mxu0 %v6144
    %v6146 = vand.u32 %v3822, 4294901760
    %v6147 = vsub.f32 %v3822, %v6146
    %v6148 = vand.u32 %v6147, 4294901760
    %6149 = vmatmul.mubr.f32.gmra.mxu0 %v6148
    %v6150 = vpop.f32.mrf.mxu0
    %v6151 = vadd.f32 %v6043, %v6150
    %v6152 = vpop.f32.mrf.mxu0
    %6153 = vdwg.mxu0
    %6154 = vmatprep.subr.mxu0 0.0
    %v6155 = vand.u32 %v255, 4294901760
    %v6156 = vsub.f32 %v255, %v6155
    %v6157 = vand.u32 %v6156, 4294901760
    %6158 = vmatpush1.msra.mxu0 %v6157
    %6159 = vmatprep.subr.mxu0 0.0
    %v6160 = vand.u32 %v254, 4294901760
    %v6161 = vsub.f32 %v254, %v6160
    %v6162 = vand.u32 %v6161, 4294901760
    %6163 = vmatpush1.msra.mxu0 %v6162
    %6164 = vmatprep.subr.mxu0 0.0
    %v6165 = vand.u32 %v253, 4294901760
    %v6166 = vsub.f32 %v253, %v6165
    %v6167 = vand.u32 %v6166, 4294901760
    %6168 = vmatpush1.msra.mxu0 %v6167
    %6169 = vmatprep.subr.mxu0 0.0
    %v6170 = vand.u32 %v252, 4294901760
    %v6171 = vsub.f32 %v252, %v6170
    %v6172 = vand.u32 %v6171, 4294901760
    %6173 = vmatpush1.msra.mxu0 %v6172
    %6174 = vmatprep.subr.mxu0 0.0
    %v6175 = vand.u32 %v251, 4294901760
    %v6176 = vsub.f32 %v251, %v6175
    %v6177 = vand.u32 %v6176, 4294901760
    %6178 = vmatpush1.msra.mxu0 %v6177
    %6179 = vmatprep.subr.mxu0 0.0
    %v6180 = vand.u32 %v250, 4294901760
    %v6181 = vsub.f32 %v250, %v6180
    %v6182 = vand.u32 %v6181, 4294901760
    %6183 = vmatpush1.msra.mxu0 %v6182
    %6184 = vmatprep.subr.mxu0 0.0
    %v6185 = vand.u32 %v249, 4294901760
    %v6186 = vsub.f32 %v249, %v6185
    %v6187 = vand.u32 %v6186, 4294901760
    %6188 = vmatpush1.msra.mxu0 %v6187
    %6189 = vmatprep.subr.mxu0 0.0
    %v6190 = vand.u32 %v248, 4294901760
    %v6191 = vsub.f32 %v248, %v6190
    %v6192 = vand.u32 %v6191, 4294901760
    %6193 = vmatpush1.msra.mxu0 %v6192
    %6194 = vmatprep.subr.mxu0 0.0
    %v6195 = vand.u32 %v247, 4294901760
    %v6196 = vsub.f32 %v247, %v6195
    %v6197 = vand.u32 %v6196, 4294901760
    %6198 = vmatpush1.msra.mxu0 %v6197
    %6199 = vmatprep.subr.mxu0 0.0
    %v6200 = vand.u32 %v246, 4294901760
    %v6201 = vsub.f32 %v246, %v6200
    %v6202 = vand.u32 %v6201, 4294901760
    %6203 = vmatpush1.msra.mxu0 %v6202
    %6204 = vmatprep.subr.mxu0 0.0
    %v6205 = vand.u32 %v245, 4294901760
    %v6206 = vsub.f32 %v245, %v6205
    %v6207 = vand.u32 %v6206, 4294901760
    %6208 = vmatpush1.msra.mxu0 %v6207
    %6209 = vmatprep.subr.mxu0 0.0
    %v6210 = vand.u32 %v244, 4294901760
    %v6211 = vsub.f32 %v244, %v6210
    %v6212 = vand.u32 %v6211, 4294901760
    %6213 = vmatpush1.msra.mxu0 %v6212
    %6214 = vmatprep.subr.mxu0 0.0
    %v6215 = vand.u32 %v243, 4294901760
    %v6216 = vsub.f32 %v243, %v6215
    %v6217 = vand.u32 %v6216, 4294901760
    %6218 = vmatpush1.msra.mxu0 %v6217
    %6219 = vmatprep.subr.mxu0 0.0
    %v6220 = vand.u32 %v242, 4294901760
    %v6221 = vsub.f32 %v242, %v6220
    %v6222 = vand.u32 %v6221, 4294901760
    %6223 = vmatpush1.msra.mxu0 %v6222
    %6224 = vmatprep.subr.mxu0 0.0
    %v6225 = vand.u32 %v241, 4294901760
    %v6226 = vsub.f32 %v241, %v6225
    %v6227 = vand.u32 %v6226, 4294901760
    %6228 = vmatpush1.msra.mxu0 %v6227
    %6229 = vmatprep.subr.mxu0 0.0
    %v6230 = vand.u32 %v240, 4294901760
    %v6231 = vsub.f32 %v240, %v6230
    %v6232 = vand.u32 %v6231, 4294901760
    %6233 = vmatpush1.msra.mxu0 %v6232
    %6234 = vmatprep.subr.mxu0 0.0
    %v6235 = vand.u32 %v271, 4294901760
    %v6236 = vsub.f32 %v271, %v6235
    %v6237 = vand.u32 %v6236, 4294901760
    %6238 = vmatpush2.msra.mxu0 %v6237
    %6239 = vmatprep.subr.mxu0 0.0
    %v6240 = vand.u32 %v270, 4294901760
    %v6241 = vsub.f32 %v270, %v6240
    %v6242 = vand.u32 %v6241, 4294901760
    %6243 = vmatpush2.msra.mxu0 %v6242
    %6244 = vmatprep.subr.mxu0 0.0
    %v6245 = vand.u32 %v269, 4294901760
    %v6246 = vsub.f32 %v269, %v6245
    %v6247 = vand.u32 %v6246, 4294901760
    %6248 = vmatpush2.msra.mxu0 %v6247
    %6249 = vmatprep.subr.mxu0 0.0
    %v6250 = vand.u32 %v268, 4294901760
    %v6251 = vsub.f32 %v268, %v6250
    %v6252 = vand.u32 %v6251, 4294901760
    %6253 = vmatpush2.msra.mxu0 %v6252
    %6254 = vmatprep.subr.mxu0 0.0
    %v6255 = vand.u32 %v267, 4294901760
    %v6256 = vsub.f32 %v267, %v6255
    %v6257 = vand.u32 %v6256, 4294901760
    %6258 = vmatpush2.msra.mxu0 %v6257
    %6259 = vmatprep.subr.mxu0 0.0
    %v6260 = vand.u32 %v266, 4294901760
    %v6261 = vsub.f32 %v266, %v6260
    %v6262 = vand.u32 %v6261, 4294901760
    %6263 = vmatpush2.msra.mxu0 %v6262
    %6264 = vmatprep.subr.mxu0 0.0
    %v6265 = vand.u32 %v265, 4294901760
    %v6266 = vsub.f32 %v265, %v6265
    %v6267 = vand.u32 %v6266, 4294901760
    %6268 = vmatpush2.msra.mxu0 %v6267
    %6269 = vmatprep.subr.mxu0 0.0
    %v6270 = vand.u32 %v264, 4294901760
    %v6271 = vsub.f32 %v264, %v6270
    %v6272 = vand.u32 %v6271, 4294901760
    %6273 = vmatpush2.msra.mxu0 %v6272
    %6274 = vmatprep.subr.mxu0 0.0
    %v6275 = vand.u32 %v263, 4294901760
    %v6276 = vsub.f32 %v263, %v6275
    %v6277 = vand.u32 %v6276, 4294901760
    %6278 = vmatpush2.msra.mxu0 %v6277
    %6279 = vmatprep.subr.mxu0 0.0
    %v6280 = vand.u32 %v262, 4294901760
    %v6281 = vsub.f32 %v262, %v6280
    %v6282 = vand.u32 %v6281, 4294901760
    %6283 = vmatpush2.msra.mxu0 %v6282
    %6284 = vmatprep.subr.mxu0 0.0
    %v6285 = vand.u32 %v261, 4294901760
    %v6286 = vsub.f32 %v261, %v6285
    %v6287 = vand.u32 %v6286, 4294901760
    %6288 = vmatpush2.msra.mxu0 %v6287
    %6289 = vmatprep.subr.mxu0 0.0
    %v6290 = vand.u32 %v260, 4294901760
    %v6291 = vsub.f32 %v260, %v6290
    %v6292 = vand.u32 %v6291, 4294901760
    %6293 = vmatpush2.msra.mxu0 %v6292
    %6294 = vmatprep.subr.mxu0 0.0
    %v6295 = vand.u32 %v259, 4294901760
    %v6296 = vsub.f32 %v259, %v6295
    %v6297 = vand.u32 %v6296, 4294901760
    %6298 = vmatpush2.msra.mxu0 %v6297
    %6299 = vmatprep.subr.mxu0 0.0
    %v6300 = vand.u32 %v258, 4294901760
    %v6301 = vsub.f32 %v258, %v6300
    %v6302 = vand.u32 %v6301, 4294901760
    %6303 = vmatpush2.msra.mxu0 %v6302
    %6304 = vmatprep.subr.mxu0 0.0
    %v6305 = vand.u32 %v257, 4294901760
    %v6306 = vsub.f32 %v257, %v6305
    %v6307 = vand.u32 %v6306, 4294901760
    %6308 = vmatpush2.msra.mxu0 %v6307
    %6309 = vmatprep.subr.mxu0 0.0
    %v6310 = vand.u32 %v256, 4294901760
    %v6311 = vsub.f32 %v256, %v6310
    %v6312 = vand.u32 %v6311, 4294901760
    %6313 = vmatpush2.msra.mxu0 %v6312
    %v6314 = vand.u32 %v3830, 4294901760
    %6315 = vmatprep.mubr.f32.mxu0 %v6314
    %v6316 = vand.u32 %v3822, 4294901760
    %6317 = vmatmul.mubr.f32.gmra.mxu0 %v6316
    %v6318 = vpop.f32.mrf.mxu0
    %v6319 = vadd.f32 %v6151, %v6318
    %v6320 = vpop.f32.mrf.mxu0
    %6321 = vdwg.mxu0
    %6322 = vmatprep.subr.mxu0 0.0
    %v6323 = vand.u32 %v255, 4294901760
    %6324 = vmatpush1.msra.mxu0 %v6323
    %6325 = vmatprep.subr.mxu0 0.0
    %v6326 = vand.u32 %v254, 4294901760
    %6327 = vmatpush1.msra.mxu0 %v6326
    %6328 = vmatprep.subr.mxu0 0.0
    %v6329 = vand.u32 %v253, 4294901760
    %6330 = vmatpush1.msra.mxu0 %v6329
    %6331 = vmatprep.subr.mxu0 0.0
    %v6332 = vand.u32 %v252, 4294901760
    %6333 = vmatpush1.msra.mxu0 %v6332
    %6334 = vmatprep.subr.mxu0 0.0
    %v6335 = vand.u32 %v251, 4294901760
    %6336 = vmatpush1.msra.mxu0 %v6335
    %6337 = vmatprep.subr.mxu0 0.0
    %v6338 = vand.u32 %v250, 4294901760
    %6339 = vmatpush1.msra.mxu0 %v6338
    %6340 = vmatprep.subr.mxu0 0.0
    %v6341 = vand.u32 %v249, 4294901760
    %6342 = vmatpush1.msra.mxu0 %v6341
    %6343 = vmatprep.subr.mxu0 0.0
    %v6344 = vand.u32 %v248, 4294901760
    %6345 = vmatpush1.msra.mxu0 %v6344
    %6346 = vmatprep.subr.mxu0 0.0
    %v6347 = vand.u32 %v247, 4294901760
    %6348 = vmatpush1.msra.mxu0 %v6347
    %6349 = vmatprep.subr.mxu0 0.0
    %v6350 = vand.u32 %v246, 4294901760
    %6351 = vmatpush1.msra.mxu0 %v6350
    %6352 = vmatprep.subr.mxu0 0.0
    %v6353 = vand.u32 %v245, 4294901760
    %6354 = vmatpush1.msra.mxu0 %v6353
    %6355 = vmatprep.subr.mxu0 0.0
    %v6356 = vand.u32 %v244, 4294901760
    %6357 = vmatpush1.msra.mxu0 %v6356
    %6358 = vmatprep.subr.mxu0 0.0
    %v6359 = vand.u32 %v243, 4294901760
    %6360 = vmatpush1.msra.mxu0 %v6359
    %6361 = vmatprep.subr.mxu0 0.0
    %v6362 = vand.u32 %v242, 4294901760
    %6363 = vmatpush1.msra.mxu0 %v6362
    %6364 = vmatprep.subr.mxu0 0.0
    %v6365 = vand.u32 %v241, 4294901760
    %6366 = vmatpush1.msra.mxu0 %v6365
    %6367 = vmatprep.subr.mxu0 0.0
    %v6368 = vand.u32 %v240, 4294901760
    %6369 = vmatpush1.msra.mxu0 %v6368
    %6370 = vmatprep.subr.mxu0 0.0
    %v6371 = vand.u32 %v271, 4294901760
    %6372 = vmatpush2.msra.mxu0 %v6371
    %6373 = vmatprep.subr.mxu0 0.0
    %v6374 = vand.u32 %v270, 4294901760
    %6375 = vmatpush2.msra.mxu0 %v6374
    %6376 = vmatprep.subr.mxu0 0.0
    %v6377 = vand.u32 %v269, 4294901760
    %6378 = vmatpush2.msra.mxu0 %v6377
    %6379 = vmatprep.subr.mxu0 0.0
    %v6380 = vand.u32 %v268, 4294901760
    %6381 = vmatpush2.msra.mxu0 %v6380
    %6382 = vmatprep.subr.mxu0 0.0
    %v6383 = vand.u32 %v267, 4294901760
    %6384 = vmatpush2.msra.mxu0 %v6383
    %6385 = vmatprep.subr.mxu0 0.0
    %v6386 = vand.u32 %v266, 4294901760
    %6387 = vmatpush2.msra.mxu0 %v6386
    %6388 = vmatprep.subr.mxu0 0.0
    %v6389 = vand.u32 %v265, 4294901760
    %6390 = vmatpush2.msra.mxu0 %v6389
    %6391 = vmatprep.subr.mxu0 0.0
    %v6392 = vand.u32 %v264, 4294901760
    %6393 = vmatpush2.msra.mxu0 %v6392
    %6394 = vmatprep.subr.mxu0 0.0
    %v6395 = vand.u32 %v263, 4294901760
    %6396 = vmatpush2.msra.mxu0 %v6395
    %6397 = vmatprep.subr.mxu0 0.0
    %v6398 = vand.u32 %v262, 4294901760
    %6399 = vmatpush2.msra.mxu0 %v6398
    %6400 = vmatprep.subr.mxu0 0.0
    %v6401 = vand.u32 %v261, 4294901760
    %6402 = vmatpush2.msra.mxu0 %v6401
    %6403 = vmatprep.subr.mxu0 0.0
    %v6404 = vand.u32 %v260, 4294901760
    %6405 = vmatpush2.msra.mxu0 %v6404
    %6406 = vmatprep.subr.mxu0 0.0
    %v6407 = vand.u32 %v259, 4294901760
    %6408 = vmatpush2.msra.mxu0 %v6407
    %6409 = vmatprep.subr.mxu0 0.0
    %v6410 = vand.u32 %v258, 4294901760
    %6411 = vmatpush2.msra.mxu0 %v6410
    %6412 = vmatprep.subr.mxu0 0.0
    %v6413 = vand.u32 %v257, 4294901760
    %6414 = vmatpush2.msra.mxu0 %v6413
    %6415 = vmatprep.subr.mxu0 0.0
    %v6416 = vand.u32 %v256, 4294901760
    %6417 = vmatpush2.msra.mxu0 %v6416
    %v6418 = vand.u32 %v3830, 4294901760
    %6419 = vmatprep.mubr.f32.mxu0 %v6418
    %v6420 = vand.u32 %v3822, 4294901760
    %6421 = vmatmul.mubr.f32.gmra.mxu0 %v6420
    %v6422 = vpop.f32.mrf.mxu0
    %v6423 = vadd.f32 %v6319, %v6422
    %v6424 = vpop.f32.mrf.mxu0
    %6425 = vdwg.mxu0
    %6426 = vmatprep.subr.mxu0 0.0
    %v6427 = vand.u32 %v287, 4294901760
    %6428 = vmatpush1.msra.mxu0 %v6427
    %6429 = vmatprep.subr.mxu0 0.0
    %v6430 = vand.u32 %v286, 4294901760
    %6431 = vmatpush1.msra.mxu0 %v6430
    %6432 = vmatprep.subr.mxu0 0.0
    %v6433 = vand.u32 %v285, 4294901760
    %6434 = vmatpush1.msra.mxu0 %v6433
    %6435 = vmatprep.subr.mxu0 0.0
    %v6436 = vand.u32 %v284, 4294901760
    %6437 = vmatpush1.msra.mxu0 %v6436
    %6438 = vmatprep.subr.mxu0 0.0
    %v6439 = vand.u32 %v283, 4294901760
    %6440 = vmatpush1.msra.mxu0 %v6439
    %6441 = vmatprep.subr.mxu0 0.0
    %v6442 = vand.u32 %v282, 4294901760
    %6443 = vmatpush1.msra.mxu0 %v6442
    %6444 = vmatprep.subr.mxu0 0.0
    %v6445 = vand.u32 %v281, 4294901760
    %6446 = vmatpush1.msra.mxu0 %v6445
    %6447 = vmatprep.subr.mxu0 0.0
    %v6448 = vand.u32 %v280, 4294901760
    %6449 = vmatpush1.msra.mxu0 %v6448
    %6450 = vmatprep.subr.mxu0 0.0
    %v6451 = vand.u32 %v279, 4294901760
    %6452 = vmatpush1.msra.mxu0 %v6451
    %6453 = vmatprep.subr.mxu0 0.0
    %v6454 = vand.u32 %v278, 4294901760
    %6455 = vmatpush1.msra.mxu0 %v6454
    %6456 = vmatprep.subr.mxu0 0.0
    %v6457 = vand.u32 %v277, 4294901760
    %6458 = vmatpush1.msra.mxu0 %v6457
    %6459 = vmatprep.subr.mxu0 0.0
    %v6460 = vand.u32 %v276, 4294901760
    %6461 = vmatpush1.msra.mxu0 %v6460
    %6462 = vmatprep.subr.mxu0 0.0
    %v6463 = vand.u32 %v275, 4294901760
    %6464 = vmatpush1.msra.mxu0 %v6463
    %6465 = vmatprep.subr.mxu0 0.0
    %v6466 = vand.u32 %v274, 4294901760
    %6467 = vmatpush1.msra.mxu0 %v6466
    %6468 = vmatprep.subr.mxu0 0.0
    %v6469 = vand.u32 %v273, 4294901760
    %6470 = vmatpush1.msra.mxu0 %v6469
    %6471 = vmatprep.subr.mxu0 0.0
    %v6472 = vand.u32 %v272, 4294901760
    %6473 = vmatpush1.msra.mxu0 %v6472
    %6474 = vmatprep.subr.mxu0 0.0
    %v6475 = vand.u32 %v303, 4294901760
    %6476 = vmatpush2.msra.mxu0 %v6475
    %6477 = vmatprep.subr.mxu0 0.0
    %v6478 = vand.u32 %v302, 4294901760
    %6479 = vmatpush2.msra.mxu0 %v6478
    %6480 = vmatprep.subr.mxu0 0.0
    %v6481 = vand.u32 %v301, 4294901760
    %6482 = vmatpush2.msra.mxu0 %v6481
    %6483 = vmatprep.subr.mxu0 0.0
    %v6484 = vand.u32 %v300, 4294901760
    %6485 = vmatpush2.msra.mxu0 %v6484
    %6486 = vmatprep.subr.mxu0 0.0
    %v6487 = vand.u32 %v299, 4294901760
    %6488 = vmatpush2.msra.mxu0 %v6487
    %6489 = vmatprep.subr.mxu0 0.0
    %v6490 = vand.u32 %v298, 4294901760
    %6491 = vmatpush2.msra.mxu0 %v6490
    %6492 = vmatprep.subr.mxu0 0.0
    %v6493 = vand.u32 %v297, 4294901760
    %6494 = vmatpush2.msra.mxu0 %v6493
    %6495 = vmatprep.subr.mxu0 0.0
    %v6496 = vand.u32 %v296, 4294901760
    %6497 = vmatpush2.msra.mxu0 %v6496
    %6498 = vmatprep.subr.mxu0 0.0
    %v6499 = vand.u32 %v295, 4294901760
    %6500 = vmatpush2.msra.mxu0 %v6499
    %6501 = vmatprep.subr.mxu0 0.0
    %v6502 = vand.u32 %v294, 4294901760
    %6503 = vmatpush2.msra.mxu0 %v6502
    %6504 = vmatprep.subr.mxu0 0.0
    %v6505 = vand.u32 %v293, 4294901760
    %6506 = vmatpush2.msra.mxu0 %v6505
    %6507 = vmatprep.subr.mxu0 0.0
    %v6508 = vand.u32 %v292, 4294901760
    %6509 = vmatpush2.msra.mxu0 %v6508
    %6510 = vmatprep.subr.mxu0 0.0
    %v6511 = vand.u32 %v291, 4294901760
    %6512 = vmatpush2.msra.mxu0 %v6511
    %6513 = vmatprep.subr.mxu0 0.0
    %v6514 = vand.u32 %v290, 4294901760
    %6515 = vmatpush2.msra.mxu0 %v6514
    %6516 = vmatprep.subr.mxu0 0.0
    %v6517 = vand.u32 %v289, 4294901760
    %6518 = vmatpush2.msra.mxu0 %v6517
    %6519 = vmatprep.subr.mxu0 0.0
    %v6520 = vand.u32 %v288, 4294901760
    %6521 = vmatpush2.msra.mxu0 %v6520
    %v6522 = vand.u32 %v3831, 4294901760
    %v6523 = vsub.f32 %v3831, %v6522
    %v6524 = vand.u32 %v6523, 4294901760
    %v6525 = vsub.f32 %v6523, %v6524
    %v6526 = vand.u32 %v6525, 4294901760
    %6527 = vmatprep.mubr.f32.mxu0 %v6526
    %v6528 = vand.u32 %v3829, 4294901760
    %v6529 = vsub.f32 %v3829, %v6528
    %v6530 = vand.u32 %v6529, 4294901760
    %v6531 = vsub.f32 %v6529, %v6530
    %v6532 = vand.u32 %v6531, 4294901760
    %6533 = vmatmul.mubr.f32.gmra.mxu0 %v6532
    %v6534 = vpop.f32.mrf.mxu0
    %v6535 = vadd.f32 %v6423, %v6534
    %v6536 = vpop.f32.mrf.mxu0
    %6537 = vdwg.mxu0
    %6538 = vmatprep.subr.mxu0 0.0
    %v6539 = vand.u32 %v287, 4294901760
    %v6540 = vsub.f32 %v287, %v6539
    %v6541 = vand.u32 %v6540, 4294901760
    %v6542 = vsub.f32 %v6540, %v6541
    %v6543 = vand.u32 %v6542, 4294901760
    %6544 = vmatpush1.msra.mxu0 %v6543
    %6545 = vmatprep.subr.mxu0 0.0
    %v6546 = vand.u32 %v286, 4294901760
    %v6547 = vsub.f32 %v286, %v6546
    %v6548 = vand.u32 %v6547, 4294901760
    %v6549 = vsub.f32 %v6547, %v6548
    %v6550 = vand.u32 %v6549, 4294901760
    %6551 = vmatpush1.msra.mxu0 %v6550
    %6552 = vmatprep.subr.mxu0 0.0
    %v6553 = vand.u32 %v285, 4294901760
    %v6554 = vsub.f32 %v285, %v6553
    %v6555 = vand.u32 %v6554, 4294901760
    %v6556 = vsub.f32 %v6554, %v6555
    %v6557 = vand.u32 %v6556, 4294901760
    %6558 = vmatpush1.msra.mxu0 %v6557
    %6559 = vmatprep.subr.mxu0 0.0
    %v6560 = vand.u32 %v284, 4294901760
    %v6561 = vsub.f32 %v284, %v6560
    %v6562 = vand.u32 %v6561, 4294901760
    %v6563 = vsub.f32 %v6561, %v6562
    %v6564 = vand.u32 %v6563, 4294901760
    %6565 = vmatpush1.msra.mxu0 %v6564
    %6566 = vmatprep.subr.mxu0 0.0
    %v6567 = vand.u32 %v283, 4294901760
    %v6568 = vsub.f32 %v283, %v6567
    %v6569 = vand.u32 %v6568, 4294901760
    %v6570 = vsub.f32 %v6568, %v6569
    %v6571 = vand.u32 %v6570, 4294901760
    %6572 = vmatpush1.msra.mxu0 %v6571
    %6573 = vmatprep.subr.mxu0 0.0
    %v6574 = vand.u32 %v282, 4294901760
    %v6575 = vsub.f32 %v282, %v6574
    %v6576 = vand.u32 %v6575, 4294901760
    %v6577 = vsub.f32 %v6575, %v6576
    %v6578 = vand.u32 %v6577, 4294901760
    %6579 = vmatpush1.msra.mxu0 %v6578
    %6580 = vmatprep.subr.mxu0 0.0
    %v6581 = vand.u32 %v281, 4294901760
    %v6582 = vsub.f32 %v281, %v6581
    %v6583 = vand.u32 %v6582, 4294901760
    %v6584 = vsub.f32 %v6582, %v6583
    %v6585 = vand.u32 %v6584, 4294901760
    %6586 = vmatpush1.msra.mxu0 %v6585
    %6587 = vmatprep.subr.mxu0 0.0
    %v6588 = vand.u32 %v280, 4294901760
    %v6589 = vsub.f32 %v280, %v6588
    %v6590 = vand.u32 %v6589, 4294901760
    %v6591 = vsub.f32 %v6589, %v6590
    %v6592 = vand.u32 %v6591, 4294901760
    %6593 = vmatpush1.msra.mxu0 %v6592
    %6594 = vmatprep.subr.mxu0 0.0
    %v6595 = vand.u32 %v279, 4294901760
    %v6596 = vsub.f32 %v279, %v6595
    %v6597 = vand.u32 %v6596, 4294901760
    %v6598 = vsub.f32 %v6596, %v6597
    %v6599 = vand.u32 %v6598, 4294901760
    %6600 = vmatpush1.msra.mxu0 %v6599
    %6601 = vmatprep.subr.mxu0 0.0
    %v6602 = vand.u32 %v278, 4294901760
    %v6603 = vsub.f32 %v278, %v6602
    %v6604 = vand.u32 %v6603, 4294901760
    %v6605 = vsub.f32 %v6603, %v6604
    %v6606 = vand.u32 %v6605, 4294901760
    %6607 = vmatpush1.msra.mxu0 %v6606
    %6608 = vmatprep.subr.mxu0 0.0
    %v6609 = vand.u32 %v277, 4294901760
    %v6610 = vsub.f32 %v277, %v6609
    %v6611 = vand.u32 %v6610, 4294901760
    %v6612 = vsub.f32 %v6610, %v6611
    %v6613 = vand.u32 %v6612, 4294901760
    %6614 = vmatpush1.msra.mxu0 %v6613
    %6615 = vmatprep.subr.mxu0 0.0
    %v6616 = vand.u32 %v276, 4294901760
    %v6617 = vsub.f32 %v276, %v6616
    %v6618 = vand.u32 %v6617, 4294901760
    %v6619 = vsub.f32 %v6617, %v6618
    %v6620 = vand.u32 %v6619, 4294901760
    %6621 = vmatpush1.msra.mxu0 %v6620
    %6622 = vmatprep.subr.mxu0 0.0
    %v6623 = vand.u32 %v275, 4294901760
    %v6624 = vsub.f32 %v275, %v6623
    %v6625 = vand.u32 %v6624, 4294901760
    %v6626 = vsub.f32 %v6624, %v6625
    %v6627 = vand.u32 %v6626, 4294901760
    %6628 = vmatpush1.msra.mxu0 %v6627
    %6629 = vmatprep.subr.mxu0 0.0
    %v6630 = vand.u32 %v274, 4294901760
    %v6631 = vsub.f32 %v274, %v6630
    %v6632 = vand.u32 %v6631, 4294901760
    %v6633 = vsub.f32 %v6631, %v6632
    %v6634 = vand.u32 %v6633, 4294901760
    %6635 = vmatpush1.msra.mxu0 %v6634
    %6636 = vmatprep.subr.mxu0 0.0
    %v6637 = vand.u32 %v273, 4294901760
    %v6638 = vsub.f32 %v273, %v6637
    %v6639 = vand.u32 %v6638, 4294901760
    %v6640 = vsub.f32 %v6638, %v6639
    %v6641 = vand.u32 %v6640, 4294901760
    %6642 = vmatpush1.msra.mxu0 %v6641
    %6643 = vmatprep.subr.mxu0 0.0
    %v6644 = vand.u32 %v272, 4294901760
    %v6645 = vsub.f32 %v272, %v6644
    %v6646 = vand.u32 %v6645, 4294901760
    %v6647 = vsub.f32 %v6645, %v6646
    %v6648 = vand.u32 %v6647, 4294901760
    %6649 = vmatpush1.msra.mxu0 %v6648
    %6650 = vmatprep.subr.mxu0 0.0
    %v6651 = vand.u32 %v303, 4294901760
    %v6652 = vsub.f32 %v303, %v6651
    %v6653 = vand.u32 %v6652, 4294901760
    %v6654 = vsub.f32 %v6652, %v6653
    %v6655 = vand.u32 %v6654, 4294901760
    %6656 = vmatpush2.msra.mxu0 %v6655
    %6657 = vmatprep.subr.mxu0 0.0
    %v6658 = vand.u32 %v302, 4294901760
    %v6659 = vsub.f32 %v302, %v6658
    %v6660 = vand.u32 %v6659, 4294901760
    %v6661 = vsub.f32 %v6659, %v6660
    %v6662 = vand.u32 %v6661, 4294901760
    %6663 = vmatpush2.msra.mxu0 %v6662
    %6664 = vmatprep.subr.mxu0 0.0
    %v6665 = vand.u32 %v301, 4294901760
    %v6666 = vsub.f32 %v301, %v6665
    %v6667 = vand.u32 %v6666, 4294901760
    %v6668 = vsub.f32 %v6666, %v6667
    %v6669 = vand.u32 %v6668, 4294901760
    %6670 = vmatpush2.msra.mxu0 %v6669
    %6671 = vmatprep.subr.mxu0 0.0
    %v6672 = vand.u32 %v300, 4294901760
    %v6673 = vsub.f32 %v300, %v6672
    %v6674 = vand.u32 %v6673, 4294901760
    %v6675 = vsub.f32 %v6673, %v6674
    %v6676 = vand.u32 %v6675, 4294901760
    %6677 = vmatpush2.msra.mxu0 %v6676
    %6678 = vmatprep.subr.mxu0 0.0
    %v6679 = vand.u32 %v299, 4294901760
    %v6680 = vsub.f32 %v299, %v6679
    %v6681 = vand.u32 %v6680, 4294901760
    %v6682 = vsub.f32 %v6680, %v6681
    %v6683 = vand.u32 %v6682, 4294901760
    %6684 = vmatpush2.msra.mxu0 %v6683
    %6685 = vmatprep.subr.mxu0 0.0
    %v6686 = vand.u32 %v298, 4294901760
    %v6687 = vsub.f32 %v298, %v6686
    %v6688 = vand.u32 %v6687, 4294901760
    %v6689 = vsub.f32 %v6687, %v6688
    %v6690 = vand.u32 %v6689, 4294901760
    %6691 = vmatpush2.msra.mxu0 %v6690
    %6692 = vmatprep.subr.mxu0 0.0
    %v6693 = vand.u32 %v297, 4294901760
    %v6694 = vsub.f32 %v297, %v6693
    %v6695 = vand.u32 %v6694, 4294901760
    %v6696 = vsub.f32 %v6694, %v6695
    %v6697 = vand.u32 %v6696, 4294901760
    %6698 = vmatpush2.msra.mxu0 %v6697
    %6699 = vmatprep.subr.mxu0 0.0
    %v6700 = vand.u32 %v296, 4294901760
    %v6701 = vsub.f32 %v296, %v6700
    %v6702 = vand.u32 %v6701, 4294901760
    %v6703 = vsub.f32 %v6701, %v6702
    %v6704 = vand.u32 %v6703, 4294901760
    %6705 = vmatpush2.msra.mxu0 %v6704
    %6706 = vmatprep.subr.mxu0 0.0
    %v6707 = vand.u32 %v295, 4294901760
    %v6708 = vsub.f32 %v295, %v6707
    %v6709 = vand.u32 %v6708, 4294901760
    %v6710 = vsub.f32 %v6708, %v6709
    %v6711 = vand.u32 %v6710, 4294901760
    %6712 = vmatpush2.msra.mxu0 %v6711
    %6713 = vmatprep.subr.mxu0 0.0
    %v6714 = vand.u32 %v294, 4294901760
    %v6715 = vsub.f32 %v294, %v6714
    %v6716 = vand.u32 %v6715, 4294901760
    %v6717 = vsub.f32 %v6715, %v6716
    %v6718 = vand.u32 %v6717, 4294901760
    %6719 = vmatpush2.msra.mxu0 %v6718
    %6720 = vmatprep.subr.mxu0 0.0
    %v6721 = vand.u32 %v293, 4294901760
    %v6722 = vsub.f32 %v293, %v6721
    %v6723 = vand.u32 %v6722, 4294901760
    %v6724 = vsub.f32 %v6722, %v6723
    %v6725 = vand.u32 %v6724, 4294901760
    %6726 = vmatpush2.msra.mxu0 %v6725
    %6727 = vmatprep.subr.mxu0 0.0
    %v6728 = vand.u32 %v292, 4294901760
    %v6729 = vsub.f32 %v292, %v6728
    %v6730 = vand.u32 %v6729, 4294901760
    %v6731 = vsub.f32 %v6729, %v6730
    %v6732 = vand.u32 %v6731, 4294901760
    %6733 = vmatpush2.msra.mxu0 %v6732
    %6734 = vmatprep.subr.mxu0 0.0
    %v6735 = vand.u32 %v291, 4294901760
    %v6736 = vsub.f32 %v291, %v6735
    %v6737 = vand.u32 %v6736, 4294901760
    %v6738 = vsub.f32 %v6736, %v6737
    %v6739 = vand.u32 %v6738, 4294901760
    %6740 = vmatpush2.msra.mxu0 %v6739
    %6741 = vmatprep.subr.mxu0 0.0
    %v6742 = vand.u32 %v290, 4294901760
    %v6743 = vsub.f32 %v290, %v6742
    %v6744 = vand.u32 %v6743, 4294901760
    %v6745 = vsub.f32 %v6743, %v6744
    %v6746 = vand.u32 %v6745, 4294901760
    %6747 = vmatpush2.msra.mxu0 %v6746
    %6748 = vmatprep.subr.mxu0 0.0
    %v6749 = vand.u32 %v289, 4294901760
    %v6750 = vsub.f32 %v289, %v6749
    %v6751 = vand.u32 %v6750, 4294901760
    %v6752 = vsub.f32 %v6750, %v6751
    %v6753 = vand.u32 %v6752, 4294901760
    %6754 = vmatpush2.msra.mxu0 %v6753
    %6755 = vmatprep.subr.mxu0 0.0
    %v6756 = vand.u32 %v288, 4294901760
    %v6757 = vsub.f32 %v288, %v6756
    %v6758 = vand.u32 %v6757, 4294901760
    %v6759 = vsub.f32 %v6757, %v6758
    %v6760 = vand.u32 %v6759, 4294901760
    %6761 = vmatpush2.msra.mxu0 %v6760
    %v6762 = vand.u32 %v3831, 4294901760
    %6763 = vmatprep.mubr.f32.mxu0 %v6762
    %v6764 = vand.u32 %v3829, 4294901760
    %6765 = vmatmul.mubr.f32.gmra.mxu0 %v6764
    %v6766 = vpop.f32.mrf.mxu0
    %v6767 = vadd.f32 %v6535, %v6766
    %v6768 = vpop.f32.mrf.mxu0
    %6769 = vdwg.mxu0
    %6770 = vmatprep.subr.mxu0 0.0
    %v6771 = vand.u32 %v287, 4294901760
    %v6772 = vsub.f32 %v287, %v6771
    %6773 = vmatpush1.msra.mxu0 %v6772
    %6774 = vmatprep.subr.mxu0 0.0
    %v6775 = vand.u32 %v286, 4294901760
    %v6776 = vsub.f32 %v286, %v6775
    %6777 = vmatpush1.msra.mxu0 %v6776
    %6778 = vmatprep.subr.mxu0 0.0
    %v6779 = vand.u32 %v285, 4294901760
    %v6780 = vsub.f32 %v285, %v6779
    %6781 = vmatpush1.msra.mxu0 %v6780
    %6782 = vmatprep.subr.mxu0 0.0
    %v6783 = vand.u32 %v284, 4294901760
    %v6784 = vsub.f32 %v284, %v6783
    %6785 = vmatpush1.msra.mxu0 %v6784
    %6786 = vmatprep.subr.mxu0 0.0
    %v6787 = vand.u32 %v283, 4294901760
    %v6788 = vsub.f32 %v283, %v6787
    %6789 = vmatpush1.msra.mxu0 %v6788
    %6790 = vmatprep.subr.mxu0 0.0
    %v6791 = vand.u32 %v282, 4294901760
    %v6792 = vsub.f32 %v282, %v6791
    %6793 = vmatpush1.msra.mxu0 %v6792
    %6794 = vmatprep.subr.mxu0 0.0
    %v6795 = vand.u32 %v281, 4294901760
    %v6796 = vsub.f32 %v281, %v6795
    %6797 = vmatpush1.msra.mxu0 %v6796
    %6798 = vmatprep.subr.mxu0 0.0
    %v6799 = vand.u32 %v280, 4294901760
    %v6800 = vsub.f32 %v280, %v6799
    %6801 = vmatpush1.msra.mxu0 %v6800
    %6802 = vmatprep.subr.mxu0 0.0
    %v6803 = vand.u32 %v279, 4294901760
    %v6804 = vsub.f32 %v279, %v6803
    %6805 = vmatpush1.msra.mxu0 %v6804
    %6806 = vmatprep.subr.mxu0 0.0
    %v6807 = vand.u32 %v278, 4294901760
    %v6808 = vsub.f32 %v278, %v6807
    %6809 = vmatpush1.msra.mxu0 %v6808
    %6810 = vmatprep.subr.mxu0 0.0
    %v6811 = vand.u32 %v277, 4294901760
    %v6812 = vsub.f32 %v277, %v6811
    %6813 = vmatpush1.msra.mxu0 %v6812
    %6814 = vmatprep.subr.mxu0 0.0
    %v6815 = vand.u32 %v276, 4294901760
    %v6816 = vsub.f32 %v276, %v6815
    %6817 = vmatpush1.msra.mxu0 %v6816
    %6818 = vmatprep.subr.mxu0 0.0
    %v6819 = vand.u32 %v275, 4294901760
    %v6820 = vsub.f32 %v275, %v6819
    %6821 = vmatpush1.msra.mxu0 %v6820
    %6822 = vmatprep.subr.mxu0 0.0
    %v6823 = vand.u32 %v274, 4294901760
    %v6824 = vsub.f32 %v274, %v6823
    %6825 = vmatpush1.msra.mxu0 %v6824
    %6826 = vmatprep.subr.mxu0 0.0
    %v6827 = vand.u32 %v273, 4294901760
    %v6828 = vsub.f32 %v273, %v6827
    %6829 = vmatpush1.msra.mxu0 %v6828
    %6830 = vmatprep.subr.mxu0 0.0
    %v6831 = vand.u32 %v272, 4294901760
    %v6832 = vsub.f32 %v272, %v6831
    %6833 = vmatpush1.msra.mxu0 %v6832
    %6834 = vmatprep.subr.mxu0 0.0
    %v6835 = vand.u32 %v303, 4294901760
    %v6836 = vsub.f32 %v303, %v6835
    %6837 = vmatpush2.msra.mxu0 %v6836
    %6838 = vmatprep.subr.mxu0 0.0
    %v6839 = vand.u32 %v302, 4294901760
    %v6840 = vsub.f32 %v302, %v6839
    %6841 = vmatpush2.msra.mxu0 %v6840
    %6842 = vmatprep.subr.mxu0 0.0
    %v6843 = vand.u32 %v301, 4294901760
    %v6844 = vsub.f32 %v301, %v6843
    %6845 = vmatpush2.msra.mxu0 %v6844
    %6846 = vmatprep.subr.mxu0 0.0
    %v6847 = vand.u32 %v300, 4294901760
    %v6848 = vsub.f32 %v300, %v6847
    %6849 = vmatpush2.msra.mxu0 %v6848
    %6850 = vmatprep.subr.mxu0 0.0
    %v6851 = vand.u32 %v299, 4294901760
    %v6852 = vsub.f32 %v299, %v6851
    %6853 = vmatpush2.msra.mxu0 %v6852
    %6854 = vmatprep.subr.mxu0 0.0
    %v6855 = vand.u32 %v298, 4294901760
    %v6856 = vsub.f32 %v298, %v6855
    %6857 = vmatpush2.msra.mxu0 %v6856
    %6858 = vmatprep.subr.mxu0 0.0
    %v6859 = vand.u32 %v297, 4294901760
    %v6860 = vsub.f32 %v297, %v6859
    %6861 = vmatpush2.msra.mxu0 %v6860
    %6862 = vmatprep.subr.mxu0 0.0
    %v6863 = vand.u32 %v296, 4294901760
    %v6864 = vsub.f32 %v296, %v6863
    %6865 = vmatpush2.msra.mxu0 %v6864
    %6866 = vmatprep.subr.mxu0 0.0
    %v6867 = vand.u32 %v295, 4294901760
    %v6868 = vsub.f32 %v295, %v6867
    %6869 = vmatpush2.msra.mxu0 %v6868
    %6870 = vmatprep.subr.mxu0 0.0
    %v6871 = vand.u32 %v294, 4294901760
    %v6872 = vsub.f32 %v294, %v6871
    %6873 = vmatpush2.msra.mxu0 %v6872
    %6874 = vmatprep.subr.mxu0 0.0
    %v6875 = vand.u32 %v293, 4294901760
    %v6876 = vsub.f32 %v293, %v6875
    %6877 = vmatpush2.msra.mxu0 %v6876
    %6878 = vmatprep.subr.mxu0 0.0
    %v6879 = vand.u32 %v292, 4294901760
    %v6880 = vsub.f32 %v292, %v6879
    %6881 = vmatpush2.msra.mxu0 %v6880
    %6882 = vmatprep.subr.mxu0 0.0
    %v6883 = vand.u32 %v291, 4294901760
    %v6884 = vsub.f32 %v291, %v6883
    %6885 = vmatpush2.msra.mxu0 %v6884
    %6886 = vmatprep.subr.mxu0 0.0
    %v6887 = vand.u32 %v290, 4294901760
    %v6888 = vsub.f32 %v290, %v6887
    %6889 = vmatpush2.msra.mxu0 %v6888
    %6890 = vmatprep.subr.mxu0 0.0
    %v6891 = vand.u32 %v289, 4294901760
    %v6892 = vsub.f32 %v289, %v6891
    %6893 = vmatpush2.msra.mxu0 %v6892
    %6894 = vmatprep.subr.mxu0 0.0
    %v6895 = vand.u32 %v288, 4294901760
    %v6896 = vsub.f32 %v288, %v6895
    %6897 = vmatpush2.msra.mxu0 %v6896
    %v6898 = vand.u32 %v3831, 4294901760
    %v6899 = vsub.f32 %v3831, %v6898
    %6900 = vmatprep.mubr.f32.mxu0 %v6899
    %v6901 = vand.u32 %v3829, 4294901760
    %v6902 = vsub.f32 %v3829, %v6901
    %6903 = vmatmul.mubr.f32.gmra.mxu0 %v6902
    %v6904 = vpop.f32.mrf.mxu0
    %v6905 = vadd.f32 %v6767, %v6904
    %v6906 = vpop.f32.mrf.mxu0
    %6907 = vdwg.mxu0
    %6908 = vmatprep.subr.mxu0 0.0
    %v6909 = vand.u32 %v287, 4294901760
    %6910 = vmatpush1.msra.mxu0 %v6909
    %6911 = vmatprep.subr.mxu0 0.0
    %v6912 = vand.u32 %v286, 4294901760
    %6913 = vmatpush1.msra.mxu0 %v6912
    %6914 = vmatprep.subr.mxu0 0.0
    %v6915 = vand.u32 %v285, 4294901760
    %6916 = vmatpush1.msra.mxu0 %v6915
    %6917 = vmatprep.subr.mxu0 0.0
    %v6918 = vand.u32 %v284, 4294901760
    %6919 = vmatpush1.msra.mxu0 %v6918
    %6920 = vmatprep.subr.mxu0 0.0
    %v6921 = vand.u32 %v283, 4294901760
    %6922 = vmatpush1.msra.mxu0 %v6921
    %6923 = vmatprep.subr.mxu0 0.0
    %v6924 = vand.u32 %v282, 4294901760
    %6925 = vmatpush1.msra.mxu0 %v6924
    %6926 = vmatprep.subr.mxu0 0.0
    %v6927 = vand.u32 %v281, 4294901760
    %6928 = vmatpush1.msra.mxu0 %v6927
    %6929 = vmatprep.subr.mxu0 0.0
    %v6930 = vand.u32 %v280, 4294901760
    %6931 = vmatpush1.msra.mxu0 %v6930
    %6932 = vmatprep.subr.mxu0 0.0
    %v6933 = vand.u32 %v279, 4294901760
    %6934 = vmatpush1.msra.mxu0 %v6933
    %6935 = vmatprep.subr.mxu0 0.0
    %v6936 = vand.u32 %v278, 4294901760
    %6937 = vmatpush1.msra.mxu0 %v6936
    %6938 = vmatprep.subr.mxu0 0.0
    %v6939 = vand.u32 %v277, 4294901760
    %6940 = vmatpush1.msra.mxu0 %v6939
    %6941 = vmatprep.subr.mxu0 0.0
    %v6942 = vand.u32 %v276, 4294901760
    %6943 = vmatpush1.msra.mxu0 %v6942
    %6944 = vmatprep.subr.mxu0 0.0
    %v6945 = vand.u32 %v275, 4294901760
    %6946 = vmatpush1.msra.mxu0 %v6945
    %6947 = vmatprep.subr.mxu0 0.0
    %v6948 = vand.u32 %v274, 4294901760
    %6949 = vmatpush1.msra.mxu0 %v6948
    %6950 = vmatprep.subr.mxu0 0.0
    %v6951 = vand.u32 %v273, 4294901760
    %6952 = vmatpush1.msra.mxu0 %v6951
    %6953 = vmatprep.subr.mxu0 0.0
    %v6954 = vand.u32 %v272, 4294901760
    %6955 = vmatpush1.msra.mxu0 %v6954
    %6956 = vmatprep.subr.mxu0 0.0
    %v6957 = vand.u32 %v303, 4294901760
    %6958 = vmatpush2.msra.mxu0 %v6957
    %6959 = vmatprep.subr.mxu0 0.0
    %v6960 = vand.u32 %v302, 4294901760
    %6961 = vmatpush2.msra.mxu0 %v6960
    %6962 = vmatprep.subr.mxu0 0.0
    %v6963 = vand.u32 %v301, 4294901760
    %6964 = vmatpush2.msra.mxu0 %v6963
    %6965 = vmatprep.subr.mxu0 0.0
    %v6966 = vand.u32 %v300, 4294901760
    %6967 = vmatpush2.msra.mxu0 %v6966
    %6968 = vmatprep.subr.mxu0 0.0
    %v6969 = vand.u32 %v299, 4294901760
    %6970 = vmatpush2.msra.mxu0 %v6969
    %6971 = vmatprep.subr.mxu0 0.0
    %v6972 = vand.u32 %v298, 4294901760
    %6973 = vmatpush2.msra.mxu0 %v6972
    %6974 = vmatprep.subr.mxu0 0.0
    %v6975 = vand.u32 %v297, 4294901760
    %6976 = vmatpush2.msra.mxu0 %v6975
    %6977 = vmatprep.subr.mxu0 0.0
    %v6978 = vand.u32 %v296, 4294901760
    %6979 = vmatpush2.msra.mxu0 %v6978
    %6980 = vmatprep.subr.mxu0 0.0
    %v6981 = vand.u32 %v295, 4294901760
    %6982 = vmatpush2.msra.mxu0 %v6981
    %6983 = vmatprep.subr.mxu0 0.0
    %v6984 = vand.u32 %v294, 4294901760
    %6985 = vmatpush2.msra.mxu0 %v6984
    %6986 = vmatprep.subr.mxu0 0.0
    %v6987 = vand.u32 %v293, 4294901760
    %6988 = vmatpush2.msra.mxu0 %v6987
    %6989 = vmatprep.subr.mxu0 0.0
    %v6990 = vand.u32 %v292, 4294901760
    %6991 = vmatpush2.msra.mxu0 %v6990
    %6992 = vmatprep.subr.mxu0 0.0
    %v6993 = vand.u32 %v291, 4294901760
    %6994 = vmatpush2.msra.mxu0 %v6993
    %6995 = vmatprep.subr.mxu0 0.0
    %v6996 = vand.u32 %v290, 4294901760
    %6997 = vmatpush2.msra.mxu0 %v6996
    %6998 = vmatprep.subr.mxu0 0.0
    %v6999 = vand.u32 %v289, 4294901760
    %7000 = vmatpush2.msra.mxu0 %v6999
    %7001 = vmatprep.subr.mxu0 0.0
    %v7002 = vand.u32 %v288, 4294901760
    %7003 = vmatpush2.msra.mxu0 %v7002
    %v7004 = vand.u32 %v3831, 4294901760
    %v7005 = vsub.f32 %v3831, %v7004
    %v7006 = vand.u32 %v7005, 4294901760
    %7007 = vmatprep.mubr.f32.mxu0 %v7006
    %v7008 = vand.u32 %v3829, 4294901760
    %v7009 = vsub.f32 %v3829, %v7008
    %v7010 = vand.u32 %v7009, 4294901760
    %7011 = vmatmul.mubr.f32.gmra.mxu0 %v7010
    %v7012 = vpop.f32.mrf.mxu0
    %v7013 = vadd.f32 %v6905, %v7012
    %v7014 = vpop.f32.mrf.mxu0
    %7015 = vdwg.mxu0
    %7016 = vmatprep.subr.mxu0 0.0
    %v7017 = vand.u32 %v287, 4294901760
    %v7018 = vsub.f32 %v287, %v7017
    %v7019 = vand.u32 %v7018, 4294901760
    %7020 = vmatpush1.msra.mxu0 %v7019
    %7021 = vmatprep.subr.mxu0 0.0
    %v7022 = vand.u32 %v286, 4294901760
    %v7023 = vsub.f32 %v286, %v7022
    %v7024 = vand.u32 %v7023, 4294901760
    %7025 = vmatpush1.msra.mxu0 %v7024
    %7026 = vmatprep.subr.mxu0 0.0
    %v7027 = vand.u32 %v285, 4294901760
    %v7028 = vsub.f32 %v285, %v7027
    %v7029 = vand.u32 %v7028, 4294901760
    %7030 = vmatpush1.msra.mxu0 %v7029
    %7031 = vmatprep.subr.mxu0 0.0
    %v7032 = vand.u32 %v284, 4294901760
    %v7033 = vsub.f32 %v284, %v7032
    %v7034 = vand.u32 %v7033, 4294901760
    %7035 = vmatpush1.msra.mxu0 %v7034
    %7036 = vmatprep.subr.mxu0 0.0
    %v7037 = vand.u32 %v283, 4294901760
    %v7038 = vsub.f32 %v283, %v7037
    %v7039 = vand.u32 %v7038, 4294901760
    %7040 = vmatpush1.msra.mxu0 %v7039
    %7041 = vmatprep.subr.mxu0 0.0
    %v7042 = vand.u32 %v282, 4294901760
    %v7043 = vsub.f32 %v282, %v7042
    %v7044 = vand.u32 %v7043, 4294901760
    %7045 = vmatpush1.msra.mxu0 %v7044
    %7046 = vmatprep.subr.mxu0 0.0
    %v7047 = vand.u32 %v281, 4294901760
    %v7048 = vsub.f32 %v281, %v7047
    %v7049 = vand.u32 %v7048, 4294901760
    %7050 = vmatpush1.msra.mxu0 %v7049
    %7051 = vmatprep.subr.mxu0 0.0
    %v7052 = vand.u32 %v280, 4294901760
    %v7053 = vsub.f32 %v280, %v7052
    %v7054 = vand.u32 %v7053, 4294901760
    %7055 = vmatpush1.msra.mxu0 %v7054
    %7056 = vmatprep.subr.mxu0 0.0
    %v7057 = vand.u32 %v279, 4294901760
    %v7058 = vsub.f32 %v279, %v7057
    %v7059 = vand.u32 %v7058, 4294901760
    %7060 = vmatpush1.msra.mxu0 %v7059
    %7061 = vmatprep.subr.mxu0 0.0
    %v7062 = vand.u32 %v278, 4294901760
    %v7063 = vsub.f32 %v278, %v7062
    %v7064 = vand.u32 %v7063, 4294901760
    %7065 = vmatpush1.msra.mxu0 %v7064
    %7066 = vmatprep.subr.mxu0 0.0
    %v7067 = vand.u32 %v277, 4294901760
    %v7068 = vsub.f32 %v277, %v7067
    %v7069 = vand.u32 %v7068, 4294901760
    %7070 = vmatpush1.msra.mxu0 %v7069
    %7071 = vmatprep.subr.mxu0 0.0
    %v7072 = vand.u32 %v276, 4294901760
    %v7073 = vsub.f32 %v276, %v7072
    %v7074 = vand.u32 %v7073, 4294901760
    %7075 = vmatpush1.msra.mxu0 %v7074
    %7076 = vmatprep.subr.mxu0 0.0
    %v7077 = vand.u32 %v275, 4294901760
    %v7078 = vsub.f32 %v275, %v7077
    %v7079 = vand.u32 %v7078, 4294901760
    %7080 = vmatpush1.msra.mxu0 %v7079
    %7081 = vmatprep.subr.mxu0 0.0
    %v7082 = vand.u32 %v274, 4294901760
    %v7083 = vsub.f32 %v274, %v7082
    %v7084 = vand.u32 %v7083, 4294901760
    %7085 = vmatpush1.msra.mxu0 %v7084
    %7086 = vmatprep.subr.mxu0 0.0
    %v7087 = vand.u32 %v273, 4294901760
    %v7088 = vsub.f32 %v273, %v7087
    %v7089 = vand.u32 %v7088, 4294901760
    %7090 = vmatpush1.msra.mxu0 %v7089
    %7091 = vmatprep.subr.mxu0 0.0
    %v7092 = vand.u32 %v272, 4294901760
    %v7093 = vsub.f32 %v272, %v7092
    %v7094 = vand.u32 %v7093, 4294901760
    %7095 = vmatpush1.msra.mxu0 %v7094
    %7096 = vmatprep.subr.mxu0 0.0
    %v7097 = vand.u32 %v303, 4294901760
    %v7098 = vsub.f32 %v303, %v7097
    %v7099 = vand.u32 %v7098, 4294901760
    %7100 = vmatpush2.msra.mxu0 %v7099
    %7101 = vmatprep.subr.mxu0 0.0
    %v7102 = vand.u32 %v302, 4294901760
    %v7103 = vsub.f32 %v302, %v7102
    %v7104 = vand.u32 %v7103, 4294901760
    %7105 = vmatpush2.msra.mxu0 %v7104
    %7106 = vmatprep.subr.mxu0 0.0
    %v7107 = vand.u32 %v301, 4294901760
    %v7108 = vsub.f32 %v301, %v7107
    %v7109 = vand.u32 %v7108, 4294901760
    %7110 = vmatpush2.msra.mxu0 %v7109
    %7111 = vmatprep.subr.mxu0 0.0
    %v7112 = vand.u32 %v300, 4294901760
    %v7113 = vsub.f32 %v300, %v7112
    %v7114 = vand.u32 %v7113, 4294901760
    %7115 = vmatpush2.msra.mxu0 %v7114
    %7116 = vmatprep.subr.mxu0 0.0
    %v7117 = vand.u32 %v299, 4294901760
    %v7118 = vsub.f32 %v299, %v7117
    %v7119 = vand.u32 %v7118, 4294901760
    %7120 = vmatpush2.msra.mxu0 %v7119
    %7121 = vmatprep.subr.mxu0 0.0
    %v7122 = vand.u32 %v298, 4294901760
    %v7123 = vsub.f32 %v298, %v7122
    %v7124 = vand.u32 %v7123, 4294901760
    %7125 = vmatpush2.msra.mxu0 %v7124
    %7126 = vmatprep.subr.mxu0 0.0
    %v7127 = vand.u32 %v297, 4294901760
    %v7128 = vsub.f32 %v297, %v7127
    %v7129 = vand.u32 %v7128, 4294901760
    %7130 = vmatpush2.msra.mxu0 %v7129
    %7131 = vmatprep.subr.mxu0 0.0
    %v7132 = vand.u32 %v296, 4294901760
    %v7133 = vsub.f32 %v296, %v7132
    %v7134 = vand.u32 %v7133, 4294901760
    %7135 = vmatpush2.msra.mxu0 %v7134
    %7136 = vmatprep.subr.mxu0 0.0
    %v7137 = vand.u32 %v295, 4294901760
    %v7138 = vsub.f32 %v295, %v7137
    %v7139 = vand.u32 %v7138, 4294901760
    %7140 = vmatpush2.msra.mxu0 %v7139
    %7141 = vmatprep.subr.mxu0 0.0
    %v7142 = vand.u32 %v294, 4294901760
    %v7143 = vsub.f32 %v294, %v7142
    %v7144 = vand.u32 %v7143, 4294901760
    %7145 = vmatpush2.msra.mxu0 %v7144
    %7146 = vmatprep.subr.mxu0 0.0
    %v7147 = vand.u32 %v293, 4294901760
    %v7148 = vsub.f32 %v293, %v7147
    %v7149 = vand.u32 %v7148, 4294901760
    %7150 = vmatpush2.msra.mxu0 %v7149
    %7151 = vmatprep.subr.mxu0 0.0
    %v7152 = vand.u32 %v292, 4294901760
    %v7153 = vsub.f32 %v292, %v7152
    %v7154 = vand.u32 %v7153, 4294901760
    %7155 = vmatpush2.msra.mxu0 %v7154
    %7156 = vmatprep.subr.mxu0 0.0
    %v7157 = vand.u32 %v291, 4294901760
    %v7158 = vsub.f32 %v291, %v7157
    %v7159 = vand.u32 %v7158, 4294901760
    %7160 = vmatpush2.msra.mxu0 %v7159
    %7161 = vmatprep.subr.mxu0 0.0
    %v7162 = vand.u32 %v290, 4294901760
    %v7163 = vsub.f32 %v290, %v7162
    %v7164 = vand.u32 %v7163, 4294901760
    %7165 = vmatpush2.msra.mxu0 %v7164
    %7166 = vmatprep.subr.mxu0 0.0
    %v7167 = vand.u32 %v289, 4294901760
    %v7168 = vsub.f32 %v289, %v7167
    %v7169 = vand.u32 %v7168, 4294901760
    %7170 = vmatpush2.msra.mxu0 %v7169
    %7171 = vmatprep.subr.mxu0 0.0
    %v7172 = vand.u32 %v288, 4294901760
    %v7173 = vsub.f32 %v288, %v7172
    %v7174 = vand.u32 %v7173, 4294901760
    %7175 = vmatpush2.msra.mxu0 %v7174
    %v7176 = vand.u32 %v3831, 4294901760
    %7177 = vmatprep.mubr.f32.mxu0 %v7176
    %v7178 = vand.u32 %v3829, 4294901760
    %7179 = vmatmul.mubr.f32.gmra.mxu0 %v7178
    %v7180 = vpop.f32.mrf.mxu0
    %v7181 = vadd.f32 %v7013, %v7180
    %v7182 = vpop.f32.mrf.mxu0
    %7183 = vdwg.mxu0
    %7184 = vmatprep.subr.mxu0 0.0
    %v7185 = vand.u32 %v287, 4294901760
    %7186 = vmatpush1.msra.mxu0 %v7185
    %7187 = vmatprep.subr.mxu0 0.0
    %v7188 = vand.u32 %v286, 4294901760
    %7189 = vmatpush1.msra.mxu0 %v7188
    %7190 = vmatprep.subr.mxu0 0.0
    %v7191 = vand.u32 %v285, 4294901760
    %7192 = vmatpush1.msra.mxu0 %v7191
    %7193 = vmatprep.subr.mxu0 0.0
    %v7194 = vand.u32 %v284, 4294901760
    %7195 = vmatpush1.msra.mxu0 %v7194
    %7196 = vmatprep.subr.mxu0 0.0
    %v7197 = vand.u32 %v283, 4294901760
    %7198 = vmatpush1.msra.mxu0 %v7197
    %7199 = vmatprep.subr.mxu0 0.0
    %v7200 = vand.u32 %v282, 4294901760
    %7201 = vmatpush1.msra.mxu0 %v7200
    %7202 = vmatprep.subr.mxu0 0.0
    %v7203 = vand.u32 %v281, 4294901760
    %7204 = vmatpush1.msra.mxu0 %v7203
    %7205 = vmatprep.subr.mxu0 0.0
    %v7206 = vand.u32 %v280, 4294901760
    %7207 = vmatpush1.msra.mxu0 %v7206
    %7208 = vmatprep.subr.mxu0 0.0
    %v7209 = vand.u32 %v279, 4294901760
    %7210 = vmatpush1.msra.mxu0 %v7209
    %7211 = vmatprep.subr.mxu0 0.0
    %v7212 = vand.u32 %v278, 4294901760
    %7213 = vmatpush1.msra.mxu0 %v7212
    %7214 = vmatprep.subr.mxu0 0.0
    %v7215 = vand.u32 %v277, 4294901760
    %7216 = vmatpush1.msra.mxu0 %v7215
    %7217 = vmatprep.subr.mxu0 0.0
    %v7218 = vand.u32 %v276, 4294901760
    %7219 = vmatpush1.msra.mxu0 %v7218
    %7220 = vmatprep.subr.mxu0 0.0
    %v7221 = vand.u32 %v275, 4294901760
    %7222 = vmatpush1.msra.mxu0 %v7221
    %7223 = vmatprep.subr.mxu0 0.0
    %v7224 = vand.u32 %v274, 4294901760
    %7225 = vmatpush1.msra.mxu0 %v7224
    %7226 = vmatprep.subr.mxu0 0.0
    %v7227 = vand.u32 %v273, 4294901760
    %7228 = vmatpush1.msra.mxu0 %v7227
    %7229 = vmatprep.subr.mxu0 0.0
    %v7230 = vand.u32 %v272, 4294901760
    %7231 = vmatpush1.msra.mxu0 %v7230
    %7232 = vmatprep.subr.mxu0 0.0
    %v7233 = vand.u32 %v303, 4294901760
    %7234 = vmatpush2.msra.mxu0 %v7233
    %7235 = vmatprep.subr.mxu0 0.0
    %v7236 = vand.u32 %v302, 4294901760
    %7237 = vmatpush2.msra.mxu0 %v7236
    %7238 = vmatprep.subr.mxu0 0.0
    %v7239 = vand.u32 %v301, 4294901760
    %7240 = vmatpush2.msra.mxu0 %v7239
    %7241 = vmatprep.subr.mxu0 0.0
    %v7242 = vand.u32 %v300, 4294901760
    %7243 = vmatpush2.msra.mxu0 %v7242
    %7244 = vmatprep.subr.mxu0 0.0
    %v7245 = vand.u32 %v299, 4294901760
    %7246 = vmatpush2.msra.mxu0 %v7245
    %7247 = vmatprep.subr.mxu0 0.0
    %v7248 = vand.u32 %v298, 4294901760
    %7249 = vmatpush2.msra.mxu0 %v7248
    %7250 = vmatprep.subr.mxu0 0.0
    %v7251 = vand.u32 %v297, 4294901760
    %7252 = vmatpush2.msra.mxu0 %v7251
    %7253 = vmatprep.subr.mxu0 0.0
    %v7254 = vand.u32 %v296, 4294901760
    %7255 = vmatpush2.msra.mxu0 %v7254
    %7256 = vmatprep.subr.mxu0 0.0
    %v7257 = vand.u32 %v295, 4294901760
    %7258 = vmatpush2.msra.mxu0 %v7257
    %7259 = vmatprep.subr.mxu0 0.0
    %v7260 = vand.u32 %v294, 4294901760
    %7261 = vmatpush2.msra.mxu0 %v7260
    %7262 = vmatprep.subr.mxu0 0.0
    %v7263 = vand.u32 %v293, 4294901760
    %7264 = vmatpush2.msra.mxu0 %v7263
    %7265 = vmatprep.subr.mxu0 0.0
    %v7266 = vand.u32 %v292, 4294901760
    %7267 = vmatpush2.msra.mxu0 %v7266
    %7268 = vmatprep.subr.mxu0 0.0
    %v7269 = vand.u32 %v291, 4294901760
    %7270 = vmatpush2.msra.mxu0 %v7269
    %7271 = vmatprep.subr.mxu0 0.0
    %v7272 = vand.u32 %v290, 4294901760
    %7273 = vmatpush2.msra.mxu0 %v7272
    %7274 = vmatprep.subr.mxu0 0.0
    %v7275 = vand.u32 %v289, 4294901760
    %7276 = vmatpush2.msra.mxu0 %v7275
    %7277 = vmatprep.subr.mxu0 0.0
    %v7278 = vand.u32 %v288, 4294901760
    %7279 = vmatpush2.msra.mxu0 %v7278
    %v7280 = vand.u32 %v3831, 4294901760
    %7281 = vmatprep.mubr.f32.mxu0 %v7280
    %v7282 = vand.u32 %v3829, 4294901760
    %7283 = vmatmul.mubr.f32.gmra.mxu0 %v7282
    %v7284 = vpop.f32.mrf.mxu0
    %v7285 = vadd.f32 %v7181, %v7284
    %v7286 = vpop.f32.mrf.mxu0
    %7287 = vdwg.mxu0
    %v7290 = vcombine.high %v174, %v174
    %v7292 = vunpack.c.l.s4 1983009808
    %v7293 = vunpack.c.0.s8 %v7292
    %v7294 = vlaneseq
    %v7295 = vshrl.u32 %v7294, 7
    %v7296 = vsub.s32 %v7293, %v7295
    %v7297 = vrot.slane %v174, %v7296
    %v7299 = vunpack.c.l.s4 1983009808
    %v7300 = vunpack.c.0.s8 %v7299
    %v7301 = vlaneseq
    %v7302 = vshrl.u32 %v7301, 7
    %v7303 = vsub.s32 %v7300, %v7302
    %v7304 = vrot.slane %v7290, %v7303
    %v7305 = vcombine.high %v7297, %v7297
    %v7306 = vcombine.high %v7304, %v7304
    %v7307 = vcombine.high %v175, %v175
    %v7309 = vunpack.c.l.s4 1983009808
    %v7310 = vunpack.c.0.s8 %v7309
    %v7311 = vlaneseq
    %v7312 = vshrl.u32 %v7311, 7
    %v7313 = vsub.s32 %v7310, %v7312
    %v7314 = vrot.slane %v175, %v7313
    %v7316 = vunpack.c.l.s4 1983009808
    %v7317 = vunpack.c.0.s8 %v7316
    %v7318 = vlaneseq
    %v7319 = vshrl.u32 %v7318, 7
    %v7320 = vsub.s32 %v7317, %v7319
    %v7321 = vrot.slane %v7307, %v7320
    %v7322 = vcombine.high %v7314, %v7314
    %v7323 = vcombine.high %v7321, %v7321
    %7332 = vmatprep.subr.mxu0 0.0
    %v7333 = vand.u32 %v191, 4294901760
    %7334 = vmatpush1.msra.mxu0 %v7333
    %7335 = vmatprep.subr.mxu0 0.0
    %v7336 = vand.u32 %v190, 4294901760
    %7337 = vmatpush1.msra.mxu0 %v7336
    %7338 = vmatprep.subr.mxu0 0.0
    %v7339 = vand.u32 %v189, 4294901760
    %7340 = vmatpush1.msra.mxu0 %v7339
    %7341 = vmatprep.subr.mxu0 0.0
    %v7342 = vand.u32 %v188, 4294901760
    %7343 = vmatpush1.msra.mxu0 %v7342
    %7344 = vmatprep.subr.mxu0 0.0
    %v7345 = vand.u32 %v187, 4294901760
    %7346 = vmatpush1.msra.mxu0 %v7345
    %7347 = vmatprep.subr.mxu0 0.0
    %v7348 = vand.u32 %v186, 4294901760
    %7349 = vmatpush1.msra.mxu0 %v7348
    %7350 = vmatprep.subr.mxu0 0.0
    %v7351 = vand.u32 %v185, 4294901760
    %7352 = vmatpush1.msra.mxu0 %v7351
    %7353 = vmatprep.subr.mxu0 0.0
    %v7354 = vand.u32 %v184, 4294901760
    %7355 = vmatpush1.msra.mxu0 %v7354
    %7356 = vmatprep.subr.mxu0 0.0
    %v7357 = vand.u32 %v183, 4294901760
    %7358 = vmatpush1.msra.mxu0 %v7357
    %7359 = vmatprep.subr.mxu0 0.0
    %v7360 = vand.u32 %v182, 4294901760
    %7361 = vmatpush1.msra.mxu0 %v7360
    %7362 = vmatprep.subr.mxu0 0.0
    %v7363 = vand.u32 %v181, 4294901760
    %7364 = vmatpush1.msra.mxu0 %v7363
    %7365 = vmatprep.subr.mxu0 0.0
    %v7366 = vand.u32 %v180, 4294901760
    %7367 = vmatpush1.msra.mxu0 %v7366
    %7368 = vmatprep.subr.mxu0 0.0
    %v7369 = vand.u32 %v179, 4294901760
    %7370 = vmatpush1.msra.mxu0 %v7369
    %7371 = vmatprep.subr.mxu0 0.0
    %v7372 = vand.u32 %v178, 4294901760
    %7373 = vmatpush1.msra.mxu0 %v7372
    %7374 = vmatprep.subr.mxu0 0.0
    %v7375 = vand.u32 %v177, 4294901760
    %7376 = vmatpush1.msra.mxu0 %v7375
    %7377 = vmatprep.subr.mxu0 0.0
    %v7378 = vand.u32 %v176, 4294901760
    %7379 = vmatpush1.msra.mxu0 %v7378
    %7380 = vmatprep.subr.mxu0 0.0
    %v7381 = vand.u32 %v207, 4294901760
    %7382 = vmatpush2.msra.mxu0 %v7381
    %7383 = vmatprep.subr.mxu0 0.0
    %v7384 = vand.u32 %v206, 4294901760
    %7385 = vmatpush2.msra.mxu0 %v7384
    %7386 = vmatprep.subr.mxu0 0.0
    %v7387 = vand.u32 %v205, 4294901760
    %7388 = vmatpush2.msra.mxu0 %v7387
    %7389 = vmatprep.subr.mxu0 0.0
    %v7390 = vand.u32 %v204, 4294901760
    %7391 = vmatpush2.msra.mxu0 %v7390
    %7392 = vmatprep.subr.mxu0 0.0
    %v7393 = vand.u32 %v203, 4294901760
    %7394 = vmatpush2.msra.mxu0 %v7393
    %7395 = vmatprep.subr.mxu0 0.0
    %v7396 = vand.u32 %v202, 4294901760
    %7397 = vmatpush2.msra.mxu0 %v7396
    %7398 = vmatprep.subr.mxu0 0.0
    %v7399 = vand.u32 %v201, 4294901760
    %7400 = vmatpush2.msra.mxu0 %v7399
    %7401 = vmatprep.subr.mxu0 0.0
    %v7402 = vand.u32 %v200, 4294901760
    %7403 = vmatpush2.msra.mxu0 %v7402
    %7404 = vmatprep.subr.mxu0 0.0
    %v7405 = vand.u32 %v199, 4294901760
    %7406 = vmatpush2.msra.mxu0 %v7405
    %7407 = vmatprep.subr.mxu0 0.0
    %v7408 = vand.u32 %v198, 4294901760
    %7409 = vmatpush2.msra.mxu0 %v7408
    %7410 = vmatprep.subr.mxu0 0.0
    %v7411 = vand.u32 %v197, 4294901760
    %7412 = vmatpush2.msra.mxu0 %v7411
    %7413 = vmatprep.subr.mxu0 0.0
    %v7414 = vand.u32 %v196, 4294901760
    %7415 = vmatpush2.msra.mxu0 %v7414
    %7416 = vmatprep.subr.mxu0 0.0
    %v7417 = vand.u32 %v195, 4294901760
    %7418 = vmatpush2.msra.mxu0 %v7417
    %7419 = vmatprep.subr.mxu0 0.0
    %v7420 = vand.u32 %v194, 4294901760
    %7421 = vmatpush2.msra.mxu0 %v7420
    %7422 = vmatprep.subr.mxu0 0.0
    %v7423 = vand.u32 %v193, 4294901760
    %7424 = vmatpush2.msra.mxu0 %v7423
    %7425 = vmatprep.subr.mxu0 0.0
    %v7426 = vand.u32 %v192, 4294901760
    %7427 = vmatpush2.msra.mxu0 %v7426
    %v7428 = vand.u32 %v7305, 4294901760
    %v7429 = vsub.f32 %v7305, %v7428
    %v7430 = vand.u32 %v7429, 4294901760
    %v7431 = vsub.f32 %v7429, %v7430
    %v7432 = vand.u32 %v7431, 4294901760
    %7433 = vmatprep.mubr.f32.mxu0 %v7432
    %v7434 = vand.u32 %v7297, 4294901760
    %v7435 = vsub.f32 %v7297, %v7434
    %v7436 = vand.u32 %v7435, 4294901760
    %v7437 = vsub.f32 %v7435, %v7436
    %v7438 = vand.u32 %v7437, 4294901760
    %7439 = vmatmul.mubr.f32.gmra.mxu0 %v7438
    %v7440 = vpop.f32.mrf.mxu0
    %v7441 = vadd.f32 0.0, %v7440
    %v7442 = vpop.f32.mrf.mxu0
    %7443 = vdwg.mxu0
    %7444 = vmatprep.subr.mxu0 0.0
    %v7445 = vand.u32 %v191, 4294901760
    %v7446 = vsub.f32 %v191, %v7445
    %v7447 = vand.u32 %v7446, 4294901760
    %v7448 = vsub.f32 %v7446, %v7447
    %v7449 = vand.u32 %v7448, 4294901760
    %7450 = vmatpush1.msra.mxu0 %v7449
    %7451 = vmatprep.subr.mxu0 0.0
    %v7452 = vand.u32 %v190, 4294901760
    %v7453 = vsub.f32 %v190, %v7452
    %v7454 = vand.u32 %v7453, 4294901760
    %v7455 = vsub.f32 %v7453, %v7454
    %v7456 = vand.u32 %v7455, 4294901760
    %7457 = vmatpush1.msra.mxu0 %v7456
    %7458 = vmatprep.subr.mxu0 0.0
    %v7459 = vand.u32 %v189, 4294901760
    %v7460 = vsub.f32 %v189, %v7459
    %v7461 = vand.u32 %v7460, 4294901760
    %v7462 = vsub.f32 %v7460, %v7461
    %v7463 = vand.u32 %v7462, 4294901760
    %7464 = vmatpush1.msra.mxu0 %v7463
    %7465 = vmatprep.subr.mxu0 0.0
    %v7466 = vand.u32 %v188, 4294901760
    %v7467 = vsub.f32 %v188, %v7466
    %v7468 = vand.u32 %v7467, 4294901760
    %v7469 = vsub.f32 %v7467, %v7468
    %v7470 = vand.u32 %v7469, 4294901760
    %7471 = vmatpush1.msra.mxu0 %v7470
    %7472 = vmatprep.subr.mxu0 0.0
    %v7473 = vand.u32 %v187, 4294901760
    %v7474 = vsub.f32 %v187, %v7473
    %v7475 = vand.u32 %v7474, 4294901760
    %v7476 = vsub.f32 %v7474, %v7475
    %v7477 = vand.u32 %v7476, 4294901760
    %7478 = vmatpush1.msra.mxu0 %v7477
    %7479 = vmatprep.subr.mxu0 0.0
    %v7480 = vand.u32 %v186, 4294901760
    %v7481 = vsub.f32 %v186, %v7480
    %v7482 = vand.u32 %v7481, 4294901760
    %v7483 = vsub.f32 %v7481, %v7482
    %v7484 = vand.u32 %v7483, 4294901760
    %7485 = vmatpush1.msra.mxu0 %v7484
    %7486 = vmatprep.subr.mxu0 0.0
    %v7487 = vand.u32 %v185, 4294901760
    %v7488 = vsub.f32 %v185, %v7487
    %v7489 = vand.u32 %v7488, 4294901760
    %v7490 = vsub.f32 %v7488, %v7489
    %v7491 = vand.u32 %v7490, 4294901760
    %7492 = vmatpush1.msra.mxu0 %v7491
    %7493 = vmatprep.subr.mxu0 0.0
    %v7494 = vand.u32 %v184, 4294901760
    %v7495 = vsub.f32 %v184, %v7494
    %v7496 = vand.u32 %v7495, 4294901760
    %v7497 = vsub.f32 %v7495, %v7496
    %v7498 = vand.u32 %v7497, 4294901760
    %7499 = vmatpush1.msra.mxu0 %v7498
    %7500 = vmatprep.subr.mxu0 0.0
    %v7501 = vand.u32 %v183, 4294901760
    %v7502 = vsub.f32 %v183, %v7501
    %v7503 = vand.u32 %v7502, 4294901760
    %v7504 = vsub.f32 %v7502, %v7503
    %v7505 = vand.u32 %v7504, 4294901760
    %7506 = vmatpush1.msra.mxu0 %v7505
    %7507 = vmatprep.subr.mxu0 0.0
    %v7508 = vand.u32 %v182, 4294901760
    %v7509 = vsub.f32 %v182, %v7508
    %v7510 = vand.u32 %v7509, 4294901760
    %v7511 = vsub.f32 %v7509, %v7510
    %v7512 = vand.u32 %v7511, 4294901760
    %7513 = vmatpush1.msra.mxu0 %v7512
    %7514 = vmatprep.subr.mxu0 0.0
    %v7515 = vand.u32 %v181, 4294901760
    %v7516 = vsub.f32 %v181, %v7515
    %v7517 = vand.u32 %v7516, 4294901760
    %v7518 = vsub.f32 %v7516, %v7517
    %v7519 = vand.u32 %v7518, 4294901760
    %7520 = vmatpush1.msra.mxu0 %v7519
    %7521 = vmatprep.subr.mxu0 0.0
    %v7522 = vand.u32 %v180, 4294901760
    %v7523 = vsub.f32 %v180, %v7522
    %v7524 = vand.u32 %v7523, 4294901760
    %v7525 = vsub.f32 %v7523, %v7524
    %v7526 = vand.u32 %v7525, 4294901760
    %7527 = vmatpush1.msra.mxu0 %v7526
    %7528 = vmatprep.subr.mxu0 0.0
    %v7529 = vand.u32 %v179, 4294901760
    %v7530 = vsub.f32 %v179, %v7529
    %v7531 = vand.u32 %v7530, 4294901760
    %v7532 = vsub.f32 %v7530, %v7531
    %v7533 = vand.u32 %v7532, 4294901760
    %7534 = vmatpush1.msra.mxu0 %v7533
    %7535 = vmatprep.subr.mxu0 0.0
    %v7536 = vand.u32 %v178, 4294901760
    %v7537 = vsub.f32 %v178, %v7536
    %v7538 = vand.u32 %v7537, 4294901760
    %v7539 = vsub.f32 %v7537, %v7538
    %v7540 = vand.u32 %v7539, 4294901760
    %7541 = vmatpush1.msra.mxu0 %v7540
    %7542 = vmatprep.subr.mxu0 0.0
    %v7543 = vand.u32 %v177, 4294901760
    %v7544 = vsub.f32 %v177, %v7543
    %v7545 = vand.u32 %v7544, 4294901760
    %v7546 = vsub.f32 %v7544, %v7545
    %v7547 = vand.u32 %v7546, 4294901760
    %7548 = vmatpush1.msra.mxu0 %v7547
    %7549 = vmatprep.subr.mxu0 0.0
    %v7550 = vand.u32 %v176, 4294901760
    %v7551 = vsub.f32 %v176, %v7550
    %v7552 = vand.u32 %v7551, 4294901760
    %v7553 = vsub.f32 %v7551, %v7552
    %v7554 = vand.u32 %v7553, 4294901760
    %7555 = vmatpush1.msra.mxu0 %v7554
    %7556 = vmatprep.subr.mxu0 0.0
    %v7557 = vand.u32 %v207, 4294901760
    %v7558 = vsub.f32 %v207, %v7557
    %v7559 = vand.u32 %v7558, 4294901760
    %v7560 = vsub.f32 %v7558, %v7559
    %v7561 = vand.u32 %v7560, 4294901760
    %7562 = vmatpush2.msra.mxu0 %v7561
    %7563 = vmatprep.subr.mxu0 0.0
    %v7564 = vand.u32 %v206, 4294901760
    %v7565 = vsub.f32 %v206, %v7564
    %v7566 = vand.u32 %v7565, 4294901760
    %v7567 = vsub.f32 %v7565, %v7566
    %v7568 = vand.u32 %v7567, 4294901760
    %7569 = vmatpush2.msra.mxu0 %v7568
    %7570 = vmatprep.subr.mxu0 0.0
    %v7571 = vand.u32 %v205, 4294901760
    %v7572 = vsub.f32 %v205, %v7571
    %v7573 = vand.u32 %v7572, 4294901760
    %v7574 = vsub.f32 %v7572, %v7573
    %v7575 = vand.u32 %v7574, 4294901760
    %7576 = vmatpush2.msra.mxu0 %v7575
    %7577 = vmatprep.subr.mxu0 0.0
    %v7578 = vand.u32 %v204, 4294901760
    %v7579 = vsub.f32 %v204, %v7578
    %v7580 = vand.u32 %v7579, 4294901760
    %v7581 = vsub.f32 %v7579, %v7580
    %v7582 = vand.u32 %v7581, 4294901760
    %7583 = vmatpush2.msra.mxu0 %v7582
    %7584 = vmatprep.subr.mxu0 0.0
    %v7585 = vand.u32 %v203, 4294901760
    %v7586 = vsub.f32 %v203, %v7585
    %v7587 = vand.u32 %v7586, 4294901760
    %v7588 = vsub.f32 %v7586, %v7587
    %v7589 = vand.u32 %v7588, 4294901760
    %7590 = vmatpush2.msra.mxu0 %v7589
    %7591 = vmatprep.subr.mxu0 0.0
    %v7592 = vand.u32 %v202, 4294901760
    %v7593 = vsub.f32 %v202, %v7592
    %v7594 = vand.u32 %v7593, 4294901760
    %v7595 = vsub.f32 %v7593, %v7594
    %v7596 = vand.u32 %v7595, 4294901760
    %7597 = vmatpush2.msra.mxu0 %v7596
    %7598 = vmatprep.subr.mxu0 0.0
    %v7599 = vand.u32 %v201, 4294901760
    %v7600 = vsub.f32 %v201, %v7599
    %v7601 = vand.u32 %v7600, 4294901760
    %v7602 = vsub.f32 %v7600, %v7601
    %v7603 = vand.u32 %v7602, 4294901760
    %7604 = vmatpush2.msra.mxu0 %v7603
    %7605 = vmatprep.subr.mxu0 0.0
    %v7606 = vand.u32 %v200, 4294901760
    %v7607 = vsub.f32 %v200, %v7606
    %v7608 = vand.u32 %v7607, 4294901760
    %v7609 = vsub.f32 %v7607, %v7608
    %v7610 = vand.u32 %v7609, 4294901760
    %7611 = vmatpush2.msra.mxu0 %v7610
    %7612 = vmatprep.subr.mxu0 0.0
    %v7613 = vand.u32 %v199, 4294901760
    %v7614 = vsub.f32 %v199, %v7613
    %v7615 = vand.u32 %v7614, 4294901760
    %v7616 = vsub.f32 %v7614, %v7615
    %v7617 = vand.u32 %v7616, 4294901760
    %7618 = vmatpush2.msra.mxu0 %v7617
    %7619 = vmatprep.subr.mxu0 0.0
    %v7620 = vand.u32 %v198, 4294901760
    %v7621 = vsub.f32 %v198, %v7620
    %v7622 = vand.u32 %v7621, 4294901760
    %v7623 = vsub.f32 %v7621, %v7622
    %v7624 = vand.u32 %v7623, 4294901760
    %7625 = vmatpush2.msra.mxu0 %v7624
    %7626 = vmatprep.subr.mxu0 0.0
    %v7627 = vand.u32 %v197, 4294901760
    %v7628 = vsub.f32 %v197, %v7627
    %v7629 = vand.u32 %v7628, 4294901760
    %v7630 = vsub.f32 %v7628, %v7629
    %v7631 = vand.u32 %v7630, 4294901760
    %7632 = vmatpush2.msra.mxu0 %v7631
    %7633 = vmatprep.subr.mxu0 0.0
    %v7634 = vand.u32 %v196, 4294901760
    %v7635 = vsub.f32 %v196, %v7634
    %v7636 = vand.u32 %v7635, 4294901760
    %v7637 = vsub.f32 %v7635, %v7636
    %v7638 = vand.u32 %v7637, 4294901760
    %7639 = vmatpush2.msra.mxu0 %v7638
    %7640 = vmatprep.subr.mxu0 0.0
    %v7641 = vand.u32 %v195, 4294901760
    %v7642 = vsub.f32 %v195, %v7641
    %v7643 = vand.u32 %v7642, 4294901760
    %v7644 = vsub.f32 %v7642, %v7643
    %v7645 = vand.u32 %v7644, 4294901760
    %7646 = vmatpush2.msra.mxu0 %v7645
    %7647 = vmatprep.subr.mxu0 0.0
    %v7648 = vand.u32 %v194, 4294901760
    %v7649 = vsub.f32 %v194, %v7648
    %v7650 = vand.u32 %v7649, 4294901760
    %v7651 = vsub.f32 %v7649, %v7650
    %v7652 = vand.u32 %v7651, 4294901760
    %7653 = vmatpush2.msra.mxu0 %v7652
    %7654 = vmatprep.subr.mxu0 0.0
    %v7655 = vand.u32 %v193, 4294901760
    %v7656 = vsub.f32 %v193, %v7655
    %v7657 = vand.u32 %v7656, 4294901760
    %v7658 = vsub.f32 %v7656, %v7657
    %v7659 = vand.u32 %v7658, 4294901760
    %7660 = vmatpush2.msra.mxu0 %v7659
    %7661 = vmatprep.subr.mxu0 0.0
    %v7662 = vand.u32 %v192, 4294901760
    %v7663 = vsub.f32 %v192, %v7662
    %v7664 = vand.u32 %v7663, 4294901760
    %v7665 = vsub.f32 %v7663, %v7664
    %v7666 = vand.u32 %v7665, 4294901760
    %7667 = vmatpush2.msra.mxu0 %v7666
    %v7668 = vand.u32 %v7305, 4294901760
    %7669 = vmatprep.mubr.f32.mxu0 %v7668
    %v7670 = vand.u32 %v7297, 4294901760
    %7671 = vmatmul.mubr.f32.gmra.mxu0 %v7670
    %v7672 = vpop.f32.mrf.mxu0
    %v7673 = vadd.f32 %v7441, %v7672
    %v7674 = vpop.f32.mrf.mxu0
    %7675 = vdwg.mxu0
    %7676 = vmatprep.subr.mxu0 0.0
    %v7677 = vand.u32 %v191, 4294901760
    %v7678 = vsub.f32 %v191, %v7677
    %7679 = vmatpush1.msra.mxu0 %v7678
    %7680 = vmatprep.subr.mxu0 0.0
    %v7681 = vand.u32 %v190, 4294901760
    %v7682 = vsub.f32 %v190, %v7681
    %7683 = vmatpush1.msra.mxu0 %v7682
    %7684 = vmatprep.subr.mxu0 0.0
    %v7685 = vand.u32 %v189, 4294901760
    %v7686 = vsub.f32 %v189, %v7685
    %7687 = vmatpush1.msra.mxu0 %v7686
    %7688 = vmatprep.subr.mxu0 0.0
    %v7689 = vand.u32 %v188, 4294901760
    %v7690 = vsub.f32 %v188, %v7689
    %7691 = vmatpush1.msra.mxu0 %v7690
    %7692 = vmatprep.subr.mxu0 0.0
    %v7693 = vand.u32 %v187, 4294901760
    %v7694 = vsub.f32 %v187, %v7693
    %7695 = vmatpush1.msra.mxu0 %v7694
    %7696 = vmatprep.subr.mxu0 0.0
    %v7697 = vand.u32 %v186, 4294901760
    %v7698 = vsub.f32 %v186, %v7697
    %7699 = vmatpush1.msra.mxu0 %v7698
    %7700 = vmatprep.subr.mxu0 0.0
    %v7701 = vand.u32 %v185, 4294901760
    %v7702 = vsub.f32 %v185, %v7701
    %7703 = vmatpush1.msra.mxu0 %v7702
    %7704 = vmatprep.subr.mxu0 0.0
    %v7705 = vand.u32 %v184, 4294901760
    %v7706 = vsub.f32 %v184, %v7705
    %7707 = vmatpush1.msra.mxu0 %v7706
    %7708 = vmatprep.subr.mxu0 0.0
    %v7709 = vand.u32 %v183, 4294901760
    %v7710 = vsub.f32 %v183, %v7709
    %7711 = vmatpush1.msra.mxu0 %v7710
    %7712 = vmatprep.subr.mxu0 0.0
    %v7713 = vand.u32 %v182, 4294901760
    %v7714 = vsub.f32 %v182, %v7713
    %7715 = vmatpush1.msra.mxu0 %v7714
    %7716 = vmatprep.subr.mxu0 0.0
    %v7717 = vand.u32 %v181, 4294901760
    %v7718 = vsub.f32 %v181, %v7717
    %7719 = vmatpush1.msra.mxu0 %v7718
    %7720 = vmatprep.subr.mxu0 0.0
    %v7721 = vand.u32 %v180, 4294901760
    %v7722 = vsub.f32 %v180, %v7721
    %7723 = vmatpush1.msra.mxu0 %v7722
    %7724 = vmatprep.subr.mxu0 0.0
    %v7725 = vand.u32 %v179, 4294901760
    %v7726 = vsub.f32 %v179, %v7725
    %7727 = vmatpush1.msra.mxu0 %v7726
    %7728 = vmatprep.subr.mxu0 0.0
    %v7729 = vand.u32 %v178, 4294901760
    %v7730 = vsub.f32 %v178, %v7729
    %7731 = vmatpush1.msra.mxu0 %v7730
    %7732 = vmatprep.subr.mxu0 0.0
    %v7733 = vand.u32 %v177, 4294901760
    %v7734 = vsub.f32 %v177, %v7733
    %7735 = vmatpush1.msra.mxu0 %v7734
    %7736 = vmatprep.subr.mxu0 0.0
    %v7737 = vand.u32 %v176, 4294901760
    %v7738 = vsub.f32 %v176, %v7737
    %7739 = vmatpush1.msra.mxu0 %v7738
    %7740 = vmatprep.subr.mxu0 0.0
    %v7741 = vand.u32 %v207, 4294901760
    %v7742 = vsub.f32 %v207, %v7741
    %7743 = vmatpush2.msra.mxu0 %v7742
    %7744 = vmatprep.subr.mxu0 0.0
    %v7745 = vand.u32 %v206, 4294901760
    %v7746 = vsub.f32 %v206, %v7745
    %7747 = vmatpush2.msra.mxu0 %v7746
    %7748 = vmatprep.subr.mxu0 0.0
    %v7749 = vand.u32 %v205, 4294901760
    %v7750 = vsub.f32 %v205, %v7749
    %7751 = vmatpush2.msra.mxu0 %v7750
    %7752 = vmatprep.subr.mxu0 0.0
    %v7753 = vand.u32 %v204, 4294901760
    %v7754 = vsub.f32 %v204, %v7753
    %7755 = vmatpush2.msra.mxu0 %v7754
    %7756 = vmatprep.subr.mxu0 0.0
    %v7757 = vand.u32 %v203, 4294901760
    %v7758 = vsub.f32 %v203, %v7757
    %7759 = vmatpush2.msra.mxu0 %v7758
    %7760 = vmatprep.subr.mxu0 0.0
    %v7761 = vand.u32 %v202, 4294901760
    %v7762 = vsub.f32 %v202, %v7761
    %7763 = vmatpush2.msra.mxu0 %v7762
    %7764 = vmatprep.subr.mxu0 0.0
    %v7765 = vand.u32 %v201, 4294901760
    %v7766 = vsub.f32 %v201, %v7765
    %7767 = vmatpush2.msra.mxu0 %v7766
    %7768 = vmatprep.subr.mxu0 0.0
    %v7769 = vand.u32 %v200, 4294901760
    %v7770 = vsub.f32 %v200, %v7769
    %7771 = vmatpush2.msra.mxu0 %v7770
    %7772 = vmatprep.subr.mxu0 0.0
    %v7773 = vand.u32 %v199, 4294901760
    %v7774 = vsub.f32 %v199, %v7773
    %7775 = vmatpush2.msra.mxu0 %v7774
    %7776 = vmatprep.subr.mxu0 0.0
    %v7777 = vand.u32 %v198, 4294901760
    %v7778 = vsub.f32 %v198, %v7777
    %7779 = vmatpush2.msra.mxu0 %v7778
    %7780 = vmatprep.subr.mxu0 0.0
    %v7781 = vand.u32 %v197, 4294901760
    %v7782 = vsub.f32 %v197, %v7781
    %7783 = vmatpush2.msra.mxu0 %v7782
    %7784 = vmatprep.subr.mxu0 0.0
    %v7785 = vand.u32 %v196, 4294901760
    %v7786 = vsub.f32 %v196, %v7785
    %7787 = vmatpush2.msra.mxu0 %v7786
    %7788 = vmatprep.subr.mxu0 0.0
    %v7789 = vand.u32 %v195, 4294901760
    %v7790 = vsub.f32 %v195, %v7789
    %7791 = vmatpush2.msra.mxu0 %v7790
    %7792 = vmatprep.subr.mxu0 0.0
    %v7793 = vand.u32 %v194, 4294901760
    %v7794 = vsub.f32 %v194, %v7793
    %7795 = vmatpush2.msra.mxu0 %v7794
    %7796 = vmatprep.subr.mxu0 0.0
    %v7797 = vand.u32 %v193, 4294901760
    %v7798 = vsub.f32 %v193, %v7797
    %7799 = vmatpush2.msra.mxu0 %v7798
    %7800 = vmatprep.subr.mxu0 0.0
    %v7801 = vand.u32 %v192, 4294901760
    %v7802 = vsub.f32 %v192, %v7801
    %7803 = vmatpush2.msra.mxu0 %v7802
    %v7804 = vand.u32 %v7305, 4294901760
    %v7805 = vsub.f32 %v7305, %v7804
    %7806 = vmatprep.mubr.f32.mxu0 %v7805
    %v7807 = vand.u32 %v7297, 4294901760
    %v7808 = vsub.f32 %v7297, %v7807
    %7809 = vmatmul.mubr.f32.gmra.mxu0 %v7808
    %v7810 = vpop.f32.mrf.mxu0
    %v7811 = vadd.f32 %v7673, %v7810
    %v7812 = vpop.f32.mrf.mxu0
    %7813 = vdwg.mxu0
    %7814 = vmatprep.subr.mxu0 0.0
    %v7815 = vand.u32 %v191, 4294901760
    %7816 = vmatpush1.msra.mxu0 %v7815
    %7817 = vmatprep.subr.mxu0 0.0
    %v7818 = vand.u32 %v190, 4294901760
    %7819 = vmatpush1.msra.mxu0 %v7818
    %7820 = vmatprep.subr.mxu0 0.0
    %v7821 = vand.u32 %v189, 4294901760
    %7822 = vmatpush1.msra.mxu0 %v7821
    %7823 = vmatprep.subr.mxu0 0.0
    %v7824 = vand.u32 %v188, 4294901760
    %7825 = vmatpush1.msra.mxu0 %v7824
    %7826 = vmatprep.subr.mxu0 0.0
    %v7827 = vand.u32 %v187, 4294901760
    %7828 = vmatpush1.msra.mxu0 %v7827
    %7829 = vmatprep.subr.mxu0 0.0
    %v7830 = vand.u32 %v186, 4294901760
    %7831 = vmatpush1.msra.mxu0 %v7830
    %7832 = vmatprep.subr.mxu0 0.0
    %v7833 = vand.u32 %v185, 4294901760
    %7834 = vmatpush1.msra.mxu0 %v7833
    %7835 = vmatprep.subr.mxu0 0.0
    %v7836 = vand.u32 %v184, 4294901760
    %7837 = vmatpush1.msra.mxu0 %v7836
    %7838 = vmatprep.subr.mxu0 0.0
    %v7839 = vand.u32 %v183, 4294901760
    %7840 = vmatpush1.msra.mxu0 %v7839
    %7841 = vmatprep.subr.mxu0 0.0
    %v7842 = vand.u32 %v182, 4294901760
    %7843 = vmatpush1.msra.mxu0 %v7842
    %7844 = vmatprep.subr.mxu0 0.0
    %v7845 = vand.u32 %v181, 4294901760
    %7846 = vmatpush1.msra.mxu0 %v7845
    %7847 = vmatprep.subr.mxu0 0.0
    %v7848 = vand.u32 %v180, 4294901760
    %7849 = vmatpush1.msra.mxu0 %v7848
    %7850 = vmatprep.subr.mxu0 0.0
    %v7851 = vand.u32 %v179, 4294901760
    %7852 = vmatpush1.msra.mxu0 %v7851
    %7853 = vmatprep.subr.mxu0 0.0
    %v7854 = vand.u32 %v178, 4294901760
    %7855 = vmatpush1.msra.mxu0 %v7854
    %7856 = vmatprep.subr.mxu0 0.0
    %v7857 = vand.u32 %v177, 4294901760
    %7858 = vmatpush1.msra.mxu0 %v7857
    %7859 = vmatprep.subr.mxu0 0.0
    %v7860 = vand.u32 %v176, 4294901760
    %7861 = vmatpush1.msra.mxu0 %v7860
    %7862 = vmatprep.subr.mxu0 0.0
    %v7863 = vand.u32 %v207, 4294901760
    %7864 = vmatpush2.msra.mxu0 %v7863
    %7865 = vmatprep.subr.mxu0 0.0
    %v7866 = vand.u32 %v206, 4294901760
    %7867 = vmatpush2.msra.mxu0 %v7866
    %7868 = vmatprep.subr.mxu0 0.0
    %v7869 = vand.u32 %v205, 4294901760
    %7870 = vmatpush2.msra.mxu0 %v7869
    %7871 = vmatprep.subr.mxu0 0.0
    %v7872 = vand.u32 %v204, 4294901760
    %7873 = vmatpush2.msra.mxu0 %v7872
    %7874 = vmatprep.subr.mxu0 0.0
    %v7875 = vand.u32 %v203, 4294901760
    %7876 = vmatpush2.msra.mxu0 %v7875
    %7877 = vmatprep.subr.mxu0 0.0
    %v7878 = vand.u32 %v202, 4294901760
    %7879 = vmatpush2.msra.mxu0 %v7878
    %7880 = vmatprep.subr.mxu0 0.0
    %v7881 = vand.u32 %v201, 4294901760
    %7882 = vmatpush2.msra.mxu0 %v7881
    %7883 = vmatprep.subr.mxu0 0.0
    %v7884 = vand.u32 %v200, 4294901760
    %7885 = vmatpush2.msra.mxu0 %v7884
    %7886 = vmatprep.subr.mxu0 0.0
    %v7887 = vand.u32 %v199, 4294901760
    %7888 = vmatpush2.msra.mxu0 %v7887
    %7889 = vmatprep.subr.mxu0 0.0
    %v7890 = vand.u32 %v198, 4294901760
    %7891 = vmatpush2.msra.mxu0 %v7890
    %7892 = vmatprep.subr.mxu0 0.0
    %v7893 = vand.u32 %v197, 4294901760
    %7894 = vmatpush2.msra.mxu0 %v7893
    %7895 = vmatprep.subr.mxu0 0.0
    %v7896 = vand.u32 %v196, 4294901760
    %7897 = vmatpush2.msra.mxu0 %v7896
    %7898 = vmatprep.subr.mxu0 0.0
    %v7899 = vand.u32 %v195, 4294901760
    %7900 = vmatpush2.msra.mxu0 %v7899
    %7901 = vmatprep.subr.mxu0 0.0
    %v7902 = vand.u32 %v194, 4294901760
    %7903 = vmatpush2.msra.mxu0 %v7902
    %7904 = vmatprep.subr.mxu0 0.0
    %v7905 = vand.u32 %v193, 4294901760
    %7906 = vmatpush2.msra.mxu0 %v7905
    %7907 = vmatprep.subr.mxu0 0.0
    %v7908 = vand.u32 %v192, 4294901760
    %7909 = vmatpush2.msra.mxu0 %v7908
    %v7910 = vand.u32 %v7305, 4294901760
    %v7911 = vsub.f32 %v7305, %v7910
    %v7912 = vand.u32 %v7911, 4294901760
    %7913 = vmatprep.mubr.f32.mxu0 %v7912
    %v7914 = vand.u32 %v7297, 4294901760
    %v7915 = vsub.f32 %v7297, %v7914
    %v7916 = vand.u32 %v7915, 4294901760
    %7917 = vmatmul.mubr.f32.gmra.mxu0 %v7916
    %v7918 = vpop.f32.mrf.mxu0
    %v7919 = vadd.f32 %v7811, %v7918
    %v7920 = vpop.f32.mrf.mxu0
    %7921 = vdwg.mxu0
    %7922 = vmatprep.subr.mxu0 0.0
    %v7923 = vand.u32 %v191, 4294901760
    %v7924 = vsub.f32 %v191, %v7923
    %v7925 = vand.u32 %v7924, 4294901760
    %7926 = vmatpush1.msra.mxu0 %v7925
    %7927 = vmatprep.subr.mxu0 0.0
    %v7928 = vand.u32 %v190, 4294901760
    %v7929 = vsub.f32 %v190, %v7928
    %v7930 = vand.u32 %v7929, 4294901760
    %7931 = vmatpush1.msra.mxu0 %v7930
    %7932 = vmatprep.subr.mxu0 0.0
    %v7933 = vand.u32 %v189, 4294901760
    %v7934 = vsub.f32 %v189, %v7933
    %v7935 = vand.u32 %v7934, 4294901760
    %7936 = vmatpush1.msra.mxu0 %v7935
    %7937 = vmatprep.subr.mxu0 0.0
    %v7938 = vand.u32 %v188, 4294901760
    %v7939 = vsub.f32 %v188, %v7938
    %v7940 = vand.u32 %v7939, 4294901760
    %7941 = vmatpush1.msra.mxu0 %v7940
    %7942 = vmatprep.subr.mxu0 0.0
    %v7943 = vand.u32 %v187, 4294901760
    %v7944 = vsub.f32 %v187, %v7943
    %v7945 = vand.u32 %v7944, 4294901760
    %7946 = vmatpush1.msra.mxu0 %v7945
    %7947 = vmatprep.subr.mxu0 0.0
    %v7948 = vand.u32 %v186, 4294901760
    %v7949 = vsub.f32 %v186, %v7948
    %v7950 = vand.u32 %v7949, 4294901760
    %7951 = vmatpush1.msra.mxu0 %v7950
    %7952 = vmatprep.subr.mxu0 0.0
    %v7953 = vand.u32 %v185, 4294901760
    %v7954 = vsub.f32 %v185, %v7953
    %v7955 = vand.u32 %v7954, 4294901760
    %7956 = vmatpush1.msra.mxu0 %v7955
    %7957 = vmatprep.subr.mxu0 0.0
    %v7958 = vand.u32 %v184, 4294901760
    %v7959 = vsub.f32 %v184, %v7958
    %v7960 = vand.u32 %v7959, 4294901760
    %7961 = vmatpush1.msra.mxu0 %v7960
    %7962 = vmatprep.subr.mxu0 0.0
    %v7963 = vand.u32 %v183, 4294901760
    %v7964 = vsub.f32 %v183, %v7963
    %v7965 = vand.u32 %v7964, 4294901760
    %7966 = vmatpush1.msra.mxu0 %v7965
    %7967 = vmatprep.subr.mxu0 0.0
    %v7968 = vand.u32 %v182, 4294901760
    %v7969 = vsub.f32 %v182, %v7968
    %v7970 = vand.u32 %v7969, 4294901760
    %7971 = vmatpush1.msra.mxu0 %v7970
    %7972 = vmatprep.subr.mxu0 0.0
    %v7973 = vand.u32 %v181, 4294901760
    %v7974 = vsub.f32 %v181, %v7973
    %v7975 = vand.u32 %v7974, 4294901760
    %7976 = vmatpush1.msra.mxu0 %v7975
    %7977 = vmatprep.subr.mxu0 0.0
    %v7978 = vand.u32 %v180, 4294901760
    %v7979 = vsub.f32 %v180, %v7978
    %v7980 = vand.u32 %v7979, 4294901760
    %7981 = vmatpush1.msra.mxu0 %v7980
    %7982 = vmatprep.subr.mxu0 0.0
    %v7983 = vand.u32 %v179, 4294901760
    %v7984 = vsub.f32 %v179, %v7983
    %v7985 = vand.u32 %v7984, 4294901760
    %7986 = vmatpush1.msra.mxu0 %v7985
    %7987 = vmatprep.subr.mxu0 0.0
    %v7988 = vand.u32 %v178, 4294901760
    %v7989 = vsub.f32 %v178, %v7988
    %v7990 = vand.u32 %v7989, 4294901760
    %7991 = vmatpush1.msra.mxu0 %v7990
    %7992 = vmatprep.subr.mxu0 0.0
    %v7993 = vand.u32 %v177, 4294901760
    %v7994 = vsub.f32 %v177, %v7993
    %v7995 = vand.u32 %v7994, 4294901760
    %7996 = vmatpush1.msra.mxu0 %v7995
    %7997 = vmatprep.subr.mxu0 0.0
    %v7998 = vand.u32 %v176, 4294901760
    %v7999 = vsub.f32 %v176, %v7998
    %v8000 = vand.u32 %v7999, 4294901760
    %8001 = vmatpush1.msra.mxu0 %v8000
    %8002 = vmatprep.subr.mxu0 0.0
    %v8003 = vand.u32 %v207, 4294901760
    %v8004 = vsub.f32 %v207, %v8003
    %v8005 = vand.u32 %v8004, 4294901760
    %8006 = vmatpush2.msra.mxu0 %v8005
    %8007 = vmatprep.subr.mxu0 0.0
    %v8008 = vand.u32 %v206, 4294901760
    %v8009 = vsub.f32 %v206, %v8008
    %v8010 = vand.u32 %v8009, 4294901760
    %8011 = vmatpush2.msra.mxu0 %v8010
    %8012 = vmatprep.subr.mxu0 0.0
    %v8013 = vand.u32 %v205, 4294901760
    %v8014 = vsub.f32 %v205, %v8013
    %v8015 = vand.u32 %v8014, 4294901760
    %8016 = vmatpush2.msra.mxu0 %v8015
    %8017 = vmatprep.subr.mxu0 0.0
    %v8018 = vand.u32 %v204, 4294901760
    %v8019 = vsub.f32 %v204, %v8018
    %v8020 = vand.u32 %v8019, 4294901760
    %8021 = vmatpush2.msra.mxu0 %v8020
    %8022 = vmatprep.subr.mxu0 0.0
    %v8023 = vand.u32 %v203, 4294901760
    %v8024 = vsub.f32 %v203, %v8023
    %v8025 = vand.u32 %v8024, 4294901760
    %8026 = vmatpush2.msra.mxu0 %v8025
    %8027 = vmatprep.subr.mxu0 0.0
    %v8028 = vand.u32 %v202, 4294901760
    %v8029 = vsub.f32 %v202, %v8028
    %v8030 = vand.u32 %v8029, 4294901760
    %8031 = vmatpush2.msra.mxu0 %v8030
    %8032 = vmatprep.subr.mxu0 0.0
    %v8033 = vand.u32 %v201, 4294901760
    %v8034 = vsub.f32 %v201, %v8033
    %v8035 = vand.u32 %v8034, 4294901760
    %8036 = vmatpush2.msra.mxu0 %v8035
    %8037 = vmatprep.subr.mxu0 0.0
    %v8038 = vand.u32 %v200, 4294901760
    %v8039 = vsub.f32 %v200, %v8038
    %v8040 = vand.u32 %v8039, 4294901760
    %8041 = vmatpush2.msra.mxu0 %v8040
    %8042 = vmatprep.subr.mxu0 0.0
    %v8043 = vand.u32 %v199, 4294901760
    %v8044 = vsub.f32 %v199, %v8043
    %v8045 = vand.u32 %v8044, 4294901760
    %8046 = vmatpush2.msra.mxu0 %v8045
    %8047 = vmatprep.subr.mxu0 0.0
    %v8048 = vand.u32 %v198, 4294901760
    %v8049 = vsub.f32 %v198, %v8048
    %v8050 = vand.u32 %v8049, 4294901760
    %8051 = vmatpush2.msra.mxu0 %v8050
    %8052 = vmatprep.subr.mxu0 0.0
    %v8053 = vand.u32 %v197, 4294901760
    %v8054 = vsub.f32 %v197, %v8053
    %v8055 = vand.u32 %v8054, 4294901760
    %8056 = vmatpush2.msra.mxu0 %v8055
    %8057 = vmatprep.subr.mxu0 0.0
    %v8058 = vand.u32 %v196, 4294901760
    %v8059 = vsub.f32 %v196, %v8058
    %v8060 = vand.u32 %v8059, 4294901760
    %8061 = vmatpush2.msra.mxu0 %v8060
    %8062 = vmatprep.subr.mxu0 0.0
    %v8063 = vand.u32 %v195, 4294901760
    %v8064 = vsub.f32 %v195, %v8063
    %v8065 = vand.u32 %v8064, 4294901760
    %8066 = vmatpush2.msra.mxu0 %v8065
    %8067 = vmatprep.subr.mxu0 0.0
    %v8068 = vand.u32 %v194, 4294901760
    %v8069 = vsub.f32 %v194, %v8068
    %v8070 = vand.u32 %v8069, 4294901760
    %8071 = vmatpush2.msra.mxu0 %v8070
    %8072 = vmatprep.subr.mxu0 0.0
    %v8073 = vand.u32 %v193, 4294901760
    %v8074 = vsub.f32 %v193, %v8073
    %v8075 = vand.u32 %v8074, 4294901760
    %8076 = vmatpush2.msra.mxu0 %v8075
    %8077 = vmatprep.subr.mxu0 0.0
    %v8078 = vand.u32 %v192, 4294901760
    %v8079 = vsub.f32 %v192, %v8078
    %v8080 = vand.u32 %v8079, 4294901760
    %8081 = vmatpush2.msra.mxu0 %v8080
    %v8082 = vand.u32 %v7305, 4294901760
    %8083 = vmatprep.mubr.f32.mxu0 %v8082
    %v8084 = vand.u32 %v7297, 4294901760
    %8085 = vmatmul.mubr.f32.gmra.mxu0 %v8084
    %v8086 = vpop.f32.mrf.mxu0
    %v8087 = vadd.f32 %v7919, %v8086
    %v8088 = vpop.f32.mrf.mxu0
    %8089 = vdwg.mxu0
    %8090 = vmatprep.subr.mxu0 0.0
    %v8091 = vand.u32 %v191, 4294901760
    %8092 = vmatpush1.msra.mxu0 %v8091
    %8093 = vmatprep.subr.mxu0 0.0
    %v8094 = vand.u32 %v190, 4294901760
    %8095 = vmatpush1.msra.mxu0 %v8094
    %8096 = vmatprep.subr.mxu0 0.0
    %v8097 = vand.u32 %v189, 4294901760
    %8098 = vmatpush1.msra.mxu0 %v8097
    %8099 = vmatprep.subr.mxu0 0.0
    %v8100 = vand.u32 %v188, 4294901760
    %8101 = vmatpush1.msra.mxu0 %v8100
    %8102 = vmatprep.subr.mxu0 0.0
    %v8103 = vand.u32 %v187, 4294901760
    %8104 = vmatpush1.msra.mxu0 %v8103
    %8105 = vmatprep.subr.mxu0 0.0
    %v8106 = vand.u32 %v186, 4294901760
    %8107 = vmatpush1.msra.mxu0 %v8106
    %8108 = vmatprep.subr.mxu0 0.0
    %v8109 = vand.u32 %v185, 4294901760
    %8110 = vmatpush1.msra.mxu0 %v8109
    %8111 = vmatprep.subr.mxu0 0.0
    %v8112 = vand.u32 %v184, 4294901760
    %8113 = vmatpush1.msra.mxu0 %v8112
    %8114 = vmatprep.subr.mxu0 0.0
    %v8115 = vand.u32 %v183, 4294901760
    %8116 = vmatpush1.msra.mxu0 %v8115
    %8117 = vmatprep.subr.mxu0 0.0
    %v8118 = vand.u32 %v182, 4294901760
    %8119 = vmatpush1.msra.mxu0 %v8118
    %8120 = vmatprep.subr.mxu0 0.0
    %v8121 = vand.u32 %v181, 4294901760
    %8122 = vmatpush1.msra.mxu0 %v8121
    %8123 = vmatprep.subr.mxu0 0.0
    %v8124 = vand.u32 %v180, 4294901760
    %8125 = vmatpush1.msra.mxu0 %v8124
    %8126 = vmatprep.subr.mxu0 0.0
    %v8127 = vand.u32 %v179, 4294901760
    %8128 = vmatpush1.msra.mxu0 %v8127
    %8129 = vmatprep.subr.mxu0 0.0
    %v8130 = vand.u32 %v178, 4294901760
    %8131 = vmatpush1.msra.mxu0 %v8130
    %8132 = vmatprep.subr.mxu0 0.0
    %v8133 = vand.u32 %v177, 4294901760
    %8134 = vmatpush1.msra.mxu0 %v8133
    %8135 = vmatprep.subr.mxu0 0.0
    %v8136 = vand.u32 %v176, 4294901760
    %8137 = vmatpush1.msra.mxu0 %v8136
    %8138 = vmatprep.subr.mxu0 0.0
    %v8139 = vand.u32 %v207, 4294901760
    %8140 = vmatpush2.msra.mxu0 %v8139
    %8141 = vmatprep.subr.mxu0 0.0
    %v8142 = vand.u32 %v206, 4294901760
    %8143 = vmatpush2.msra.mxu0 %v8142
    %8144 = vmatprep.subr.mxu0 0.0
    %v8145 = vand.u32 %v205, 4294901760
    %8146 = vmatpush2.msra.mxu0 %v8145
    %8147 = vmatprep.subr.mxu0 0.0
    %v8148 = vand.u32 %v204, 4294901760
    %8149 = vmatpush2.msra.mxu0 %v8148
    %8150 = vmatprep.subr.mxu0 0.0
    %v8151 = vand.u32 %v203, 4294901760
    %8152 = vmatpush2.msra.mxu0 %v8151
    %8153 = vmatprep.subr.mxu0 0.0
    %v8154 = vand.u32 %v202, 4294901760
    %8155 = vmatpush2.msra.mxu0 %v8154
    %8156 = vmatprep.subr.mxu0 0.0
    %v8157 = vand.u32 %v201, 4294901760
    %8158 = vmatpush2.msra.mxu0 %v8157
    %8159 = vmatprep.subr.mxu0 0.0
    %v8160 = vand.u32 %v200, 4294901760
    %8161 = vmatpush2.msra.mxu0 %v8160
    %8162 = vmatprep.subr.mxu0 0.0
    %v8163 = vand.u32 %v199, 4294901760
    %8164 = vmatpush2.msra.mxu0 %v8163
    %8165 = vmatprep.subr.mxu0 0.0
    %v8166 = vand.u32 %v198, 4294901760
    %8167 = vmatpush2.msra.mxu0 %v8166
    %8168 = vmatprep.subr.mxu0 0.0
    %v8169 = vand.u32 %v197, 4294901760
    %8170 = vmatpush2.msra.mxu0 %v8169
    %8171 = vmatprep.subr.mxu0 0.0
    %v8172 = vand.u32 %v196, 4294901760
    %8173 = vmatpush2.msra.mxu0 %v8172
    %8174 = vmatprep.subr.mxu0 0.0
    %v8175 = vand.u32 %v195, 4294901760
    %8176 = vmatpush2.msra.mxu0 %v8175
    %8177 = vmatprep.subr.mxu0 0.0
    %v8178 = vand.u32 %v194, 4294901760
    %8179 = vmatpush2.msra.mxu0 %v8178
    %8180 = vmatprep.subr.mxu0 0.0
    %v8181 = vand.u32 %v193, 4294901760
    %8182 = vmatpush2.msra.mxu0 %v8181
    %8183 = vmatprep.subr.mxu0 0.0
    %v8184 = vand.u32 %v192, 4294901760
    %8185 = vmatpush2.msra.mxu0 %v8184
    %v8186 = vand.u32 %v7305, 4294901760
    %8187 = vmatprep.mubr.f32.mxu0 %v8186
    %v8188 = vand.u32 %v7297, 4294901760
    %8189 = vmatmul.mubr.f32.gmra.mxu0 %v8188
    %v8190 = vpop.f32.mrf.mxu0
    %v8191 = vadd.f32 %v8087, %v8190
    %v8192 = vpop.f32.mrf.mxu0
    %8193 = vdwg.mxu0
    %8194 = vmatprep.subr.mxu0 0.0
    %v8195 = vand.u32 %v223, 4294901760
    %8196 = vmatpush1.msra.mxu0 %v8195
    %8197 = vmatprep.subr.mxu0 0.0
    %v8198 = vand.u32 %v222, 4294901760
    %8199 = vmatpush1.msra.mxu0 %v8198
    %8200 = vmatprep.subr.mxu0 0.0
    %v8201 = vand.u32 %v221, 4294901760
    %8202 = vmatpush1.msra.mxu0 %v8201
    %8203 = vmatprep.subr.mxu0 0.0
    %v8204 = vand.u32 %v220, 4294901760
    %8205 = vmatpush1.msra.mxu0 %v8204
    %8206 = vmatprep.subr.mxu0 0.0
    %v8207 = vand.u32 %v219, 4294901760
    %8208 = vmatpush1.msra.mxu0 %v8207
    %8209 = vmatprep.subr.mxu0 0.0
    %v8210 = vand.u32 %v218, 4294901760
    %8211 = vmatpush1.msra.mxu0 %v8210
    %8212 = vmatprep.subr.mxu0 0.0
    %v8213 = vand.u32 %v217, 4294901760
    %8214 = vmatpush1.msra.mxu0 %v8213
    %8215 = vmatprep.subr.mxu0 0.0
    %v8216 = vand.u32 %v216, 4294901760
    %8217 = vmatpush1.msra.mxu0 %v8216
    %8218 = vmatprep.subr.mxu0 0.0
    %v8219 = vand.u32 %v215, 4294901760
    %8220 = vmatpush1.msra.mxu0 %v8219
    %8221 = vmatprep.subr.mxu0 0.0
    %v8222 = vand.u32 %v214, 4294901760
    %8223 = vmatpush1.msra.mxu0 %v8222
    %8224 = vmatprep.subr.mxu0 0.0
    %v8225 = vand.u32 %v213, 4294901760
    %8226 = vmatpush1.msra.mxu0 %v8225
    %8227 = vmatprep.subr.mxu0 0.0
    %v8228 = vand.u32 %v212, 4294901760
    %8229 = vmatpush1.msra.mxu0 %v8228
    %8230 = vmatprep.subr.mxu0 0.0
    %v8231 = vand.u32 %v211, 4294901760
    %8232 = vmatpush1.msra.mxu0 %v8231
    %8233 = vmatprep.subr.mxu0 0.0
    %v8234 = vand.u32 %v210, 4294901760
    %8235 = vmatpush1.msra.mxu0 %v8234
    %8236 = vmatprep.subr.mxu0 0.0
    %v8237 = vand.u32 %v209, 4294901760
    %8238 = vmatpush1.msra.mxu0 %v8237
    %8239 = vmatprep.subr.mxu0 0.0
    %v8240 = vand.u32 %v208, 4294901760
    %8241 = vmatpush1.msra.mxu0 %v8240
    %8242 = vmatprep.subr.mxu0 0.0
    %v8243 = vand.u32 %v239, 4294901760
    %8244 = vmatpush2.msra.mxu0 %v8243
    %8245 = vmatprep.subr.mxu0 0.0
    %v8246 = vand.u32 %v238, 4294901760
    %8247 = vmatpush2.msra.mxu0 %v8246
    %8248 = vmatprep.subr.mxu0 0.0
    %v8249 = vand.u32 %v237, 4294901760
    %8250 = vmatpush2.msra.mxu0 %v8249
    %8251 = vmatprep.subr.mxu0 0.0
    %v8252 = vand.u32 %v236, 4294901760
    %8253 = vmatpush2.msra.mxu0 %v8252
    %8254 = vmatprep.subr.mxu0 0.0
    %v8255 = vand.u32 %v235, 4294901760
    %8256 = vmatpush2.msra.mxu0 %v8255
    %8257 = vmatprep.subr.mxu0 0.0
    %v8258 = vand.u32 %v234, 4294901760
    %8259 = vmatpush2.msra.mxu0 %v8258
    %8260 = vmatprep.subr.mxu0 0.0
    %v8261 = vand.u32 %v233, 4294901760
    %8262 = vmatpush2.msra.mxu0 %v8261
    %8263 = vmatprep.subr.mxu0 0.0
    %v8264 = vand.u32 %v232, 4294901760
    %8265 = vmatpush2.msra.mxu0 %v8264
    %8266 = vmatprep.subr.mxu0 0.0
    %v8267 = vand.u32 %v231, 4294901760
    %8268 = vmatpush2.msra.mxu0 %v8267
    %8269 = vmatprep.subr.mxu0 0.0
    %v8270 = vand.u32 %v230, 4294901760
    %8271 = vmatpush2.msra.mxu0 %v8270
    %8272 = vmatprep.subr.mxu0 0.0
    %v8273 = vand.u32 %v229, 4294901760
    %8274 = vmatpush2.msra.mxu0 %v8273
    %8275 = vmatprep.subr.mxu0 0.0
    %v8276 = vand.u32 %v228, 4294901760
    %8277 = vmatpush2.msra.mxu0 %v8276
    %8278 = vmatprep.subr.mxu0 0.0
    %v8279 = vand.u32 %v227, 4294901760
    %8280 = vmatpush2.msra.mxu0 %v8279
    %8281 = vmatprep.subr.mxu0 0.0
    %v8282 = vand.u32 %v226, 4294901760
    %8283 = vmatpush2.msra.mxu0 %v8282
    %8284 = vmatprep.subr.mxu0 0.0
    %v8285 = vand.u32 %v225, 4294901760
    %8286 = vmatpush2.msra.mxu0 %v8285
    %8287 = vmatprep.subr.mxu0 0.0
    %v8288 = vand.u32 %v224, 4294901760
    %8289 = vmatpush2.msra.mxu0 %v8288
    %v8290 = vand.u32 %v7306, 4294901760
    %v8291 = vsub.f32 %v7306, %v8290
    %v8292 = vand.u32 %v8291, 4294901760
    %v8293 = vsub.f32 %v8291, %v8292
    %v8294 = vand.u32 %v8293, 4294901760
    %8295 = vmatprep.mubr.f32.mxu0 %v8294
    %v8296 = vand.u32 %v7304, 4294901760
    %v8297 = vsub.f32 %v7304, %v8296
    %v8298 = vand.u32 %v8297, 4294901760
    %v8299 = vsub.f32 %v8297, %v8298
    %v8300 = vand.u32 %v8299, 4294901760
    %8301 = vmatmul.mubr.f32.gmra.mxu0 %v8300
    %v8302 = vpop.f32.mrf.mxu0
    %v8303 = vadd.f32 %v8191, %v8302
    %v8304 = vpop.f32.mrf.mxu0
    %8305 = vdwg.mxu0
    %8306 = vmatprep.subr.mxu0 0.0
    %v8307 = vand.u32 %v223, 4294901760
    %v8308 = vsub.f32 %v223, %v8307
    %v8309 = vand.u32 %v8308, 4294901760
    %v8310 = vsub.f32 %v8308, %v8309
    %v8311 = vand.u32 %v8310, 4294901760
    %8312 = vmatpush1.msra.mxu0 %v8311
    %8313 = vmatprep.subr.mxu0 0.0
    %v8314 = vand.u32 %v222, 4294901760
    %v8315 = vsub.f32 %v222, %v8314
    %v8316 = vand.u32 %v8315, 4294901760
    %v8317 = vsub.f32 %v8315, %v8316
    %v8318 = vand.u32 %v8317, 4294901760
    %8319 = vmatpush1.msra.mxu0 %v8318
    %8320 = vmatprep.subr.mxu0 0.0
    %v8321 = vand.u32 %v221, 4294901760
    %v8322 = vsub.f32 %v221, %v8321
    %v8323 = vand.u32 %v8322, 4294901760
    %v8324 = vsub.f32 %v8322, %v8323
    %v8325 = vand.u32 %v8324, 4294901760
    %8326 = vmatpush1.msra.mxu0 %v8325
    %8327 = vmatprep.subr.mxu0 0.0
    %v8328 = vand.u32 %v220, 4294901760
    %v8329 = vsub.f32 %v220, %v8328
    %v8330 = vand.u32 %v8329, 4294901760
    %v8331 = vsub.f32 %v8329, %v8330
    %v8332 = vand.u32 %v8331, 4294901760
    %8333 = vmatpush1.msra.mxu0 %v8332
    %8334 = vmatprep.subr.mxu0 0.0
    %v8335 = vand.u32 %v219, 4294901760
    %v8336 = vsub.f32 %v219, %v8335
    %v8337 = vand.u32 %v8336, 4294901760
    %v8338 = vsub.f32 %v8336, %v8337
    %v8339 = vand.u32 %v8338, 4294901760
    %8340 = vmatpush1.msra.mxu0 %v8339
    %8341 = vmatprep.subr.mxu0 0.0
    %v8342 = vand.u32 %v218, 4294901760
    %v8343 = vsub.f32 %v218, %v8342
    %v8344 = vand.u32 %v8343, 4294901760
    %v8345 = vsub.f32 %v8343, %v8344
    %v8346 = vand.u32 %v8345, 4294901760
    %8347 = vmatpush1.msra.mxu0 %v8346
    %8348 = vmatprep.subr.mxu0 0.0
    %v8349 = vand.u32 %v217, 4294901760
    %v8350 = vsub.f32 %v217, %v8349
    %v8351 = vand.u32 %v8350, 4294901760
    %v8352 = vsub.f32 %v8350, %v8351
    %v8353 = vand.u32 %v8352, 4294901760
    %8354 = vmatpush1.msra.mxu0 %v8353
    %8355 = vmatprep.subr.mxu0 0.0
    %v8356 = vand.u32 %v216, 4294901760
    %v8357 = vsub.f32 %v216, %v8356
    %v8358 = vand.u32 %v8357, 4294901760
    %v8359 = vsub.f32 %v8357, %v8358
    %v8360 = vand.u32 %v8359, 4294901760
    %8361 = vmatpush1.msra.mxu0 %v8360
    %8362 = vmatprep.subr.mxu0 0.0
    %v8363 = vand.u32 %v215, 4294901760
    %v8364 = vsub.f32 %v215, %v8363
    %v8365 = vand.u32 %v8364, 4294901760
    %v8366 = vsub.f32 %v8364, %v8365
    %v8367 = vand.u32 %v8366, 4294901760
    %8368 = vmatpush1.msra.mxu0 %v8367
    %8369 = vmatprep.subr.mxu0 0.0
    %v8370 = vand.u32 %v214, 4294901760
    %v8371 = vsub.f32 %v214, %v8370
    %v8372 = vand.u32 %v8371, 4294901760
    %v8373 = vsub.f32 %v8371, %v8372
    %v8374 = vand.u32 %v8373, 4294901760
    %8375 = vmatpush1.msra.mxu0 %v8374
    %8376 = vmatprep.subr.mxu0 0.0
    %v8377 = vand.u32 %v213, 4294901760
    %v8378 = vsub.f32 %v213, %v8377
    %v8379 = vand.u32 %v8378, 4294901760
    %v8380 = vsub.f32 %v8378, %v8379
    %v8381 = vand.u32 %v8380, 4294901760
    %8382 = vmatpush1.msra.mxu0 %v8381
    %8383 = vmatprep.subr.mxu0 0.0
    %v8384 = vand.u32 %v212, 4294901760
    %v8385 = vsub.f32 %v212, %v8384
    %v8386 = vand.u32 %v8385, 4294901760
    %v8387 = vsub.f32 %v8385, %v8386
    %v8388 = vand.u32 %v8387, 4294901760
    %8389 = vmatpush1.msra.mxu0 %v8388
    %8390 = vmatprep.subr.mxu0 0.0
    %v8391 = vand.u32 %v211, 4294901760
    %v8392 = vsub.f32 %v211, %v8391
    %v8393 = vand.u32 %v8392, 4294901760
    %v8394 = vsub.f32 %v8392, %v8393
    %v8395 = vand.u32 %v8394, 4294901760
    %8396 = vmatpush1.msra.mxu0 %v8395
    %8397 = vmatprep.subr.mxu0 0.0
    %v8398 = vand.u32 %v210, 4294901760
    %v8399 = vsub.f32 %v210, %v8398
    %v8400 = vand.u32 %v8399, 4294901760
    %v8401 = vsub.f32 %v8399, %v8400
    %v8402 = vand.u32 %v8401, 4294901760
    %8403 = vmatpush1.msra.mxu0 %v8402
    %8404 = vmatprep.subr.mxu0 0.0
    %v8405 = vand.u32 %v209, 4294901760
    %v8406 = vsub.f32 %v209, %v8405
    %v8407 = vand.u32 %v8406, 4294901760
    %v8408 = vsub.f32 %v8406, %v8407
    %v8409 = vand.u32 %v8408, 4294901760
    %8410 = vmatpush1.msra.mxu0 %v8409
    %8411 = vmatprep.subr.mxu0 0.0
    %v8412 = vand.u32 %v208, 4294901760
    %v8413 = vsub.f32 %v208, %v8412
    %v8414 = vand.u32 %v8413, 4294901760
    %v8415 = vsub.f32 %v8413, %v8414
    %v8416 = vand.u32 %v8415, 4294901760
    %8417 = vmatpush1.msra.mxu0 %v8416
    %8418 = vmatprep.subr.mxu0 0.0
    %v8419 = vand.u32 %v239, 4294901760
    %v8420 = vsub.f32 %v239, %v8419
    %v8421 = vand.u32 %v8420, 4294901760
    %v8422 = vsub.f32 %v8420, %v8421
    %v8423 = vand.u32 %v8422, 4294901760
    %8424 = vmatpush2.msra.mxu0 %v8423
    %8425 = vmatprep.subr.mxu0 0.0
    %v8426 = vand.u32 %v238, 4294901760
    %v8427 = vsub.f32 %v238, %v8426
    %v8428 = vand.u32 %v8427, 4294901760
    %v8429 = vsub.f32 %v8427, %v8428
    %v8430 = vand.u32 %v8429, 4294901760
    %8431 = vmatpush2.msra.mxu0 %v8430
    %8432 = vmatprep.subr.mxu0 0.0
    %v8433 = vand.u32 %v237, 4294901760
    %v8434 = vsub.f32 %v237, %v8433
    %v8435 = vand.u32 %v8434, 4294901760
    %v8436 = vsub.f32 %v8434, %v8435
    %v8437 = vand.u32 %v8436, 4294901760
    %8438 = vmatpush2.msra.mxu0 %v8437
    %8439 = vmatprep.subr.mxu0 0.0
    %v8440 = vand.u32 %v236, 4294901760
    %v8441 = vsub.f32 %v236, %v8440
    %v8442 = vand.u32 %v8441, 4294901760
    %v8443 = vsub.f32 %v8441, %v8442
    %v8444 = vand.u32 %v8443, 4294901760
    %8445 = vmatpush2.msra.mxu0 %v8444
    %8446 = vmatprep.subr.mxu0 0.0
    %v8447 = vand.u32 %v235, 4294901760
    %v8448 = vsub.f32 %v235, %v8447
    %v8449 = vand.u32 %v8448, 4294901760
    %v8450 = vsub.f32 %v8448, %v8449
    %v8451 = vand.u32 %v8450, 4294901760
    %8452 = vmatpush2.msra.mxu0 %v8451
    %8453 = vmatprep.subr.mxu0 0.0
    %v8454 = vand.u32 %v234, 4294901760
    %v8455 = vsub.f32 %v234, %v8454
    %v8456 = vand.u32 %v8455, 4294901760
    %v8457 = vsub.f32 %v8455, %v8456
    %v8458 = vand.u32 %v8457, 4294901760
    %8459 = vmatpush2.msra.mxu0 %v8458
    %8460 = vmatprep.subr.mxu0 0.0
    %v8461 = vand.u32 %v233, 4294901760
    %v8462 = vsub.f32 %v233, %v8461
    %v8463 = vand.u32 %v8462, 4294901760
    %v8464 = vsub.f32 %v8462, %v8463
    %v8465 = vand.u32 %v8464, 4294901760
    %8466 = vmatpush2.msra.mxu0 %v8465
    %8467 = vmatprep.subr.mxu0 0.0
    %v8468 = vand.u32 %v232, 4294901760
    %v8469 = vsub.f32 %v232, %v8468
    %v8470 = vand.u32 %v8469, 4294901760
    %v8471 = vsub.f32 %v8469, %v8470
    %v8472 = vand.u32 %v8471, 4294901760
    %8473 = vmatpush2.msra.mxu0 %v8472
    %8474 = vmatprep.subr.mxu0 0.0
    %v8475 = vand.u32 %v231, 4294901760
    %v8476 = vsub.f32 %v231, %v8475
    %v8477 = vand.u32 %v8476, 4294901760
    %v8478 = vsub.f32 %v8476, %v8477
    %v8479 = vand.u32 %v8478, 4294901760
    %8480 = vmatpush2.msra.mxu0 %v8479
    %8481 = vmatprep.subr.mxu0 0.0
    %v8482 = vand.u32 %v230, 4294901760
    %v8483 = vsub.f32 %v230, %v8482
    %v8484 = vand.u32 %v8483, 4294901760
    %v8485 = vsub.f32 %v8483, %v8484
    %v8486 = vand.u32 %v8485, 4294901760
    %8487 = vmatpush2.msra.mxu0 %v8486
    %8488 = vmatprep.subr.mxu0 0.0
    %v8489 = vand.u32 %v229, 4294901760
    %v8490 = vsub.f32 %v229, %v8489
    %v8491 = vand.u32 %v8490, 4294901760
    %v8492 = vsub.f32 %v8490, %v8491
    %v8493 = vand.u32 %v8492, 4294901760
    %8494 = vmatpush2.msra.mxu0 %v8493
    %8495 = vmatprep.subr.mxu0 0.0
    %v8496 = vand.u32 %v228, 4294901760
    %v8497 = vsub.f32 %v228, %v8496
    %v8498 = vand.u32 %v8497, 4294901760
    %v8499 = vsub.f32 %v8497, %v8498
    %v8500 = vand.u32 %v8499, 4294901760
    %8501 = vmatpush2.msra.mxu0 %v8500
    %8502 = vmatprep.subr.mxu0 0.0
    %v8503 = vand.u32 %v227, 4294901760
    %v8504 = vsub.f32 %v227, %v8503
    %v8505 = vand.u32 %v8504, 4294901760
    %v8506 = vsub.f32 %v8504, %v8505
    %v8507 = vand.u32 %v8506, 4294901760
    %8508 = vmatpush2.msra.mxu0 %v8507
    %8509 = vmatprep.subr.mxu0 0.0
    %v8510 = vand.u32 %v226, 4294901760
    %v8511 = vsub.f32 %v226, %v8510
    %v8512 = vand.u32 %v8511, 4294901760
    %v8513 = vsub.f32 %v8511, %v8512
    %v8514 = vand.u32 %v8513, 4294901760
    %8515 = vmatpush2.msra.mxu0 %v8514
    %8516 = vmatprep.subr.mxu0 0.0
    %v8517 = vand.u32 %v225, 4294901760
    %v8518 = vsub.f32 %v225, %v8517
    %v8519 = vand.u32 %v8518, 4294901760
    %v8520 = vsub.f32 %v8518, %v8519
    %v8521 = vand.u32 %v8520, 4294901760
    %8522 = vmatpush2.msra.mxu0 %v8521
    %8523 = vmatprep.subr.mxu0 0.0
    %v8524 = vand.u32 %v224, 4294901760
    %v8525 = vsub.f32 %v224, %v8524
    %v8526 = vand.u32 %v8525, 4294901760
    %v8527 = vsub.f32 %v8525, %v8526
    %v8528 = vand.u32 %v8527, 4294901760
    %8529 = vmatpush2.msra.mxu0 %v8528
    %v8530 = vand.u32 %v7306, 4294901760
    %8531 = vmatprep.mubr.f32.mxu0 %v8530
    %v8532 = vand.u32 %v7304, 4294901760
    %8533 = vmatmul.mubr.f32.gmra.mxu0 %v8532
    %v8534 = vpop.f32.mrf.mxu0
    %v8535 = vadd.f32 %v8303, %v8534
    %v8536 = vpop.f32.mrf.mxu0
    %8537 = vdwg.mxu0
    %8538 = vmatprep.subr.mxu0 0.0
    %v8539 = vand.u32 %v223, 4294901760
    %v8540 = vsub.f32 %v223, %v8539
    %8541 = vmatpush1.msra.mxu0 %v8540
    %8542 = vmatprep.subr.mxu0 0.0
    %v8543 = vand.u32 %v222, 4294901760
    %v8544 = vsub.f32 %v222, %v8543
    %8545 = vmatpush1.msra.mxu0 %v8544
    %8546 = vmatprep.subr.mxu0 0.0
    %v8547 = vand.u32 %v221, 4294901760
    %v8548 = vsub.f32 %v221, %v8547
    %8549 = vmatpush1.msra.mxu0 %v8548
    %8550 = vmatprep.subr.mxu0 0.0
    %v8551 = vand.u32 %v220, 4294901760
    %v8552 = vsub.f32 %v220, %v8551
    %8553 = vmatpush1.msra.mxu0 %v8552
    %8554 = vmatprep.subr.mxu0 0.0
    %v8555 = vand.u32 %v219, 4294901760
    %v8556 = vsub.f32 %v219, %v8555
    %8557 = vmatpush1.msra.mxu0 %v8556
    %8558 = vmatprep.subr.mxu0 0.0
    %v8559 = vand.u32 %v218, 4294901760
    %v8560 = vsub.f32 %v218, %v8559
    %8561 = vmatpush1.msra.mxu0 %v8560
    %8562 = vmatprep.subr.mxu0 0.0
    %v8563 = vand.u32 %v217, 4294901760
    %v8564 = vsub.f32 %v217, %v8563
    %8565 = vmatpush1.msra.mxu0 %v8564
    %8566 = vmatprep.subr.mxu0 0.0
    %v8567 = vand.u32 %v216, 4294901760
    %v8568 = vsub.f32 %v216, %v8567
    %8569 = vmatpush1.msra.mxu0 %v8568
    %8570 = vmatprep.subr.mxu0 0.0
    %v8571 = vand.u32 %v215, 4294901760
    %v8572 = vsub.f32 %v215, %v8571
    %8573 = vmatpush1.msra.mxu0 %v8572
    %8574 = vmatprep.subr.mxu0 0.0
    %v8575 = vand.u32 %v214, 4294901760
    %v8576 = vsub.f32 %v214, %v8575
    %8577 = vmatpush1.msra.mxu0 %v8576
    %8578 = vmatprep.subr.mxu0 0.0
    %v8579 = vand.u32 %v213, 4294901760
    %v8580 = vsub.f32 %v213, %v8579
    %8581 = vmatpush1.msra.mxu0 %v8580
    %8582 = vmatprep.subr.mxu0 0.0
    %v8583 = vand.u32 %v212, 4294901760
    %v8584 = vsub.f32 %v212, %v8583
    %8585 = vmatpush1.msra.mxu0 %v8584
    %8586 = vmatprep.subr.mxu0 0.0
    %v8587 = vand.u32 %v211, 4294901760
    %v8588 = vsub.f32 %v211, %v8587
    %8589 = vmatpush1.msra.mxu0 %v8588
    %8590 = vmatprep.subr.mxu0 0.0
    %v8591 = vand.u32 %v210, 4294901760
    %v8592 = vsub.f32 %v210, %v8591
    %8593 = vmatpush1.msra.mxu0 %v8592
    %8594 = vmatprep.subr.mxu0 0.0
    %v8595 = vand.u32 %v209, 4294901760
    %v8596 = vsub.f32 %v209, %v8595
    %8597 = vmatpush1.msra.mxu0 %v8596
    %8598 = vmatprep.subr.mxu0 0.0
    %v8599 = vand.u32 %v208, 4294901760
    %v8600 = vsub.f32 %v208, %v8599
    %8601 = vmatpush1.msra.mxu0 %v8600
    %8602 = vmatprep.subr.mxu0 0.0
    %v8603 = vand.u32 %v239, 4294901760
    %v8604 = vsub.f32 %v239, %v8603
    %8605 = vmatpush2.msra.mxu0 %v8604
    %8606 = vmatprep.subr.mxu0 0.0
    %v8607 = vand.u32 %v238, 4294901760
    %v8608 = vsub.f32 %v238, %v8607
    %8609 = vmatpush2.msra.mxu0 %v8608
    %8610 = vmatprep.subr.mxu0 0.0
    %v8611 = vand.u32 %v237, 4294901760
    %v8612 = vsub.f32 %v237, %v8611
    %8613 = vmatpush2.msra.mxu0 %v8612
    %8614 = vmatprep.subr.mxu0 0.0
    %v8615 = vand.u32 %v236, 4294901760
    %v8616 = vsub.f32 %v236, %v8615
    %8617 = vmatpush2.msra.mxu0 %v8616
    %8618 = vmatprep.subr.mxu0 0.0
    %v8619 = vand.u32 %v235, 4294901760
    %v8620 = vsub.f32 %v235, %v8619
    %8621 = vmatpush2.msra.mxu0 %v8620
    %8622 = vmatprep.subr.mxu0 0.0
    %v8623 = vand.u32 %v234, 4294901760
    %v8624 = vsub.f32 %v234, %v8623
    %8625 = vmatpush2.msra.mxu0 %v8624
    %8626 = vmatprep.subr.mxu0 0.0
    %v8627 = vand.u32 %v233, 4294901760
    %v8628 = vsub.f32 %v233, %v8627
    %8629 = vmatpush2.msra.mxu0 %v8628
    %8630 = vmatprep.subr.mxu0 0.0
    %v8631 = vand.u32 %v232, 4294901760
    %v8632 = vsub.f32 %v232, %v8631
    %8633 = vmatpush2.msra.mxu0 %v8632
    %8634 = vmatprep.subr.mxu0 0.0
    %v8635 = vand.u32 %v231, 4294901760
    %v8636 = vsub.f32 %v231, %v8635
    %8637 = vmatpush2.msra.mxu0 %v8636
    %8638 = vmatprep.subr.mxu0 0.0
    %v8639 = vand.u32 %v230, 4294901760
    %v8640 = vsub.f32 %v230, %v8639
    %8641 = vmatpush2.msra.mxu0 %v8640
    %8642 = vmatprep.subr.mxu0 0.0
    %v8643 = vand.u32 %v229, 4294901760
    %v8644 = vsub.f32 %v229, %v8643
    %8645 = vmatpush2.msra.mxu0 %v8644
    %8646 = vmatprep.subr.mxu0 0.0
    %v8647 = vand.u32 %v228, 4294901760
    %v8648 = vsub.f32 %v228, %v8647
    %8649 = vmatpush2.msra.mxu0 %v8648
    %8650 = vmatprep.subr.mxu0 0.0
    %v8651 = vand.u32 %v227, 4294901760
    %v8652 = vsub.f32 %v227, %v8651
    %8653 = vmatpush2.msra.mxu0 %v8652
    %8654 = vmatprep.subr.mxu0 0.0
    %v8655 = vand.u32 %v226, 4294901760
    %v8656 = vsub.f32 %v226, %v8655
    %8657 = vmatpush2.msra.mxu0 %v8656
    %8658 = vmatprep.subr.mxu0 0.0
    %v8659 = vand.u32 %v225, 4294901760
    %v8660 = vsub.f32 %v225, %v8659
    %8661 = vmatpush2.msra.mxu0 %v8660
    %8662 = vmatprep.subr.mxu0 0.0
    %v8663 = vand.u32 %v224, 4294901760
    %v8664 = vsub.f32 %v224, %v8663
    %8665 = vmatpush2.msra.mxu0 %v8664
    %v8666 = vand.u32 %v7306, 4294901760
    %v8667 = vsub.f32 %v7306, %v8666
    %8668 = vmatprep.mubr.f32.mxu0 %v8667
    %v8669 = vand.u32 %v7304, 4294901760
    %v8670 = vsub.f32 %v7304, %v8669
    %8671 = vmatmul.mubr.f32.gmra.mxu0 %v8670
    %v8672 = vpop.f32.mrf.mxu0
    %v8673 = vadd.f32 %v8535, %v8672
    %v8674 = vpop.f32.mrf.mxu0
    %8675 = vdwg.mxu0
    %8676 = vmatprep.subr.mxu0 0.0
    %v8677 = vand.u32 %v223, 4294901760
    %8678 = vmatpush1.msra.mxu0 %v8677
    %8679 = vmatprep.subr.mxu0 0.0
    %v8680 = vand.u32 %v222, 4294901760
    %8681 = vmatpush1.msra.mxu0 %v8680
    %8682 = vmatprep.subr.mxu0 0.0
    %v8683 = vand.u32 %v221, 4294901760
    %8684 = vmatpush1.msra.mxu0 %v8683
    %8685 = vmatprep.subr.mxu0 0.0
    %v8686 = vand.u32 %v220, 4294901760
    %8687 = vmatpush1.msra.mxu0 %v8686
    %8688 = vmatprep.subr.mxu0 0.0
    %v8689 = vand.u32 %v219, 4294901760
    %8690 = vmatpush1.msra.mxu0 %v8689
    %8691 = vmatprep.subr.mxu0 0.0
    %v8692 = vand.u32 %v218, 4294901760
    %8693 = vmatpush1.msra.mxu0 %v8692
    %8694 = vmatprep.subr.mxu0 0.0
    %v8695 = vand.u32 %v217, 4294901760
    %8696 = vmatpush1.msra.mxu0 %v8695
    %8697 = vmatprep.subr.mxu0 0.0
    %v8698 = vand.u32 %v216, 4294901760
    %8699 = vmatpush1.msra.mxu0 %v8698
    %8700 = vmatprep.subr.mxu0 0.0
    %v8701 = vand.u32 %v215, 4294901760
    %8702 = vmatpush1.msra.mxu0 %v8701
    %8703 = vmatprep.subr.mxu0 0.0
    %v8704 = vand.u32 %v214, 4294901760
    %8705 = vmatpush1.msra.mxu0 %v8704
    %8706 = vmatprep.subr.mxu0 0.0
    %v8707 = vand.u32 %v213, 4294901760
    %8708 = vmatpush1.msra.mxu0 %v8707
    %8709 = vmatprep.subr.mxu0 0.0
    %v8710 = vand.u32 %v212, 4294901760
    %8711 = vmatpush1.msra.mxu0 %v8710
    %8712 = vmatprep.subr.mxu0 0.0
    %v8713 = vand.u32 %v211, 4294901760
    %8714 = vmatpush1.msra.mxu0 %v8713
    %8715 = vmatprep.subr.mxu0 0.0
    %v8716 = vand.u32 %v210, 4294901760
    %8717 = vmatpush1.msra.mxu0 %v8716
    %8718 = vmatprep.subr.mxu0 0.0
    %v8719 = vand.u32 %v209, 4294901760
    %8720 = vmatpush1.msra.mxu0 %v8719
    %8721 = vmatprep.subr.mxu0 0.0
    %v8722 = vand.u32 %v208, 4294901760
    %8723 = vmatpush1.msra.mxu0 %v8722
    %8724 = vmatprep.subr.mxu0 0.0
    %v8725 = vand.u32 %v239, 4294901760
    %8726 = vmatpush2.msra.mxu0 %v8725
    %8727 = vmatprep.subr.mxu0 0.0
    %v8728 = vand.u32 %v238, 4294901760
    %8729 = vmatpush2.msra.mxu0 %v8728
    %8730 = vmatprep.subr.mxu0 0.0
    %v8731 = vand.u32 %v237, 4294901760
    %8732 = vmatpush2.msra.mxu0 %v8731
    %8733 = vmatprep.subr.mxu0 0.0
    %v8734 = vand.u32 %v236, 4294901760
    %8735 = vmatpush2.msra.mxu0 %v8734
    %8736 = vmatprep.subr.mxu0 0.0
    %v8737 = vand.u32 %v235, 4294901760
    %8738 = vmatpush2.msra.mxu0 %v8737
    %8739 = vmatprep.subr.mxu0 0.0
    %v8740 = vand.u32 %v234, 4294901760
    %8741 = vmatpush2.msra.mxu0 %v8740
    %8742 = vmatprep.subr.mxu0 0.0
    %v8743 = vand.u32 %v233, 4294901760
    %8744 = vmatpush2.msra.mxu0 %v8743
    %8745 = vmatprep.subr.mxu0 0.0
    %v8746 = vand.u32 %v232, 4294901760
    %8747 = vmatpush2.msra.mxu0 %v8746
    %8748 = vmatprep.subr.mxu0 0.0
    %v8749 = vand.u32 %v231, 4294901760
    %8750 = vmatpush2.msra.mxu0 %v8749
    %8751 = vmatprep.subr.mxu0 0.0
    %v8752 = vand.u32 %v230, 4294901760
    %8753 = vmatpush2.msra.mxu0 %v8752
    %8754 = vmatprep.subr.mxu0 0.0
    %v8755 = vand.u32 %v229, 4294901760
    %8756 = vmatpush2.msra.mxu0 %v8755
    %8757 = vmatprep.subr.mxu0 0.0
    %v8758 = vand.u32 %v228, 4294901760
    %8759 = vmatpush2.msra.mxu0 %v8758
    %8760 = vmatprep.subr.mxu0 0.0
    %v8761 = vand.u32 %v227, 4294901760
    %8762 = vmatpush2.msra.mxu0 %v8761
    %8763 = vmatprep.subr.mxu0 0.0
    %v8764 = vand.u32 %v226, 4294901760
    %8765 = vmatpush2.msra.mxu0 %v8764
    %8766 = vmatprep.subr.mxu0 0.0
    %v8767 = vand.u32 %v225, 4294901760
    %8768 = vmatpush2.msra.mxu0 %v8767
    %8769 = vmatprep.subr.mxu0 0.0
    %v8770 = vand.u32 %v224, 4294901760
    %8771 = vmatpush2.msra.mxu0 %v8770
    %v8772 = vand.u32 %v7306, 4294901760
    %v8773 = vsub.f32 %v7306, %v8772
    %v8774 = vand.u32 %v8773, 4294901760
    %8775 = vmatprep.mubr.f32.mxu0 %v8774
    %v8776 = vand.u32 %v7304, 4294901760
    %v8777 = vsub.f32 %v7304, %v8776
    %v8778 = vand.u32 %v8777, 4294901760
    %8779 = vmatmul.mubr.f32.gmra.mxu0 %v8778
    %v8780 = vpop.f32.mrf.mxu0
    %v8781 = vadd.f32 %v8673, %v8780
    %v8782 = vpop.f32.mrf.mxu0
    %8783 = vdwg.mxu0
    %8784 = vmatprep.subr.mxu0 0.0
    %v8785 = vand.u32 %v223, 4294901760
    %v8786 = vsub.f32 %v223, %v8785
    %v8787 = vand.u32 %v8786, 4294901760
    %8788 = vmatpush1.msra.mxu0 %v8787
    %8789 = vmatprep.subr.mxu0 0.0
    %v8790 = vand.u32 %v222, 4294901760
    %v8791 = vsub.f32 %v222, %v8790
    %v8792 = vand.u32 %v8791, 4294901760
    %8793 = vmatpush1.msra.mxu0 %v8792
    %8794 = vmatprep.subr.mxu0 0.0
    %v8795 = vand.u32 %v221, 4294901760
    %v8796 = vsub.f32 %v221, %v8795
    %v8797 = vand.u32 %v8796, 4294901760
    %8798 = vmatpush1.msra.mxu0 %v8797
    %8799 = vmatprep.subr.mxu0 0.0
    %v8800 = vand.u32 %v220, 4294901760
    %v8801 = vsub.f32 %v220, %v8800
    %v8802 = vand.u32 %v8801, 4294901760
    %8803 = vmatpush1.msra.mxu0 %v8802
    %8804 = vmatprep.subr.mxu0 0.0
    %v8805 = vand.u32 %v219, 4294901760
    %v8806 = vsub.f32 %v219, %v8805
    %v8807 = vand.u32 %v8806, 4294901760
    %8808 = vmatpush1.msra.mxu0 %v8807
    %8809 = vmatprep.subr.mxu0 0.0
    %v8810 = vand.u32 %v218, 4294901760
    %v8811 = vsub.f32 %v218, %v8810
    %v8812 = vand.u32 %v8811, 4294901760
    %8813 = vmatpush1.msra.mxu0 %v8812
    %8814 = vmatprep.subr.mxu0 0.0
    %v8815 = vand.u32 %v217, 4294901760
    %v8816 = vsub.f32 %v217, %v8815
    %v8817 = vand.u32 %v8816, 4294901760
    %8818 = vmatpush1.msra.mxu0 %v8817
    %8819 = vmatprep.subr.mxu0 0.0
    %v8820 = vand.u32 %v216, 4294901760
    %v8821 = vsub.f32 %v216, %v8820
    %v8822 = vand.u32 %v8821, 4294901760
    %8823 = vmatpush1.msra.mxu0 %v8822
    %8824 = vmatprep.subr.mxu0 0.0
    %v8825 = vand.u32 %v215, 4294901760
    %v8826 = vsub.f32 %v215, %v8825
    %v8827 = vand.u32 %v8826, 4294901760
    %8828 = vmatpush1.msra.mxu0 %v8827
    %8829 = vmatprep.subr.mxu0 0.0
    %v8830 = vand.u32 %v214, 4294901760
    %v8831 = vsub.f32 %v214, %v8830
    %v8832 = vand.u32 %v8831, 4294901760
    %8833 = vmatpush1.msra.mxu0 %v8832
    %8834 = vmatprep.subr.mxu0 0.0
    %v8835 = vand.u32 %v213, 4294901760
    %v8836 = vsub.f32 %v213, %v8835
    %v8837 = vand.u32 %v8836, 4294901760
    %8838 = vmatpush1.msra.mxu0 %v8837
    %8839 = vmatprep.subr.mxu0 0.0
    %v8840 = vand.u32 %v212, 4294901760
    %v8841 = vsub.f32 %v212, %v8840
    %v8842 = vand.u32 %v8841, 4294901760
    %8843 = vmatpush1.msra.mxu0 %v8842
    %8844 = vmatprep.subr.mxu0 0.0
    %v8845 = vand.u32 %v211, 4294901760
    %v8846 = vsub.f32 %v211, %v8845
    %v8847 = vand.u32 %v8846, 4294901760
    %8848 = vmatpush1.msra.mxu0 %v8847
    %8849 = vmatprep.subr.mxu0 0.0
    %v8850 = vand.u32 %v210, 4294901760
    %v8851 = vsub.f32 %v210, %v8850
    %v8852 = vand.u32 %v8851, 4294901760
    %8853 = vmatpush1.msra.mxu0 %v8852
    %8854 = vmatprep.subr.mxu0 0.0
    %v8855 = vand.u32 %v209, 4294901760
    %v8856 = vsub.f32 %v209, %v8855
    %v8857 = vand.u32 %v8856, 4294901760
    %8858 = vmatpush1.msra.mxu0 %v8857
    %8859 = vmatprep.subr.mxu0 0.0
    %v8860 = vand.u32 %v208, 4294901760
    %v8861 = vsub.f32 %v208, %v8860
    %v8862 = vand.u32 %v8861, 4294901760
    %8863 = vmatpush1.msra.mxu0 %v8862
    %8864 = vmatprep.subr.mxu0 0.0
    %v8865 = vand.u32 %v239, 4294901760
    %v8866 = vsub.f32 %v239, %v8865
    %v8867 = vand.u32 %v8866, 4294901760
    %8868 = vmatpush2.msra.mxu0 %v8867
    %8869 = vmatprep.subr.mxu0 0.0
    %v8870 = vand.u32 %v238, 4294901760
    %v8871 = vsub.f32 %v238, %v8870
    %v8872 = vand.u32 %v8871, 4294901760
    %8873 = vmatpush2.msra.mxu0 %v8872
    %8874 = vmatprep.subr.mxu0 0.0
    %v8875 = vand.u32 %v237, 4294901760
    %v8876 = vsub.f32 %v237, %v8875
    %v8877 = vand.u32 %v8876, 4294901760
    %8878 = vmatpush2.msra.mxu0 %v8877
    %8879 = vmatprep.subr.mxu0 0.0
    %v8880 = vand.u32 %v236, 4294901760
    %v8881 = vsub.f32 %v236, %v8880
    %v8882 = vand.u32 %v8881, 4294901760
    %8883 = vmatpush2.msra.mxu0 %v8882
    %8884 = vmatprep.subr.mxu0 0.0
    %v8885 = vand.u32 %v235, 4294901760
    %v8886 = vsub.f32 %v235, %v8885
    %v8887 = vand.u32 %v8886, 4294901760
    %8888 = vmatpush2.msra.mxu0 %v8887
    %8889 = vmatprep.subr.mxu0 0.0
    %v8890 = vand.u32 %v234, 4294901760
    %v8891 = vsub.f32 %v234, %v8890
    %v8892 = vand.u32 %v8891, 4294901760
    %8893 = vmatpush2.msra.mxu0 %v8892
    %8894 = vmatprep.subr.mxu0 0.0
    %v8895 = vand.u32 %v233, 4294901760
    %v8896 = vsub.f32 %v233, %v8895
    %v8897 = vand.u32 %v8896, 4294901760
    %8898 = vmatpush2.msra.mxu0 %v8897
    %8899 = vmatprep.subr.mxu0 0.0
    %v8900 = vand.u32 %v232, 4294901760
    %v8901 = vsub.f32 %v232, %v8900
    %v8902 = vand.u32 %v8901, 4294901760
    %8903 = vmatpush2.msra.mxu0 %v8902
    %8904 = vmatprep.subr.mxu0 0.0
    %v8905 = vand.u32 %v231, 4294901760
    %v8906 = vsub.f32 %v231, %v8905
    %v8907 = vand.u32 %v8906, 4294901760
    %8908 = vmatpush2.msra.mxu0 %v8907
    %8909 = vmatprep.subr.mxu0 0.0
    %v8910 = vand.u32 %v230, 4294901760
    %v8911 = vsub.f32 %v230, %v8910
    %v8912 = vand.u32 %v8911, 4294901760
    %8913 = vmatpush2.msra.mxu0 %v8912
    %8914 = vmatprep.subr.mxu0 0.0
    %v8915 = vand.u32 %v229, 4294901760
    %v8916 = vsub.f32 %v229, %v8915
    %v8917 = vand.u32 %v8916, 4294901760
    %8918 = vmatpush2.msra.mxu0 %v8917
    %8919 = vmatprep.subr.mxu0 0.0
    %v8920 = vand.u32 %v228, 4294901760
    %v8921 = vsub.f32 %v228, %v8920
    %v8922 = vand.u32 %v8921, 4294901760
    %8923 = vmatpush2.msra.mxu0 %v8922
    %8924 = vmatprep.subr.mxu0 0.0
    %v8925 = vand.u32 %v227, 4294901760
    %v8926 = vsub.f32 %v227, %v8925
    %v8927 = vand.u32 %v8926, 4294901760
    %8928 = vmatpush2.msra.mxu0 %v8927
    %8929 = vmatprep.subr.mxu0 0.0
    %v8930 = vand.u32 %v226, 4294901760
    %v8931 = vsub.f32 %v226, %v8930
    %v8932 = vand.u32 %v8931, 4294901760
    %8933 = vmatpush2.msra.mxu0 %v8932
    %8934 = vmatprep.subr.mxu0 0.0
    %v8935 = vand.u32 %v225, 4294901760
    %v8936 = vsub.f32 %v225, %v8935
    %v8937 = vand.u32 %v8936, 4294901760
    %8938 = vmatpush2.msra.mxu0 %v8937
    %8939 = vmatprep.subr.mxu0 0.0
    %v8940 = vand.u32 %v224, 4294901760
    %v8941 = vsub.f32 %v224, %v8940
    %v8942 = vand.u32 %v8941, 4294901760
    %8943 = vmatpush2.msra.mxu0 %v8942
    %v8944 = vand.u32 %v7306, 4294901760
    %8945 = vmatprep.mubr.f32.mxu0 %v8944
    %v8946 = vand.u32 %v7304, 4294901760
    %8947 = vmatmul.mubr.f32.gmra.mxu0 %v8946
    %v8948 = vpop.f32.mrf.mxu0
    %v8949 = vadd.f32 %v8781, %v8948
    %v8950 = vpop.f32.mrf.mxu0
    %8951 = vdwg.mxu0
    %8952 = vmatprep.subr.mxu0 0.0
    %v8953 = vand.u32 %v223, 4294901760
    %8954 = vmatpush1.msra.mxu0 %v8953
    %8955 = vmatprep.subr.mxu0 0.0
    %v8956 = vand.u32 %v222, 4294901760
    %8957 = vmatpush1.msra.mxu0 %v8956
    %8958 = vmatprep.subr.mxu0 0.0
    %v8959 = vand.u32 %v221, 4294901760
    %8960 = vmatpush1.msra.mxu0 %v8959
    %8961 = vmatprep.subr.mxu0 0.0
    %v8962 = vand.u32 %v220, 4294901760
    %8963 = vmatpush1.msra.mxu0 %v8962
    %8964 = vmatprep.subr.mxu0 0.0
    %v8965 = vand.u32 %v219, 4294901760
    %8966 = vmatpush1.msra.mxu0 %v8965
    %8967 = vmatprep.subr.mxu0 0.0
    %v8968 = vand.u32 %v218, 4294901760
    %8969 = vmatpush1.msra.mxu0 %v8968
    %8970 = vmatprep.subr.mxu0 0.0
    %v8971 = vand.u32 %v217, 4294901760
    %8972 = vmatpush1.msra.mxu0 %v8971
    %8973 = vmatprep.subr.mxu0 0.0
    %v8974 = vand.u32 %v216, 4294901760
    %8975 = vmatpush1.msra.mxu0 %v8974
    %8976 = vmatprep.subr.mxu0 0.0
    %v8977 = vand.u32 %v215, 4294901760
    %8978 = vmatpush1.msra.mxu0 %v8977
    %8979 = vmatprep.subr.mxu0 0.0
    %v8980 = vand.u32 %v214, 4294901760
    %8981 = vmatpush1.msra.mxu0 %v8980
    %8982 = vmatprep.subr.mxu0 0.0
    %v8983 = vand.u32 %v213, 4294901760
    %8984 = vmatpush1.msra.mxu0 %v8983
    %8985 = vmatprep.subr.mxu0 0.0
    %v8986 = vand.u32 %v212, 4294901760
    %8987 = vmatpush1.msra.mxu0 %v8986
    %8988 = vmatprep.subr.mxu0 0.0
    %v8989 = vand.u32 %v211, 4294901760
    %8990 = vmatpush1.msra.mxu0 %v8989
    %8991 = vmatprep.subr.mxu0 0.0
    %v8992 = vand.u32 %v210, 4294901760
    %8993 = vmatpush1.msra.mxu0 %v8992
    %8994 = vmatprep.subr.mxu0 0.0
    %v8995 = vand.u32 %v209, 4294901760
    %8996 = vmatpush1.msra.mxu0 %v8995
    %8997 = vmatprep.subr.mxu0 0.0
    %v8998 = vand.u32 %v208, 4294901760
    %8999 = vmatpush1.msra.mxu0 %v8998
    %9000 = vmatprep.subr.mxu0 0.0
    %v9001 = vand.u32 %v239, 4294901760
    %9002 = vmatpush2.msra.mxu0 %v9001
    %9003 = vmatprep.subr.mxu0 0.0
    %v9004 = vand.u32 %v238, 4294901760
    %9005 = vmatpush2.msra.mxu0 %v9004
    %9006 = vmatprep.subr.mxu0 0.0
    %v9007 = vand.u32 %v237, 4294901760
    %9008 = vmatpush2.msra.mxu0 %v9007
    %9009 = vmatprep.subr.mxu0 0.0
    %v9010 = vand.u32 %v236, 4294901760
    %9011 = vmatpush2.msra.mxu0 %v9010
    %9012 = vmatprep.subr.mxu0 0.0
    %v9013 = vand.u32 %v235, 4294901760
    %9014 = vmatpush2.msra.mxu0 %v9013
    %9015 = vmatprep.subr.mxu0 0.0
    %v9016 = vand.u32 %v234, 4294901760
    %9017 = vmatpush2.msra.mxu0 %v9016
    %9018 = vmatprep.subr.mxu0 0.0
    %v9019 = vand.u32 %v233, 4294901760
    %9020 = vmatpush2.msra.mxu0 %v9019
    %9021 = vmatprep.subr.mxu0 0.0
    %v9022 = vand.u32 %v232, 4294901760
    %9023 = vmatpush2.msra.mxu0 %v9022
    %9024 = vmatprep.subr.mxu0 0.0
    %v9025 = vand.u32 %v231, 4294901760
    %9026 = vmatpush2.msra.mxu0 %v9025
    %9027 = vmatprep.subr.mxu0 0.0
    %v9028 = vand.u32 %v230, 4294901760
    %9029 = vmatpush2.msra.mxu0 %v9028
    %9030 = vmatprep.subr.mxu0 0.0
    %v9031 = vand.u32 %v229, 4294901760
    %9032 = vmatpush2.msra.mxu0 %v9031
    %9033 = vmatprep.subr.mxu0 0.0
    %v9034 = vand.u32 %v228, 4294901760
    %9035 = vmatpush2.msra.mxu0 %v9034
    %9036 = vmatprep.subr.mxu0 0.0
    %v9037 = vand.u32 %v227, 4294901760
    %9038 = vmatpush2.msra.mxu0 %v9037
    %9039 = vmatprep.subr.mxu0 0.0
    %v9040 = vand.u32 %v226, 4294901760
    %9041 = vmatpush2.msra.mxu0 %v9040
    %9042 = vmatprep.subr.mxu0 0.0
    %v9043 = vand.u32 %v225, 4294901760
    %9044 = vmatpush2.msra.mxu0 %v9043
    %9045 = vmatprep.subr.mxu0 0.0
    %v9046 = vand.u32 %v224, 4294901760
    %9047 = vmatpush2.msra.mxu0 %v9046
    %v9048 = vand.u32 %v7306, 4294901760
    %9049 = vmatprep.mubr.f32.mxu0 %v9048
    %v9050 = vand.u32 %v7304, 4294901760
    %9051 = vmatmul.mubr.f32.gmra.mxu0 %v9050
    %v9052 = vpop.f32.mrf.mxu0
    %v9053 = vadd.f32 %v8949, %v9052
    %v9054 = vpop.f32.mrf.mxu0
    %9055 = vdwg.mxu0
    %9056 = vmatprep.subr.mxu0 0.0
    %v9057 = vand.u32 %v255, 4294901760
    %9058 = vmatpush1.msra.mxu0 %v9057
    %9059 = vmatprep.subr.mxu0 0.0
    %v9060 = vand.u32 %v254, 4294901760
    %9061 = vmatpush1.msra.mxu0 %v9060
    %9062 = vmatprep.subr.mxu0 0.0
    %v9063 = vand.u32 %v253, 4294901760
    %9064 = vmatpush1.msra.mxu0 %v9063
    %9065 = vmatprep.subr.mxu0 0.0
    %v9066 = vand.u32 %v252, 4294901760
    %9067 = vmatpush1.msra.mxu0 %v9066
    %9068 = vmatprep.subr.mxu0 0.0
    %v9069 = vand.u32 %v251, 4294901760
    %9070 = vmatpush1.msra.mxu0 %v9069
    %9071 = vmatprep.subr.mxu0 0.0
    %v9072 = vand.u32 %v250, 4294901760
    %9073 = vmatpush1.msra.mxu0 %v9072
    %9074 = vmatprep.subr.mxu0 0.0
    %v9075 = vand.u32 %v249, 4294901760
    %9076 = vmatpush1.msra.mxu0 %v9075
    %9077 = vmatprep.subr.mxu0 0.0
    %v9078 = vand.u32 %v248, 4294901760
    %9079 = vmatpush1.msra.mxu0 %v9078
    %9080 = vmatprep.subr.mxu0 0.0
    %v9081 = vand.u32 %v247, 4294901760
    %9082 = vmatpush1.msra.mxu0 %v9081
    %9083 = vmatprep.subr.mxu0 0.0
    %v9084 = vand.u32 %v246, 4294901760
    %9085 = vmatpush1.msra.mxu0 %v9084
    %9086 = vmatprep.subr.mxu0 0.0
    %v9087 = vand.u32 %v245, 4294901760
    %9088 = vmatpush1.msra.mxu0 %v9087
    %9089 = vmatprep.subr.mxu0 0.0
    %v9090 = vand.u32 %v244, 4294901760
    %9091 = vmatpush1.msra.mxu0 %v9090
    %9092 = vmatprep.subr.mxu0 0.0
    %v9093 = vand.u32 %v243, 4294901760
    %9094 = vmatpush1.msra.mxu0 %v9093
    %9095 = vmatprep.subr.mxu0 0.0
    %v9096 = vand.u32 %v242, 4294901760
    %9097 = vmatpush1.msra.mxu0 %v9096
    %9098 = vmatprep.subr.mxu0 0.0
    %v9099 = vand.u32 %v241, 4294901760
    %9100 = vmatpush1.msra.mxu0 %v9099
    %9101 = vmatprep.subr.mxu0 0.0
    %v9102 = vand.u32 %v240, 4294901760
    %9103 = vmatpush1.msra.mxu0 %v9102
    %9104 = vmatprep.subr.mxu0 0.0
    %v9105 = vand.u32 %v271, 4294901760
    %9106 = vmatpush2.msra.mxu0 %v9105
    %9107 = vmatprep.subr.mxu0 0.0
    %v9108 = vand.u32 %v270, 4294901760
    %9109 = vmatpush2.msra.mxu0 %v9108
    %9110 = vmatprep.subr.mxu0 0.0
    %v9111 = vand.u32 %v269, 4294901760
    %9112 = vmatpush2.msra.mxu0 %v9111
    %9113 = vmatprep.subr.mxu0 0.0
    %v9114 = vand.u32 %v268, 4294901760
    %9115 = vmatpush2.msra.mxu0 %v9114
    %9116 = vmatprep.subr.mxu0 0.0
    %v9117 = vand.u32 %v267, 4294901760
    %9118 = vmatpush2.msra.mxu0 %v9117
    %9119 = vmatprep.subr.mxu0 0.0
    %v9120 = vand.u32 %v266, 4294901760
    %9121 = vmatpush2.msra.mxu0 %v9120
    %9122 = vmatprep.subr.mxu0 0.0
    %v9123 = vand.u32 %v265, 4294901760
    %9124 = vmatpush2.msra.mxu0 %v9123
    %9125 = vmatprep.subr.mxu0 0.0
    %v9126 = vand.u32 %v264, 4294901760
    %9127 = vmatpush2.msra.mxu0 %v9126
    %9128 = vmatprep.subr.mxu0 0.0
    %v9129 = vand.u32 %v263, 4294901760
    %9130 = vmatpush2.msra.mxu0 %v9129
    %9131 = vmatprep.subr.mxu0 0.0
    %v9132 = vand.u32 %v262, 4294901760
    %9133 = vmatpush2.msra.mxu0 %v9132
    %9134 = vmatprep.subr.mxu0 0.0
    %v9135 = vand.u32 %v261, 4294901760
    %9136 = vmatpush2.msra.mxu0 %v9135
    %9137 = vmatprep.subr.mxu0 0.0
    %v9138 = vand.u32 %v260, 4294901760
    %9139 = vmatpush2.msra.mxu0 %v9138
    %9140 = vmatprep.subr.mxu0 0.0
    %v9141 = vand.u32 %v259, 4294901760
    %9142 = vmatpush2.msra.mxu0 %v9141
    %9143 = vmatprep.subr.mxu0 0.0
    %v9144 = vand.u32 %v258, 4294901760
    %9145 = vmatpush2.msra.mxu0 %v9144
    %9146 = vmatprep.subr.mxu0 0.0
    %v9147 = vand.u32 %v257, 4294901760
    %9148 = vmatpush2.msra.mxu0 %v9147
    %9149 = vmatprep.subr.mxu0 0.0
    %v9150 = vand.u32 %v256, 4294901760
    %9151 = vmatpush2.msra.mxu0 %v9150
    %v9152 = vand.u32 %v7322, 4294901760
    %v9153 = vsub.f32 %v7322, %v9152
    %v9154 = vand.u32 %v9153, 4294901760
    %v9155 = vsub.f32 %v9153, %v9154
    %v9156 = vand.u32 %v9155, 4294901760
    %9157 = vmatprep.mubr.f32.mxu0 %v9156
    %v9158 = vand.u32 %v7314, 4294901760
    %v9159 = vsub.f32 %v7314, %v9158
    %v9160 = vand.u32 %v9159, 4294901760
    %v9161 = vsub.f32 %v9159, %v9160
    %v9162 = vand.u32 %v9161, 4294901760
    %9163 = vmatmul.mubr.f32.gmra.mxu0 %v9162
    %v9164 = vpop.f32.mrf.mxu0
    %v9165 = vadd.f32 %v9053, %v9164
    %v9166 = vpop.f32.mrf.mxu0
    %9167 = vdwg.mxu0
    %9168 = vmatprep.subr.mxu0 0.0
    %v9169 = vand.u32 %v255, 4294901760
    %v9170 = vsub.f32 %v255, %v9169
    %v9171 = vand.u32 %v9170, 4294901760
    %v9172 = vsub.f32 %v9170, %v9171
    %v9173 = vand.u32 %v9172, 4294901760
    %9174 = vmatpush1.msra.mxu0 %v9173
    %9175 = vmatprep.subr.mxu0 0.0
    %v9176 = vand.u32 %v254, 4294901760
    %v9177 = vsub.f32 %v254, %v9176
    %v9178 = vand.u32 %v9177, 4294901760
    %v9179 = vsub.f32 %v9177, %v9178
    %v9180 = vand.u32 %v9179, 4294901760
    %9181 = vmatpush1.msra.mxu0 %v9180
    %9182 = vmatprep.subr.mxu0 0.0
    %v9183 = vand.u32 %v253, 4294901760
    %v9184 = vsub.f32 %v253, %v9183
    %v9185 = vand.u32 %v9184, 4294901760
    %v9186 = vsub.f32 %v9184, %v9185
    %v9187 = vand.u32 %v9186, 4294901760
    %9188 = vmatpush1.msra.mxu0 %v9187
    %9189 = vmatprep.subr.mxu0 0.0
    %v9190 = vand.u32 %v252, 4294901760
    %v9191 = vsub.f32 %v252, %v9190
    %v9192 = vand.u32 %v9191, 4294901760
    %v9193 = vsub.f32 %v9191, %v9192
    %v9194 = vand.u32 %v9193, 4294901760
    %9195 = vmatpush1.msra.mxu0 %v9194
    %9196 = vmatprep.subr.mxu0 0.0
    %v9197 = vand.u32 %v251, 4294901760
    %v9198 = vsub.f32 %v251, %v9197
    %v9199 = vand.u32 %v9198, 4294901760
    %v9200 = vsub.f32 %v9198, %v9199
    %v9201 = vand.u32 %v9200, 4294901760
    %9202 = vmatpush1.msra.mxu0 %v9201
    %9203 = vmatprep.subr.mxu0 0.0
    %v9204 = vand.u32 %v250, 4294901760
    %v9205 = vsub.f32 %v250, %v9204
    %v9206 = vand.u32 %v9205, 4294901760
    %v9207 = vsub.f32 %v9205, %v9206
    %v9208 = vand.u32 %v9207, 4294901760
    %9209 = vmatpush1.msra.mxu0 %v9208
    %9210 = vmatprep.subr.mxu0 0.0
    %v9211 = vand.u32 %v249, 4294901760
    %v9212 = vsub.f32 %v249, %v9211
    %v9213 = vand.u32 %v9212, 4294901760
    %v9214 = vsub.f32 %v9212, %v9213
    %v9215 = vand.u32 %v9214, 4294901760
    %9216 = vmatpush1.msra.mxu0 %v9215
    %9217 = vmatprep.subr.mxu0 0.0
    %v9218 = vand.u32 %v248, 4294901760
    %v9219 = vsub.f32 %v248, %v9218
    %v9220 = vand.u32 %v9219, 4294901760
    %v9221 = vsub.f32 %v9219, %v9220
    %v9222 = vand.u32 %v9221, 4294901760
    %9223 = vmatpush1.msra.mxu0 %v9222
    %9224 = vmatprep.subr.mxu0 0.0
    %v9225 = vand.u32 %v247, 4294901760
    %v9226 = vsub.f32 %v247, %v9225
    %v9227 = vand.u32 %v9226, 4294901760
    %v9228 = vsub.f32 %v9226, %v9227
    %v9229 = vand.u32 %v9228, 4294901760
    %9230 = vmatpush1.msra.mxu0 %v9229
    %9231 = vmatprep.subr.mxu0 0.0
    %v9232 = vand.u32 %v246, 4294901760
    %v9233 = vsub.f32 %v246, %v9232
    %v9234 = vand.u32 %v9233, 4294901760
    %v9235 = vsub.f32 %v9233, %v9234
    %v9236 = vand.u32 %v9235, 4294901760
    %9237 = vmatpush1.msra.mxu0 %v9236
    %9238 = vmatprep.subr.mxu0 0.0
    %v9239 = vand.u32 %v245, 4294901760
    %v9240 = vsub.f32 %v245, %v9239
    %v9241 = vand.u32 %v9240, 4294901760
    %v9242 = vsub.f32 %v9240, %v9241
    %v9243 = vand.u32 %v9242, 4294901760
    %9244 = vmatpush1.msra.mxu0 %v9243
    %9245 = vmatprep.subr.mxu0 0.0
    %v9246 = vand.u32 %v244, 4294901760
    %v9247 = vsub.f32 %v244, %v9246
    %v9248 = vand.u32 %v9247, 4294901760
    %v9249 = vsub.f32 %v9247, %v9248
    %v9250 = vand.u32 %v9249, 4294901760
    %9251 = vmatpush1.msra.mxu0 %v9250
    %9252 = vmatprep.subr.mxu0 0.0
    %v9253 = vand.u32 %v243, 4294901760
    %v9254 = vsub.f32 %v243, %v9253
    %v9255 = vand.u32 %v9254, 4294901760
    %v9256 = vsub.f32 %v9254, %v9255
    %v9257 = vand.u32 %v9256, 4294901760
    %9258 = vmatpush1.msra.mxu0 %v9257
    %9259 = vmatprep.subr.mxu0 0.0
    %v9260 = vand.u32 %v242, 4294901760
    %v9261 = vsub.f32 %v242, %v9260
    %v9262 = vand.u32 %v9261, 4294901760
    %v9263 = vsub.f32 %v9261, %v9262
    %v9264 = vand.u32 %v9263, 4294901760
    %9265 = vmatpush1.msra.mxu0 %v9264
    %9266 = vmatprep.subr.mxu0 0.0
    %v9267 = vand.u32 %v241, 4294901760
    %v9268 = vsub.f32 %v241, %v9267
    %v9269 = vand.u32 %v9268, 4294901760
    %v9270 = vsub.f32 %v9268, %v9269
    %v9271 = vand.u32 %v9270, 4294901760
    %9272 = vmatpush1.msra.mxu0 %v9271
    %9273 = vmatprep.subr.mxu0 0.0
    %v9274 = vand.u32 %v240, 4294901760
    %v9275 = vsub.f32 %v240, %v9274
    %v9276 = vand.u32 %v9275, 4294901760
    %v9277 = vsub.f32 %v9275, %v9276
    %v9278 = vand.u32 %v9277, 4294901760
    %9279 = vmatpush1.msra.mxu0 %v9278
    %9280 = vmatprep.subr.mxu0 0.0
    %v9281 = vand.u32 %v271, 4294901760
    %v9282 = vsub.f32 %v271, %v9281
    %v9283 = vand.u32 %v9282, 4294901760
    %v9284 = vsub.f32 %v9282, %v9283
    %v9285 = vand.u32 %v9284, 4294901760
    %9286 = vmatpush2.msra.mxu0 %v9285
    %9287 = vmatprep.subr.mxu0 0.0
    %v9288 = vand.u32 %v270, 4294901760
    %v9289 = vsub.f32 %v270, %v9288
    %v9290 = vand.u32 %v9289, 4294901760
    %v9291 = vsub.f32 %v9289, %v9290
    %v9292 = vand.u32 %v9291, 4294901760
    %9293 = vmatpush2.msra.mxu0 %v9292
    %9294 = vmatprep.subr.mxu0 0.0
    %v9295 = vand.u32 %v269, 4294901760
    %v9296 = vsub.f32 %v269, %v9295
    %v9297 = vand.u32 %v9296, 4294901760
    %v9298 = vsub.f32 %v9296, %v9297
    %v9299 = vand.u32 %v9298, 4294901760
    %9300 = vmatpush2.msra.mxu0 %v9299
    %9301 = vmatprep.subr.mxu0 0.0
    %v9302 = vand.u32 %v268, 4294901760
    %v9303 = vsub.f32 %v268, %v9302
    %v9304 = vand.u32 %v9303, 4294901760
    %v9305 = vsub.f32 %v9303, %v9304
    %v9306 = vand.u32 %v9305, 4294901760
    %9307 = vmatpush2.msra.mxu0 %v9306
    %9308 = vmatprep.subr.mxu0 0.0
    %v9309 = vand.u32 %v267, 4294901760
    %v9310 = vsub.f32 %v267, %v9309
    %v9311 = vand.u32 %v9310, 4294901760
    %v9312 = vsub.f32 %v9310, %v9311
    %v9313 = vand.u32 %v9312, 4294901760
    %9314 = vmatpush2.msra.mxu0 %v9313
    %9315 = vmatprep.subr.mxu0 0.0
    %v9316 = vand.u32 %v266, 4294901760
    %v9317 = vsub.f32 %v266, %v9316
    %v9318 = vand.u32 %v9317, 4294901760
    %v9319 = vsub.f32 %v9317, %v9318
    %v9320 = vand.u32 %v9319, 4294901760
    %9321 = vmatpush2.msra.mxu0 %v9320
    %9322 = vmatprep.subr.mxu0 0.0
    %v9323 = vand.u32 %v265, 4294901760
    %v9324 = vsub.f32 %v265, %v9323
    %v9325 = vand.u32 %v9324, 4294901760
    %v9326 = vsub.f32 %v9324, %v9325
    %v9327 = vand.u32 %v9326, 4294901760
    %9328 = vmatpush2.msra.mxu0 %v9327
    %9329 = vmatprep.subr.mxu0 0.0
    %v9330 = vand.u32 %v264, 4294901760
    %v9331 = vsub.f32 %v264, %v9330
    %v9332 = vand.u32 %v9331, 4294901760
    %v9333 = vsub.f32 %v9331, %v9332
    %v9334 = vand.u32 %v9333, 4294901760
    %9335 = vmatpush2.msra.mxu0 %v9334
    %9336 = vmatprep.subr.mxu0 0.0
    %v9337 = vand.u32 %v263, 4294901760
    %v9338 = vsub.f32 %v263, %v9337
    %v9339 = vand.u32 %v9338, 4294901760
    %v9340 = vsub.f32 %v9338, %v9339
    %v9341 = vand.u32 %v9340, 4294901760
    %9342 = vmatpush2.msra.mxu0 %v9341
    %9343 = vmatprep.subr.mxu0 0.0
    %v9344 = vand.u32 %v262, 4294901760
    %v9345 = vsub.f32 %v262, %v9344
    %v9346 = vand.u32 %v9345, 4294901760
    %v9347 = vsub.f32 %v9345, %v9346
    %v9348 = vand.u32 %v9347, 4294901760
    %9349 = vmatpush2.msra.mxu0 %v9348
    %9350 = vmatprep.subr.mxu0 0.0
    %v9351 = vand.u32 %v261, 4294901760
    %v9352 = vsub.f32 %v261, %v9351
    %v9353 = vand.u32 %v9352, 4294901760
    %v9354 = vsub.f32 %v9352, %v9353
    %v9355 = vand.u32 %v9354, 4294901760
    %9356 = vmatpush2.msra.mxu0 %v9355
    %9357 = vmatprep.subr.mxu0 0.0
    %v9358 = vand.u32 %v260, 4294901760
    %v9359 = vsub.f32 %v260, %v9358
    %v9360 = vand.u32 %v9359, 4294901760
    %v9361 = vsub.f32 %v9359, %v9360
    %v9362 = vand.u32 %v9361, 4294901760
    %9363 = vmatpush2.msra.mxu0 %v9362
    %9364 = vmatprep.subr.mxu0 0.0
    %v9365 = vand.u32 %v259, 4294901760
    %v9366 = vsub.f32 %v259, %v9365
    %v9367 = vand.u32 %v9366, 4294901760
    %v9368 = vsub.f32 %v9366, %v9367
    %v9369 = vand.u32 %v9368, 4294901760
    %9370 = vmatpush2.msra.mxu0 %v9369
    %9371 = vmatprep.subr.mxu0 0.0
    %v9372 = vand.u32 %v258, 4294901760
    %v9373 = vsub.f32 %v258, %v9372
    %v9374 = vand.u32 %v9373, 4294901760
    %v9375 = vsub.f32 %v9373, %v9374
    %v9376 = vand.u32 %v9375, 4294901760
    %9377 = vmatpush2.msra.mxu0 %v9376
    %9378 = vmatprep.subr.mxu0 0.0
    %v9379 = vand.u32 %v257, 4294901760
    %v9380 = vsub.f32 %v257, %v9379
    %v9381 = vand.u32 %v9380, 4294901760
    %v9382 = vsub.f32 %v9380, %v9381
    %v9383 = vand.u32 %v9382, 4294901760
    %9384 = vmatpush2.msra.mxu0 %v9383
    %9385 = vmatprep.subr.mxu0 0.0
    %v9386 = vand.u32 %v256, 4294901760
    %v9387 = vsub.f32 %v256, %v9386
    %v9388 = vand.u32 %v9387, 4294901760
    %v9389 = vsub.f32 %v9387, %v9388
    %v9390 = vand.u32 %v9389, 4294901760
    %9391 = vmatpush2.msra.mxu0 %v9390
    %v9392 = vand.u32 %v7322, 4294901760
    %9393 = vmatprep.mubr.f32.mxu0 %v9392
    %v9394 = vand.u32 %v7314, 4294901760
    %9395 = vmatmul.mubr.f32.gmra.mxu0 %v9394
    %v9396 = vpop.f32.mrf.mxu0
    %v9397 = vadd.f32 %v9165, %v9396
    %v9398 = vpop.f32.mrf.mxu0
    %9399 = vdwg.mxu0
    %9400 = vmatprep.subr.mxu0 0.0
    %v9401 = vand.u32 %v255, 4294901760
    %v9402 = vsub.f32 %v255, %v9401
    %9403 = vmatpush1.msra.mxu0 %v9402
    %9404 = vmatprep.subr.mxu0 0.0
    %v9405 = vand.u32 %v254, 4294901760
    %v9406 = vsub.f32 %v254, %v9405
    %9407 = vmatpush1.msra.mxu0 %v9406
    %9408 = vmatprep.subr.mxu0 0.0
    %v9409 = vand.u32 %v253, 4294901760
    %v9410 = vsub.f32 %v253, %v9409
    %9411 = vmatpush1.msra.mxu0 %v9410
    %9412 = vmatprep.subr.mxu0 0.0
    %v9413 = vand.u32 %v252, 4294901760
    %v9414 = vsub.f32 %v252, %v9413
    %9415 = vmatpush1.msra.mxu0 %v9414
    %9416 = vmatprep.subr.mxu0 0.0
    %v9417 = vand.u32 %v251, 4294901760
    %v9418 = vsub.f32 %v251, %v9417
    %9419 = vmatpush1.msra.mxu0 %v9418
    %9420 = vmatprep.subr.mxu0 0.0
    %v9421 = vand.u32 %v250, 4294901760
    %v9422 = vsub.f32 %v250, %v9421
    %9423 = vmatpush1.msra.mxu0 %v9422
    %9424 = vmatprep.subr.mxu0 0.0
    %v9425 = vand.u32 %v249, 4294901760
    %v9426 = vsub.f32 %v249, %v9425
    %9427 = vmatpush1.msra.mxu0 %v9426
    %9428 = vmatprep.subr.mxu0 0.0
    %v9429 = vand.u32 %v248, 4294901760
    %v9430 = vsub.f32 %v248, %v9429
    %9431 = vmatpush1.msra.mxu0 %v9430
    %9432 = vmatprep.subr.mxu0 0.0
    %v9433 = vand.u32 %v247, 4294901760
    %v9434 = vsub.f32 %v247, %v9433
    %9435 = vmatpush1.msra.mxu0 %v9434
    %9436 = vmatprep.subr.mxu0 0.0
    %v9437 = vand.u32 %v246, 4294901760
    %v9438 = vsub.f32 %v246, %v9437
    %9439 = vmatpush1.msra.mxu0 %v9438
    %9440 = vmatprep.subr.mxu0 0.0
    %v9441 = vand.u32 %v245, 4294901760
    %v9442 = vsub.f32 %v245, %v9441
    %9443 = vmatpush1.msra.mxu0 %v9442
    %9444 = vmatprep.subr.mxu0 0.0
    %v9445 = vand.u32 %v244, 4294901760
    %v9446 = vsub.f32 %v244, %v9445
    %9447 = vmatpush1.msra.mxu0 %v9446
    %9448 = vmatprep.subr.mxu0 0.0
    %v9449 = vand.u32 %v243, 4294901760
    %v9450 = vsub.f32 %v243, %v9449
    %9451 = vmatpush1.msra.mxu0 %v9450
    %9452 = vmatprep.subr.mxu0 0.0
    %v9453 = vand.u32 %v242, 4294901760
    %v9454 = vsub.f32 %v242, %v9453
    %9455 = vmatpush1.msra.mxu0 %v9454
    %9456 = vmatprep.subr.mxu0 0.0
    %v9457 = vand.u32 %v241, 4294901760
    %v9458 = vsub.f32 %v241, %v9457
    %9459 = vmatpush1.msra.mxu0 %v9458
    %9460 = vmatprep.subr.mxu0 0.0
    %v9461 = vand.u32 %v240, 4294901760
    %v9462 = vsub.f32 %v240, %v9461
    %9463 = vmatpush1.msra.mxu0 %v9462
    %9464 = vmatprep.subr.mxu0 0.0
    %v9465 = vand.u32 %v271, 4294901760
    %v9466 = vsub.f32 %v271, %v9465
    %9467 = vmatpush2.msra.mxu0 %v9466
    %9468 = vmatprep.subr.mxu0 0.0
    %v9469 = vand.u32 %v270, 4294901760
    %v9470 = vsub.f32 %v270, %v9469
    %9471 = vmatpush2.msra.mxu0 %v9470
    %9472 = vmatprep.subr.mxu0 0.0
    %v9473 = vand.u32 %v269, 4294901760
    %v9474 = vsub.f32 %v269, %v9473
    %9475 = vmatpush2.msra.mxu0 %v9474
    %9476 = vmatprep.subr.mxu0 0.0
    %v9477 = vand.u32 %v268, 4294901760
    %v9478 = vsub.f32 %v268, %v9477
    %9479 = vmatpush2.msra.mxu0 %v9478
    %9480 = vmatprep.subr.mxu0 0.0
    %v9481 = vand.u32 %v267, 4294901760
    %v9482 = vsub.f32 %v267, %v9481
    %9483 = vmatpush2.msra.mxu0 %v9482
    %9484 = vmatprep.subr.mxu0 0.0
    %v9485 = vand.u32 %v266, 4294901760
    %v9486 = vsub.f32 %v266, %v9485
    %9487 = vmatpush2.msra.mxu0 %v9486
    %9488 = vmatprep.subr.mxu0 0.0
    %v9489 = vand.u32 %v265, 4294901760
    %v9490 = vsub.f32 %v265, %v9489
    %9491 = vmatpush2.msra.mxu0 %v9490
    %9492 = vmatprep.subr.mxu0 0.0
    %v9493 = vand.u32 %v264, 4294901760
    %v9494 = vsub.f32 %v264, %v9493
    %9495 = vmatpush2.msra.mxu0 %v9494
    %9496 = vmatprep.subr.mxu0 0.0
    %v9497 = vand.u32 %v263, 4294901760
    %v9498 = vsub.f32 %v263, %v9497
    %9499 = vmatpush2.msra.mxu0 %v9498
    %9500 = vmatprep.subr.mxu0 0.0
    %v9501 = vand.u32 %v262, 4294901760
    %v9502 = vsub.f32 %v262, %v9501
    %9503 = vmatpush2.msra.mxu0 %v9502
    %9504 = vmatprep.subr.mxu0 0.0
    %v9505 = vand.u32 %v261, 4294901760
    %v9506 = vsub.f32 %v261, %v9505
    %9507 = vmatpush2.msra.mxu0 %v9506
    %9508 = vmatprep.subr.mxu0 0.0
    %v9509 = vand.u32 %v260, 4294901760
    %v9510 = vsub.f32 %v260, %v9509
    %9511 = vmatpush2.msra.mxu0 %v9510
    %9512 = vmatprep.subr.mxu0 0.0
    %v9513 = vand.u32 %v259, 4294901760
    %v9514 = vsub.f32 %v259, %v9513
    %9515 = vmatpush2.msra.mxu0 %v9514
    %9516 = vmatprep.subr.mxu0 0.0
    %v9517 = vand.u32 %v258, 4294901760
    %v9518 = vsub.f32 %v258, %v9517
    %9519 = vmatpush2.msra.mxu0 %v9518
    %9520 = vmatprep.subr.mxu0 0.0
    %v9521 = vand.u32 %v257, 4294901760
    %v9522 = vsub.f32 %v257, %v9521
    %9523 = vmatpush2.msra.mxu0 %v9522
    %9524 = vmatprep.subr.mxu0 0.0
    %v9525 = vand.u32 %v256, 4294901760
    %v9526 = vsub.f32 %v256, %v9525
    %9527 = vmatpush2.msra.mxu0 %v9526
    %v9528 = vand.u32 %v7322, 4294901760
    %v9529 = vsub.f32 %v7322, %v9528
    %9530 = vmatprep.mubr.f32.mxu0 %v9529
    %v9531 = vand.u32 %v7314, 4294901760
    %v9532 = vsub.f32 %v7314, %v9531
    %9533 = vmatmul.mubr.f32.gmra.mxu0 %v9532
    %v9534 = vpop.f32.mrf.mxu0
    %v9535 = vadd.f32 %v9397, %v9534
    %v9536 = vpop.f32.mrf.mxu0
    %9537 = vdwg.mxu0
    %9538 = vmatprep.subr.mxu0 0.0
    %v9539 = vand.u32 %v255, 4294901760
    %9540 = vmatpush1.msra.mxu0 %v9539
    %9541 = vmatprep.subr.mxu0 0.0
    %v9542 = vand.u32 %v254, 4294901760
    %9543 = vmatpush1.msra.mxu0 %v9542
    %9544 = vmatprep.subr.mxu0 0.0
    %v9545 = vand.u32 %v253, 4294901760
    %9546 = vmatpush1.msra.mxu0 %v9545
    %9547 = vmatprep.subr.mxu0 0.0
    %v9548 = vand.u32 %v252, 4294901760
    %9549 = vmatpush1.msra.mxu0 %v9548
    %9550 = vmatprep.subr.mxu0 0.0
    %v9551 = vand.u32 %v251, 4294901760
    %9552 = vmatpush1.msra.mxu0 %v9551
    %9553 = vmatprep.subr.mxu0 0.0
    %v9554 = vand.u32 %v250, 4294901760
    %9555 = vmatpush1.msra.mxu0 %v9554
    %9556 = vmatprep.subr.mxu0 0.0
    %v9557 = vand.u32 %v249, 4294901760
    %9558 = vmatpush1.msra.mxu0 %v9557
    %9559 = vmatprep.subr.mxu0 0.0
    %v9560 = vand.u32 %v248, 4294901760
    %9561 = vmatpush1.msra.mxu0 %v9560
    %9562 = vmatprep.subr.mxu0 0.0
    %v9563 = vand.u32 %v247, 4294901760
    %9564 = vmatpush1.msra.mxu0 %v9563
    %9565 = vmatprep.subr.mxu0 0.0
    %v9566 = vand.u32 %v246, 4294901760
    %9567 = vmatpush1.msra.mxu0 %v9566
    %9568 = vmatprep.subr.mxu0 0.0
    %v9569 = vand.u32 %v245, 4294901760
    %9570 = vmatpush1.msra.mxu0 %v9569
    %9571 = vmatprep.subr.mxu0 0.0
    %v9572 = vand.u32 %v244, 4294901760
    %9573 = vmatpush1.msra.mxu0 %v9572
    %9574 = vmatprep.subr.mxu0 0.0
    %v9575 = vand.u32 %v243, 4294901760
    %9576 = vmatpush1.msra.mxu0 %v9575
    %9577 = vmatprep.subr.mxu0 0.0
    %v9578 = vand.u32 %v242, 4294901760
    %9579 = vmatpush1.msra.mxu0 %v9578
    %9580 = vmatprep.subr.mxu0 0.0
    %v9581 = vand.u32 %v241, 4294901760
    %9582 = vmatpush1.msra.mxu0 %v9581
    %9583 = vmatprep.subr.mxu0 0.0
    %v9584 = vand.u32 %v240, 4294901760
    %9585 = vmatpush1.msra.mxu0 %v9584
    %9586 = vmatprep.subr.mxu0 0.0
    %v9587 = vand.u32 %v271, 4294901760
    %9588 = vmatpush2.msra.mxu0 %v9587
    %9589 = vmatprep.subr.mxu0 0.0
    %v9590 = vand.u32 %v270, 4294901760
    %9591 = vmatpush2.msra.mxu0 %v9590
    %9592 = vmatprep.subr.mxu0 0.0
    %v9593 = vand.u32 %v269, 4294901760
    %9594 = vmatpush2.msra.mxu0 %v9593
    %9595 = vmatprep.subr.mxu0 0.0
    %v9596 = vand.u32 %v268, 4294901760
    %9597 = vmatpush2.msra.mxu0 %v9596
    %9598 = vmatprep.subr.mxu0 0.0
    %v9599 = vand.u32 %v267, 4294901760
    %9600 = vmatpush2.msra.mxu0 %v9599
    %9601 = vmatprep.subr.mxu0 0.0
    %v9602 = vand.u32 %v266, 4294901760
    %9603 = vmatpush2.msra.mxu0 %v9602
    %9604 = vmatprep.subr.mxu0 0.0
    %v9605 = vand.u32 %v265, 4294901760
    %9606 = vmatpush2.msra.mxu0 %v9605
    %9607 = vmatprep.subr.mxu0 0.0
    %v9608 = vand.u32 %v264, 4294901760
    %9609 = vmatpush2.msra.mxu0 %v9608
    %9610 = vmatprep.subr.mxu0 0.0
    %v9611 = vand.u32 %v263, 4294901760
    %9612 = vmatpush2.msra.mxu0 %v9611
    %9613 = vmatprep.subr.mxu0 0.0
    %v9614 = vand.u32 %v262, 4294901760
    %9615 = vmatpush2.msra.mxu0 %v9614
    %9616 = vmatprep.subr.mxu0 0.0
    %v9617 = vand.u32 %v261, 4294901760
    %9618 = vmatpush2.msra.mxu0 %v9617
    %9619 = vmatprep.subr.mxu0 0.0
    %v9620 = vand.u32 %v260, 4294901760
    %9621 = vmatpush2.msra.mxu0 %v9620
    %9622 = vmatprep.subr.mxu0 0.0
    %v9623 = vand.u32 %v259, 4294901760
    %9624 = vmatpush2.msra.mxu0 %v9623
    %9625 = vmatprep.subr.mxu0 0.0
    %v9626 = vand.u32 %v258, 4294901760
    %9627 = vmatpush2.msra.mxu0 %v9626
    %9628 = vmatprep.subr.mxu0 0.0
    %v9629 = vand.u32 %v257, 4294901760
    %9630 = vmatpush2.msra.mxu0 %v9629
    %9631 = vmatprep.subr.mxu0 0.0
    %v9632 = vand.u32 %v256, 4294901760
    %9633 = vmatpush2.msra.mxu0 %v9632
    %v9634 = vand.u32 %v7322, 4294901760
    %v9635 = vsub.f32 %v7322, %v9634
    %v9636 = vand.u32 %v9635, 4294901760
    %9637 = vmatprep.mubr.f32.mxu0 %v9636
    %v9638 = vand.u32 %v7314, 4294901760
    %v9639 = vsub.f32 %v7314, %v9638
    %v9640 = vand.u32 %v9639, 4294901760
    %9641 = vmatmul.mubr.f32.gmra.mxu0 %v9640
    %v9642 = vpop.f32.mrf.mxu0
    %v9643 = vadd.f32 %v9535, %v9642
    %v9644 = vpop.f32.mrf.mxu0
    %9645 = vdwg.mxu0
    %9646 = vmatprep.subr.mxu0 0.0
    %v9647 = vand.u32 %v255, 4294901760
    %v9648 = vsub.f32 %v255, %v9647
    %v9649 = vand.u32 %v9648, 4294901760
    %9650 = vmatpush1.msra.mxu0 %v9649
    %9651 = vmatprep.subr.mxu0 0.0
    %v9652 = vand.u32 %v254, 4294901760
    %v9653 = vsub.f32 %v254, %v9652
    %v9654 = vand.u32 %v9653, 4294901760
    %9655 = vmatpush1.msra.mxu0 %v9654
    %9656 = vmatprep.subr.mxu0 0.0
    %v9657 = vand.u32 %v253, 4294901760
    %v9658 = vsub.f32 %v253, %v9657
    %v9659 = vand.u32 %v9658, 4294901760
    %9660 = vmatpush1.msra.mxu0 %v9659
    %9661 = vmatprep.subr.mxu0 0.0
    %v9662 = vand.u32 %v252, 4294901760
    %v9663 = vsub.f32 %v252, %v9662
    %v9664 = vand.u32 %v9663, 4294901760
    %9665 = vmatpush1.msra.mxu0 %v9664
    %9666 = vmatprep.subr.mxu0 0.0
    %v9667 = vand.u32 %v251, 4294901760
    %v9668 = vsub.f32 %v251, %v9667
    %v9669 = vand.u32 %v9668, 4294901760
    %9670 = vmatpush1.msra.mxu0 %v9669
    %9671 = vmatprep.subr.mxu0 0.0
    %v9672 = vand.u32 %v250, 4294901760
    %v9673 = vsub.f32 %v250, %v9672
    %v9674 = vand.u32 %v9673, 4294901760
    %9675 = vmatpush1.msra.mxu0 %v9674
    %9676 = vmatprep.subr.mxu0 0.0
    %v9677 = vand.u32 %v249, 4294901760
    %v9678 = vsub.f32 %v249, %v9677
    %v9679 = vand.u32 %v9678, 4294901760
    %9680 = vmatpush1.msra.mxu0 %v9679
    %9681 = vmatprep.subr.mxu0 0.0
    %v9682 = vand.u32 %v248, 4294901760
    %v9683 = vsub.f32 %v248, %v9682
    %v9684 = vand.u32 %v9683, 4294901760
    %9685 = vmatpush1.msra.mxu0 %v9684
    %9686 = vmatprep.subr.mxu0 0.0
    %v9687 = vand.u32 %v247, 4294901760
    %v9688 = vsub.f32 %v247, %v9687
    %v9689 = vand.u32 %v9688, 4294901760
    %9690 = vmatpush1.msra.mxu0 %v9689
    %9691 = vmatprep.subr.mxu0 0.0
    %v9692 = vand.u32 %v246, 4294901760
    %v9693 = vsub.f32 %v246, %v9692
    %v9694 = vand.u32 %v9693, 4294901760
    %9695 = vmatpush1.msra.mxu0 %v9694
    %9696 = vmatprep.subr.mxu0 0.0
    %v9697 = vand.u32 %v245, 4294901760
    %v9698 = vsub.f32 %v245, %v9697
    %v9699 = vand.u32 %v9698, 4294901760
    %9700 = vmatpush1.msra.mxu0 %v9699
    %9701 = vmatprep.subr.mxu0 0.0
    %v9702 = vand.u32 %v244, 4294901760
    %v9703 = vsub.f32 %v244, %v9702
    %v9704 = vand.u32 %v9703, 4294901760
    %9705 = vmatpush1.msra.mxu0 %v9704
    %9706 = vmatprep.subr.mxu0 0.0
    %v9707 = vand.u32 %v243, 4294901760
    %v9708 = vsub.f32 %v243, %v9707
    %v9709 = vand.u32 %v9708, 4294901760
    %9710 = vmatpush1.msra.mxu0 %v9709
    %9711 = vmatprep.subr.mxu0 0.0
    %v9712 = vand.u32 %v242, 4294901760
    %v9713 = vsub.f32 %v242, %v9712
    %v9714 = vand.u32 %v9713, 4294901760
    %9715 = vmatpush1.msra.mxu0 %v9714
    %9716 = vmatprep.subr.mxu0 0.0
    %v9717 = vand.u32 %v241, 4294901760
    %v9718 = vsub.f32 %v241, %v9717
    %v9719 = vand.u32 %v9718, 4294901760
    %9720 = vmatpush1.msra.mxu0 %v9719
    %9721 = vmatprep.subr.mxu0 0.0
    %v9722 = vand.u32 %v240, 4294901760
    %v9723 = vsub.f32 %v240, %v9722
    %v9724 = vand.u32 %v9723, 4294901760
    %9725 = vmatpush1.msra.mxu0 %v9724
    %9726 = vmatprep.subr.mxu0 0.0
    %v9727 = vand.u32 %v271, 4294901760
    %v9728 = vsub.f32 %v271, %v9727
    %v9729 = vand.u32 %v9728, 4294901760
    %9730 = vmatpush2.msra.mxu0 %v9729
    %9731 = vmatprep.subr.mxu0 0.0
    %v9732 = vand.u32 %v270, 4294901760
    %v9733 = vsub.f32 %v270, %v9732
    %v9734 = vand.u32 %v9733, 4294901760
    %9735 = vmatpush2.msra.mxu0 %v9734
    %9736 = vmatprep.subr.mxu0 0.0
    %v9737 = vand.u32 %v269, 4294901760
    %v9738 = vsub.f32 %v269, %v9737
    %v9739 = vand.u32 %v9738, 4294901760
    %9740 = vmatpush2.msra.mxu0 %v9739
    %9741 = vmatprep.subr.mxu0 0.0
    %v9742 = vand.u32 %v268, 4294901760
    %v9743 = vsub.f32 %v268, %v9742
    %v9744 = vand.u32 %v9743, 4294901760
    %9745 = vmatpush2.msra.mxu0 %v9744
    %9746 = vmatprep.subr.mxu0 0.0
    %v9747 = vand.u32 %v267, 4294901760
    %v9748 = vsub.f32 %v267, %v9747
    %v9749 = vand.u32 %v9748, 4294901760
    %9750 = vmatpush2.msra.mxu0 %v9749
    %9751 = vmatprep.subr.mxu0 0.0
    %v9752 = vand.u32 %v266, 4294901760
    %v9753 = vsub.f32 %v266, %v9752
    %v9754 = vand.u32 %v9753, 4294901760
    %9755 = vmatpush2.msra.mxu0 %v9754
    %9756 = vmatprep.subr.mxu0 0.0
    %v9757 = vand.u32 %v265, 4294901760
    %v9758 = vsub.f32 %v265, %v9757
    %v9759 = vand.u32 %v9758, 4294901760
    %9760 = vmatpush2.msra.mxu0 %v9759
    %9761 = vmatprep.subr.mxu0 0.0
    %v9762 = vand.u32 %v264, 4294901760
    %v9763 = vsub.f32 %v264, %v9762
    %v9764 = vand.u32 %v9763, 4294901760
    %9765 = vmatpush2.msra.mxu0 %v9764
    %9766 = vmatprep.subr.mxu0 0.0
    %v9767 = vand.u32 %v263, 4294901760
    %v9768 = vsub.f32 %v263, %v9767
    %v9769 = vand.u32 %v9768, 4294901760
    %9770 = vmatpush2.msra.mxu0 %v9769
    %9771 = vmatprep.subr.mxu0 0.0
    %v9772 = vand.u32 %v262, 4294901760
    %v9773 = vsub.f32 %v262, %v9772
    %v9774 = vand.u32 %v9773, 4294901760
    %9775 = vmatpush2.msra.mxu0 %v9774
    %9776 = vmatprep.subr.mxu0 0.0
    %v9777 = vand.u32 %v261, 4294901760
    %v9778 = vsub.f32 %v261, %v9777
    %v9779 = vand.u32 %v9778, 4294901760
    %9780 = vmatpush2.msra.mxu0 %v9779
    %9781 = vmatprep.subr.mxu0 0.0
    %v9782 = vand.u32 %v260, 4294901760
    %v9783 = vsub.f32 %v260, %v9782
    %v9784 = vand.u32 %v9783, 4294901760
    %9785 = vmatpush2.msra.mxu0 %v9784
    %9786 = vmatprep.subr.mxu0 0.0
    %v9787 = vand.u32 %v259, 4294901760
    %v9788 = vsub.f32 %v259, %v9787
    %v9789 = vand.u32 %v9788, 4294901760
    %9790 = vmatpush2.msra.mxu0 %v9789
    %9791 = vmatprep.subr.mxu0 0.0
    %v9792 = vand.u32 %v258, 4294901760
    %v9793 = vsub.f32 %v258, %v9792
    %v9794 = vand.u32 %v9793, 4294901760
    %9795 = vmatpush2.msra.mxu0 %v9794
    %9796 = vmatprep.subr.mxu0 0.0
    %v9797 = vand.u32 %v257, 4294901760
    %v9798 = vsub.f32 %v257, %v9797
    %v9799 = vand.u32 %v9798, 4294901760
    %9800 = vmatpush2.msra.mxu0 %v9799
    %9801 = vmatprep.subr.mxu0 0.0
    %v9802 = vand.u32 %v256, 4294901760
    %v9803 = vsub.f32 %v256, %v9802
    %v9804 = vand.u32 %v9803, 4294901760
    %9805 = vmatpush2.msra.mxu0 %v9804
    %v9806 = vand.u32 %v7322, 4294901760
    %9807 = vmatprep.mubr.f32.mxu0 %v9806
    %v9808 = vand.u32 %v7314, 4294901760
    %9809 = vmatmul.mubr.f32.gmra.mxu0 %v9808
    %v9810 = vpop.f32.mrf.mxu0
    %v9811 = vadd.f32 %v9643, %v9810
    %v9812 = vpop.f32.mrf.mxu0
    %9813 = vdwg.mxu0
    %9814 = vmatprep.subr.mxu0 0.0
    %v9815 = vand.u32 %v255, 4294901760
    %9816 = vmatpush1.msra.mxu0 %v9815
    %9817 = vmatprep.subr.mxu0 0.0
    %v9818 = vand.u32 %v254, 4294901760
    %9819 = vmatpush1.msra.mxu0 %v9818
    %9820 = vmatprep.subr.mxu0 0.0
    %v9821 = vand.u32 %v253, 4294901760
    %9822 = vmatpush1.msra.mxu0 %v9821
    %9823 = vmatprep.subr.mxu0 0.0
    %v9824 = vand.u32 %v252, 4294901760
    %9825 = vmatpush1.msra.mxu0 %v9824
    %9826 = vmatprep.subr.mxu0 0.0
    %v9827 = vand.u32 %v251, 4294901760
    %9828 = vmatpush1.msra.mxu0 %v9827
    %9829 = vmatprep.subr.mxu0 0.0
    %v9830 = vand.u32 %v250, 4294901760
    %9831 = vmatpush1.msra.mxu0 %v9830
    %9832 = vmatprep.subr.mxu0 0.0
    %v9833 = vand.u32 %v249, 4294901760
    %9834 = vmatpush1.msra.mxu0 %v9833
    %9835 = vmatprep.subr.mxu0 0.0
    %v9836 = vand.u32 %v248, 4294901760
    %9837 = vmatpush1.msra.mxu0 %v9836
    %9838 = vmatprep.subr.mxu0 0.0
    %v9839 = vand.u32 %v247, 4294901760
    %9840 = vmatpush1.msra.mxu0 %v9839
    %9841 = vmatprep.subr.mxu0 0.0
    %v9842 = vand.u32 %v246, 4294901760
    %9843 = vmatpush1.msra.mxu0 %v9842
    %9844 = vmatprep.subr.mxu0 0.0
    %v9845 = vand.u32 %v245, 4294901760
    %9846 = vmatpush1.msra.mxu0 %v9845
    %9847 = vmatprep.subr.mxu0 0.0
    %v9848 = vand.u32 %v244, 4294901760
    %9849 = vmatpush1.msra.mxu0 %v9848
    %9850 = vmatprep.subr.mxu0 0.0
    %v9851 = vand.u32 %v243, 4294901760
    %9852 = vmatpush1.msra.mxu0 %v9851
    %9853 = vmatprep.subr.mxu0 0.0
    %v9854 = vand.u32 %v242, 4294901760
    %9855 = vmatpush1.msra.mxu0 %v9854
    %9856 = vmatprep.subr.mxu0 0.0
    %v9857 = vand.u32 %v241, 4294901760
    %9858 = vmatpush1.msra.mxu0 %v9857
    %9859 = vmatprep.subr.mxu0 0.0
    %v9860 = vand.u32 %v240, 4294901760
    %9861 = vmatpush1.msra.mxu0 %v9860
    %9862 = vmatprep.subr.mxu0 0.0
    %v9863 = vand.u32 %v271, 4294901760
    %9864 = vmatpush2.msra.mxu0 %v9863
    %9865 = vmatprep.subr.mxu0 0.0
    %v9866 = vand.u32 %v270, 4294901760
    %9867 = vmatpush2.msra.mxu0 %v9866
    %9868 = vmatprep.subr.mxu0 0.0
    %v9869 = vand.u32 %v269, 4294901760
    %9870 = vmatpush2.msra.mxu0 %v9869
    %9871 = vmatprep.subr.mxu0 0.0
    %v9872 = vand.u32 %v268, 4294901760
    %9873 = vmatpush2.msra.mxu0 %v9872
    %9874 = vmatprep.subr.mxu0 0.0
    %v9875 = vand.u32 %v267, 4294901760
    %9876 = vmatpush2.msra.mxu0 %v9875
    %9877 = vmatprep.subr.mxu0 0.0
    %v9878 = vand.u32 %v266, 4294901760
    %9879 = vmatpush2.msra.mxu0 %v9878
    %9880 = vmatprep.subr.mxu0 0.0
    %v9881 = vand.u32 %v265, 4294901760
    %9882 = vmatpush2.msra.mxu0 %v9881
    %9883 = vmatprep.subr.mxu0 0.0
    %v9884 = vand.u32 %v264, 4294901760
    %9885 = vmatpush2.msra.mxu0 %v9884
    %9886 = vmatprep.subr.mxu0 0.0
    %v9887 = vand.u32 %v263, 4294901760
    %9888 = vmatpush2.msra.mxu0 %v9887
    %9889 = vmatprep.subr.mxu0 0.0
    %v9890 = vand.u32 %v262, 4294901760
    %9891 = vmatpush2.msra.mxu0 %v9890
    %9892 = vmatprep.subr.mxu0 0.0
    %v9893 = vand.u32 %v261, 4294901760
    %9894 = vmatpush2.msra.mxu0 %v9893
    %9895 = vmatprep.subr.mxu0 0.0
    %v9896 = vand.u32 %v260, 4294901760
    %9897 = vmatpush2.msra.mxu0 %v9896
    %9898 = vmatprep.subr.mxu0 0.0
    %v9899 = vand.u32 %v259, 4294901760
    %9900 = vmatpush2.msra.mxu0 %v9899
    %9901 = vmatprep.subr.mxu0 0.0
    %v9902 = vand.u32 %v258, 4294901760
    %9903 = vmatpush2.msra.mxu0 %v9902
    %9904 = vmatprep.subr.mxu0 0.0
    %v9905 = vand.u32 %v257, 4294901760
    %9906 = vmatpush2.msra.mxu0 %v9905
    %9907 = vmatprep.subr.mxu0 0.0
    %v9908 = vand.u32 %v256, 4294901760
    %9909 = vmatpush2.msra.mxu0 %v9908
    %v9910 = vand.u32 %v7322, 4294901760
    %9911 = vmatprep.mubr.f32.mxu0 %v9910
    %v9912 = vand.u32 %v7314, 4294901760
    %9913 = vmatmul.mubr.f32.gmra.mxu0 %v9912
    %v9914 = vpop.f32.mrf.mxu0
    %v9915 = vadd.f32 %v9811, %v9914
    %v9916 = vpop.f32.mrf.mxu0
    %9917 = vdwg.mxu0
    %9918 = vmatprep.subr.mxu0 0.0
    %v9919 = vand.u32 %v287, 4294901760
    %9920 = vmatpush1.msra.mxu0 %v9919
    %9921 = vmatprep.subr.mxu0 0.0
    %v9922 = vand.u32 %v286, 4294901760
    %9923 = vmatpush1.msra.mxu0 %v9922
    %9924 = vmatprep.subr.mxu0 0.0
    %v9925 = vand.u32 %v285, 4294901760
    %9926 = vmatpush1.msra.mxu0 %v9925
    %9927 = vmatprep.subr.mxu0 0.0
    %v9928 = vand.u32 %v284, 4294901760
    %9929 = vmatpush1.msra.mxu0 %v9928
    %9930 = vmatprep.subr.mxu0 0.0
    %v9931 = vand.u32 %v283, 4294901760
    %9932 = vmatpush1.msra.mxu0 %v9931
    %9933 = vmatprep.subr.mxu0 0.0
    %v9934 = vand.u32 %v282, 4294901760
    %9935 = vmatpush1.msra.mxu0 %v9934
    %9936 = vmatprep.subr.mxu0 0.0
    %v9937 = vand.u32 %v281, 4294901760
    %9938 = vmatpush1.msra.mxu0 %v9937
    %9939 = vmatprep.subr.mxu0 0.0
    %v9940 = vand.u32 %v280, 4294901760
    %9941 = vmatpush1.msra.mxu0 %v9940
    %9942 = vmatprep.subr.mxu0 0.0
    %v9943 = vand.u32 %v279, 4294901760
    %9944 = vmatpush1.msra.mxu0 %v9943
    %9945 = vmatprep.subr.mxu0 0.0
    %v9946 = vand.u32 %v278, 4294901760
    %9947 = vmatpush1.msra.mxu0 %v9946
    %9948 = vmatprep.subr.mxu0 0.0
    %v9949 = vand.u32 %v277, 4294901760
    %9950 = vmatpush1.msra.mxu0 %v9949
    %9951 = vmatprep.subr.mxu0 0.0
    %v9952 = vand.u32 %v276, 4294901760
    %9953 = vmatpush1.msra.mxu0 %v9952
    %9954 = vmatprep.subr.mxu0 0.0
    %v9955 = vand.u32 %v275, 4294901760
    %9956 = vmatpush1.msra.mxu0 %v9955
    %9957 = vmatprep.subr.mxu0 0.0
    %v9958 = vand.u32 %v274, 4294901760
    %9959 = vmatpush1.msra.mxu0 %v9958
    %9960 = vmatprep.subr.mxu0 0.0
    %v9961 = vand.u32 %v273, 4294901760
    %9962 = vmatpush1.msra.mxu0 %v9961
    %9963 = vmatprep.subr.mxu0 0.0
    %v9964 = vand.u32 %v272, 4294901760
    %9965 = vmatpush1.msra.mxu0 %v9964
    %9966 = vmatprep.subr.mxu0 0.0
    %v9967 = vand.u32 %v303, 4294901760
    %9968 = vmatpush2.msra.mxu0 %v9967
    %9969 = vmatprep.subr.mxu0 0.0
    %v9970 = vand.u32 %v302, 4294901760
    %9971 = vmatpush2.msra.mxu0 %v9970
    %9972 = vmatprep.subr.mxu0 0.0
    %v9973 = vand.u32 %v301, 4294901760
    %9974 = vmatpush2.msra.mxu0 %v9973
    %9975 = vmatprep.subr.mxu0 0.0
    %v9976 = vand.u32 %v300, 4294901760
    %9977 = vmatpush2.msra.mxu0 %v9976
    %9978 = vmatprep.subr.mxu0 0.0
    %v9979 = vand.u32 %v299, 4294901760
    %9980 = vmatpush2.msra.mxu0 %v9979
    %9981 = vmatprep.subr.mxu0 0.0
    %v9982 = vand.u32 %v298, 4294901760
    %9983 = vmatpush2.msra.mxu0 %v9982
    %9984 = vmatprep.subr.mxu0 0.0
    %v9985 = vand.u32 %v297, 4294901760
    %9986 = vmatpush2.msra.mxu0 %v9985
    %9987 = vmatprep.subr.mxu0 0.0
    %v9988 = vand.u32 %v296, 4294901760
    %9989 = vmatpush2.msra.mxu0 %v9988
    %9990 = vmatprep.subr.mxu0 0.0
    %v9991 = vand.u32 %v295, 4294901760
    %9992 = vmatpush2.msra.mxu0 %v9991
    %9993 = vmatprep.subr.mxu0 0.0
    %v9994 = vand.u32 %v294, 4294901760
    %9995 = vmatpush2.msra.mxu0 %v9994
    %9996 = vmatprep.subr.mxu0 0.0
    %v9997 = vand.u32 %v293, 4294901760
    %9998 = vmatpush2.msra.mxu0 %v9997
    %9999 = vmatprep.subr.mxu0 0.0
    %v10000 = vand.u32 %v292, 4294901760
    %10001 = vmatpush2.msra.mxu0 %v10000
    %10002 = vmatprep.subr.mxu0 0.0
    %v10003 = vand.u32 %v291, 4294901760
    %10004 = vmatpush2.msra.mxu0 %v10003
    %10005 = vmatprep.subr.mxu0 0.0
    %v10006 = vand.u32 %v290, 4294901760
    %10007 = vmatpush2.msra.mxu0 %v10006
    %10008 = vmatprep.subr.mxu0 0.0
    %v10009 = vand.u32 %v289, 4294901760
    %10010 = vmatpush2.msra.mxu0 %v10009
    %10011 = vmatprep.subr.mxu0 0.0
    %v10012 = vand.u32 %v288, 4294901760
    %10013 = vmatpush2.msra.mxu0 %v10012
    %v10014 = vand.u32 %v7323, 4294901760
    %v10015 = vsub.f32 %v7323, %v10014
    %v10016 = vand.u32 %v10015, 4294901760
    %v10017 = vsub.f32 %v10015, %v10016
    %v10018 = vand.u32 %v10017, 4294901760
    %10019 = vmatprep.mubr.f32.mxu0 %v10018
    %v10020 = vand.u32 %v7321, 4294901760
    %v10021 = vsub.f32 %v7321, %v10020
    %v10022 = vand.u32 %v10021, 4294901760
    %v10023 = vsub.f32 %v10021, %v10022
    %v10024 = vand.u32 %v10023, 4294901760
    %10025 = vmatmul.mubr.f32.gmra.mxu0 %v10024
    %v10026 = vpop.f32.mrf.mxu0
    %v10027 = vadd.f32 %v9915, %v10026
    %v10028 = vpop.f32.mrf.mxu0
    %10029 = vdwg.mxu0
    %10030 = vmatprep.subr.mxu0 0.0
    %v10031 = vand.u32 %v287, 4294901760
    %v10032 = vsub.f32 %v287, %v10031
    %v10033 = vand.u32 %v10032, 4294901760
    %v10034 = vsub.f32 %v10032, %v10033
    %v10035 = vand.u32 %v10034, 4294901760
    %10036 = vmatpush1.msra.mxu0 %v10035
    %10037 = vmatprep.subr.mxu0 0.0
    %v10038 = vand.u32 %v286, 4294901760
    %v10039 = vsub.f32 %v286, %v10038
    %v10040 = vand.u32 %v10039, 4294901760
    %v10041 = vsub.f32 %v10039, %v10040
    %v10042 = vand.u32 %v10041, 4294901760
    %10043 = vmatpush1.msra.mxu0 %v10042
    %10044 = vmatprep.subr.mxu0 0.0
    %v10045 = vand.u32 %v285, 4294901760
    %v10046 = vsub.f32 %v285, %v10045
    %v10047 = vand.u32 %v10046, 4294901760
    %v10048 = vsub.f32 %v10046, %v10047
    %v10049 = vand.u32 %v10048, 4294901760
    %10050 = vmatpush1.msra.mxu0 %v10049
    %10051 = vmatprep.subr.mxu0 0.0
    %v10052 = vand.u32 %v284, 4294901760
    %v10053 = vsub.f32 %v284, %v10052
    %v10054 = vand.u32 %v10053, 4294901760
    %v10055 = vsub.f32 %v10053, %v10054
    %v10056 = vand.u32 %v10055, 4294901760
    %10057 = vmatpush1.msra.mxu0 %v10056
    %10058 = vmatprep.subr.mxu0 0.0
    %v10059 = vand.u32 %v283, 4294901760
    %v10060 = vsub.f32 %v283, %v10059
    %v10061 = vand.u32 %v10060, 4294901760
    %v10062 = vsub.f32 %v10060, %v10061
    %v10063 = vand.u32 %v10062, 4294901760
    %10064 = vmatpush1.msra.mxu0 %v10063
    %10065 = vmatprep.subr.mxu0 0.0
    %v10066 = vand.u32 %v282, 4294901760
    %v10067 = vsub.f32 %v282, %v10066
    %v10068 = vand.u32 %v10067, 4294901760
    %v10069 = vsub.f32 %v10067, %v10068
    %v10070 = vand.u32 %v10069, 4294901760
    %10071 = vmatpush1.msra.mxu0 %v10070
    %10072 = vmatprep.subr.mxu0 0.0
    %v10073 = vand.u32 %v281, 4294901760
    %v10074 = vsub.f32 %v281, %v10073
    %v10075 = vand.u32 %v10074, 4294901760
    %v10076 = vsub.f32 %v10074, %v10075
    %v10077 = vand.u32 %v10076, 4294901760
    %10078 = vmatpush1.msra.mxu0 %v10077
    %10079 = vmatprep.subr.mxu0 0.0
    %v10080 = vand.u32 %v280, 4294901760
    %v10081 = vsub.f32 %v280, %v10080
    %v10082 = vand.u32 %v10081, 4294901760
    %v10083 = vsub.f32 %v10081, %v10082
    %v10084 = vand.u32 %v10083, 4294901760
    %10085 = vmatpush1.msra.mxu0 %v10084
    %10086 = vmatprep.subr.mxu0 0.0
    %v10087 = vand.u32 %v279, 4294901760
    %v10088 = vsub.f32 %v279, %v10087
    %v10089 = vand.u32 %v10088, 4294901760
    %v10090 = vsub.f32 %v10088, %v10089
    %v10091 = vand.u32 %v10090, 4294901760
    %10092 = vmatpush1.msra.mxu0 %v10091
    %10093 = vmatprep.subr.mxu0 0.0
    %v10094 = vand.u32 %v278, 4294901760
    %v10095 = vsub.f32 %v278, %v10094
    %v10096 = vand.u32 %v10095, 4294901760
    %v10097 = vsub.f32 %v10095, %v10096
    %v10098 = vand.u32 %v10097, 4294901760
    %10099 = vmatpush1.msra.mxu0 %v10098
    %10100 = vmatprep.subr.mxu0 0.0
    %v10101 = vand.u32 %v277, 4294901760
    %v10102 = vsub.f32 %v277, %v10101
    %v10103 = vand.u32 %v10102, 4294901760
    %v10104 = vsub.f32 %v10102, %v10103
    %v10105 = vand.u32 %v10104, 4294901760
    %10106 = vmatpush1.msra.mxu0 %v10105
    %10107 = vmatprep.subr.mxu0 0.0
    %v10108 = vand.u32 %v276, 4294901760
    %v10109 = vsub.f32 %v276, %v10108
    %v10110 = vand.u32 %v10109, 4294901760
    %v10111 = vsub.f32 %v10109, %v10110
    %v10112 = vand.u32 %v10111, 4294901760
    %10113 = vmatpush1.msra.mxu0 %v10112
    %10114 = vmatprep.subr.mxu0 0.0
    %v10115 = vand.u32 %v275, 4294901760
    %v10116 = vsub.f32 %v275, %v10115
    %v10117 = vand.u32 %v10116, 4294901760
    %v10118 = vsub.f32 %v10116, %v10117
    %v10119 = vand.u32 %v10118, 4294901760
    %10120 = vmatpush1.msra.mxu0 %v10119
    %10121 = vmatprep.subr.mxu0 0.0
    %v10122 = vand.u32 %v274, 4294901760
    %v10123 = vsub.f32 %v274, %v10122
    %v10124 = vand.u32 %v10123, 4294901760
    %v10125 = vsub.f32 %v10123, %v10124
    %v10126 = vand.u32 %v10125, 4294901760
    %10127 = vmatpush1.msra.mxu0 %v10126
    %10128 = vmatprep.subr.mxu0 0.0
    %v10129 = vand.u32 %v273, 4294901760
    %v10130 = vsub.f32 %v273, %v10129
    %v10131 = vand.u32 %v10130, 4294901760
    %v10132 = vsub.f32 %v10130, %v10131
    %v10133 = vand.u32 %v10132, 4294901760
    %10134 = vmatpush1.msra.mxu0 %v10133
    %10135 = vmatprep.subr.mxu0 0.0
    %v10136 = vand.u32 %v272, 4294901760
    %v10137 = vsub.f32 %v272, %v10136
    %v10138 = vand.u32 %v10137, 4294901760
    %v10139 = vsub.f32 %v10137, %v10138
    %v10140 = vand.u32 %v10139, 4294901760
    %10141 = vmatpush1.msra.mxu0 %v10140
    %10142 = vmatprep.subr.mxu0 0.0
    %v10143 = vand.u32 %v303, 4294901760
    %v10144 = vsub.f32 %v303, %v10143
    %v10145 = vand.u32 %v10144, 4294901760
    %v10146 = vsub.f32 %v10144, %v10145
    %v10147 = vand.u32 %v10146, 4294901760
    %10148 = vmatpush2.msra.mxu0 %v10147
    %10149 = vmatprep.subr.mxu0 0.0
    %v10150 = vand.u32 %v302, 4294901760
    %v10151 = vsub.f32 %v302, %v10150
    %v10152 = vand.u32 %v10151, 4294901760
    %v10153 = vsub.f32 %v10151, %v10152
    %v10154 = vand.u32 %v10153, 4294901760
    %10155 = vmatpush2.msra.mxu0 %v10154
    %10156 = vmatprep.subr.mxu0 0.0
    %v10157 = vand.u32 %v301, 4294901760
    %v10158 = vsub.f32 %v301, %v10157
    %v10159 = vand.u32 %v10158, 4294901760
    %v10160 = vsub.f32 %v10158, %v10159
    %v10161 = vand.u32 %v10160, 4294901760
    %10162 = vmatpush2.msra.mxu0 %v10161
    %10163 = vmatprep.subr.mxu0 0.0
    %v10164 = vand.u32 %v300, 4294901760
    %v10165 = vsub.f32 %v300, %v10164
    %v10166 = vand.u32 %v10165, 4294901760
    %v10167 = vsub.f32 %v10165, %v10166
    %v10168 = vand.u32 %v10167, 4294901760
    %10169 = vmatpush2.msra.mxu0 %v10168
    %10170 = vmatprep.subr.mxu0 0.0
    %v10171 = vand.u32 %v299, 4294901760
    %v10172 = vsub.f32 %v299, %v10171
    %v10173 = vand.u32 %v10172, 4294901760
    %v10174 = vsub.f32 %v10172, %v10173
    %v10175 = vand.u32 %v10174, 4294901760
    %10176 = vmatpush2.msra.mxu0 %v10175
    %10177 = vmatprep.subr.mxu0 0.0
    %v10178 = vand.u32 %v298, 4294901760
    %v10179 = vsub.f32 %v298, %v10178
    %v10180 = vand.u32 %v10179, 4294901760
    %v10181 = vsub.f32 %v10179, %v10180
    %v10182 = vand.u32 %v10181, 4294901760
    %10183 = vmatpush2.msra.mxu0 %v10182
    %10184 = vmatprep.subr.mxu0 0.0
    %v10185 = vand.u32 %v297, 4294901760
    %v10186 = vsub.f32 %v297, %v10185
    %v10187 = vand.u32 %v10186, 4294901760
    %v10188 = vsub.f32 %v10186, %v10187
    %v10189 = vand.u32 %v10188, 4294901760
    %10190 = vmatpush2.msra.mxu0 %v10189
    %10191 = vmatprep.subr.mxu0 0.0
    %v10192 = vand.u32 %v296, 4294901760
    %v10193 = vsub.f32 %v296, %v10192
    %v10194 = vand.u32 %v10193, 4294901760
    %v10195 = vsub.f32 %v10193, %v10194
    %v10196 = vand.u32 %v10195, 4294901760
    %10197 = vmatpush2.msra.mxu0 %v10196
    %10198 = vmatprep.subr.mxu0 0.0
    %v10199 = vand.u32 %v295, 4294901760
    %v10200 = vsub.f32 %v295, %v10199
    %v10201 = vand.u32 %v10200, 4294901760
    %v10202 = vsub.f32 %v10200, %v10201
    %v10203 = vand.u32 %v10202, 4294901760
    %10204 = vmatpush2.msra.mxu0 %v10203
    %10205 = vmatprep.subr.mxu0 0.0
    %v10206 = vand.u32 %v294, 4294901760
    %v10207 = vsub.f32 %v294, %v10206
    %v10208 = vand.u32 %v10207, 4294901760
    %v10209 = vsub.f32 %v10207, %v10208
    %v10210 = vand.u32 %v10209, 4294901760
    %10211 = vmatpush2.msra.mxu0 %v10210
    %10212 = vmatprep.subr.mxu0 0.0
    %v10213 = vand.u32 %v293, 4294901760
    %v10214 = vsub.f32 %v293, %v10213
    %v10215 = vand.u32 %v10214, 4294901760
    %v10216 = vsub.f32 %v10214, %v10215
    %v10217 = vand.u32 %v10216, 4294901760
    %10218 = vmatpush2.msra.mxu0 %v10217
    %10219 = vmatprep.subr.mxu0 0.0
    %v10220 = vand.u32 %v292, 4294901760
    %v10221 = vsub.f32 %v292, %v10220
    %v10222 = vand.u32 %v10221, 4294901760
    %v10223 = vsub.f32 %v10221, %v10222
    %v10224 = vand.u32 %v10223, 4294901760
    %10225 = vmatpush2.msra.mxu0 %v10224
    %10226 = vmatprep.subr.mxu0 0.0
    %v10227 = vand.u32 %v291, 4294901760
    %v10228 = vsub.f32 %v291, %v10227
    %v10229 = vand.u32 %v10228, 4294901760
    %v10230 = vsub.f32 %v10228, %v10229
    %v10231 = vand.u32 %v10230, 4294901760
    %10232 = vmatpush2.msra.mxu0 %v10231
    %10233 = vmatprep.subr.mxu0 0.0
    %v10234 = vand.u32 %v290, 4294901760
    %v10235 = vsub.f32 %v290, %v10234
    %v10236 = vand.u32 %v10235, 4294901760
    %v10237 = vsub.f32 %v10235, %v10236
    %v10238 = vand.u32 %v10237, 4294901760
    %10239 = vmatpush2.msra.mxu0 %v10238
    %10240 = vmatprep.subr.mxu0 0.0
    %v10241 = vand.u32 %v289, 4294901760
    %v10242 = vsub.f32 %v289, %v10241
    %v10243 = vand.u32 %v10242, 4294901760
    %v10244 = vsub.f32 %v10242, %v10243
    %v10245 = vand.u32 %v10244, 4294901760
    %10246 = vmatpush2.msra.mxu0 %v10245
    %10247 = vmatprep.subr.mxu0 0.0
    %v10248 = vand.u32 %v288, 4294901760
    %v10249 = vsub.f32 %v288, %v10248
    %v10250 = vand.u32 %v10249, 4294901760
    %v10251 = vsub.f32 %v10249, %v10250
    %v10252 = vand.u32 %v10251, 4294901760
    %10253 = vmatpush2.msra.mxu0 %v10252
    %v10254 = vand.u32 %v7323, 4294901760
    %10255 = vmatprep.mubr.f32.mxu0 %v10254
    %v10256 = vand.u32 %v7321, 4294901760
    %10257 = vmatmul.mubr.f32.gmra.mxu0 %v10256
    %v10258 = vpop.f32.mrf.mxu0
    %v10259 = vadd.f32 %v10027, %v10258
    %v10260 = vpop.f32.mrf.mxu0
    %10261 = vdwg.mxu0
    %10262 = vmatprep.subr.mxu0 0.0
    %v10263 = vand.u32 %v287, 4294901760
    %v10264 = vsub.f32 %v287, %v10263
    %10265 = vmatpush1.msra.mxu0 %v10264
    %10266 = vmatprep.subr.mxu0 0.0
    %v10267 = vand.u32 %v286, 4294901760
    %v10268 = vsub.f32 %v286, %v10267
    %10269 = vmatpush1.msra.mxu0 %v10268
    %10270 = vmatprep.subr.mxu0 0.0
    %v10271 = vand.u32 %v285, 4294901760
    %v10272 = vsub.f32 %v285, %v10271
    %10273 = vmatpush1.msra.mxu0 %v10272
    %10274 = vmatprep.subr.mxu0 0.0
    %v10275 = vand.u32 %v284, 4294901760
    %v10276 = vsub.f32 %v284, %v10275
    %10277 = vmatpush1.msra.mxu0 %v10276
    %10278 = vmatprep.subr.mxu0 0.0
    %v10279 = vand.u32 %v283, 4294901760
    %v10280 = vsub.f32 %v283, %v10279
    %10281 = vmatpush1.msra.mxu0 %v10280
    %10282 = vmatprep.subr.mxu0 0.0
    %v10283 = vand.u32 %v282, 4294901760
    %v10284 = vsub.f32 %v282, %v10283
    %10285 = vmatpush1.msra.mxu0 %v10284
    %10286 = vmatprep.subr.mxu0 0.0
    %v10287 = vand.u32 %v281, 4294901760
    %v10288 = vsub.f32 %v281, %v10287
    %10289 = vmatpush1.msra.mxu0 %v10288
    %10290 = vmatprep.subr.mxu0 0.0
    %v10291 = vand.u32 %v280, 4294901760
    %v10292 = vsub.f32 %v280, %v10291
    %10293 = vmatpush1.msra.mxu0 %v10292
    %10294 = vmatprep.subr.mxu0 0.0
    %v10295 = vand.u32 %v279, 4294901760
    %v10296 = vsub.f32 %v279, %v10295
    %10297 = vmatpush1.msra.mxu0 %v10296
    %10298 = vmatprep.subr.mxu0 0.0
    %v10299 = vand.u32 %v278, 4294901760
    %v10300 = vsub.f32 %v278, %v10299
    %10301 = vmatpush1.msra.mxu0 %v10300
    %10302 = vmatprep.subr.mxu0 0.0
    %v10303 = vand.u32 %v277, 4294901760
    %v10304 = vsub.f32 %v277, %v10303
    %10305 = vmatpush1.msra.mxu0 %v10304
    %10306 = vmatprep.subr.mxu0 0.0
    %v10307 = vand.u32 %v276, 4294901760
    %v10308 = vsub.f32 %v276, %v10307
    %10309 = vmatpush1.msra.mxu0 %v10308
    %10310 = vmatprep.subr.mxu0 0.0
    %v10311 = vand.u32 %v275, 4294901760
    %v10312 = vsub.f32 %v275, %v10311
    %10313 = vmatpush1.msra.mxu0 %v10312
    %10314 = vmatprep.subr.mxu0 0.0
    %v10315 = vand.u32 %v274, 4294901760
    %v10316 = vsub.f32 %v274, %v10315
    %10317 = vmatpush1.msra.mxu0 %v10316
    %10318 = vmatprep.subr.mxu0 0.0
    %v10319 = vand.u32 %v273, 4294901760
    %v10320 = vsub.f32 %v273, %v10319
    %10321 = vmatpush1.msra.mxu0 %v10320
    %10322 = vmatprep.subr.mxu0 0.0
    %v10323 = vand.u32 %v272, 4294901760
    %v10324 = vsub.f32 %v272, %v10323
    %10325 = vmatpush1.msra.mxu0 %v10324
    %10326 = vmatprep.subr.mxu0 0.0
    %v10327 = vand.u32 %v303, 4294901760
    %v10328 = vsub.f32 %v303, %v10327
    %10329 = vmatpush2.msra.mxu0 %v10328
    %10330 = vmatprep.subr.mxu0 0.0
    %v10331 = vand.u32 %v302, 4294901760
    %v10332 = vsub.f32 %v302, %v10331
    %10333 = vmatpush2.msra.mxu0 %v10332
    %10334 = vmatprep.subr.mxu0 0.0
    %v10335 = vand.u32 %v301, 4294901760
    %v10336 = vsub.f32 %v301, %v10335
    %10337 = vmatpush2.msra.mxu0 %v10336
    %10338 = vmatprep.subr.mxu0 0.0
    %v10339 = vand.u32 %v300, 4294901760
    %v10340 = vsub.f32 %v300, %v10339
    %10341 = vmatpush2.msra.mxu0 %v10340
    %10342 = vmatprep.subr.mxu0 0.0
    %v10343 = vand.u32 %v299, 4294901760
    %v10344 = vsub.f32 %v299, %v10343
    %10345 = vmatpush2.msra.mxu0 %v10344
    %10346 = vmatprep.subr.mxu0 0.0
    %v10347 = vand.u32 %v298, 4294901760
    %v10348 = vsub.f32 %v298, %v10347
    %10349 = vmatpush2.msra.mxu0 %v10348
    %10350 = vmatprep.subr.mxu0 0.0
    %v10351 = vand.u32 %v297, 4294901760
    %v10352 = vsub.f32 %v297, %v10351
    %10353 = vmatpush2.msra.mxu0 %v10352
    %10354 = vmatprep.subr.mxu0 0.0
    %v10355 = vand.u32 %v296, 4294901760
    %v10356 = vsub.f32 %v296, %v10355
    %10357 = vmatpush2.msra.mxu0 %v10356
    %10358 = vmatprep.subr.mxu0 0.0
    %v10359 = vand.u32 %v295, 4294901760
    %v10360 = vsub.f32 %v295, %v10359
    %10361 = vmatpush2.msra.mxu0 %v10360
    %10362 = vmatprep.subr.mxu0 0.0
    %v10363 = vand.u32 %v294, 4294901760
    %v10364 = vsub.f32 %v294, %v10363
    %10365 = vmatpush2.msra.mxu0 %v10364
    %10366 = vmatprep.subr.mxu0 0.0
    %v10367 = vand.u32 %v293, 4294901760
    %v10368 = vsub.f32 %v293, %v10367
    %10369 = vmatpush2.msra.mxu0 %v10368
    %10370 = vmatprep.subr.mxu0 0.0
    %v10371 = vand.u32 %v292, 4294901760
    %v10372 = vsub.f32 %v292, %v10371
    %10373 = vmatpush2.msra.mxu0 %v10372
    %10374 = vmatprep.subr.mxu0 0.0
    %v10375 = vand.u32 %v291, 4294901760
    %v10376 = vsub.f32 %v291, %v10375
    %10377 = vmatpush2.msra.mxu0 %v10376
    %10378 = vmatprep.subr.mxu0 0.0
    %v10379 = vand.u32 %v290, 4294901760
    %v10380 = vsub.f32 %v290, %v10379
    %10381 = vmatpush2.msra.mxu0 %v10380
    %10382 = vmatprep.subr.mxu0 0.0
    %v10383 = vand.u32 %v289, 4294901760
    %v10384 = vsub.f32 %v289, %v10383
    %10385 = vmatpush2.msra.mxu0 %v10384
    %10386 = vmatprep.subr.mxu0 0.0
    %v10387 = vand.u32 %v288, 4294901760
    %v10388 = vsub.f32 %v288, %v10387
    %10389 = vmatpush2.msra.mxu0 %v10388
    %v10390 = vand.u32 %v7323, 4294901760
    %v10391 = vsub.f32 %v7323, %v10390
    %10392 = vmatprep.mubr.f32.mxu0 %v10391
    %v10393 = vand.u32 %v7321, 4294901760
    %v10394 = vsub.f32 %v7321, %v10393
    %10395 = vmatmul.mubr.f32.gmra.mxu0 %v10394
    %v10396 = vpop.f32.mrf.mxu0
    %v10397 = vadd.f32 %v10259, %v10396
    %v10398 = vpop.f32.mrf.mxu0
    %10399 = vdwg.mxu0
    %10400 = vmatprep.subr.mxu0 0.0
    %v10401 = vand.u32 %v287, 4294901760
    %10402 = vmatpush1.msra.mxu0 %v10401
    %10403 = vmatprep.subr.mxu0 0.0
    %v10404 = vand.u32 %v286, 4294901760
    %10405 = vmatpush1.msra.mxu0 %v10404
    %10406 = vmatprep.subr.mxu0 0.0
    %v10407 = vand.u32 %v285, 4294901760
    %10408 = vmatpush1.msra.mxu0 %v10407
    %10409 = vmatprep.subr.mxu0 0.0
    %v10410 = vand.u32 %v284, 4294901760
    %10411 = vmatpush1.msra.mxu0 %v10410
    %10412 = vmatprep.subr.mxu0 0.0
    %v10413 = vand.u32 %v283, 4294901760
    %10414 = vmatpush1.msra.mxu0 %v10413
    %10415 = vmatprep.subr.mxu0 0.0
    %v10416 = vand.u32 %v282, 4294901760
    %10417 = vmatpush1.msra.mxu0 %v10416
    %10418 = vmatprep.subr.mxu0 0.0
    %v10419 = vand.u32 %v281, 4294901760
    %10420 = vmatpush1.msra.mxu0 %v10419
    %10421 = vmatprep.subr.mxu0 0.0
    %v10422 = vand.u32 %v280, 4294901760
    %10423 = vmatpush1.msra.mxu0 %v10422
    %10424 = vmatprep.subr.mxu0 0.0
    %v10425 = vand.u32 %v279, 4294901760
    %10426 = vmatpush1.msra.mxu0 %v10425
    %10427 = vmatprep.subr.mxu0 0.0
    %v10428 = vand.u32 %v278, 4294901760
    %10429 = vmatpush1.msra.mxu0 %v10428
    %10430 = vmatprep.subr.mxu0 0.0
    %v10431 = vand.u32 %v277, 4294901760
    %10432 = vmatpush1.msra.mxu0 %v10431
    %10433 = vmatprep.subr.mxu0 0.0
    %v10434 = vand.u32 %v276, 4294901760
    %10435 = vmatpush1.msra.mxu0 %v10434
    %10436 = vmatprep.subr.mxu0 0.0
    %v10437 = vand.u32 %v275, 4294901760
    %10438 = vmatpush1.msra.mxu0 %v10437
    %10439 = vmatprep.subr.mxu0 0.0
    %v10440 = vand.u32 %v274, 4294901760
    %10441 = vmatpush1.msra.mxu0 %v10440
    %10442 = vmatprep.subr.mxu0 0.0
    %v10443 = vand.u32 %v273, 4294901760
    %10444 = vmatpush1.msra.mxu0 %v10443
    %10445 = vmatprep.subr.mxu0 0.0
    %v10446 = vand.u32 %v272, 4294901760
    %10447 = vmatpush1.msra.mxu0 %v10446
    %10448 = vmatprep.subr.mxu0 0.0
    %v10449 = vand.u32 %v303, 4294901760
    %10450 = vmatpush2.msra.mxu0 %v10449
    %10451 = vmatprep.subr.mxu0 0.0
    %v10452 = vand.u32 %v302, 4294901760
    %10453 = vmatpush2.msra.mxu0 %v10452
    %10454 = vmatprep.subr.mxu0 0.0
    %v10455 = vand.u32 %v301, 4294901760
    %10456 = vmatpush2.msra.mxu0 %v10455
    %10457 = vmatprep.subr.mxu0 0.0
    %v10458 = vand.u32 %v300, 4294901760
    %10459 = vmatpush2.msra.mxu0 %v10458
    %10460 = vmatprep.subr.mxu0 0.0
    %v10461 = vand.u32 %v299, 4294901760
    %10462 = vmatpush2.msra.mxu0 %v10461
    %10463 = vmatprep.subr.mxu0 0.0
    %v10464 = vand.u32 %v298, 4294901760
    %10465 = vmatpush2.msra.mxu0 %v10464
    %10466 = vmatprep.subr.mxu0 0.0
    %v10467 = vand.u32 %v297, 4294901760
    %10468 = vmatpush2.msra.mxu0 %v10467
    %10469 = vmatprep.subr.mxu0 0.0
    %v10470 = vand.u32 %v296, 4294901760
    %10471 = vmatpush2.msra.mxu0 %v10470
    %10472 = vmatprep.subr.mxu0 0.0
    %v10473 = vand.u32 %v295, 4294901760
    %10474 = vmatpush2.msra.mxu0 %v10473
    %10475 = vmatprep.subr.mxu0 0.0
    %v10476 = vand.u32 %v294, 4294901760
    %10477 = vmatpush2.msra.mxu0 %v10476
    %10478 = vmatprep.subr.mxu0 0.0
    %v10479 = vand.u32 %v293, 4294901760
    %10480 = vmatpush2.msra.mxu0 %v10479
    %10481 = vmatprep.subr.mxu0 0.0
    %v10482 = vand.u32 %v292, 4294901760
    %10483 = vmatpush2.msra.mxu0 %v10482
    %10484 = vmatprep.subr.mxu0 0.0
    %v10485 = vand.u32 %v291, 4294901760
    %10486 = vmatpush2.msra.mxu0 %v10485
    %10487 = vmatprep.subr.mxu0 0.0
    %v10488 = vand.u32 %v290, 4294901760
    %10489 = vmatpush2.msra.mxu0 %v10488
    %10490 = vmatprep.subr.mxu0 0.0
    %v10491 = vand.u32 %v289, 4294901760
    %10492 = vmatpush2.msra.mxu0 %v10491
    %10493 = vmatprep.subr.mxu0 0.0
    %v10494 = vand.u32 %v288, 4294901760
    %10495 = vmatpush2.msra.mxu0 %v10494
    %v10496 = vand.u32 %v7323, 4294901760
    %v10497 = vsub.f32 %v7323, %v10496
    %v10498 = vand.u32 %v10497, 4294901760
    %10499 = vmatprep.mubr.f32.mxu0 %v10498
    %v10500 = vand.u32 %v7321, 4294901760
    %v10501 = vsub.f32 %v7321, %v10500
    %v10502 = vand.u32 %v10501, 4294901760
    %10503 = vmatmul.mubr.f32.gmra.mxu0 %v10502
    %v10504 = vpop.f32.mrf.mxu0
    %v10505 = vadd.f32 %v10397, %v10504
    %v10506 = vpop.f32.mrf.mxu0
    %10507 = vdwg.mxu0
    %10508 = vmatprep.subr.mxu0 0.0
    %v10509 = vand.u32 %v287, 4294901760
    %v10510 = vsub.f32 %v287, %v10509
    %v10511 = vand.u32 %v10510, 4294901760
    %10512 = vmatpush1.msra.mxu0 %v10511
    %10513 = vmatprep.subr.mxu0 0.0
    %v10514 = vand.u32 %v286, 4294901760
    %v10515 = vsub.f32 %v286, %v10514
    %v10516 = vand.u32 %v10515, 4294901760
    %10517 = vmatpush1.msra.mxu0 %v10516
    %10518 = vmatprep.subr.mxu0 0.0
    %v10519 = vand.u32 %v285, 4294901760
    %v10520 = vsub.f32 %v285, %v10519
    %v10521 = vand.u32 %v10520, 4294901760
    %10522 = vmatpush1.msra.mxu0 %v10521
    %10523 = vmatprep.subr.mxu0 0.0
    %v10524 = vand.u32 %v284, 4294901760
    %v10525 = vsub.f32 %v284, %v10524
    %v10526 = vand.u32 %v10525, 4294901760
    %10527 = vmatpush1.msra.mxu0 %v10526
    %10528 = vmatprep.subr.mxu0 0.0
    %v10529 = vand.u32 %v283, 4294901760
    %v10530 = vsub.f32 %v283, %v10529
    %v10531 = vand.u32 %v10530, 4294901760
    %10532 = vmatpush1.msra.mxu0 %v10531
    %10533 = vmatprep.subr.mxu0 0.0
    %v10534 = vand.u32 %v282, 4294901760
    %v10535 = vsub.f32 %v282, %v10534
    %v10536 = vand.u32 %v10535, 4294901760
    %10537 = vmatpush1.msra.mxu0 %v10536
    %10538 = vmatprep.subr.mxu0 0.0
    %v10539 = vand.u32 %v281, 4294901760
    %v10540 = vsub.f32 %v281, %v10539
    %v10541 = vand.u32 %v10540, 4294901760
    %10542 = vmatpush1.msra.mxu0 %v10541
    %10543 = vmatprep.subr.mxu0 0.0
    %v10544 = vand.u32 %v280, 4294901760
    %v10545 = vsub.f32 %v280, %v10544
    %v10546 = vand.u32 %v10545, 4294901760
    %10547 = vmatpush1.msra.mxu0 %v10546
    %10548 = vmatprep.subr.mxu0 0.0
    %v10549 = vand.u32 %v279, 4294901760
    %v10550 = vsub.f32 %v279, %v10549
    %v10551 = vand.u32 %v10550, 4294901760
    %10552 = vmatpush1.msra.mxu0 %v10551
    %10553 = vmatprep.subr.mxu0 0.0
    %v10554 = vand.u32 %v278, 4294901760
    %v10555 = vsub.f32 %v278, %v10554
    %v10556 = vand.u32 %v10555, 4294901760
    %10557 = vmatpush1.msra.mxu0 %v10556
    %10558 = vmatprep.subr.mxu0 0.0
    %v10559 = vand.u32 %v277, 4294901760
    %v10560 = vsub.f32 %v277, %v10559
    %v10561 = vand.u32 %v10560, 4294901760
    %10562 = vmatpush1.msra.mxu0 %v10561
    %10563 = vmatprep.subr.mxu0 0.0
    %v10564 = vand.u32 %v276, 4294901760
    %v10565 = vsub.f32 %v276, %v10564
    %v10566 = vand.u32 %v10565, 4294901760
    %10567 = vmatpush1.msra.mxu0 %v10566
    %10568 = vmatprep.subr.mxu0 0.0
    %v10569 = vand.u32 %v275, 4294901760
    %v10570 = vsub.f32 %v275, %v10569
    %v10571 = vand.u32 %v10570, 4294901760
    %10572 = vmatpush1.msra.mxu0 %v10571
    %10573 = vmatprep.subr.mxu0 0.0
    %v10574 = vand.u32 %v274, 4294901760
    %v10575 = vsub.f32 %v274, %v10574
    %v10576 = vand.u32 %v10575, 4294901760
    %10577 = vmatpush1.msra.mxu0 %v10576
    %10578 = vmatprep.subr.mxu0 0.0
    %v10579 = vand.u32 %v273, 4294901760
    %v10580 = vsub.f32 %v273, %v10579
    %v10581 = vand.u32 %v10580, 4294901760
    %10582 = vmatpush1.msra.mxu0 %v10581
    %10583 = vmatprep.subr.mxu0 0.0
    %v10584 = vand.u32 %v272, 4294901760
    %v10585 = vsub.f32 %v272, %v10584
    %v10586 = vand.u32 %v10585, 4294901760
    %10587 = vmatpush1.msra.mxu0 %v10586
    %10588 = vmatprep.subr.mxu0 0.0
    %v10589 = vand.u32 %v303, 4294901760
    %v10590 = vsub.f32 %v303, %v10589
    %v10591 = vand.u32 %v10590, 4294901760
    %10592 = vmatpush2.msra.mxu0 %v10591
    %10593 = vmatprep.subr.mxu0 0.0
    %v10594 = vand.u32 %v302, 4294901760
    %v10595 = vsub.f32 %v302, %v10594
    %v10596 = vand.u32 %v10595, 4294901760
    %10597 = vmatpush2.msra.mxu0 %v10596
    %10598 = vmatprep.subr.mxu0 0.0
    %v10599 = vand.u32 %v301, 4294901760
    %v10600 = vsub.f32 %v301, %v10599
    %v10601 = vand.u32 %v10600, 4294901760
    %10602 = vmatpush2.msra.mxu0 %v10601
    %10603 = vmatprep.subr.mxu0 0.0
    %v10604 = vand.u32 %v300, 4294901760
    %v10605 = vsub.f32 %v300, %v10604
    %v10606 = vand.u32 %v10605, 4294901760
    %10607 = vmatpush2.msra.mxu0 %v10606
    %10608 = vmatprep.subr.mxu0 0.0
    %v10609 = vand.u32 %v299, 4294901760
    %v10610 = vsub.f32 %v299, %v10609
    %v10611 = vand.u32 %v10610, 4294901760
    %10612 = vmatpush2.msra.mxu0 %v10611
    %10613 = vmatprep.subr.mxu0 0.0
    %v10614 = vand.u32 %v298, 4294901760
    %v10615 = vsub.f32 %v298, %v10614
    %v10616 = vand.u32 %v10615, 4294901760
    %10617 = vmatpush2.msra.mxu0 %v10616
    %10618 = vmatprep.subr.mxu0 0.0
    %v10619 = vand.u32 %v297, 4294901760
    %v10620 = vsub.f32 %v297, %v10619
    %v10621 = vand.u32 %v10620, 4294901760
    %10622 = vmatpush2.msra.mxu0 %v10621
    %10623 = vmatprep.subr.mxu0 0.0
    %v10624 = vand.u32 %v296, 4294901760
    %v10625 = vsub.f32 %v296, %v10624
    %v10626 = vand.u32 %v10625, 4294901760
    %10627 = vmatpush2.msra.mxu0 %v10626
    %10628 = vmatprep.subr.mxu0 0.0
    %v10629 = vand.u32 %v295, 4294901760
    %v10630 = vsub.f32 %v295, %v10629
    %v10631 = vand.u32 %v10630, 4294901760
    %10632 = vmatpush2.msra.mxu0 %v10631
    %10633 = vmatprep.subr.mxu0 0.0
    %v10634 = vand.u32 %v294, 4294901760
    %v10635 = vsub.f32 %v294, %v10634
    %v10636 = vand.u32 %v10635, 4294901760
    %10637 = vmatpush2.msra.mxu0 %v10636
    %10638 = vmatprep.subr.mxu0 0.0
    %v10639 = vand.u32 %v293, 4294901760
    %v10640 = vsub.f32 %v293, %v10639
    %v10641 = vand.u32 %v10640, 4294901760
    %10642 = vmatpush2.msra.mxu0 %v10641
    %10643 = vmatprep.subr.mxu0 0.0
    %v10644 = vand.u32 %v292, 4294901760
    %v10645 = vsub.f32 %v292, %v10644
    %v10646 = vand.u32 %v10645, 4294901760
    %10647 = vmatpush2.msra.mxu0 %v10646
    %10648 = vmatprep.subr.mxu0 0.0
    %v10649 = vand.u32 %v291, 4294901760
    %v10650 = vsub.f32 %v291, %v10649
    %v10651 = vand.u32 %v10650, 4294901760
    %10652 = vmatpush2.msra.mxu0 %v10651
    %10653 = vmatprep.subr.mxu0 0.0
    %v10654 = vand.u32 %v290, 4294901760
    %v10655 = vsub.f32 %v290, %v10654
    %v10656 = vand.u32 %v10655, 4294901760
    %10657 = vmatpush2.msra.mxu0 %v10656
    %10658 = vmatprep.subr.mxu0 0.0
    %v10659 = vand.u32 %v289, 4294901760
    %v10660 = vsub.f32 %v289, %v10659
    %v10661 = vand.u32 %v10660, 4294901760
    %10662 = vmatpush2.msra.mxu0 %v10661
    %10663 = vmatprep.subr.mxu0 0.0
    %v10664 = vand.u32 %v288, 4294901760
    %v10665 = vsub.f32 %v288, %v10664
    %v10666 = vand.u32 %v10665, 4294901760
    %10667 = vmatpush2.msra.mxu0 %v10666
    %v10668 = vand.u32 %v7323, 4294901760
    %10669 = vmatprep.mubr.f32.mxu0 %v10668
    %v10670 = vand.u32 %v7321, 4294901760
    %10671 = vmatmul.mubr.f32.gmra.mxu0 %v10670
    %v10672 = vpop.f32.mrf.mxu0
    %v10673 = vadd.f32 %v10505, %v10672
    %v10674 = vpop.f32.mrf.mxu0
    %10675 = vdwg.mxu0
    %10676 = vmatprep.subr.mxu0 0.0
    %v10677 = vand.u32 %v287, 4294901760
    %10678 = vmatpush1.msra.mxu0 %v10677
    %10679 = vmatprep.subr.mxu0 0.0
    %v10680 = vand.u32 %v286, 4294901760
    %10681 = vmatpush1.msra.mxu0 %v10680
    %10682 = vmatprep.subr.mxu0 0.0
    %v10683 = vand.u32 %v285, 4294901760
    %10684 = vmatpush1.msra.mxu0 %v10683
    %10685 = vmatprep.subr.mxu0 0.0
    %v10686 = vand.u32 %v284, 4294901760
    %10687 = vmatpush1.msra.mxu0 %v10686
    %10688 = vmatprep.subr.mxu0 0.0
    %v10689 = vand.u32 %v283, 4294901760
    %10690 = vmatpush1.msra.mxu0 %v10689
    %10691 = vmatprep.subr.mxu0 0.0
    %v10692 = vand.u32 %v282, 4294901760
    %10693 = vmatpush1.msra.mxu0 %v10692
    %10694 = vmatprep.subr.mxu0 0.0
    %v10695 = vand.u32 %v281, 4294901760
    %10696 = vmatpush1.msra.mxu0 %v10695
    %10697 = vmatprep.subr.mxu0 0.0
    %v10698 = vand.u32 %v280, 4294901760
    %10699 = vmatpush1.msra.mxu0 %v10698
    %10700 = vmatprep.subr.mxu0 0.0
    %v10701 = vand.u32 %v279, 4294901760
    %10702 = vmatpush1.msra.mxu0 %v10701
    %10703 = vmatprep.subr.mxu0 0.0
    %v10704 = vand.u32 %v278, 4294901760
    %10705 = vmatpush1.msra.mxu0 %v10704
    %10706 = vmatprep.subr.mxu0 0.0
    %v10707 = vand.u32 %v277, 4294901760
    %10708 = vmatpush1.msra.mxu0 %v10707
    %10709 = vmatprep.subr.mxu0 0.0
    %v10710 = vand.u32 %v276, 4294901760
    %10711 = vmatpush1.msra.mxu0 %v10710
    %10712 = vmatprep.subr.mxu0 0.0
    %v10713 = vand.u32 %v275, 4294901760
    %10714 = vmatpush1.msra.mxu0 %v10713
    %10715 = vmatprep.subr.mxu0 0.0
    %v10716 = vand.u32 %v274, 4294901760
    %10717 = vmatpush1.msra.mxu0 %v10716
    %10718 = vmatprep.subr.mxu0 0.0
    %v10719 = vand.u32 %v273, 4294901760
    %10720 = vmatpush1.msra.mxu0 %v10719
    %10721 = vmatprep.subr.mxu0 0.0
    %v10722 = vand.u32 %v272, 4294901760
    %10723 = vmatpush1.msra.mxu0 %v10722
    %10724 = vmatprep.subr.mxu0 0.0
    %v10725 = vand.u32 %v303, 4294901760
    %10726 = vmatpush2.msra.mxu0 %v10725
    %10727 = vmatprep.subr.mxu0 0.0
    %v10728 = vand.u32 %v302, 4294901760
    %10729 = vmatpush2.msra.mxu0 %v10728
    %10730 = vmatprep.subr.mxu0 0.0
    %v10731 = vand.u32 %v301, 4294901760
    %10732 = vmatpush2.msra.mxu0 %v10731
    %10733 = vmatprep.subr.mxu0 0.0
    %v10734 = vand.u32 %v300, 4294901760
    %10735 = vmatpush2.msra.mxu0 %v10734
    %10736 = vmatprep.subr.mxu0 0.0
    %v10737 = vand.u32 %v299, 4294901760
    %10738 = vmatpush2.msra.mxu0 %v10737
    %10739 = vmatprep.subr.mxu0 0.0
    %v10740 = vand.u32 %v298, 4294901760
    %10741 = vmatpush2.msra.mxu0 %v10740
    %10742 = vmatprep.subr.mxu0 0.0
    %v10743 = vand.u32 %v297, 4294901760
    %10744 = vmatpush2.msra.mxu0 %v10743
    %10745 = vmatprep.subr.mxu0 0.0
    %v10746 = vand.u32 %v296, 4294901760
    %10747 = vmatpush2.msra.mxu0 %v10746
    %10748 = vmatprep.subr.mxu0 0.0
    %v10749 = vand.u32 %v295, 4294901760
    %10750 = vmatpush2.msra.mxu0 %v10749
    %10751 = vmatprep.subr.mxu0 0.0
    %v10752 = vand.u32 %v294, 4294901760
    %10753 = vmatpush2.msra.mxu0 %v10752
    %10754 = vmatprep.subr.mxu0 0.0
    %v10755 = vand.u32 %v293, 4294901760
    %10756 = vmatpush2.msra.mxu0 %v10755
    %10757 = vmatprep.subr.mxu0 0.0
    %v10758 = vand.u32 %v292, 4294901760
    %10759 = vmatpush2.msra.mxu0 %v10758
    %10760 = vmatprep.subr.mxu0 0.0
    %v10761 = vand.u32 %v291, 4294901760
    %10762 = vmatpush2.msra.mxu0 %v10761
    %10763 = vmatprep.subr.mxu0 0.0
    %v10764 = vand.u32 %v290, 4294901760
    %10765 = vmatpush2.msra.mxu0 %v10764
    %10766 = vmatprep.subr.mxu0 0.0
    %v10767 = vand.u32 %v289, 4294901760
    %10768 = vmatpush2.msra.mxu0 %v10767
    %10769 = vmatprep.subr.mxu0 0.0
    %v10770 = vand.u32 %v288, 4294901760
    %10771 = vmatpush2.msra.mxu0 %v10770
    %v10772 = vand.u32 %v7323, 4294901760
    %10773 = vmatprep.mubr.f32.mxu0 %v10772
    %v10774 = vand.u32 %v7321, 4294901760
    %10775 = vmatmul.mubr.f32.gmra.mxu0 %v10774
    %v10776 = vpop.f32.mrf.mxu0
    %v10777 = vadd.f32 %v10673, %v10776
    %v10778 = vpop.f32.mrf.mxu0
    %10779 = vdwg.mxu0
    %v10780 = vrcp.pop %v7285
    %v10781 = vmul.f32 1.0, %v10780
    %v10782 = vmul.f32 %v10777, %v10781
    %v10783 = vmul.f32 %v3793, %v10781
    %v10784 = vlog2.pop %v10783
    %v10785 = vmul.f32 %v10784, 0.6931472
    %v10786 = vadd.f32 %v10782, %v10785
    %v10787 = vsub.f32 %v80, %v141
    %vm10788 = vcmask 517120
    %v10789 = vsel %vm10788, %v10786, 0.0
    %10790 = vadd.xlane.f32.xlu0 %v10789
    %v10791 = vpop.xlane.xlu0 %10790
    %v10792 = vrot.slane %v10791, 4
    %v10793 = vadd.f32 %v10791, %v10792
    %v10794 = vrot.slane %v10793, 2
    %v10795 = vadd.f32 %v10793, %v10794
    %v10796 = vrot.slane %v10795, 1
    %v10797 = vadd.f32 %v10795, %v10796
    %s10798 = vtos %v10797
    %vm10799 = vcmask 1024
    %v10800 = vsel %vm10799, %v10787, 0.0
    %10801 = vadd.xlane.f32.xlu0 %v10800
    %v10802 = vpop.xlane.xlu0 %10801
    %v10803 = vrot.slane %v10802, 4
    %v10804 = vadd.f32 %v10802, %v10803
    %v10805 = vrot.slane %v10804, 2
    %v10806 = vadd.f32 %v10804, %v10805
    %v10807 = vrot.slane %v10806, 1
    %v10808 = vadd.f32 %v10806, %v10807
    %s10809 = vtos %v10808
    %s10810 = smul.f32 %s10809, 64.0
    %s10811 = sadd.f32 %s10798, %s10810
    %v10812 = vstv %s10811
    %10813 = vst [vmem:[#allocation2] sm:$0xff] %v10812
    // Predicated region
    $region14: #{tpu_custom_call.1} parent=1 // pred_check
      _
    $region15: #{tpu_custom_call.1} parent=1 // pred_check_branch
      %10815 = sbr.rel (0) target = $region17
    $region16: #{tpu_custom_call.1} parent=1 // pred_region
      %s10817 = ssub.s32 128, 128
      %10818 = vsyncadd [#allocation3], %s10817
      %s10820 = sshll.u32 [#allocation2], 4
      %s10821 = int_to_ptr.vmem [resolvable:$true] %s10820
      %10823 = dma.vmem_to_hbm [thread:$0]  %s10821, 128, %s3, [#allocation3]
    $region17: #{tpu_custom_call.1} parent=1 // pred_fallthru
      _
    // Predicated region
    $region18: #{tpu_custom_call.1} parent=1 // pred_check
      _
    $region19: #{tpu_custom_call.1} parent=1 // pred_check_branch
      %10825 = sbr.rel (0) target = $region21
    $region20: #{tpu_custom_call.1} parent=1 // pred_region
      %10826 = dma.done [#allocation3], 128
    $region21: #{tpu_custom_call.1} parent=1 // pred_fallthru
      _
    %10827 = vsyncpa [#allocation3], 1

</llo_original>
